<compile_context>
chip_gen: v5e
topology: v5e:2x2
jax: 0.10.0
libtpu: 0.0.40
codegen_flags: <defaults>
</compile_context>

<pallas_src>
import functools

import jax
import jax.numpy as jnp
import numpy as np
from jax import lax
from jax.experimental import pallas as pl
from jax.experimental.pallas import tpu as pltpu


# ----------------------------------------------------------------------------
# Fused Pallas kernel (one batch element per grid step)
# ----------------------------------------------------------------------------
def _visual_block_kernel(x_ref, ws_ref, bs_ref, wt_ref, bt_ref, wl_ref,
                         bl_ref, o_ref, *, co, cin_p, T, Wp, hw_a, lead):
    """x_ref : (1, cin_p, L)        bf16 flat padded frames (stride hw_a)
       ws_ref: (5, 2*co, 5*cin_p)   bf16 spatial weights per dh row, BN folded
       bs_ref: (2*co, 1)            f32 spatial BN bias
       wt_ref: (2*co, 10*co)        bf16 block-diag temporal weights, BN folded
       bt_ref: (2*co, 1)            f32 temporal BN bias
       wl_ref: (co, 2*co)           bf16 [wl, wl] last-conv weight, BN folded
       bl_ref: (co, 1)              f32 last BN bias
       o_ref : (1, co, T*hw_a)      f32 output on the padded frame grid
    """
    n = T * hw_a
    x = x_ref[0]                                        # (cin_p, L) bf16

    # ---- spatial 1x3x3 (zero-embedded into 5x5) + 1x5x5, one branch pair --
    # 5 dh-row-group matmuls (K = 5*cin_p) accumulated in f32; each tap is a
    # plain lane slice of the zero-extended flat buffer (halo/pad lanes are 0).
    acc = None
    for dh in range(5):
        base = lead + (dh - 2) * Wp
        group = jnp.concatenate(
            [x[:, base + dw - 2: base + dw - 2 + n] for dw in range(5)],
            axis=0)                                     # (5*cin_p, n) bf16
        part = jnp.dot(ws_ref[dh], group, preferred_element_type=jnp.float32)
        acc = part if acc is None else acc + part
    z = jnp.maximum(acc + bs_ref[...], 0.0)             # (2*co, n) f32
    zb = z.astype(jnp.bfloat16)

    # ---- temporal (3,1,1) & (5,1,1) fused into one block-diagonal matmul --
    # col = 5 whole-frame shifts of [z3; z5]; every shift is a multiple of
    # hw_a (itself a multiple of 128) -> whole-vreg lane moves, no XLU rotate.
    def tshift(s):                                      # (2*co, n), col t = z[:, t+s]
        if s == 0:
            return zb
        pad = jnp.zeros((2 * co, abs(s) * hw_a), zb.dtype)
        if s > 0:
            return jnp.concatenate([zb[:, s * hw_a:], pad], axis=1)
        return jnp.concatenate([pad, zb[:, :n + s * hw_a]], axis=1)

    col = jnp.concatenate([tshift(s) for s in (-2, -1, 0, 1, 2)], axis=0)
    y = jnp.dot(wt_ref[...], col, preferred_element_type=jnp.float32)
    y = jnp.maximum(y + bt_ref[...], 0.0)               # (2*co, n) f32, [y3; y5]

    # ---- x3 + x5 folded into the 1x1x1 conv via [wl, wl] + BN + ReLU ------
    out = jnp.dot(wl_ref[...], y.astype(jnp.bfloat16),
                  preferred_element_type=jnp.float32)   # (co, n) f32
    o_ref[0] = jnp.maximum(out + bl_ref[...], 0.0)


# ----------------------------------------------------------------------------
# Wrapper: BN folding, bf16 weight packing, layout plumbing, pallas_call
# ----------------------------------------------------------------------------
def _fold_bn(gamma, beta, mean, var, eps=1e-3):
    scale = gamma / jnp.sqrt(var + eps)
    bias = beta - mean * scale
    return scale, bias


def visual_block_forward(x_ncdhw, p):
    N, Cin, T, H, W = x_ncdhw.shape
    Co = p["ws3"].shape[-1]

    Hp, Wp = H + 4, W + 4                      # halo 2 covers both 3x3 and 5x5
    hw = Hp * Wp
    hw_a = ((hw + 127) // 128) * 128           # 128-aligned per-frame stride
    n_out = T * hw_a
    cin_p = ((Cin + 15) // 16) * 16            # bf16 sublane-group alignment
    lead = ((2 * Wp + 2 + 127) // 128) * 128   # zero head/tail for tap shifts
    trail = lead
    L = lead + n_out + trail

    bf16 = jnp.bfloat16

    # ---- fold BN (inference) into weights / per-channel biases ------------
    s3, b3 = _fold_bn(*p["bn_s3"])
    s5, b5 = _fold_bn(*p["bn_s5"])
    w3 = jnp.transpose(p["ws3"] * s3, (3, 0, 1, 2))          # (Co,3,3,Cin)
    w5 = jnp.transpose(p["ws5"] * s5, (3, 0, 1, 2))          # (Co,5,5,Cin)
    w3e = jnp.zeros((Co, 5, 5, Cin), jnp.float32).at[:, 1:4, 1:4, :].set(w3)
    ws = jnp.concatenate([w3e, w5], axis=0)                  # (2Co,5,5,Cin)
    ws = jnp.pad(ws, ((0, 0), (0, 0), (0, 0), (0, cin_p - Cin)))
    ws = jnp.transpose(ws, (1, 0, 2, 3)).reshape(5, 2 * Co, 5 * cin_p)
    ws = ws.astype(bf16)                                     # (5,2Co,5cin_p)
    bs = jnp.concatenate([b3, b5]).reshape(2 * Co, 1)

    t3s, t3b = _fold_bn(*p["bn_t3"])
    t5s, t5b = _fold_bn(*p["bn_t5"])
    wt3 = jnp.transpose(p["wt3"], (2, 0, 1)) * t3s[:, None, None]  # (Co,3,Co)
    wt5 = jnp.transpose(p["wt5"], (2, 0, 1)) * t5s[:, None, None]  # (Co,5,Co)
    Wt = jnp.zeros((2 * Co, 5, 2 * Co), jnp.float32)
    Wt = Wt.at[:Co, 1:4, :Co].set(wt3)        # branch 3: shifts {-1,0,+1}
    Wt = Wt.at[Co:, :, Co:].set(wt5)          # branch 5: shifts {-2..+2}
    Wt = Wt.reshape(2 * Co, 10 * Co).astype(bf16)
    bt = jnp.concatenate([t3b, t5b]).reshape(2 * Co, 1)

    ls, lb = _fold_bn(*p["bn_last"])
    wl = p["wlast"].T * ls[:, None]                          # (Co,Co)
    wl2 = jnp.concatenate([wl, wl], axis=1).astype(bf16)     # (Co,2Co)
    bl = lb.reshape(Co, 1)

    # ---- pack input: halo-2 spatial pad, 128-aligned frame stride, bf16 ---
    xp = jnp.pad(x_ncdhw, ((0, 0), (0, 0), (0, 0), (2, 2), (2, 2)))
    xf = xp.reshape(N, Cin, T, hw)
    xf = jnp.pad(xf, ((0, 0), (0, cin_p - Cin), (0, 0), (0, hw_a - hw)))
    xf = xf.reshape(N, cin_p, n_out)
    xf = jnp.pad(xf, ((0, 0), (0, 0), (lead, trail))).astype(bf16)

    # ---- explicit scoped-VMEM limit from the actual peak (+headroom) ------
    vmem_peak = (2 * (cin_p * L * 2)                      # x block (bf16), 2-buf
                 + 2 * (Co * n_out * 4)                   # out block (f32), 2-buf
                 + 3 * (2 * Co * n_out * 4)               # acc / z / y (f32)
                 + (12 * Co + 5 * cin_p) * n_out * 2      # zb + col + dh group
                 + Co * n_out * 4)                        # last matmul result
    vmem_limit = int(min(max(2 * vmem_peak, 8 * 2**20), 48 * 2**20))

    kernel = functools.partial(_visual_block_kernel, co=Co, cin_p=cin_p, T=T,
                               Wp=Wp, hw_a=hw_a, lead=lead)
    out_flat = pl.pallas_call(
        kernel,
        out_shape=jax.ShapeDtypeStruct((N, Co, n_out), jnp.float32),
        grid=(N,),
        in_specs=[
            pl.BlockSpec((1, cin_p, L), lambda n: (n, 0, 0)),
            pl.BlockSpec((5, 2 * Co, 5 * cin_p), lambda n: (0, 0, 0)),
            pl.BlockSpec((2 * Co, 1), lambda n: (0, 0)),
            pl.BlockSpec((2 * Co, 10 * Co), lambda n: (0, 0)),
            pl.BlockSpec((2 * Co, 1), lambda n: (0, 0)),
            pl.BlockSpec((Co, 2 * Co), lambda n: (0, 0)),
            pl.BlockSpec((Co, 1), lambda n: (0, 0)),
        ],
        out_specs=pl.BlockSpec((1, Co, n_out), lambda n: (n, 0, 0)),
        compiler_params=pltpu.CompilerParams(
            dimension_semantics=("parallel",),
            vmem_limit_bytes=vmem_limit),
    )(xf, ws, bs, Wt, bt, wl2, bl)

    # drop frame-stride padding + spatial halo, restore NCDHW
    out = out_flat.reshape(N, Co, T, hw_a)[:, :, :, :hw]
    out = out.reshape(N, Co, T, Hp, Wp)[:, :, :, 2:2 + H, 2:2 + W]
    return out


# ----------------------------------------------------------------------------
# Deterministic synthetic parameters (shapes from Visual_Block.__init__)
# ----------------------------------------------------------------------------
def init_params(key, cin, co):
    ks = jax.random.split(key, 10)

    def w(k, shape):
        return 0.1 * jax.random.normal(k, shape, jnp.float32)

    def bn(k):
        k1, k2, k3, k4 = jax.random.split(k, 4)
        gamma = 1.0 + 0.1 * jax.random.normal(k1, (co,), jnp.float32)
        beta = 0.1 * jax.random.normal(k2, (co,), jnp.float32)
        mean = 0.1 * jax.random.normal(k3, (co,), jnp.float32)
        var = 1.0 + 0.1 * jnp.abs(jax.random.normal(k4, (co,), jnp.float32))
        return (gamma, beta, mean, var)

    return dict(
        ws3=w(ks[0], (3, 3, cin, co)),      # s_3: (1,3,3) conv, HWIO slice
        wt3=w(ks[1], (3, co, co)),          # t_3: (3,1,1) conv, (dt, ci, co)
        ws5=w(ks[2], (5, 5, cin, co)),      # s_5: (1,5,5) conv
        wt5=w(ks[3], (5, co, co)),          # t_5: (5,1,1) conv
        wlast=w(ks[4], (co, co)),           # last: (1,1,1) conv, (ci, co)
        bn_s3=bn(ks[5]), bn_t3=bn(ks[6]),
        bn_s5=bn(ks[7]), bn_t5=bn(ks[8]),
        bn_last=bn(ks[9]),
    )


# ----------------------------------------------------------------------------
# Pure-JAX reference (lax.conv_general_dilated) for validation
# ----------------------------------------------------------------------------
def ref_forward(x_ncdhw, p, eps=1e-3):
    x = jnp.transpose(x_ncdhw, (0, 2, 3, 4, 1))            # NDHWC
    dn = ("NDHWC", "DHWIO", "NDHWC")

    def conv(xx, ww, pad):
        return lax.conv_general_dilated(xx, ww, (1, 1, 1), pad,
                                        dimension_numbers=dn,
                                        precision=lax.Precision.HIGHEST)

    def bn_relu(y, g, b, m, v):
        return jax.nn.relu(g * (y - m) / jnp.sqrt(v + eps) + b)

    x3 = bn_relu(conv(x, p["ws3"][None], [(0, 0), (1, 1), (1, 1)]), *p["bn_s3"])
    x3 = bn_relu(conv(x3, p["wt3"][:, None, None], [(1, 1), (0, 0), (0, 0)]),
                 *p["bn_t3"])
    x5 = bn_relu(conv(x, p["ws5"][None], [(0, 0), (2, 2), (2, 2)]), *p["bn_s5"])
    x5 = bn_relu(conv(x5, p["wt5"][:, None, None], [(2, 2), (0, 0), (0, 0)]),
                 *p["bn_t5"])
    y = x3 + x5
    y = bn_relu(conv(y, p["wlast"][None, None, None],
                     [(0, 0), (0, 0), (0, 0)]), *p["bn_last"])
    return jnp.transpose(y, (0, 4, 1, 2, 3))


# ----------------------------------------------------------------------------
if __name__ == "__main__":
    key = jax.random.PRNGKey(0)
    kx, kp = jax.random.split(key)

    N, Cin, Co, T, H, W = 2, 4, 8, 8, 16, 16
    x = jax.random.normal(kx, (N, Cin, T, H, W), jnp.float32)
    params = init_params(kp, Cin, Co)

    fwd = jax.jit(visual_block_forward)
    out = jax.block_until_ready(fwd(x, params))
    assert out.shape == (N, Co, T, H, W)

    ref = jax.block_until_ready(ref_forward(x, params))
    # bf16 matmul operands (f32 accumulation) -> loosened tolerance vs f32 ref
    np.testing.assert_allclose(np.asarray(out), np.asarray(ref),
                               rtol=5e-2, atol=5e-2)
    print("KERNEL_OK")
</pallas_src>

<mosaic_0001>
module attributes {stable_mosaic.version = 11 : i64} {
  func.func @_visual_block_kernel(%arg0: i32, %arg1: memref<1x16x4352xbf16, #tpu.memory_space<vmem>>, %arg2: memref<5x16x80xbf16, #tpu.memory_space<vmem>>, %arg3: memref<16x1xf32, #tpu.memory_space<vmem>>, %arg4: memref<16x80xbf16, #tpu.memory_space<vmem>>, %arg5: memref<16x1xf32, #tpu.memory_space<vmem>>, %arg6: memref<8x16xbf16, #tpu.memory_space<vmem>>, %arg7: memref<8x1xf32, #tpu.memory_space<vmem>>, %arg8: memref<1x8x4096xf32, #tpu.memory_space<vmem>>) attributes {dimension_semantics = [#tpu.dimension_semantics<parallel>], iteration_bounds = array<i64: 2>, scalar_prefetch = 0 : i64, scratch_operands = 0 : i64, tpu.core_type = #tpu.core_type<tc>, window_params = [{transform_indices = @transform_0, window_bounds = array<i64: 1, 16, 4352>}, {pipeline_mode = #tpu.pipeline_mode<synchronous>, transform_indices = @transform_1, window_bounds = array<i64: 5, 16, 80>}, {pipeline_mode = #tpu.pipeline_mode<synchronous>, transform_indices = @transform_2, window_bounds = array<i64: 16, 1>}, {pipeline_mode = #tpu.pipeline_mode<synchronous>, transform_indices = @transform_3, window_bounds = array<i64: 16, 80>}, {pipeline_mode = #tpu.pipeline_mode<synchronous>, transform_indices = @transform_4, window_bounds = array<i64: 16, 1>}, {pipeline_mode = #tpu.pipeline_mode<synchronous>, transform_indices = @transform_5, window_bounds = array<i64: 8, 16>}, {pipeline_mode = #tpu.pipeline_mode<synchronous>, transform_indices = @transform_6, window_bounds = array<i64: 8, 1>}, {transform_indices = @transform_7, window_bounds = array<i64: 1, 8, 4096>}]} {
    %c0 = arith.constant 0 : index
    %c0_0 = arith.constant 0 : index
    %c0_1 = arith.constant 0 : index
    %0 = vector.load %arg1[%c0, %c0_0, %c0_1] : memref<1x16x4352xbf16, #tpu.memory_space<vmem>>, vector<1x16x4352xbf16>
    %1 = vector.shape_cast %0 : vector<1x16x4352xbf16> to vector<16x4352xbf16>
    %2 = vector.extract_strided_slice %1 {offsets = [0, 86], sizes = [16, 4096], strides = [1, 1]} : vector<16x4352xbf16> to vector<16x4096xbf16>
    %3 = vector.extract_strided_slice %1 {offsets = [0, 87], sizes = [16, 4096], strides = [1, 1]} : vector<16x4352xbf16> to vector<16x4096xbf16>
    %4 = vector.extract_strided_slice %1 {offsets = [0, 88], sizes = [16, 4096], strides = [1, 1]} : vector<16x4352xbf16> to vector<16x4096xbf16>
    %5 = vector.extract_strided_slice %1 {offsets = [0, 89], sizes = [16, 4096], strides = [1, 1]} : vector<16x4352xbf16> to vector<16x4096xbf16>
    %6 = vector.extract_strided_slice %1 {offsets = [0, 90], sizes = [16, 4096], strides = [1, 1]} : vector<16x4352xbf16> to vector<16x4096xbf16>
    %7 = tpu.concatenate %2, %3, %4, %5, %6 in 0 : vector<16x4096xbf16>, vector<16x4096xbf16>, vector<16x4096xbf16>, vector<16x4096xbf16>, vector<16x4096xbf16> -> vector<80x4096xbf16>
    %c0_2 = arith.constant 0 : index
    %c0_3 = arith.constant 0 : index
    %c0_4 = arith.constant 0 : index
    %8 = vector.load %arg2[%c0_2, %c0_3, %c0_4] : memref<5x16x80xbf16, #tpu.memory_space<vmem>>, vector<1x16x80xbf16>
    %9 = vector.shape_cast %8 : vector<1x16x80xbf16> to vector<16x80xbf16>
    %cst = arith.constant dense<0.000000e+00> : vector<16x4096xf32>
    %10 = tpu.matmul %9, %7, %cst {dimension_numbers = #tpu.dot_dimension_numbers<[1], [0], [0], [1], [0, 0, 1, 1], [], []>} : vector<16x80xbf16>, vector<80x4096xbf16>, vector<16x4096xf32> -> vector<16x4096xf32>
    %11 = vector.extract_strided_slice %1 {offsets = [0, 106], sizes = [16, 4096], strides = [1, 1]} : vector<16x4352xbf16> to vector<16x4096xbf16>
    %12 = vector.extract_strided_slice %1 {offsets = [0, 107], sizes = [16, 4096], strides = [1, 1]} : vector<16x4352xbf16> to vector<16x4096xbf16>
    %13 = vector.extract_strided_slice %1 {offsets = [0, 108], sizes = [16, 4096], strides = [1, 1]} : vector<16x4352xbf16> to vector<16x4096xbf16>
    %14 = vector.extract_strided_slice %1 {offsets = [0, 109], sizes = [16, 4096], strides = [1, 1]} : vector<16x4352xbf16> to vector<16x4096xbf16>
    %15 = vector.extract_strided_slice %1 {offsets = [0, 110], sizes = [16, 4096], strides = [1, 1]} : vector<16x4352xbf16> to vector<16x4096xbf16>
    %16 = tpu.concatenate %11, %12, %13, %14, %15 in 0 : vector<16x4096xbf16>, vector<16x4096xbf16>, vector<16x4096xbf16>, vector<16x4096xbf16>, vector<16x4096xbf16> -> vector<80x4096xbf16>
    %c1 = arith.constant 1 : index
    %c0_5 = arith.constant 0 : index
    %c0_6 = arith.constant 0 : index
    %17 = vector.load %arg2[%c1, %c0_5, %c0_6] : memref<5x16x80xbf16, #tpu.memory_space<vmem>>, vector<1x16x80xbf16>
    %18 = vector.shape_cast %17 : vector<1x16x80xbf16> to vector<16x80xbf16>
    %cst_7 = arith.constant dense<0.000000e+00> : vector<16x4096xf32>
    %19 = tpu.matmul %18, %16, %cst_7 {dimension_numbers = #tpu.dot_dimension_numbers<[1], [0], [0], [1], [0, 0, 1, 1], [], []>} : vector<16x80xbf16>, vector<80x4096xbf16>, vector<16x4096xf32> -> vector<16x4096xf32>
    %20 = arith.addf %10, %19 : vector<16x4096xf32>
    %21 = vector.extract_strided_slice %1 {offsets = [0, 126], sizes = [16, 4096], strides = [1, 1]} : vector<16x4352xbf16> to vector<16x4096xbf16>
    %22 = vector.extract_strided_slice %1 {offsets = [0, 127], sizes = [16, 4096], strides = [1, 1]} : vector<16x4352xbf16> to vector<16x4096xbf16>
    %23 = vector.extract_strided_slice %1 {offsets = [0, 128], sizes = [16, 4096], strides = [1, 1]} : vector<16x4352xbf16> to vector<16x4096xbf16>
    %24 = vector.extract_strided_slice %1 {offsets = [0, 129], sizes = [16, 4096], strides = [1, 1]} : vector<16x4352xbf16> to vector<16x4096xbf16>
    %25 = vector.extract_strided_slice %1 {offsets = [0, 130], sizes = [16, 4096], strides = [1, 1]} : vector<16x4352xbf16> to vector<16x4096xbf16>
    %26 = tpu.concatenate %21, %22, %23, %24, %25 in 0 : vector<16x4096xbf16>, vector<16x4096xbf16>, vector<16x4096xbf16>, vector<16x4096xbf16>, vector<16x4096xbf16> -> vector<80x4096xbf16>
    %c2 = arith.constant 2 : index
    %c0_8 = arith.constant 0 : index
    %c0_9 = arith.constant 0 : index
    %27 = vector.load %arg2[%c2, %c0_8, %c0_9] : memref<5x16x80xbf16, #tpu.memory_space<vmem>>, vector<1x16x80xbf16>
    %28 = vector.shape_cast %27 : vector<1x16x80xbf16> to vector<16x80xbf16>
    %cst_10 = arith.constant dense<0.000000e+00> : vector<16x4096xf32>
    %29 = tpu.matmul %28, %26, %cst_10 {dimension_numbers = #tpu.dot_dimension_numbers<[1], [0], [0], [1], [0, 0, 1, 1], [], []>} : vector<16x80xbf16>, vector<80x4096xbf16>, vector<16x4096xf32> -> vector<16x4096xf32>
    %30 = arith.addf %20, %29 : vector<16x4096xf32>
    %31 = vector.extract_strided_slice %1 {offsets = [0, 146], sizes = [16, 4096], strides = [1, 1]} : vector<16x4352xbf16> to vector<16x4096xbf16>
    %32 = vector.extract_strided_slice %1 {offsets = [0, 147], sizes = [16, 4096], strides = [1, 1]} : vector<16x4352xbf16> to vector<16x4096xbf16>
    %33 = vector.extract_strided_slice %1 {offsets = [0, 148], sizes = [16, 4096], strides = [1, 1]} : vector<16x4352xbf16> to vector<16x4096xbf16>
    %34 = vector.extract_strided_slice %1 {offsets = [0, 149], sizes = [16, 4096], strides = [1, 1]} : vector<16x4352xbf16> to vector<16x4096xbf16>
    %35 = vector.extract_strided_slice %1 {offsets = [0, 150], sizes = [16, 4096], strides = [1, 1]} : vector<16x4352xbf16> to vector<16x4096xbf16>
    %36 = tpu.concatenate %31, %32, %33, %34, %35 in 0 : vector<16x4096xbf16>, vector<16x4096xbf16>, vector<16x4096xbf16>, vector<16x4096xbf16>, vector<16x4096xbf16> -> vector<80x4096xbf16>
    %c3 = arith.constant 3 : index
    %c0_11 = arith.constant 0 : index
    %c0_12 = arith.constant 0 : index
    %37 = vector.load %arg2[%c3, %c0_11, %c0_12] : memref<5x16x80xbf16, #tpu.memory_space<vmem>>, vector<1x16x80xbf16>
    %38 = vector.shape_cast %37 : vector<1x16x80xbf16> to vector<16x80xbf16>
    %cst_13 = arith.constant dense<0.000000e+00> : vector<16x4096xf32>
    %39 = tpu.matmul %38, %36, %cst_13 {dimension_numbers = #tpu.dot_dimension_numbers<[1], [0], [0], [1], [0, 0, 1, 1], [], []>} : vector<16x80xbf16>, vector<80x4096xbf16>, vector<16x4096xf32> -> vector<16x4096xf32>
    %40 = arith.addf %30, %39 : vector<16x4096xf32>
    %41 = vector.extract_strided_slice %1 {offsets = [0, 166], sizes = [16, 4096], strides = [1, 1]} : vector<16x4352xbf16> to vector<16x4096xbf16>
    %42 = vector.extract_strided_slice %1 {offsets = [0, 167], sizes = [16, 4096], strides = [1, 1]} : vector<16x4352xbf16> to vector<16x4096xbf16>
    %43 = vector.extract_strided_slice %1 {offsets = [0, 168], sizes = [16, 4096], strides = [1, 1]} : vector<16x4352xbf16> to vector<16x4096xbf16>
    %44 = vector.extract_strided_slice %1 {offsets = [0, 169], sizes = [16, 4096], strides = [1, 1]} : vector<16x4352xbf16> to vector<16x4096xbf16>
    %45 = vector.extract_strided_slice %1 {offsets = [0, 170], sizes = [16, 4096], strides = [1, 1]} : vector<16x4352xbf16> to vector<16x4096xbf16>
    %46 = tpu.concatenate %41, %42, %43, %44, %45 in 0 : vector<16x4096xbf16>, vector<16x4096xbf16>, vector<16x4096xbf16>, vector<16x4096xbf16>, vector<16x4096xbf16> -> vector<80x4096xbf16>
    %c4 = arith.constant 4 : index
    %c0_14 = arith.constant 0 : index
    %c0_15 = arith.constant 0 : index
    %47 = vector.load %arg2[%c4, %c0_14, %c0_15] : memref<5x16x80xbf16, #tpu.memory_space<vmem>>, vector<1x16x80xbf16>
    %48 = vector.shape_cast %47 : vector<1x16x80xbf16> to vector<16x80xbf16>
    %cst_16 = arith.constant dense<0.000000e+00> : vector<16x4096xf32>
    %49 = tpu.matmul %48, %46, %cst_16 {dimension_numbers = #tpu.dot_dimension_numbers<[1], [0], [0], [1], [0, 0, 1, 1], [], []>} : vector<16x80xbf16>, vector<80x4096xbf16>, vector<16x4096xf32> -> vector<16x4096xf32>
    %50 = arith.addf %40, %49 : vector<16x4096xf32>
    %c0_17 = arith.constant 0 : index
    %c0_18 = arith.constant 0 : index
    %51 = vector.load %arg3[%c0_17, %c0_18] : memref<16x1xf32, #tpu.memory_space<vmem>>, vector<16x1xf32>
    %52 = vector.broadcast %51 : vector<16x1xf32> to vector<16x4096xf32>
    %53 = arith.addf %50, %52 : vector<16x4096xf32>
    %cst_19 = arith.constant 0.000000e+00 : f32
    %54 = vector.broadcast %cst_19 : f32 to vector<16x4096xf32>
    %55 = arith.maximumf %53, %54 : vector<16x4096xf32>
    %56 = arith.truncf %55 : vector<16x4096xf32> to vector<16x4096xbf16>
    %cst_20 = arith.constant 0.000000e+00 : bf16
    %57 = vector.broadcast %cst_20 : bf16 to vector<16x1024xbf16>
    %58 = vector.extract_strided_slice %56 {offsets = [0, 0], sizes = [16, 3072], strides = [1, 1]} : vector<16x4096xbf16> to vector<16x3072xbf16>
    %59 = tpu.concatenate %57, %58 in 1 : vector<16x1024xbf16>, vector<16x3072xbf16> -> vector<16x4096xbf16>
    %cst_21 = arith.constant 0.000000e+00 : bf16
    %60 = vector.broadcast %cst_21 : bf16 to vector<16x512xbf16>
    %61 = vector.extract_strided_slice %56 {offsets = [0, 0], sizes = [16, 3584], strides = [1, 1]} : vector<16x4096xbf16> to vector<16x3584xbf16>
    %62 = tpu.concatenate %60, %61 in 1 : vector<16x512xbf16>, vector<16x3584xbf16> -> vector<16x4096xbf16>
    %cst_22 = arith.constant 0.000000e+00 : bf16
    %63 = vector.broadcast %cst_22 : bf16 to vector<16x512xbf16>
    %64 = vector.extract_strided_slice %56 {offsets = [0, 512], sizes = [16, 3584], strides = [1, 1]} : vector<16x4096xbf16> to vector<16x3584xbf16>
    %65 = tpu.concatenate %64, %63 in 1 : vector<16x3584xbf16>, vector<16x512xbf16> -> vector<16x4096xbf16>
    %cst_23 = arith.constant 0.000000e+00 : bf16
    %66 = vector.broadcast %cst_23 : bf16 to vector<16x1024xbf16>
    %67 = vector.extract_strided_slice %56 {offsets = [0, 1024], sizes = [16, 3072], strides = [1, 1]} : vector<16x4096xbf16> to vector<16x3072xbf16>
    %68 = tpu.concatenate %67, %66 in 1 : vector<16x3072xbf16>, vector<16x1024xbf16> -> vector<16x4096xbf16>
    %69 = tpu.concatenate %59, %62, %56, %65, %68 in 0 : vector<16x4096xbf16>, vector<16x4096xbf16>, vector<16x4096xbf16>, vector<16x4096xbf16>, vector<16x4096xbf16> -> vector<80x4096xbf16>
    %c0_24 = arith.constant 0 : index
    %c0_25 = arith.constant 0 : index
    %70 = vector.load %arg4[%c0_24, %c0_25] : memref<16x80xbf16, #tpu.memory_space<vmem>>, vector<16x80xbf16>
    %cst_26 = arith.constant dense<0.000000e+00> : vector<16x4096xf32>
    %71 = tpu.matmul %70, %69, %cst_26 {dimension_numbers = #tpu.dot_dimension_numbers<[1], [0], [0], [1], [0, 0, 1, 1], [], []>} : vector<16x80xbf16>, vector<80x4096xbf16>, vector<16x4096xf32> -> vector<16x4096xf32>
    %c0_27 = arith.constant 0 : index
    %c0_28 = arith.constant 0 : index
    %72 = vector.load %arg5[%c0_27, %c0_28] : memref<16x1xf32, #tpu.memory_space<vmem>>, vector<16x1xf32>
    %73 = vector.broadcast %72 : vector<16x1xf32> to vector<16x4096xf32>
    %74 = arith.addf %71, %73 : vector<16x4096xf32>
    %cst_29 = arith.constant 0.000000e+00 : f32
    %75 = vector.broadcast %cst_29 : f32 to vector<16x4096xf32>
    %76 = arith.maximumf %74, %75 : vector<16x4096xf32>
    %c0_30 = arith.constant 0 : index
    %c0_31 = arith.constant 0 : index
    %77 = vector.load %arg6[%c0_30, %c0_31] : memref<8x16xbf16, #tpu.memory_space<vmem>>, vector<8x16xbf16>
    %78 = arith.truncf %76 : vector<16x4096xf32> to vector<16x4096xbf16>
    %cst_32 = arith.constant dense<0.000000e+00> : vector<8x4096xf32>
    %79 = tpu.matmul %77, %78, %cst_32 {dimension_numbers = #tpu.dot_dimension_numbers<[1], [0], [0], [1], [0, 0, 1, 1], [], []>} : vector<8x16xbf16>, vector<16x4096xbf16>, vector<8x4096xf32> -> vector<8x4096xf32>
    %c0_33 = arith.constant 0 : index
    %c0_34 = arith.constant 0 : index
    %80 = vector.load %arg7[%c0_33, %c0_34] : memref<8x1xf32, #tpu.memory_space<vmem>>, vector<8x1xf32>
    %81 = vector.broadcast %80 : vector<8x1xf32> to vector<8x4096xf32>
    %82 = arith.addf %79, %81 : vector<8x4096xf32>
    %cst_35 = arith.constant 0.000000e+00 : f32
    %83 = vector.broadcast %cst_35 : f32 to vector<8x4096xf32>
    %84 = arith.maximumf %82, %83 : vector<8x4096xf32>
    %c0_36 = arith.constant 0 : index
    %c0_37 = arith.constant 0 : index
    %c0_38 = arith.constant 0 : index
    %85 = vector.load %arg8[%c0_36, %c0_37, %c0_38] : memref<1x8x4096xf32, #tpu.memory_space<vmem>>, vector<1x8x4096xf32>
    %86 = vector.shape_cast %85 : vector<1x8x4096xf32> to vector<8x4096xf32>
    %87 = vector.shape_cast %84 : vector<8x4096xf32> to vector<1x8x4096xf32>
    tpu.vector_store %arg8[%c0_36, %c0_37, %c0_38], %87 {strides = array<i32>} : memref<1x8x4096xf32, #tpu.memory_space<vmem>>, vector<1x8x4096xf32>,
    return
  }
  func.func @transform_0(%arg0: i32) -> (i32, i32, i32) {
    %c0_i32 = arith.constant 0 : i32
    %c0_i32_0 = arith.constant 0 : i32
    %c0_i32_1 = arith.constant 0 : i32
    return %arg0, %c0_i32, %c0_i32_0 : i32, i32, i32
  }
  func.func @transform_1(%arg0: i32) -> (i32, i32, i32) {
    %c0_i32 = arith.constant 0 : i32
    %c0_i32_0 = arith.constant 0 : i32
    %c0_i32_1 = arith.constant 0 : i32
    %c0_i32_2 = arith.constant 0 : i32
    return %c0_i32, %c0_i32_0, %c0_i32_1 : i32, i32, i32
  }
  func.func @transform_2(%arg0: i32) -> (i32, i32) {
    %c0_i32 = arith.constant 0 : i32
    %c0_i32_0 = arith.constant 0 : i32
    %c0_i32_1 = arith.constant 0 : i32
    return %c0_i32, %c0_i32_0 : i32, i32
  }
  func.func @transform_3(%arg0: i32) -> (i32, i32) {
    %c0_i32 = arith.constant 0 : i32
    %c0_i32_0 = arith.constant 0 : i32
    %c0_i32_1 = arith.constant 0 : i32
    return %c0_i32, %c0_i32_0 : i32, i32
  }
  func.func @transform_4(%arg0: i32) -> (i32, i32) {
    %c0_i32 = arith.constant 0 : i32
    %c0_i32_0 = arith.constant 0 : i32
    %c0_i32_1 = arith.constant 0 : i32
    return %c0_i32, %c0_i32_0 : i32, i32
  }
  func.func @transform_5(%arg0: i32) -> (i32, i32) {
    %c0_i32 = arith.constant 0 : i32
    %c0_i32_0 = arith.constant 0 : i32
    %c0_i32_1 = arith.constant 0 : i32
    return %c0_i32, %c0_i32_0 : i32, i32
  }
  func.func @transform_6(%arg0: i32) -> (i32, i32) {
    %c0_i32 = arith.constant 0 : i32
    %c0_i32_0 = arith.constant 0 : i32
    %c0_i32_1 = arith.constant 0 : i32
    return %c0_i32, %c0_i32_0 : i32, i32
  }
  func.func @transform_7(%arg0: i32) -> (i32, i32, i32) {
    %c0_i32 = arith.constant 0 : i32
    %c0_i32_0 = arith.constant 0 : i32
    %c0_i32_1 = arith.constant 0 : i32
    return %arg0, %c0_i32, %c0_i32_0 : i32, i32, i32
  }
}

</mosaic_0001>

<llo_original>
// kernel: visual_block_forward.1
$region0: #{visual_block_forward.1}
  #allocation0 [shape = 'u32[]', space=smem, size = 0x4, offset = 0x4, fixed_abs, tag = 'smem constant byte address 0x4 - core index']
  #allocation1 [shape = 'u32[72,128]{1,0:T(1,128)}', space=vmem, size = 0x9000, scoped, tag = 'internal scratch']
  %s0 = inlined_call_operand.vmem [shape: bf16[2,16,4352], index: 0, kind: input, shape index: {}]
  %s1 = inlined_call_operand.vmem [shape: bf16[5,16,80], index: 1, kind: input, shape index: {}]
  %s2 = inlined_call_operand.vmem [shape: f32[16,1], index: 2, kind: input, shape index: {}]
  %s3 = inlined_call_operand.vmem [shape: bf16[16,80], index: 3, kind: input, shape index: {}]
  %s4 = inlined_call_operand.vmem [shape: f32[16,1], index: 4, kind: input, shape index: {}]
  %s5 = inlined_call_operand.vmem [shape: bf16[8,16], index: 5, kind: input, shape index: {}]
  %s6 = inlined_call_operand.vmem [shape: f32[8,1], index: 6, kind: input, shape index: {}]
  %s7 = inlined_call_operand.vmem [shape: f32[2,8,4096], index: 7, kind: output, shape index: {}]
  %s8 = sld [smem:[#allocation0]]
  $region61: #{visual_block_forward.1} parent=0
    _
  %s10 = ssub.s32 1, %s8
  %s11 = scalar_select 0, %s10, %s8
  loop: start=0, step=1, limit=4
  $region2: #{visual_block_forward.1} parent=0 // loop_pre_header
    _
  $region3: #{visual_block_forward.1} parent=0 // loop_header
    %s13 = sphi 0, %s17
    %p14 = scmp.ge.s32.totalorder %s13, 4
    %s23 = sphi 0, %s25
    %s26 = sphi 0, %s23
    %s27 = sphi 0, %s26
    %s43 = sphi 0, %s27
    %s47 = sphi 0, %s47
    %s49 = sphi 0, %s47
    %s50 = sphi 0, %s49
    %s64 = sphi 0, %s50
    %s68 = sphi 0, %s68
    %s70 = sphi 0, %s68
    %s71 = sphi 0, %s70
    %s85 = sphi 0, %s71
    %s89 = sphi 0, %s89
    %s91 = sphi 0, %s89
    %s92 = sphi 0, %s91
    %s106 = sphi 0, %s92
    %s110 = sphi 0, %s110
    %s112 = sphi 0, %s110
    %s113 = sphi 0, %s112
    %s127 = sphi 0, %s113
    %s131 = sphi 0, %s131
    %s133 = sphi 0, %s131
    %s134 = sphi 0, %s133
    %s148 = sphi 0, %s134
    %s152 = sphi 0, %s152
    %s154 = sphi 0, %s152
    %s155 = sphi 0, %s154
    %s169 = sphi 0, %s155
    %s175 = sphi 0, %s177
    %s178 = sphi 0, %s175
    %s179 = sphi 0, %s178
    %s195 = sphi 0, %s179
  $region4: #{visual_block_forward.1} parent=0 // loop_header_branch
    %16 = sbr.rel (%p14) target = $region8
  $region5: #{visual_block_forward.1} parent=0 // loop_body
    %s18 = ssub.s32 %s13, 1
    %s19 = ssub.s32 %s13, 2
    %s20 = sadd.s32 %s13, 1
    %s21 = ssub.s32 %s13, %s20
    %p22 = scmp.eq.s32.totalorder %s21, 0
    %s24 = sadd.s32 %s23, 1
    %s25 = scalar_select %p22, %s23, %s24
    %p28 = pneg %p22
    %p29 = scmp.eq.s32.totalorder %s13, 1
    %p30 = por %p28, %p29
    %p31 = scmp.ne.s32.totalorder %s23, %s26
    %p32 = scmp.eq.s32.totalorder %s13, 0
    %p33 = por %p31, %p32
    %p34 = scmp.ne.s32.totalorder %s23, %s26
    %p35 = scmp.eq.s32.totalorder %s18, 1
    %p36 = por %p34, %p35
    %p37 = scmp.ne.s32.totalorder %s26, %s27
    %p38 = scmp.eq.s32.totalorder %s18, 0
    %p39 = por %p37, %p38
    %p40 = scmp.ne.s32.totalorder %s26, %s27
    %p41 = scmp.eq.s32.totalorder %s19, 1
    %p42 = por %p40, %p41
    %p44 = scmp.ne.s32.totalorder %s27, %s43
    %p45 = scmp.eq.s32.totalorder %s19, 0
    %p46 = por %p44, %p45
    %s48 = sadd.s32 %s47, 1
    %p51 = scmp.eq.s32.totalorder %s13, 1
    %p52 = scmp.ne.s32.totalorder %s47, %s49
    %p53 = scmp.eq.s32.totalorder %s13, 0
    %p54 = por %p52, %p53
    %p55 = scmp.ne.s32.totalorder %s47, %s49
    %p56 = scmp.eq.s32.totalorder %s18, 1
    %p57 = por %p55, %p56
    %p58 = scmp.ne.s32.totalorder %s49, %s50
    %p59 = scmp.eq.s32.totalorder %s18, 0
    %p60 = por %p58, %p59
    %p61 = scmp.ne.s32.totalorder %s49, %s50
    %p62 = scmp.eq.s32.totalorder %s19, 1
    %p63 = por %p61, %p62
    %p65 = scmp.ne.s32.totalorder %s50, %s64
    %p66 = scmp.eq.s32.totalorder %s19, 0
    %p67 = por %p65, %p66
    %s69 = sadd.s32 %s68, 1
    %p72 = scmp.eq.s32.totalorder %s13, 1
    %p73 = scmp.ne.s32.totalorder %s68, %s70
    %p74 = scmp.eq.s32.totalorder %s13, 0
    %p75 = por %p73, %p74
    %p76 = scmp.ne.s32.totalorder %s68, %s70
    %p77 = scmp.eq.s32.totalorder %s18, 1
    %p78 = por %p76, %p77
    %p79 = scmp.ne.s32.totalorder %s70, %s71
    %p80 = scmp.eq.s32.totalorder %s18, 0
    %p81 = por %p79, %p80
    %p82 = scmp.ne.s32.totalorder %s70, %s71
    %p83 = scmp.eq.s32.totalorder %s19, 1
    %p84 = por %p82, %p83
    %p86 = scmp.ne.s32.totalorder %s71, %s85
    %p87 = scmp.eq.s32.totalorder %s19, 0
    %p88 = por %p86, %p87
    %s90 = sadd.s32 %s89, 1
    %p93 = scmp.eq.s32.totalorder %s13, 1
    %p94 = scmp.ne.s32.totalorder %s89, %s91
    %p95 = scmp.eq.s32.totalorder %s13, 0
    %p96 = por %p94, %p95
    %p97 = scmp.ne.s32.totalorder %s89, %s91
    %p98 = scmp.eq.s32.totalorder %s18, 1
    %p99 = por %p97, %p98
    %p100 = scmp.ne.s32.totalorder %s91, %s92
    %p101 = scmp.eq.s32.totalorder %s18, 0
    %p102 = por %p100, %p101
    %p103 = scmp.ne.s32.totalorder %s91, %s92
    %p104 = scmp.eq.s32.totalorder %s19, 1
    %p105 = por %p103, %p104
    %p107 = scmp.ne.s32.totalorder %s92, %s106
    %p108 = scmp.eq.s32.totalorder %s19, 0
    %p109 = por %p107, %p108
    %s111 = sadd.s32 %s110, 1
    %p114 = scmp.eq.s32.totalorder %s13, 1
    %p115 = scmp.ne.s32.totalorder %s110, %s112
    %p116 = scmp.eq.s32.totalorder %s13, 0
    %p117 = por %p115, %p116
    %p118 = scmp.ne.s32.totalorder %s110, %s112
    %p119 = scmp.eq.s32.totalorder %s18, 1
    %p120 = por %p118, %p119
    %p121 = scmp.ne.s32.totalorder %s112, %s113
    %p122 = scmp.eq.s32.totalorder %s18, 0
    %p123 = por %p121, %p122
    %p124 = scmp.ne.s32.totalorder %s112, %s113
    %p125 = scmp.eq.s32.totalorder %s19, 1
    %p126 = por %p124, %p125
    %p128 = scmp.ne.s32.totalorder %s113, %s127
    %p129 = scmp.eq.s32.totalorder %s19, 0
    %p130 = por %p128, %p129
    %s132 = sadd.s32 %s131, 1
    %p135 = scmp.eq.s32.totalorder %s13, 1
    %p136 = scmp.ne.s32.totalorder %s131, %s133
    %p137 = scmp.eq.s32.totalorder %s13, 0
    %p138 = por %p136, %p137
    %p139 = scmp.ne.s32.totalorder %s131, %s133
    %p140 = scmp.eq.s32.totalorder %s18, 1
    %p141 = por %p139, %p140
    %p142 = scmp.ne.s32.totalorder %s133, %s134
    %p143 = scmp.eq.s32.totalorder %s18, 0
    %p144 = por %p142, %p143
    %p145 = scmp.ne.s32.totalorder %s133, %s134
    %p146 = scmp.eq.s32.totalorder %s19, 1
    %p147 = por %p145, %p146
    %p149 = scmp.ne.s32.totalorder %s134, %s148
    %p150 = scmp.eq.s32.totalorder %s19, 0
    %p151 = por %p149, %p150
    %s153 = sadd.s32 %s152, 1
    %p156 = scmp.eq.s32.totalorder %s13, 1
    %p157 = scmp.ne.s32.totalorder %s152, %s154
    %p158 = scmp.eq.s32.totalorder %s13, 0
    %p159 = por %p157, %p158
    %p160 = scmp.ne.s32.totalorder %s152, %s154
    %p161 = scmp.eq.s32.totalorder %s18, 1
    %p162 = por %p160, %p161
    %p163 = scmp.ne.s32.totalorder %s154, %s155
    %p164 = scmp.eq.s32.totalorder %s18, 0
    %p165 = por %p163, %p164
    %p166 = scmp.ne.s32.totalorder %s154, %s155
    %p167 = scmp.eq.s32.totalorder %s19, 1
    %p168 = por %p166, %p167
    %p170 = scmp.ne.s32.totalorder %s155, %s169
    %p171 = scmp.eq.s32.totalorder %s19, 0
    %p172 = por %p170, %p171
    %s173 = ssub.s32 %s13, %s20
    %p174 = scmp.eq.s32.totalorder %s173, 0
    %s176 = sadd.s32 %s175, 1
    %s177 = scalar_select %p174, %s175, %s176
    %p180 = pneg %p174
    %p181 = scmp.eq.s32.totalorder %s13, 1
    %p182 = por %p180, %p181
    %p183 = scmp.ne.s32.totalorder %s175, %s178
    %p184 = scmp.eq.s32.totalorder %s13, 0
    %p185 = por %p183, %p184
    %p186 = scmp.ne.s32.totalorder %s175, %s178
    %p187 = scmp.eq.s32.totalorder %s18, 1
    %p188 = por %p186, %p187
    %p189 = scmp.ne.s32.totalorder %s178, %s179
    %p190 = scmp.eq.s32.totalorder %s18, 0
    %p191 = por %p189, %p190
    %p192 = scmp.ne.s32.totalorder %s178, %s179
    %p193 = scmp.eq.s32.totalorder %s19, 1
    %p194 = por %p192, %p193
    %p196 = scmp.ne.s32.totalorder %s179, %s195
    %p197 = scmp.eq.s32.totalorder %s19, 0
    %p198 = por %p196, %p197
    %p199 = scmp.le.s32.totalorder 1, %s13
    %p200 = scmp.lt.s32.totalorder %s13, 3
    %p201 = pnand %p199, %p200
    %p202 = pneg %p201
    // Predicated region
    $region9: #{visual_block_forward.1} parent=5 // pred_check
      _
    $region10: #{visual_block_forward.1} parent=5 // pred_check_branch
      %204 = sbr.rel (%p201) target = $region12
    $region11: #{visual_block_forward.1} parent=5 // pred_region
      %s205 = ssub.s32 %s13, 1
      // Predicated region
      $region13: #{visual_block_forward.1} parent=11 // pred_check
        %p206 = pneg %p60
      $region14: #{visual_block_forward.1} parent=11 // pred_check_branch
        %208 = sbr.rel (%p206) target = $region16
      $region15: #{visual_block_forward.1} parent=11 // pred_region
        _
      $region16: #{visual_block_forward.1} parent=11 // pred_fallthru
        _
      // Predicated region
      $region17: #{visual_block_forward.1} parent=11 // pred_check
        %p209 = pneg %p81
      $region18: #{visual_block_forward.1} parent=11 // pred_check_branch
        %211 = sbr.rel (%p209) target = $region20
      $region19: #{visual_block_forward.1} parent=11 // pred_region
        _
      $region20: #{visual_block_forward.1} parent=11 // pred_fallthru
        _
      // Predicated region
      $region21: #{visual_block_forward.1} parent=11 // pred_check
        %p212 = pneg %p102
      $region22: #{visual_block_forward.1} parent=11 // pred_check_branch
        %214 = sbr.rel (%p212) target = $region24
      $region23: #{visual_block_forward.1} parent=11 // pred_region
        _
      $region24: #{visual_block_forward.1} parent=11 // pred_fallthru
        _
      // Predicated region
      $region25: #{visual_block_forward.1} parent=11 // pred_check
        %p215 = pneg %p123
      $region26: #{visual_block_forward.1} parent=11 // pred_check_branch
        %217 = sbr.rel (%p215) target = $region28
      $region27: #{visual_block_forward.1} parent=11 // pred_region
        _
      $region28: #{visual_block_forward.1} parent=11 // pred_fallthru
        _
      // Predicated region
      $region29: #{visual_block_forward.1} parent=11 // pred_check
        %p218 = pneg %p144
      $region30: #{visual_block_forward.1} parent=11 // pred_check_branch
        %220 = sbr.rel (%p218) target = $region32
      $region31: #{visual_block_forward.1} parent=11 // pred_region
        _
      $region32: #{visual_block_forward.1} parent=11 // pred_fallthru
        _
      // Predicated region
      $region33: #{visual_block_forward.1} parent=11 // pred_check
        %p221 = pneg %p165
      $region34: #{visual_block_forward.1} parent=11 // pred_check_branch
        %223 = sbr.rel (%p221) target = $region36
      $region35: #{visual_block_forward.1} parent=11 // pred_region
        _
      $region36: #{visual_block_forward.1} parent=11 // pred_fallthru
        _
    $region12: #{visual_block_forward.1} parent=5 // pred_fallthru
      _
    %p224 = scmp.lt.s32.totalorder %s13, 2
    // Predicated region
    $region37: #{visual_block_forward.1} parent=5 // pred_check
      %p225 = pneg %p224
    $region38: #{visual_block_forward.1} parent=5 // pred_check_branch
      %227 = sbr.rel (%p225) target = $region40
    $region39: #{visual_block_forward.1} parent=5 // pred_region
      // Predicated region
      $region41: #{visual_block_forward.1} parent=39 // pred_check
        %p228 = pneg %p33
      $region42: #{visual_block_forward.1} parent=39 // pred_check_branch
        %230 = sbr.rel (%p228) target = $region44
      $region43: #{visual_block_forward.1} parent=39 // pred_region
        %p231 = scmp.lt.s32.totalorder %s13, 1
        %s232 = scalar_select %p231, %s13, 1
        %s233 = smul.addr %s232, 68
        %s234 = smul.addr %s233, 4
        %s235 = scalar_lea.vmem %s0, %s234
      $region44: #{visual_block_forward.1} parent=39 // pred_fallthru
        _
    $region40: #{visual_block_forward.1} parent=5 // pred_fallthru
      _
    %p236 = scmp.le.s32.totalorder 1, %s13
    %p237 = scmp.lt.s32.totalorder %s13, 3
    %p238 = pnand %p236, %p237
    %p239 = pneg %p238
    // Predicated region
    $region45: #{visual_block_forward.1} parent=5 // pred_check
      _
    $region46: #{visual_block_forward.1} parent=5 // pred_check_branch
      %241 = sbr.rel (%p238) target = $region48
    $region47: #{visual_block_forward.1} parent=5 // pred_region
      %s242 = ssub.s32 %s13, 1
      %p243 = scmp.lt.s32.totalorder %s18, 1
      %s244 = scalar_select %p243, %s18, 1
      %s245 = smul.addr %s244, 68
      %s246 = smul.addr %s245, 4
      %s247 = scalar_lea.vmem %s0, %s246
      %p248 = pneg %p39
      %p249 = pneg %p36
      %p250 = pneg %p60
      %p251 = pneg %p57
      %p252 = pneg %p81
      %p253 = pneg %p78
      %p254 = pneg %p102
      %p255 = pneg %p99
      %p256 = pneg %p123
      %p257 = pneg %p120
      %p258 = pneg %p144
      %p259 = pneg %p141
      %p260 = pneg %p165
      %p261 = pneg %p162
      %p262 = pneg %p191
      %p263 = pneg %p188
      %p264 = scmp.lt.s32.totalorder %s18, 1
      %s265 = scalar_select %p264, %s18, 1
      %s266 = smul.addr %s265, 32
      %s267 = smul.addr %s266, 8
      %s268 = scalar_lea.vmem %s7, %s267
      %p269 = scmp.lt.s32.totalorder %s18, 1
      %s270 = scalar_select %p269, %s18, 1
      %s271 = smul.addr %s270, 68
      %s272 = smul.addr %s271, 4
      %s273 = scalar_lea.vmem %s0, %s272
      %p274 = scmp.lt.s32.totalorder %s18, 1
      %s275 = scalar_select %p274, %s18, 1
      %s276 = smul.addr %s275, 32
      %s277 = smul.addr %s276, 8
      %s278 = scalar_lea.vmem %s7, %s277
      %v280 = vld [vmem:[%s273] sm:$0xff]
      %v281 = vld [vmem:[%s273 + $0x8] sm:$0xff]
      %v282 = vld [vmem:[%s273 + $0x10] sm:$0xff]
      %v283 = vld [vmem:[%s273 + $0x18] sm:$0xff]
      %v284 = vld [vmem:[%s273 + $0x20] sm:$0xff]
      %v285 = vld [vmem:[%s273 + $0x28] sm:$0xff]
      %v286 = vld [vmem:[%s273 + $0x30] sm:$0xff]
      %v287 = vld [vmem:[%s273 + $0x38] sm:$0xff]
      %v288 = vld [vmem:[%s273 + $0x40] sm:$0xff]
      %v289 = vld [vmem:[%s273 + $0x48] sm:$0xff]
      %v290 = vld [vmem:[%s273 + $0x50] sm:$0xff]
      %v291 = vld [vmem:[%s273 + $0x58] sm:$0xff]
      %v292 = vld [vmem:[%s273 + $0x60] sm:$0xff]
      %v293 = vld [vmem:[%s273 + $0x68] sm:$0xff]
      %v294 = vld [vmem:[%s273 + $0x70] sm:$0xff]
      %v295 = vld [vmem:[%s273 + $0x78] sm:$0xff]
      %v296 = vld [vmem:[%s273 + $0x80] sm:$0xff]
      %v297 = vld [vmem:[%s273 + $0x88] sm:$0xff]
      %v298 = vld [vmem:[%s273 + $0x90] sm:$0xff]
      %v299 = vld [vmem:[%s273 + $0x98] sm:$0xff]
      %v300 = vld [vmem:[%s273 + $0xa0] sm:$0xff]
      %v301 = vld [vmem:[%s273 + $0xa8] sm:$0xff]
      %v302 = vld [vmem:[%s273 + $0xb0] sm:$0xff]
      %v303 = vld [vmem:[%s273 + $0xb8] sm:$0xff]
      %v304 = vld [vmem:[%s273 + $0xc0] sm:$0xff]
      %v305 = vld [vmem:[%s273 + $0xc8] sm:$0xff]
      %v306 = vld [vmem:[%s273 + $0xd0] sm:$0xff]
      %v307 = vld [vmem:[%s273 + $0xd8] sm:$0xff]
      %v308 = vld [vmem:[%s273 + $0xe0] sm:$0xff]
      %v309 = vld [vmem:[%s273 + $0xe8] sm:$0xff]
      %v310 = vld [vmem:[%s273 + $0xf0] sm:$0xff]
      %v311 = vld [vmem:[%s273 + $0xf8] sm:$0xff]
      %v312 = vld [vmem:[%s273 + $0x100] sm:$0xff]
      %v313 = vld [vmem:[%s273 + $0x108] sm:$0xff]
      %v348 = vunpack.c.l.b16 %v280
      %v349 = vunpack.c.h.b16 %v280
      %v350 = vunpack.c.l.b16 %v281
      %v351 = vunpack.c.h.b16 %v281
      %v352 = vunpack.c.l.b16 %v282
      %v353 = vunpack.c.h.b16 %v282
      %v354 = vunpack.c.l.b16 %v283
      %v355 = vunpack.c.h.b16 %v283
      %v356 = vunpack.c.l.b16 %v284
      %v357 = vunpack.c.h.b16 %v284
      %v358 = vunpack.c.l.b16 %v285
      %v359 = vunpack.c.h.b16 %v285
      %v360 = vunpack.c.l.b16 %v286
      %v361 = vunpack.c.h.b16 %v286
      %v362 = vunpack.c.l.b16 %v287
      %v363 = vunpack.c.h.b16 %v287
      %v364 = vunpack.c.l.b16 %v288
      %v365 = vunpack.c.h.b16 %v288
      %v366 = vunpack.c.l.b16 %v289
      %v367 = vunpack.c.h.b16 %v289
      %v368 = vunpack.c.l.b16 %v290
      %v369 = vunpack.c.h.b16 %v290
      %v370 = vunpack.c.l.b16 %v291
      %v371 = vunpack.c.h.b16 %v291
      %v372 = vunpack.c.l.b16 %v292
      %v373 = vunpack.c.h.b16 %v292
      %v374 = vunpack.c.l.b16 %v293
      %v375 = vunpack.c.h.b16 %v293
      %v376 = vunpack.c.l.b16 %v294
      %v377 = vunpack.c.h.b16 %v294
      %v378 = vunpack.c.l.b16 %v295
      %v379 = vunpack.c.h.b16 %v295
      %v380 = vunpack.c.l.b16 %v296
      %v381 = vunpack.c.l.b16 %v297
      %v382 = vunpack.c.h.b16 %v297
      %v383 = vunpack.c.l.b16 %v298
      %v384 = vunpack.c.h.b16 %v298
      %v385 = vunpack.c.l.b16 %v299
      %v386 = vunpack.c.h.b16 %v299
      %v387 = vunpack.c.l.b16 %v300
      %v388 = vunpack.c.h.b16 %v300
      %v389 = vunpack.c.l.b16 %v301
      %v390 = vunpack.c.h.b16 %v301
      %v391 = vunpack.c.l.b16 %v302
      %v392 = vunpack.c.h.b16 %v302
      %v393 = vunpack.c.l.b16 %v303
      %v394 = vunpack.c.h.b16 %v303
      %v395 = vunpack.c.l.b16 %v304
      %v396 = vunpack.c.h.b16 %v304
      %v397 = vunpack.c.l.b16 %v305
      %v398 = vunpack.c.h.b16 %v305
      %v399 = vunpack.c.l.b16 %v306
      %v400 = vunpack.c.h.b16 %v306
      %v401 = vunpack.c.l.b16 %v307
      %v402 = vunpack.c.h.b16 %v307
      %v403 = vunpack.c.l.b16 %v308
      %v404 = vunpack.c.h.b16 %v308
      %v405 = vunpack.c.l.b16 %v309
      %v406 = vunpack.c.h.b16 %v309
      %v407 = vunpack.c.l.b16 %v310
      %v408 = vunpack.c.h.b16 %v310
      %v409 = vunpack.c.l.b16 %v311
      %v410 = vunpack.c.h.b16 %v311
      %v411 = vunpack.c.l.b16 %v312
      %v412 = vunpack.c.h.b16 %v312
      %v413 = vunpack.c.l.b16 %v313
      %v414 = vpack.c.b16 %v381, %v348
      %v415 = vpack.c.b16 %v382, %v349
      %v416 = vpack.c.b16 %v383, %v350
      %v417 = vpack.c.b16 %v384, %v351
      %v418 = vpack.c.b16 %v385, %v352
      %v419 = vpack.c.b16 %v386, %v353
      %v420 = vpack.c.b16 %v387, %v354
      %v421 = vpack.c.b16 %v388, %v355
      %v422 = vpack.c.b16 %v389, %v356
      %v423 = vpack.c.b16 %v390, %v357
      %v424 = vpack.c.b16 %v391, %v358
      %v425 = vpack.c.b16 %v392, %v359
      %v426 = vpack.c.b16 %v393, %v360
      %v427 = vpack.c.b16 %v394, %v361
      %v428 = vpack.c.b16 %v395, %v362
      %v429 = vpack.c.b16 %v396, %v363
      %v430 = vpack.c.b16 %v397, %v364
      %v431 = vpack.c.b16 %v398, %v365
      %v432 = vpack.c.b16 %v399, %v366
      %v433 = vpack.c.b16 %v400, %v367
      %v434 = vpack.c.b16 %v401, %v368
      %v435 = vpack.c.b16 %v402, %v369
      %v436 = vpack.c.b16 %v403, %v370
      %v437 = vpack.c.b16 %v404, %v371
      %v438 = vpack.c.b16 %v405, %v372
      %v439 = vpack.c.b16 %v406, %v373
      %v440 = vpack.c.b16 %v407, %v374
      %v441 = vpack.c.b16 %v408, %v375
      %v442 = vpack.c.b16 %v409, %v376
      %v443 = vpack.c.b16 %v410, %v377
      %v444 = vpack.c.b16 %v411, %v378
      %v445 = vpack.c.b16 %v412, %v379
      %v446 = vpack.c.b16 %v413, %v380
      %447 = vrot.lane.b32.xlu0 %v414, 127
      %v448 = vpop.permute.xlu0 %447
      %449 = vrot.lane.b32.xlu0 %v415, 127
      %v450 = vpop.permute.xlu0 %449
      %451 = vrot.lane.b32.xlu0 %v416, 127
      %v452 = vpop.permute.xlu0 %451
      %453 = vrot.lane.b32.xlu0 %v417, 127
      %v454 = vpop.permute.xlu0 %453
      %455 = vrot.lane.b32.xlu0 %v418, 127
      %v456 = vpop.permute.xlu0 %455
      %457 = vrot.lane.b32.xlu0 %v419, 127
      %v458 = vpop.permute.xlu0 %457
      %459 = vrot.lane.b32.xlu0 %v420, 127
      %v460 = vpop.permute.xlu0 %459
      %461 = vrot.lane.b32.xlu0 %v421, 127
      %v462 = vpop.permute.xlu0 %461
      %463 = vrot.lane.b32.xlu0 %v422, 127
      %v464 = vpop.permute.xlu0 %463
      %465 = vrot.lane.b32.xlu0 %v423, 127
      %v466 = vpop.permute.xlu0 %465
      %467 = vrot.lane.b32.xlu0 %v424, 127
      %v468 = vpop.permute.xlu0 %467
      %469 = vrot.lane.b32.xlu0 %v425, 127
      %v470 = vpop.permute.xlu0 %469
      %471 = vrot.lane.b32.xlu0 %v426, 127
      %v472 = vpop.permute.xlu0 %471
      %473 = vrot.lane.b32.xlu0 %v427, 127
      %v474 = vpop.permute.xlu0 %473
      %475 = vrot.lane.b32.xlu0 %v428, 127
      %v476 = vpop.permute.xlu0 %475
      %477 = vrot.lane.b32.xlu0 %v429, 127
      %v478 = vpop.permute.xlu0 %477
      %479 = vrot.lane.b32.xlu0 %v430, 127
      %v480 = vpop.permute.xlu0 %479
      %481 = vrot.lane.b32.xlu0 %v431, 127
      %v482 = vpop.permute.xlu0 %481
      %483 = vrot.lane.b32.xlu0 %v432, 127
      %v484 = vpop.permute.xlu0 %483
      %485 = vrot.lane.b32.xlu0 %v433, 127
      %v486 = vpop.permute.xlu0 %485
      %487 = vrot.lane.b32.xlu0 %v434, 127
      %v488 = vpop.permute.xlu0 %487
      %489 = vrot.lane.b32.xlu0 %v435, 127
      %v490 = vpop.permute.xlu0 %489
      %491 = vrot.lane.b32.xlu0 %v436, 127
      %v492 = vpop.permute.xlu0 %491
      %493 = vrot.lane.b32.xlu0 %v437, 127
      %v494 = vpop.permute.xlu0 %493
      %495 = vrot.lane.b32.xlu0 %v438, 127
      %v496 = vpop.permute.xlu0 %495
      %497 = vrot.lane.b32.xlu0 %v439, 127
      %v498 = vpop.permute.xlu0 %497
      %499 = vrot.lane.b32.xlu0 %v440, 127
      %v500 = vpop.permute.xlu0 %499
      %501 = vrot.lane.b32.xlu0 %v441, 127
      %v502 = vpop.permute.xlu0 %501
      %503 = vrot.lane.b32.xlu0 %v442, 127
      %v504 = vpop.permute.xlu0 %503
      %505 = vrot.lane.b32.xlu0 %v443, 127
      %v506 = vpop.permute.xlu0 %505
      %507 = vrot.lane.b32.xlu0 %v444, 127
      %v508 = vpop.permute.xlu0 %507
      %509 = vrot.lane.b32.xlu0 %v445, 127
      %v510 = vpop.permute.xlu0 %509
      %511 = vrot.lane.b32.xlu0 %v446, 127
      %v512 = vpop.permute.xlu0 %511
      %vm513 = vcmask 1039360
      %v514 = vsel %vm513, %v448, %v450
      %v515 = vsel %vm513, %v450, %v452
      %v516 = vsel %vm513, %v452, %v454
      %v517 = vsel %vm513, %v454, %v456
      %v518 = vsel %vm513, %v456, %v458
      %v519 = vsel %vm513, %v458, %v460
      %v520 = vsel %vm513, %v460, %v462
      %v521 = vsel %vm513, %v462, %v464
      %v522 = vsel %vm513, %v464, %v466
      %v523 = vsel %vm513, %v466, %v468
      %v524 = vsel %vm513, %v468, %v470
      %v525 = vsel %vm513, %v470, %v472
      %v526 = vsel %vm513, %v472, %v474
      %v527 = vsel %vm513, %v474, %v476
      %v528 = vsel %vm513, %v476, %v478
      %v529 = vsel %vm513, %v478, %v480
      %v530 = vsel %vm513, %v480, %v482
      %v531 = vsel %vm513, %v482, %v484
      %v532 = vsel %vm513, %v484, %v486
      %v533 = vsel %vm513, %v486, %v488
      %v534 = vsel %vm513, %v488, %v490
      %v535 = vsel %vm513, %v490, %v492
      %v536 = vsel %vm513, %v492, %v494
      %v537 = vsel %vm513, %v494, %v496
      %v538 = vsel %vm513, %v496, %v498
      %v539 = vsel %vm513, %v498, %v500
      %v540 = vsel %vm513, %v500, %v502
      %v541 = vsel %vm513, %v502, %v504
      %v542 = vsel %vm513, %v504, %v506
      %v543 = vsel %vm513, %v506, %v508
      %v544 = vsel %vm513, %v508, %v510
      %v545 = vsel %vm513, %v510, %v512
      %546 = vrot.lane.b32.xlu0 %v414, 126
      %v547 = vpop.permute.xlu0 %546
      %548 = vrot.lane.b32.xlu0 %v415, 126
      %v549 = vpop.permute.xlu0 %548
      %550 = vrot.lane.b32.xlu0 %v416, 126
      %v551 = vpop.permute.xlu0 %550
      %552 = vrot.lane.b32.xlu0 %v417, 126
      %v553 = vpop.permute.xlu0 %552
      %554 = vrot.lane.b32.xlu0 %v418, 126
      %v555 = vpop.permute.xlu0 %554
      %556 = vrot.lane.b32.xlu0 %v419, 126
      %v557 = vpop.permute.xlu0 %556
      %558 = vrot.lane.b32.xlu0 %v420, 126
      %v559 = vpop.permute.xlu0 %558
      %560 = vrot.lane.b32.xlu0 %v421, 126
      %v561 = vpop.permute.xlu0 %560
      %562 = vrot.lane.b32.xlu0 %v422, 126
      %v563 = vpop.permute.xlu0 %562
      %564 = vrot.lane.b32.xlu0 %v423, 126
      %v565 = vpop.permute.xlu0 %564
      %566 = vrot.lane.b32.xlu0 %v424, 126
      %v567 = vpop.permute.xlu0 %566
      %568 = vrot.lane.b32.xlu0 %v425, 126
      %v569 = vpop.permute.xlu0 %568
      %570 = vrot.lane.b32.xlu0 %v426, 126
      %v571 = vpop.permute.xlu0 %570
      %572 = vrot.lane.b32.xlu0 %v427, 126
      %v573 = vpop.permute.xlu0 %572
      %574 = vrot.lane.b32.xlu0 %v428, 126
      %v575 = vpop.permute.xlu0 %574
      %576 = vrot.lane.b32.xlu0 %v429, 126
      %v577 = vpop.permute.xlu0 %576
      %578 = vrot.lane.b32.xlu0 %v430, 126
      %v579 = vpop.permute.xlu0 %578
      %580 = vrot.lane.b32.xlu0 %v431, 126
      %v581 = vpop.permute.xlu0 %580
      %582 = vrot.lane.b32.xlu0 %v432, 126
      %v583 = vpop.permute.xlu0 %582
      %584 = vrot.lane.b32.xlu0 %v433, 126
      %v585 = vpop.permute.xlu0 %584
      %586 = vrot.lane.b32.xlu0 %v434, 126
      %v587 = vpop.permute.xlu0 %586
      %588 = vrot.lane.b32.xlu0 %v435, 126
      %v589 = vpop.permute.xlu0 %588
      %590 = vrot.lane.b32.xlu0 %v436, 126
      %v591 = vpop.permute.xlu0 %590
      %592 = vrot.lane.b32.xlu0 %v437, 126
      %v593 = vpop.permute.xlu0 %592
      %594 = vrot.lane.b32.xlu0 %v438, 126
      %v595 = vpop.permute.xlu0 %594
      %596 = vrot.lane.b32.xlu0 %v439, 126
      %v597 = vpop.permute.xlu0 %596
      %598 = vrot.lane.b32.xlu0 %v440, 126
      %v599 = vpop.permute.xlu0 %598
      %600 = vrot.lane.b32.xlu0 %v441, 126
      %v601 = vpop.permute.xlu0 %600
      %602 = vrot.lane.b32.xlu0 %v442, 126
      %v603 = vpop.permute.xlu0 %602
      %604 = vrot.lane.b32.xlu0 %v443, 126
      %v605 = vpop.permute.xlu0 %604
      %606 = vrot.lane.b32.xlu0 %v444, 126
      %v607 = vpop.permute.xlu0 %606
      %608 = vrot.lane.b32.xlu0 %v445, 126
      %v609 = vpop.permute.xlu0 %608
      %610 = vrot.lane.b32.xlu0 %v446, 126
      %v611 = vpop.permute.xlu0 %610
      %vm612 = vcmask 1031168
      %v613 = vsel %vm612, %v547, %v549
      %v614 = vsel %vm612, %v549, %v551
      %v615 = vsel %vm612, %v551, %v553
      %v616 = vsel %vm612, %v553, %v555
      %v617 = vsel %vm612, %v555, %v557
      %v618 = vsel %vm612, %v557, %v559
      %v619 = vsel %vm612, %v559, %v561
      %v620 = vsel %vm612, %v561, %v563
      %v621 = vsel %vm612, %v563, %v565
      %v622 = vsel %vm612, %v565, %v567
      %v623 = vsel %vm612, %v567, %v569
      %v624 = vsel %vm612, %v569, %v571
      %v625 = vsel %vm612, %v571, %v573
      %v626 = vsel %vm612, %v573, %v575
      %v627 = vsel %vm612, %v575, %v577
      %v628 = vsel %vm612, %v577, %v579
      %v629 = vsel %vm612, %v579, %v581
      %v630 = vsel %vm612, %v581, %v583
      %v631 = vsel %vm612, %v583, %v585
      %v632 = vsel %vm612, %v585, %v587
      %v633 = vsel %vm612, %v587, %v589
      %v634 = vsel %vm612, %v589, %v591
      %v635 = vsel %vm612, %v591, %v593
      %v636 = vsel %vm612, %v593, %v595
      %v637 = vsel %vm612, %v595, %v597
      %v638 = vsel %vm612, %v597, %v599
      %v639 = vsel %vm612, %v599, %v601
      %v640 = vsel %vm612, %v601, %v603
      %v641 = vsel %vm612, %v603, %v605
      %v642 = vsel %vm612, %v605, %v607
      %v643 = vsel %vm612, %v607, %v609
      %v644 = vsel %vm612, %v609, %v611
      %645 = vrot.lane.b32.xlu0 %v414, 125
      %v646 = vpop.permute.xlu0 %645
      %647 = vrot.lane.b32.xlu0 %v415, 125
      %v648 = vpop.permute.xlu0 %647
      %649 = vrot.lane.b32.xlu0 %v416, 125
      %v650 = vpop.permute.xlu0 %649
      %651 = vrot.lane.b32.xlu0 %v417, 125
      %v652 = vpop.permute.xlu0 %651
      %653 = vrot.lane.b32.xlu0 %v418, 125
      %v654 = vpop.permute.xlu0 %653
      %655 = vrot.lane.b32.xlu0 %v419, 125
      %v656 = vpop.permute.xlu0 %655
      %657 = vrot.lane.b32.xlu0 %v420, 125
      %v658 = vpop.permute.xlu0 %657
      %659 = vrot.lane.b32.xlu0 %v421, 125
      %v660 = vpop.permute.xlu0 %659
      %661 = vrot.lane.b32.xlu0 %v422, 125
      %v662 = vpop.permute.xlu0 %661
      %663 = vrot.lane.b32.xlu0 %v423, 125
      %v664 = vpop.permute.xlu0 %663
      %665 = vrot.lane.b32.xlu0 %v424, 125
      %v666 = vpop.permute.xlu0 %665
      %667 = vrot.lane.b32.xlu0 %v425, 125
      %v668 = vpop.permute.xlu0 %667
      %669 = vrot.lane.b32.xlu0 %v426, 125
      %v670 = vpop.permute.xlu0 %669
      %671 = vrot.lane.b32.xlu0 %v427, 125
      %v672 = vpop.permute.xlu0 %671
      %673 = vrot.lane.b32.xlu0 %v428, 125
      %v674 = vpop.permute.xlu0 %673
      %675 = vrot.lane.b32.xlu0 %v429, 125
      %v676 = vpop.permute.xlu0 %675
      %677 = vrot.lane.b32.xlu0 %v430, 125
      %v678 = vpop.permute.xlu0 %677
      %679 = vrot.lane.b32.xlu0 %v431, 125
      %v680 = vpop.permute.xlu0 %679
      %681 = vrot.lane.b32.xlu0 %v432, 125
      %v682 = vpop.permute.xlu0 %681
      %683 = vrot.lane.b32.xlu0 %v433, 125
      %v684 = vpop.permute.xlu0 %683
      %685 = vrot.lane.b32.xlu0 %v434, 125
      %v686 = vpop.permute.xlu0 %685
      %687 = vrot.lane.b32.xlu0 %v435, 125
      %v688 = vpop.permute.xlu0 %687
      %689 = vrot.lane.b32.xlu0 %v436, 125
      %v690 = vpop.permute.xlu0 %689
      %691 = vrot.lane.b32.xlu0 %v437, 125
      %v692 = vpop.permute.xlu0 %691
      %693 = vrot.lane.b32.xlu0 %v438, 125
      %v694 = vpop.permute.xlu0 %693
      %695 = vrot.lane.b32.xlu0 %v439, 125
      %v696 = vpop.permute.xlu0 %695
      %697 = vrot.lane.b32.xlu0 %v440, 125
      %v698 = vpop.permute.xlu0 %697
      %699 = vrot.lane.b32.xlu0 %v441, 125
      %v700 = vpop.permute.xlu0 %699
      %701 = vrot.lane.b32.xlu0 %v442, 125
      %v702 = vpop.permute.xlu0 %701
      %703 = vrot.lane.b32.xlu0 %v443, 125
      %v704 = vpop.permute.xlu0 %703
      %705 = vrot.lane.b32.xlu0 %v444, 125
      %v706 = vpop.permute.xlu0 %705
      %707 = vrot.lane.b32.xlu0 %v445, 125
      %v708 = vpop.permute.xlu0 %707
      %709 = vrot.lane.b32.xlu0 %v446, 125
      %v710 = vpop.permute.xlu0 %709
      %vm711 = vcmask 1022976
      %v712 = vsel %vm711, %v646, %v648
      %v713 = vsel %vm711, %v648, %v650
      %v714 = vsel %vm711, %v650, %v652
      %v715 = vsel %vm711, %v652, %v654
      %v716 = vsel %vm711, %v654, %v656
      %v717 = vsel %vm711, %v656, %v658
      %v718 = vsel %vm711, %v658, %v660
      %v719 = vsel %vm711, %v660, %v662
      %v720 = vsel %vm711, %v662, %v664
      %v721 = vsel %vm711, %v664, %v666
      %v722 = vsel %vm711, %v666, %v668
      %v723 = vsel %vm711, %v668, %v670
      %v724 = vsel %vm711, %v670, %v672
      %v725 = vsel %vm711, %v672, %v674
      %v726 = vsel %vm711, %v674, %v676
      %v727 = vsel %vm711, %v676, %v678
      %v728 = vsel %vm711, %v678, %v680
      %v729 = vsel %vm711, %v680, %v682
      %v730 = vsel %vm711, %v682, %v684
      %v731 = vsel %vm711, %v684, %v686
      %v732 = vsel %vm711, %v686, %v688
      %v733 = vsel %vm711, %v688, %v690
      %v734 = vsel %vm711, %v690, %v692
      %v735 = vsel %vm711, %v692, %v694
      %v736 = vsel %vm711, %v694, %v696
      %v737 = vsel %vm711, %v696, %v698
      %v738 = vsel %vm711, %v698, %v700
      %v739 = vsel %vm711, %v700, %v702
      %v740 = vsel %vm711, %v702, %v704
      %v741 = vsel %vm711, %v704, %v706
      %v742 = vsel %vm711, %v706, %v708
      %v743 = vsel %vm711, %v708, %v710
      %744 = vrot.lane.b32.xlu0 %v414, 124
      %v745 = vpop.permute.xlu0 %744
      %746 = vrot.lane.b32.xlu0 %v415, 124
      %v747 = vpop.permute.xlu0 %746
      %748 = vrot.lane.b32.xlu0 %v416, 124
      %v749 = vpop.permute.xlu0 %748
      %750 = vrot.lane.b32.xlu0 %v417, 124
      %v751 = vpop.permute.xlu0 %750
      %752 = vrot.lane.b32.xlu0 %v418, 124
      %v753 = vpop.permute.xlu0 %752
      %754 = vrot.lane.b32.xlu0 %v419, 124
      %v755 = vpop.permute.xlu0 %754
      %756 = vrot.lane.b32.xlu0 %v420, 124
      %v757 = vpop.permute.xlu0 %756
      %758 = vrot.lane.b32.xlu0 %v421, 124
      %v759 = vpop.permute.xlu0 %758
      %760 = vrot.lane.b32.xlu0 %v422, 124
      %v761 = vpop.permute.xlu0 %760
      %762 = vrot.lane.b32.xlu0 %v423, 124
      %v763 = vpop.permute.xlu0 %762
      %764 = vrot.lane.b32.xlu0 %v424, 124
      %v765 = vpop.permute.xlu0 %764
      %766 = vrot.lane.b32.xlu0 %v425, 124
      %v767 = vpop.permute.xlu0 %766
      %768 = vrot.lane.b32.xlu0 %v426, 124
      %v769 = vpop.permute.xlu0 %768
      %770 = vrot.lane.b32.xlu0 %v427, 124
      %v771 = vpop.permute.xlu0 %770
      %772 = vrot.lane.b32.xlu0 %v428, 124
      %v773 = vpop.permute.xlu0 %772
      %774 = vrot.lane.b32.xlu0 %v429, 124
      %v775 = vpop.permute.xlu0 %774
      %776 = vrot.lane.b32.xlu0 %v430, 124
      %v777 = vpop.permute.xlu0 %776
      %778 = vrot.lane.b32.xlu0 %v431, 124
      %v779 = vpop.permute.xlu0 %778
      %780 = vrot.lane.b32.xlu0 %v432, 124
      %v781 = vpop.permute.xlu0 %780
      %782 = vrot.lane.b32.xlu0 %v433, 124
      %v783 = vpop.permute.xlu0 %782
      %784 = vrot.lane.b32.xlu0 %v434, 124
      %v785 = vpop.permute.xlu0 %784
      %786 = vrot.lane.b32.xlu0 %v435, 124
      %v787 = vpop.permute.xlu0 %786
      %788 = vrot.lane.b32.xlu0 %v436, 124
      %v789 = vpop.permute.xlu0 %788
      %790 = vrot.lane.b32.xlu0 %v437, 124
      %v791 = vpop.permute.xlu0 %790
      %792 = vrot.lane.b32.xlu0 %v438, 124
      %v793 = vpop.permute.xlu0 %792
      %794 = vrot.lane.b32.xlu0 %v439, 124
      %v795 = vpop.permute.xlu0 %794
      %796 = vrot.lane.b32.xlu0 %v440, 124
      %v797 = vpop.permute.xlu0 %796
      %798 = vrot.lane.b32.xlu0 %v441, 124
      %v799 = vpop.permute.xlu0 %798
      %800 = vrot.lane.b32.xlu0 %v442, 124
      %v801 = vpop.permute.xlu0 %800
      %802 = vrot.lane.b32.xlu0 %v443, 124
      %v803 = vpop.permute.xlu0 %802
      %804 = vrot.lane.b32.xlu0 %v444, 124
      %v805 = vpop.permute.xlu0 %804
      %806 = vrot.lane.b32.xlu0 %v445, 124
      %v807 = vpop.permute.xlu0 %806
      %808 = vrot.lane.b32.xlu0 %v446, 124
      %v809 = vpop.permute.xlu0 %808
      %vm810 = vcmask 1014784
      %v811 = vsel %vm810, %v745, %v747
      %v812 = vsel %vm810, %v747, %v749
      %v813 = vsel %vm810, %v749, %v751
      %v814 = vsel %vm810, %v751, %v753
      %v815 = vsel %vm810, %v753, %v755
      %v816 = vsel %vm810, %v755, %v757
      %v817 = vsel %vm810, %v757, %v759
      %v818 = vsel %vm810, %v759, %v761
      %v819 = vsel %vm810, %v761, %v763
      %v820 = vsel %vm810, %v763, %v765
      %v821 = vsel %vm810, %v765, %v767
      %v822 = vsel %vm810, %v767, %v769
      %v823 = vsel %vm810, %v769, %v771
      %v824 = vsel %vm810, %v771, %v773
      %v825 = vsel %vm810, %v773, %v775
      %v826 = vsel %vm810, %v775, %v777
      %v827 = vsel %vm810, %v777, %v779
      %v828 = vsel %vm810, %v779, %v781
      %v829 = vsel %vm810, %v781, %v783
      %v830 = vsel %vm810, %v783, %v785
      %v831 = vsel %vm810, %v785, %v787
      %v832 = vsel %vm810, %v787, %v789
      %v833 = vsel %vm810, %v789, %v791
      %v834 = vsel %vm810, %v791, %v793
      %v835 = vsel %vm810, %v793, %v795
      %v836 = vsel %vm810, %v795, %v797
      %v837 = vsel %vm810, %v797, %v799
      %v838 = vsel %vm810, %v799, %v801
      %v839 = vsel %vm810, %v801, %v803
      %v840 = vsel %vm810, %v803, %v805
      %v841 = vsel %vm810, %v805, %v807
      %v842 = vsel %vm810, %v807, %v809
      %v843 = vld [vmem:[%s1] sm:$0xf]
      %v844 = vld [vmem:[%s1 + $0x4] sm:$0xf]
      %s845 = scalar_lea.vmem %s1, 8
      %v846 = vld [vmem:[%s845] sm:$0xf]
      %v847 = vld [vmem:[%s845 + $0x4] sm:$0xf]
      %v850 = vunpack.c.l.b16 %v846
      %v851 = vunpack.c.l.b16 %v847
      %v852 = vpack.c.b16 %v851, %v850
      %853 = vrot.lane.b32.xlu0 %v414, 22
      %v854 = vpop.permute.xlu0 %853
      %855 = vrot.lane.b32.xlu0 %v415, 22
      %v856 = vpop.permute.xlu0 %855
      %857 = vrot.lane.b32.xlu0 %v416, 22
      %v858 = vpop.permute.xlu0 %857
      %859 = vrot.lane.b32.xlu0 %v417, 22
      %v860 = vpop.permute.xlu0 %859
      %861 = vrot.lane.b32.xlu0 %v418, 22
      %v862 = vpop.permute.xlu0 %861
      %863 = vrot.lane.b32.xlu0 %v419, 22
      %v864 = vpop.permute.xlu0 %863
      %865 = vrot.lane.b32.xlu0 %v420, 22
      %v866 = vpop.permute.xlu0 %865
      %867 = vrot.lane.b32.xlu0 %v421, 22
      %v868 = vpop.permute.xlu0 %867
      %869 = vrot.lane.b32.xlu0 %v422, 22
      %v870 = vpop.permute.xlu0 %869
      %871 = vrot.lane.b32.xlu0 %v423, 22
      %v872 = vpop.permute.xlu0 %871
      %873 = vrot.lane.b32.xlu0 %v424, 22
      %v874 = vpop.permute.xlu0 %873
      %875 = vrot.lane.b32.xlu0 %v425, 22
      %v876 = vpop.permute.xlu0 %875
      %877 = vrot.lane.b32.xlu0 %v426, 22
      %v878 = vpop.permute.xlu0 %877
      %879 = vrot.lane.b32.xlu0 %v427, 22
      %v880 = vpop.permute.xlu0 %879
      %881 = vrot.lane.b32.xlu0 %v428, 22
      %v882 = vpop.permute.xlu0 %881
      %883 = vrot.lane.b32.xlu0 %v429, 22
      %v884 = vpop.permute.xlu0 %883
      %885 = vrot.lane.b32.xlu0 %v430, 22
      %v886 = vpop.permute.xlu0 %885
      %887 = vrot.lane.b32.xlu0 %v431, 22
      %v888 = vpop.permute.xlu0 %887
      %889 = vrot.lane.b32.xlu0 %v432, 22
      %v890 = vpop.permute.xlu0 %889
      %891 = vrot.lane.b32.xlu0 %v433, 22
      %v892 = vpop.permute.xlu0 %891
      %893 = vrot.lane.b32.xlu0 %v434, 22
      %v894 = vpop.permute.xlu0 %893
      %895 = vrot.lane.b32.xlu0 %v435, 22
      %v896 = vpop.permute.xlu0 %895
      %897 = vrot.lane.b32.xlu0 %v436, 22
      %v898 = vpop.permute.xlu0 %897
      %899 = vrot.lane.b32.xlu0 %v437, 22
      %v900 = vpop.permute.xlu0 %899
      %901 = vrot.lane.b32.xlu0 %v438, 22
      %v902 = vpop.permute.xlu0 %901
      %903 = vrot.lane.b32.xlu0 %v439, 22
      %v904 = vpop.permute.xlu0 %903
      %905 = vrot.lane.b32.xlu0 %v440, 22
      %v906 = vpop.permute.xlu0 %905
      %907 = vrot.lane.b32.xlu0 %v441, 22
      %v908 = vpop.permute.xlu0 %907
      %909 = vrot.lane.b32.xlu0 %v442, 22
      %v910 = vpop.permute.xlu0 %909
      %911 = vrot.lane.b32.xlu0 %v443, 22
      %v912 = vpop.permute.xlu0 %911
      %913 = vrot.lane.b32.xlu0 %v444, 22
      %v914 = vpop.permute.xlu0 %913
      %915 = vrot.lane.b32.xlu0 %v445, 22
      %v916 = vpop.permute.xlu0 %915
      %917 = vrot.lane.b32.xlu0 %v446, 22
      %v918 = vpop.permute.xlu0 %917
      %919 = vrot.lane.b32.xlu0 %v514, 22
      %v920 = vpop.permute.xlu0 %919
      %921 = vrot.lane.b32.xlu0 %v515, 22
      %v922 = vpop.permute.xlu0 %921
      %923 = vrot.lane.b32.xlu0 %v516, 22
      %v924 = vpop.permute.xlu0 %923
      %925 = vrot.lane.b32.xlu0 %v517, 22
      %v926 = vpop.permute.xlu0 %925
      %927 = vrot.lane.b32.xlu0 %v518, 22
      %v928 = vpop.permute.xlu0 %927
      %929 = vrot.lane.b32.xlu0 %v519, 22
      %v930 = vpop.permute.xlu0 %929
      %931 = vrot.lane.b32.xlu0 %v520, 22
      %v932 = vpop.permute.xlu0 %931
      %933 = vrot.lane.b32.xlu0 %v521, 22
      %v934 = vpop.permute.xlu0 %933
      %935 = vrot.lane.b32.xlu0 %v522, 22
      %v936 = vpop.permute.xlu0 %935
      %937 = vrot.lane.b32.xlu0 %v523, 22
      %v938 = vpop.permute.xlu0 %937
      %939 = vrot.lane.b32.xlu0 %v524, 22
      %v940 = vpop.permute.xlu0 %939
      %941 = vrot.lane.b32.xlu0 %v525, 22
      %v942 = vpop.permute.xlu0 %941
      %943 = vrot.lane.b32.xlu0 %v526, 22
      %v944 = vpop.permute.xlu0 %943
      %945 = vrot.lane.b32.xlu0 %v527, 22
      %v946 = vpop.permute.xlu0 %945
      %947 = vrot.lane.b32.xlu0 %v528, 22
      %v948 = vpop.permute.xlu0 %947
      %949 = vrot.lane.b32.xlu0 %v529, 22
      %v950 = vpop.permute.xlu0 %949
      %951 = vrot.lane.b32.xlu0 %v530, 22
      %v952 = vpop.permute.xlu0 %951
      %953 = vrot.lane.b32.xlu0 %v531, 22
      %v954 = vpop.permute.xlu0 %953
      %955 = vrot.lane.b32.xlu0 %v532, 22
      %v956 = vpop.permute.xlu0 %955
      %957 = vrot.lane.b32.xlu0 %v533, 22
      %v958 = vpop.permute.xlu0 %957
      %959 = vrot.lane.b32.xlu0 %v534, 22
      %v960 = vpop.permute.xlu0 %959
      %961 = vrot.lane.b32.xlu0 %v535, 22
      %v962 = vpop.permute.xlu0 %961
      %963 = vrot.lane.b32.xlu0 %v536, 22
      %v964 = vpop.permute.xlu0 %963
      %965 = vrot.lane.b32.xlu0 %v537, 22
      %v966 = vpop.permute.xlu0 %965
      %967 = vrot.lane.b32.xlu0 %v538, 22
      %v968 = vpop.permute.xlu0 %967
      %969 = vrot.lane.b32.xlu0 %v539, 22
      %v970 = vpop.permute.xlu0 %969
      %971 = vrot.lane.b32.xlu0 %v540, 22
      %v972 = vpop.permute.xlu0 %971
      %973 = vrot.lane.b32.xlu0 %v541, 22
      %v974 = vpop.permute.xlu0 %973
      %975 = vrot.lane.b32.xlu0 %v542, 22
      %v976 = vpop.permute.xlu0 %975
      %977 = vrot.lane.b32.xlu0 %v543, 22
      %v978 = vpop.permute.xlu0 %977
      %979 = vrot.lane.b32.xlu0 %v544, 22
      %v980 = vpop.permute.xlu0 %979
      %981 = vrot.lane.b32.xlu0 %v545, 22
      %v982 = vpop.permute.xlu0 %981
      %983 = vrot.lane.b32.xlu0 %v512, 22
      %v984 = vpop.permute.xlu0 %983
      %985 = vrot.lane.b32.xlu0 %v613, 22
      %v986 = vpop.permute.xlu0 %985
      %987 = vrot.lane.b32.xlu0 %v614, 22
      %v988 = vpop.permute.xlu0 %987
      %989 = vrot.lane.b32.xlu0 %v615, 22
      %v990 = vpop.permute.xlu0 %989
      %991 = vrot.lane.b32.xlu0 %v616, 22
      %v992 = vpop.permute.xlu0 %991
      %993 = vrot.lane.b32.xlu0 %v617, 22
      %v994 = vpop.permute.xlu0 %993
      %995 = vrot.lane.b32.xlu0 %v618, 22
      %v996 = vpop.permute.xlu0 %995
      %997 = vrot.lane.b32.xlu0 %v619, 22
      %v998 = vpop.permute.xlu0 %997
      %999 = vrot.lane.b32.xlu0 %v620, 22
      %v1000 = vpop.permute.xlu0 %999
      %1001 = vrot.lane.b32.xlu0 %v621, 22
      %v1002 = vpop.permute.xlu0 %1001
      %1003 = vrot.lane.b32.xlu0 %v622, 22
      %v1004 = vpop.permute.xlu0 %1003
      %1005 = vrot.lane.b32.xlu0 %v623, 22
      %v1006 = vpop.permute.xlu0 %1005
      %1007 = vrot.lane.b32.xlu0 %v624, 22
      %v1008 = vpop.permute.xlu0 %1007
      %1009 = vrot.lane.b32.xlu0 %v625, 22
      %v1010 = vpop.permute.xlu0 %1009
      %1011 = vrot.lane.b32.xlu0 %v626, 22
      %v1012 = vpop.permute.xlu0 %1011
      %1013 = vrot.lane.b32.xlu0 %v627, 22
      %v1014 = vpop.permute.xlu0 %1013
      %1015 = vrot.lane.b32.xlu0 %v628, 22
      %v1016 = vpop.permute.xlu0 %1015
      %1017 = vrot.lane.b32.xlu0 %v629, 22
      %v1018 = vpop.permute.xlu0 %1017
      %1019 = vrot.lane.b32.xlu0 %v630, 22
      %v1020 = vpop.permute.xlu0 %1019
      %1021 = vrot.lane.b32.xlu0 %v631, 22
      %v1022 = vpop.permute.xlu0 %1021
      %1023 = vrot.lane.b32.xlu0 %v632, 22
      %v1024 = vpop.permute.xlu0 %1023
      %1025 = vrot.lane.b32.xlu0 %v633, 22
      %v1026 = vpop.permute.xlu0 %1025
      %1027 = vrot.lane.b32.xlu0 %v634, 22
      %v1028 = vpop.permute.xlu0 %1027
      %1029 = vrot.lane.b32.xlu0 %v635, 22
      %v1030 = vpop.permute.xlu0 %1029
      %1031 = vrot.lane.b32.xlu0 %v636, 22
      %v1032 = vpop.permute.xlu0 %1031
      %1033 = vrot.lane.b32.xlu0 %v637, 22
      %v1034 = vpop.permute.xlu0 %1033
      %1035 = vrot.lane.b32.xlu0 %v638, 22
      %v1036 = vpop.permute.xlu0 %1035
      %1037 = vrot.lane.b32.xlu0 %v639, 22
      %v1038 = vpop.permute.xlu0 %1037
      %1039 = vrot.lane.b32.xlu0 %v640, 22
      %v1040 = vpop.permute.xlu0 %1039
      %1041 = vrot.lane.b32.xlu0 %v641, 22
      %v1042 = vpop.permute.xlu0 %1041
      %1043 = vrot.lane.b32.xlu0 %v642, 22
      %v1044 = vpop.permute.xlu0 %1043
      %1045 = vrot.lane.b32.xlu0 %v643, 22
      %v1046 = vpop.permute.xlu0 %1045
      %1047 = vrot.lane.b32.xlu0 %v644, 22
      %v1048 = vpop.permute.xlu0 %1047
      %1049 = vrot.lane.b32.xlu0 %v611, 22
      %v1050 = vpop.permute.xlu0 %1049
      %1051 = vrot.lane.b32.xlu0 %v712, 22
      %v1052 = vpop.permute.xlu0 %1051
      %1053 = vrot.lane.b32.xlu0 %v713, 22
      %v1054 = vpop.permute.xlu0 %1053
      %1055 = vrot.lane.b32.xlu0 %v714, 22
      %v1056 = vpop.permute.xlu0 %1055
      %1057 = vrot.lane.b32.xlu0 %v715, 22
      %v1058 = vpop.permute.xlu0 %1057
      %1059 = vrot.lane.b32.xlu0 %v716, 22
      %v1060 = vpop.permute.xlu0 %1059
      %1061 = vrot.lane.b32.xlu0 %v717, 22
      %v1062 = vpop.permute.xlu0 %1061
      %1063 = vrot.lane.b32.xlu0 %v718, 22
      %v1064 = vpop.permute.xlu0 %1063
      %1065 = vrot.lane.b32.xlu0 %v719, 22
      %v1066 = vpop.permute.xlu0 %1065
      %1067 = vrot.lane.b32.xlu0 %v720, 22
      %v1068 = vpop.permute.xlu0 %1067
      %1069 = vrot.lane.b32.xlu0 %v721, 22
      %v1070 = vpop.permute.xlu0 %1069
      %1071 = vrot.lane.b32.xlu0 %v722, 22
      %v1072 = vpop.permute.xlu0 %1071
      %1073 = vrot.lane.b32.xlu0 %v723, 22
      %v1074 = vpop.permute.xlu0 %1073
      %1075 = vrot.lane.b32.xlu0 %v724, 22
      %v1076 = vpop.permute.xlu0 %1075
      %1077 = vrot.lane.b32.xlu0 %v725, 22
      %v1078 = vpop.permute.xlu0 %1077
      %1079 = vrot.lane.b32.xlu0 %v726, 22
      %v1080 = vpop.permute.xlu0 %1079
      %1081 = vrot.lane.b32.xlu0 %v727, 22
      %v1082 = vpop.permute.xlu0 %1081
      %1083 = vrot.lane.b32.xlu0 %v728, 22
      %v1084 = vpop.permute.xlu0 %1083
      %1085 = vrot.lane.b32.xlu0 %v729, 22
      %v1086 = vpop.permute.xlu0 %1085
      %1087 = vrot.lane.b32.xlu0 %v730, 22
      %v1088 = vpop.permute.xlu0 %1087
      %1089 = vrot.lane.b32.xlu0 %v731, 22
      %v1090 = vpop.permute.xlu0 %1089
      %1091 = vrot.lane.b32.xlu0 %v732, 22
      %v1092 = vpop.permute.xlu0 %1091
      %1093 = vrot.lane.b32.xlu0 %v733, 22
      %v1094 = vpop.permute.xlu0 %1093
      %1095 = vrot.lane.b32.xlu0 %v734, 22
      %v1096 = vpop.permute.xlu0 %1095
      %1097 = vrot.lane.b32.xlu0 %v735, 22
      %v1098 = vpop.permute.xlu0 %1097
      %1099 = vrot.lane.b32.xlu0 %v736, 22
      %v1100 = vpop.permute.xlu0 %1099
      %1101 = vrot.lane.b32.xlu0 %v737, 22
      %v1102 = vpop.permute.xlu0 %1101
      %1103 = vrot.lane.b32.xlu0 %v738, 22
      %v1104 = vpop.permute.xlu0 %1103
      %1105 = vrot.lane.b32.xlu0 %v739, 22
      %v1106 = vpop.permute.xlu0 %1105
      %1107 = vrot.lane.b32.xlu0 %v740, 22
      %v1108 = vpop.permute.xlu0 %1107
      %1109 = vrot.lane.b32.xlu0 %v741, 22
      %v1110 = vpop.permute.xlu0 %1109
      %1111 = vrot.lane.b32.xlu0 %v742, 22
      %v1112 = vpop.permute.xlu0 %1111
      %1113 = vrot.lane.b32.xlu0 %v743, 22
      %v1114 = vpop.permute.xlu0 %1113
      %1115 = vrot.lane.b32.xlu0 %v710, 22
      %v1116 = vpop.permute.xlu0 %1115
      %1117 = vrot.lane.b32.xlu0 %v811, 22
      %v1118 = vpop.permute.xlu0 %1117
      %1119 = vrot.lane.b32.xlu0 %v812, 22
      %v1120 = vpop.permute.xlu0 %1119
      %1121 = vrot.lane.b32.xlu0 %v813, 22
      %v1122 = vpop.permute.xlu0 %1121
      %1123 = vrot.lane.b32.xlu0 %v814, 22
      %v1124 = vpop.permute.xlu0 %1123
      %1125 = vrot.lane.b32.xlu0 %v815, 22
      %v1126 = vpop.permute.xlu0 %1125
      %1127 = vrot.lane.b32.xlu0 %v816, 22
      %v1128 = vpop.permute.xlu0 %1127
      %1129 = vrot.lane.b32.xlu0 %v817, 22
      %v1130 = vpop.permute.xlu0 %1129
      %1131 = vrot.lane.b32.xlu0 %v818, 22
      %v1132 = vpop.permute.xlu0 %1131
      %1133 = vrot.lane.b32.xlu0 %v819, 22
      %v1134 = vpop.permute.xlu0 %1133
      %1135 = vrot.lane.b32.xlu0 %v820, 22
      %v1136 = vpop.permute.xlu0 %1135
      %1137 = vrot.lane.b32.xlu0 %v821, 22
      %v1138 = vpop.permute.xlu0 %1137
      %1139 = vrot.lane.b32.xlu0 %v822, 22
      %v1140 = vpop.permute.xlu0 %1139
      %1141 = vrot.lane.b32.xlu0 %v823, 22
      %v1142 = vpop.permute.xlu0 %1141
      %1143 = vrot.lane.b32.xlu0 %v824, 22
      %v1144 = vpop.permute.xlu0 %1143
      %1145 = vrot.lane.b32.xlu0 %v825, 22
      %v1146 = vpop.permute.xlu0 %1145
      %1147 = vrot.lane.b32.xlu0 %v826, 22
      %v1148 = vpop.permute.xlu0 %1147
      %1149 = vrot.lane.b32.xlu0 %v827, 22
      %v1150 = vpop.permute.xlu0 %1149
      %1151 = vrot.lane.b32.xlu0 %v828, 22
      %v1152 = vpop.permute.xlu0 %1151
      %1153 = vrot.lane.b32.xlu0 %v829, 22
      %v1154 = vpop.permute.xlu0 %1153
      %1155 = vrot.lane.b32.xlu0 %v830, 22
      %v1156 = vpop.permute.xlu0 %1155
      %1157 = vrot.lane.b32.xlu0 %v831, 22
      %v1158 = vpop.permute.xlu0 %1157
      %1159 = vrot.lane.b32.xlu0 %v832, 22
      %v1160 = vpop.permute.xlu0 %1159
      %1161 = vrot.lane.b32.xlu0 %v833, 22
      %v1162 = vpop.permute.xlu0 %1161
      %1163 = vrot.lane.b32.xlu0 %v834, 22
      %v1164 = vpop.permute.xlu0 %1163
      %1165 = vrot.lane.b32.xlu0 %v835, 22
      %v1166 = vpop.permute.xlu0 %1165
      %1167 = vrot.lane.b32.xlu0 %v836, 22
      %v1168 = vpop.permute.xlu0 %1167
      %1169 = vrot.lane.b32.xlu0 %v837, 22
      %v1170 = vpop.permute.xlu0 %1169
      %1171 = vrot.lane.b32.xlu0 %v838, 22
      %v1172 = vpop.permute.xlu0 %1171
      %1173 = vrot.lane.b32.xlu0 %v839, 22
      %v1174 = vpop.permute.xlu0 %1173
      %1175 = vrot.lane.b32.xlu0 %v840, 22
      %v1176 = vpop.permute.xlu0 %1175
      %1177 = vrot.lane.b32.xlu0 %v841, 22
      %v1178 = vpop.permute.xlu0 %1177
      %1179 = vrot.lane.b32.xlu0 %v842, 22
      %v1180 = vpop.permute.xlu0 %1179
      %1181 = vrot.lane.b32.xlu0 %v809, 22
      %v1182 = vpop.permute.xlu0 %1181
      %vm1183 = vcmask 179200
      %v1184 = vsel %vm1183, %v854, %v856
      %v1185 = vsel %vm1183, %v856, %v858
      %v1186 = vsel %vm1183, %v858, %v860
      %v1187 = vsel %vm1183, %v860, %v862
      %v1188 = vsel %vm1183, %v862, %v864
      %v1189 = vsel %vm1183, %v864, %v866
      %v1190 = vsel %vm1183, %v866, %v868
      %v1191 = vsel %vm1183, %v868, %v870
      %v1192 = vsel %vm1183, %v870, %v872
      %v1193 = vsel %vm1183, %v872, %v874
      %v1194 = vsel %vm1183, %v874, %v876
      %v1195 = vsel %vm1183, %v876, %v878
      %v1196 = vsel %vm1183, %v878, %v880
      %v1197 = vsel %vm1183, %v880, %v882
      %v1198 = vsel %vm1183, %v882, %v884
      %v1199 = vsel %vm1183, %v884, %v886
      %v1200 = vsel %vm1183, %v886, %v888
      %v1201 = vsel %vm1183, %v888, %v890
      %v1202 = vsel %vm1183, %v890, %v892
      %v1203 = vsel %vm1183, %v892, %v894
      %v1204 = vsel %vm1183, %v894, %v896
      %v1205 = vsel %vm1183, %v896, %v898
      %v1206 = vsel %vm1183, %v898, %v900
      %v1207 = vsel %vm1183, %v900, %v902
      %v1208 = vsel %vm1183, %v902, %v904
      %v1209 = vsel %vm1183, %v904, %v906
      %v1210 = vsel %vm1183, %v906, %v908
      %v1211 = vsel %vm1183, %v908, %v910
      %v1212 = vsel %vm1183, %v910, %v912
      %v1213 = vsel %vm1183, %v912, %v914
      %v1214 = vsel %vm1183, %v914, %v916
      %v1215 = vsel %vm1183, %v916, %v918
      %v1216 = vsel %vm1183, %v920, %v922
      %v1217 = vsel %vm1183, %v922, %v924
      %v1218 = vsel %vm1183, %v924, %v926
      %v1219 = vsel %vm1183, %v926, %v928
      %v1220 = vsel %vm1183, %v928, %v930
      %v1221 = vsel %vm1183, %v930, %v932
      %v1222 = vsel %vm1183, %v932, %v934
      %v1223 = vsel %vm1183, %v934, %v936
      %v1224 = vsel %vm1183, %v936, %v938
      %v1225 = vsel %vm1183, %v938, %v940
      %v1226 = vsel %vm1183, %v940, %v942
      %v1227 = vsel %vm1183, %v942, %v944
      %v1228 = vsel %vm1183, %v944, %v946
      %v1229 = vsel %vm1183, %v946, %v948
      %v1230 = vsel %vm1183, %v948, %v950
      %v1231 = vsel %vm1183, %v950, %v952
      %v1232 = vsel %vm1183, %v952, %v954
      %v1233 = vsel %vm1183, %v954, %v956
      %v1234 = vsel %vm1183, %v956, %v958
      %v1235 = vsel %vm1183, %v958, %v960
      %v1236 = vsel %vm1183, %v960, %v962
      %v1237 = vsel %vm1183, %v962, %v964
      %v1238 = vsel %vm1183, %v964, %v966
      %v1239 = vsel %vm1183, %v966, %v968
      %v1240 = vsel %vm1183, %v968, %v970
      %v1241 = vsel %vm1183, %v970, %v972
      %v1242 = vsel %vm1183, %v972, %v974
      %v1243 = vsel %vm1183, %v974, %v976
      %v1244 = vsel %vm1183, %v976, %v978
      %v1245 = vsel %vm1183, %v978, %v980
      %v1246 = vsel %vm1183, %v980, %v982
      %v1247 = vsel %vm1183, %v982, %v984
      %v1248 = vsel %vm1183, %v986, %v988
      %v1249 = vsel %vm1183, %v988, %v990
      %v1250 = vsel %vm1183, %v990, %v992
      %v1251 = vsel %vm1183, %v992, %v994
      %v1252 = vsel %vm1183, %v994, %v996
      %v1253 = vsel %vm1183, %v996, %v998
      %v1254 = vsel %vm1183, %v998, %v1000
      %v1255 = vsel %vm1183, %v1000, %v1002
      %v1256 = vsel %vm1183, %v1002, %v1004
      %v1257 = vsel %vm1183, %v1004, %v1006
      %v1258 = vsel %vm1183, %v1006, %v1008
      %v1259 = vsel %vm1183, %v1008, %v1010
      %v1260 = vsel %vm1183, %v1010, %v1012
      %v1261 = vsel %vm1183, %v1012, %v1014
      %v1262 = vsel %vm1183, %v1014, %v1016
      %v1263 = vsel %vm1183, %v1016, %v1018
      %v1264 = vsel %vm1183, %v1018, %v1020
      %v1265 = vsel %vm1183, %v1020, %v1022
      %v1266 = vsel %vm1183, %v1022, %v1024
      %v1267 = vsel %vm1183, %v1024, %v1026
      %v1268 = vsel %vm1183, %v1026, %v1028
      %v1269 = vsel %vm1183, %v1028, %v1030
      %v1270 = vsel %vm1183, %v1030, %v1032
      %v1271 = vsel %vm1183, %v1032, %v1034
      %v1272 = vsel %vm1183, %v1034, %v1036
      %v1273 = vsel %vm1183, %v1036, %v1038
      %v1274 = vsel %vm1183, %v1038, %v1040
      %v1275 = vsel %vm1183, %v1040, %v1042
      %v1276 = vsel %vm1183, %v1042, %v1044
      %v1277 = vsel %vm1183, %v1044, %v1046
      %v1278 = vsel %vm1183, %v1046, %v1048
      %v1279 = vsel %vm1183, %v1048, %v1050
      %v1280 = vsel %vm1183, %v1052, %v1054
      %v1281 = vsel %vm1183, %v1054, %v1056
      %v1282 = vsel %vm1183, %v1056, %v1058
      %v1283 = vsel %vm1183, %v1058, %v1060
      %v1284 = vsel %vm1183, %v1060, %v1062
      %v1285 = vsel %vm1183, %v1062, %v1064
      %v1286 = vsel %vm1183, %v1064, %v1066
      %v1287 = vsel %vm1183, %v1066, %v1068
      %v1288 = vsel %vm1183, %v1068, %v1070
      %v1289 = vsel %vm1183, %v1070, %v1072
      %v1290 = vsel %vm1183, %v1072, %v1074
      %v1291 = vsel %vm1183, %v1074, %v1076
      %v1292 = vsel %vm1183, %v1076, %v1078
      %v1293 = vsel %vm1183, %v1078, %v1080
      %v1294 = vsel %vm1183, %v1080, %v1082
      %v1295 = vsel %vm1183, %v1082, %v1084
      %v1296 = vsel %vm1183, %v1084, %v1086
      %v1297 = vsel %vm1183, %v1086, %v1088
      %v1298 = vsel %vm1183, %v1088, %v1090
      %v1299 = vsel %vm1183, %v1090, %v1092
      %v1300 = vsel %vm1183, %v1092, %v1094
      %v1301 = vsel %vm1183, %v1094, %v1096
      %v1302 = vsel %vm1183, %v1096, %v1098
      %v1303 = vsel %vm1183, %v1098, %v1100
      %v1304 = vsel %vm1183, %v1100, %v1102
      %v1305 = vsel %vm1183, %v1102, %v1104
      %v1306 = vsel %vm1183, %v1104, %v1106
      %v1307 = vsel %vm1183, %v1106, %v1108
      %v1308 = vsel %vm1183, %v1108, %v1110
      %v1309 = vsel %vm1183, %v1110, %v1112
      %v1310 = vsel %vm1183, %v1112, %v1114
      %v1311 = vsel %vm1183, %v1114, %v1116
      %v1312 = vsel %vm1183, %v1118, %v1120
      %v1313 = vsel %vm1183, %v1120, %v1122
      %v1314 = vsel %vm1183, %v1122, %v1124
      %v1315 = vsel %vm1183, %v1124, %v1126
      %v1316 = vsel %vm1183, %v1126, %v1128
      %v1317 = vsel %vm1183, %v1128, %v1130
      %v1318 = vsel %vm1183, %v1130, %v1132
      %v1319 = vsel %vm1183, %v1132, %v1134
      %v1320 = vsel %vm1183, %v1134, %v1136
      %v1321 = vsel %vm1183, %v1136, %v1138
      %v1322 = vsel %vm1183, %v1138, %v1140
      %v1323 = vsel %vm1183, %v1140, %v1142
      %v1324 = vsel %vm1183, %v1142, %v1144
      %v1325 = vsel %vm1183, %v1144, %v1146
      %v1326 = vsel %vm1183, %v1146, %v1148
      %v1327 = vsel %vm1183, %v1148, %v1150
      %v1328 = vsel %vm1183, %v1150, %v1152
      %v1329 = vsel %vm1183, %v1152, %v1154
      %v1330 = vsel %vm1183, %v1154, %v1156
      %v1331 = vsel %vm1183, %v1156, %v1158
      %v1332 = vsel %vm1183, %v1158, %v1160
      %v1333 = vsel %vm1183, %v1160, %v1162
      %v1334 = vsel %vm1183, %v1162, %v1164
      %v1335 = vsel %vm1183, %v1164, %v1166
      %v1336 = vsel %vm1183, %v1166, %v1168
      %v1337 = vsel %vm1183, %v1168, %v1170
      %v1338 = vsel %vm1183, %v1170, %v1172
      %v1339 = vsel %vm1183, %v1172, %v1174
      %v1340 = vsel %vm1183, %v1174, %v1176
      %v1341 = vsel %vm1183, %v1176, %v1178
      %v1342 = vsel %vm1183, %v1178, %v1180
      %v1343 = vsel %vm1183, %v1180, %v1182
      %vm1504 = vcmask 654336
      %v1506 = vsel %vm1504, %v852, 0
      %1508 = vmatpush.bf16.msra.mxu0 0
      %1509 = vmatpush.bf16.msra.mxu0 0
      %1510 = vmatpush.bf16.msra.mxu0 0
      %1511 = vmatpush.bf16.msra.mxu0 %v1312
      %1512 = vmatpush.bf16.msra.mxu0 %v1280
      %1513 = vmatpush.bf16.msra.mxu0 %v1248
      %1514 = vmatpush.bf16.msra.mxu0 %v1216
      %1515 = vmatpush.bf16.msra.mxu0 %v1184
      %1516 = vmatmul.bf16.gmra.mxu0 %v1506
      %v1517 = vpop.f32.mrf.mxu0
      %v1518 = vadd.f32 0.0, %v1517
      %v1519 = vpop.f32.mrf.mxu0
      %v1520 = vadd.f32 0.0, %v1519
      %1521 = vdwg.mxu0
      %1522 = vmatpush.bf16.msra.mxu0 0
      %1523 = vmatpush.bf16.msra.mxu0 0
      %1524 = vmatpush.bf16.msra.mxu0 0
      %1525 = vmatpush.bf16.msra.mxu0 %v1313
      %1526 = vmatpush.bf16.msra.mxu0 %v1281
      %1527 = vmatpush.bf16.msra.mxu0 %v1249
      %1528 = vmatpush.bf16.msra.mxu0 %v1217
      %1529 = vmatpush.bf16.msra.mxu0 %v1185
      %1530 = vmatmul.bf16.gmra.mxu0 %v1506
      %v1531 = vpop.f32.mrf.mxu0
      %v1532 = vadd.f32 0.0, %v1531
      %v1533 = vpop.f32.mrf.mxu0
      %v1534 = vadd.f32 0.0, %v1533
      %1535 = vdwg.mxu0
      %1536 = vmatpush.bf16.msra.mxu0 0
      %1537 = vmatpush.bf16.msra.mxu0 0
      %1538 = vmatpush.bf16.msra.mxu0 0
      %1539 = vmatpush.bf16.msra.mxu0 %v1314
      %1540 = vmatpush.bf16.msra.mxu0 %v1282
      %1541 = vmatpush.bf16.msra.mxu0 %v1250
      %1542 = vmatpush.bf16.msra.mxu0 %v1218
      %1543 = vmatpush.bf16.msra.mxu0 %v1186
      %1544 = vmatmul.bf16.gmra.mxu0 %v1506
      %v1545 = vpop.f32.mrf.mxu0
      %v1546 = vadd.f32 0.0, %v1545
      %v1547 = vpop.f32.mrf.mxu0
      %v1548 = vadd.f32 0.0, %v1547
      %1549 = vdwg.mxu0
      %1550 = vmatpush.bf16.msra.mxu0 0
      %1551 = vmatpush.bf16.msra.mxu0 0
      %1552 = vmatpush.bf16.msra.mxu0 0
      %1553 = vmatpush.bf16.msra.mxu0 %v1315
      %1554 = vmatpush.bf16.msra.mxu0 %v1283
      %1555 = vmatpush.bf16.msra.mxu0 %v1251
      %1556 = vmatpush.bf16.msra.mxu0 %v1219
      %1557 = vmatpush.bf16.msra.mxu0 %v1187
      %1558 = vmatmul.bf16.gmra.mxu0 %v1506
      %v1559 = vpop.f32.mrf.mxu0
      %v1560 = vadd.f32 0.0, %v1559
      %v1561 = vpop.f32.mrf.mxu0
      %v1562 = vadd.f32 0.0, %v1561
      %1563 = vdwg.mxu0
      %1564 = vmatpush.bf16.msra.mxu0 0
      %1565 = vmatpush.bf16.msra.mxu0 0
      %1566 = vmatpush.bf16.msra.mxu0 0
      %1567 = vmatpush.bf16.msra.mxu0 %v1316
      %1568 = vmatpush.bf16.msra.mxu0 %v1284
      %1569 = vmatpush.bf16.msra.mxu0 %v1252
      %1570 = vmatpush.bf16.msra.mxu0 %v1220
      %1571 = vmatpush.bf16.msra.mxu0 %v1188
      %1572 = vmatmul.bf16.gmra.mxu0 %v1506
      %v1573 = vpop.f32.mrf.mxu0
      %v1574 = vadd.f32 0.0, %v1573
      %v1575 = vpop.f32.mrf.mxu0
      %v1576 = vadd.f32 0.0, %v1575
      %1577 = vdwg.mxu0
      %1578 = vmatpush.bf16.msra.mxu0 0
      %1579 = vmatpush.bf16.msra.mxu0 0
      %1580 = vmatpush.bf16.msra.mxu0 0
      %1581 = vmatpush.bf16.msra.mxu0 %v1317
      %1582 = vmatpush.bf16.msra.mxu0 %v1285
      %1583 = vmatpush.bf16.msra.mxu0 %v1253
      %1584 = vmatpush.bf16.msra.mxu0 %v1221
      %1585 = vmatpush.bf16.msra.mxu0 %v1189
      %1586 = vmatmul.bf16.gmra.mxu0 %v1506
      %v1587 = vpop.f32.mrf.mxu0
      %v1588 = vadd.f32 0.0, %v1587
      %v1589 = vpop.f32.mrf.mxu0
      %v1590 = vadd.f32 0.0, %v1589
      %1591 = vdwg.mxu0
      %1592 = vmatpush.bf16.msra.mxu0 0
      %1593 = vmatpush.bf16.msra.mxu0 0
      %1594 = vmatpush.bf16.msra.mxu0 0
      %1595 = vmatpush.bf16.msra.mxu0 %v1318
      %1596 = vmatpush.bf16.msra.mxu0 %v1286
      %1597 = vmatpush.bf16.msra.mxu0 %v1254
      %1598 = vmatpush.bf16.msra.mxu0 %v1222
      %1599 = vmatpush.bf16.msra.mxu0 %v1190
      %1600 = vmatmul.bf16.gmra.mxu0 %v1506
      %v1601 = vpop.f32.mrf.mxu0
      %v1602 = vadd.f32 0.0, %v1601
      %v1603 = vpop.f32.mrf.mxu0
      %v1604 = vadd.f32 0.0, %v1603
      %1605 = vdwg.mxu0
      %1606 = vmatpush.bf16.msra.mxu0 0
      %1607 = vmatpush.bf16.msra.mxu0 0
      %1608 = vmatpush.bf16.msra.mxu0 0
      %1609 = vmatpush.bf16.msra.mxu0 %v1319
      %1610 = vmatpush.bf16.msra.mxu0 %v1287
      %1611 = vmatpush.bf16.msra.mxu0 %v1255
      %1612 = vmatpush.bf16.msra.mxu0 %v1223
      %1613 = vmatpush.bf16.msra.mxu0 %v1191
      %1614 = vmatmul.bf16.gmra.mxu0 %v1506
      %v1615 = vpop.f32.mrf.mxu0
      %v1616 = vadd.f32 0.0, %v1615
      %v1617 = vpop.f32.mrf.mxu0
      %v1618 = vadd.f32 0.0, %v1617
      %1619 = vdwg.mxu0
      %1620 = vmatpush.bf16.msra.mxu0 0
      %1621 = vmatpush.bf16.msra.mxu0 0
      %1622 = vmatpush.bf16.msra.mxu0 0
      %1623 = vmatpush.bf16.msra.mxu0 %v1320
      %1624 = vmatpush.bf16.msra.mxu0 %v1288
      %1625 = vmatpush.bf16.msra.mxu0 %v1256
      %1626 = vmatpush.bf16.msra.mxu0 %v1224
      %1627 = vmatpush.bf16.msra.mxu0 %v1192
      %1628 = vmatmul.bf16.gmra.mxu0 %v1506
      %v1629 = vpop.f32.mrf.mxu0
      %v1630 = vadd.f32 0.0, %v1629
      %v1631 = vpop.f32.mrf.mxu0
      %v1632 = vadd.f32 0.0, %v1631
      %1633 = vdwg.mxu0
      %1634 = vmatpush.bf16.msra.mxu0 0
      %1635 = vmatpush.bf16.msra.mxu0 0
      %1636 = vmatpush.bf16.msra.mxu0 0
      %1637 = vmatpush.bf16.msra.mxu0 %v1321
      %1638 = vmatpush.bf16.msra.mxu0 %v1289
      %1639 = vmatpush.bf16.msra.mxu0 %v1257
      %1640 = vmatpush.bf16.msra.mxu0 %v1225
      %1641 = vmatpush.bf16.msra.mxu0 %v1193
      %1642 = vmatmul.bf16.gmra.mxu0 %v1506
      %v1643 = vpop.f32.mrf.mxu0
      %v1644 = vadd.f32 0.0, %v1643
      %v1645 = vpop.f32.mrf.mxu0
      %v1646 = vadd.f32 0.0, %v1645
      %1647 = vdwg.mxu0
      %1648 = vmatpush.bf16.msra.mxu0 0
      %1649 = vmatpush.bf16.msra.mxu0 0
      %1650 = vmatpush.bf16.msra.mxu0 0
      %1651 = vmatpush.bf16.msra.mxu0 %v1322
      %1652 = vmatpush.bf16.msra.mxu0 %v1290
      %1653 = vmatpush.bf16.msra.mxu0 %v1258
      %1654 = vmatpush.bf16.msra.mxu0 %v1226
      %1655 = vmatpush.bf16.msra.mxu0 %v1194
      %1656 = vmatmul.bf16.gmra.mxu0 %v1506
      %v1657 = vpop.f32.mrf.mxu0
      %v1658 = vadd.f32 0.0, %v1657
      %v1659 = vpop.f32.mrf.mxu0
      %v1660 = vadd.f32 0.0, %v1659
      %1661 = vdwg.mxu0
      %1662 = vmatpush.bf16.msra.mxu0 0
      %1663 = vmatpush.bf16.msra.mxu0 0
      %1664 = vmatpush.bf16.msra.mxu0 0
      %1665 = vmatpush.bf16.msra.mxu0 %v1323
      %1666 = vmatpush.bf16.msra.mxu0 %v1291
      %1667 = vmatpush.bf16.msra.mxu0 %v1259
      %1668 = vmatpush.bf16.msra.mxu0 %v1227
      %1669 = vmatpush.bf16.msra.mxu0 %v1195
      %1670 = vmatmul.bf16.gmra.mxu0 %v1506
      %v1671 = vpop.f32.mrf.mxu0
      %v1672 = vadd.f32 0.0, %v1671
      %v1673 = vpop.f32.mrf.mxu0
      %v1674 = vadd.f32 0.0, %v1673
      %1675 = vdwg.mxu0
      %1676 = vmatpush.bf16.msra.mxu0 0
      %1677 = vmatpush.bf16.msra.mxu0 0
      %1678 = vmatpush.bf16.msra.mxu0 0
      %1679 = vmatpush.bf16.msra.mxu0 %v1324
      %1680 = vmatpush.bf16.msra.mxu0 %v1292
      %1681 = vmatpush.bf16.msra.mxu0 %v1260
      %1682 = vmatpush.bf16.msra.mxu0 %v1228
      %1683 = vmatpush.bf16.msra.mxu0 %v1196
      %1684 = vmatmul.bf16.gmra.mxu0 %v1506
      %v1685 = vpop.f32.mrf.mxu0
      %v1686 = vadd.f32 0.0, %v1685
      %v1687 = vpop.f32.mrf.mxu0
      %v1688 = vadd.f32 0.0, %v1687
      %1689 = vdwg.mxu0
      %1690 = vmatpush.bf16.msra.mxu0 0
      %1691 = vmatpush.bf16.msra.mxu0 0
      %1692 = vmatpush.bf16.msra.mxu0 0
      %1693 = vmatpush.bf16.msra.mxu0 %v1325
      %1694 = vmatpush.bf16.msra.mxu0 %v1293
      %1695 = vmatpush.bf16.msra.mxu0 %v1261
      %1696 = vmatpush.bf16.msra.mxu0 %v1229
      %1697 = vmatpush.bf16.msra.mxu0 %v1197
      %1698 = vmatmul.bf16.gmra.mxu0 %v1506
      %v1699 = vpop.f32.mrf.mxu0
      %v1700 = vadd.f32 0.0, %v1699
      %v1701 = vpop.f32.mrf.mxu0
      %v1702 = vadd.f32 0.0, %v1701
      %1703 = vdwg.mxu0
      %1704 = vmatpush.bf16.msra.mxu0 0
      %1705 = vmatpush.bf16.msra.mxu0 0
      %1706 = vmatpush.bf16.msra.mxu0 0
      %1707 = vmatpush.bf16.msra.mxu0 %v1326
      %1708 = vmatpush.bf16.msra.mxu0 %v1294
      %1709 = vmatpush.bf16.msra.mxu0 %v1262
      %1710 = vmatpush.bf16.msra.mxu0 %v1230
      %1711 = vmatpush.bf16.msra.mxu0 %v1198
      %1712 = vmatmul.bf16.gmra.mxu0 %v1506
      %v1713 = vpop.f32.mrf.mxu0
      %v1714 = vadd.f32 0.0, %v1713
      %v1715 = vpop.f32.mrf.mxu0
      %v1716 = vadd.f32 0.0, %v1715
      %1717 = vdwg.mxu0
      %1718 = vmatpush.bf16.msra.mxu0 0
      %1719 = vmatpush.bf16.msra.mxu0 0
      %1720 = vmatpush.bf16.msra.mxu0 0
      %1721 = vmatpush.bf16.msra.mxu0 %v1327
      %1722 = vmatpush.bf16.msra.mxu0 %v1295
      %1723 = vmatpush.bf16.msra.mxu0 %v1263
      %1724 = vmatpush.bf16.msra.mxu0 %v1231
      %1725 = vmatpush.bf16.msra.mxu0 %v1199
      %1726 = vmatmul.bf16.gmra.mxu0 %v1506
      %v1727 = vpop.f32.mrf.mxu0
      %v1728 = vadd.f32 0.0, %v1727
      %v1729 = vpop.f32.mrf.mxu0
      %v1730 = vadd.f32 0.0, %v1729
      %1731 = vdwg.mxu0
      %1732 = vmatpush.bf16.msra.mxu0 0
      %1733 = vmatpush.bf16.msra.mxu0 0
      %1734 = vmatpush.bf16.msra.mxu0 0
      %1735 = vmatpush.bf16.msra.mxu0 %v1328
      %1736 = vmatpush.bf16.msra.mxu0 %v1296
      %1737 = vmatpush.bf16.msra.mxu0 %v1264
      %1738 = vmatpush.bf16.msra.mxu0 %v1232
      %1739 = vmatpush.bf16.msra.mxu0 %v1200
      %1740 = vmatmul.bf16.gmra.mxu0 %v1506
      %v1741 = vpop.f32.mrf.mxu0
      %v1742 = vadd.f32 0.0, %v1741
      %v1743 = vpop.f32.mrf.mxu0
      %v1744 = vadd.f32 0.0, %v1743
      %1745 = vdwg.mxu0
      %1746 = vmatpush.bf16.msra.mxu0 0
      %1747 = vmatpush.bf16.msra.mxu0 0
      %1748 = vmatpush.bf16.msra.mxu0 0
      %1749 = vmatpush.bf16.msra.mxu0 %v1329
      %1750 = vmatpush.bf16.msra.mxu0 %v1297
      %1751 = vmatpush.bf16.msra.mxu0 %v1265
      %1752 = vmatpush.bf16.msra.mxu0 %v1233
      %1753 = vmatpush.bf16.msra.mxu0 %v1201
      %1754 = vmatmul.bf16.gmra.mxu0 %v1506
      %v1755 = vpop.f32.mrf.mxu0
      %v1756 = vadd.f32 0.0, %v1755
      %v1757 = vpop.f32.mrf.mxu0
      %v1758 = vadd.f32 0.0, %v1757
      %1759 = vdwg.mxu0
      %1760 = vmatpush.bf16.msra.mxu0 0
      %1761 = vmatpush.bf16.msra.mxu0 0
      %1762 = vmatpush.bf16.msra.mxu0 0
      %1763 = vmatpush.bf16.msra.mxu0 %v1330
      %1764 = vmatpush.bf16.msra.mxu0 %v1298
      %1765 = vmatpush.bf16.msra.mxu0 %v1266
      %1766 = vmatpush.bf16.msra.mxu0 %v1234
      %1767 = vmatpush.bf16.msra.mxu0 %v1202
      %1768 = vmatmul.bf16.gmra.mxu0 %v1506
      %v1769 = vpop.f32.mrf.mxu0
      %v1770 = vadd.f32 0.0, %v1769
      %v1771 = vpop.f32.mrf.mxu0
      %v1772 = vadd.f32 0.0, %v1771
      %1773 = vdwg.mxu0
      %1774 = vmatpush.bf16.msra.mxu0 0
      %1775 = vmatpush.bf16.msra.mxu0 0
      %1776 = vmatpush.bf16.msra.mxu0 0
      %1777 = vmatpush.bf16.msra.mxu0 %v1331
      %1778 = vmatpush.bf16.msra.mxu0 %v1299
      %1779 = vmatpush.bf16.msra.mxu0 %v1267
      %1780 = vmatpush.bf16.msra.mxu0 %v1235
      %1781 = vmatpush.bf16.msra.mxu0 %v1203
      %1782 = vmatmul.bf16.gmra.mxu0 %v1506
      %v1783 = vpop.f32.mrf.mxu0
      %v1784 = vadd.f32 0.0, %v1783
      %v1785 = vpop.f32.mrf.mxu0
      %v1786 = vadd.f32 0.0, %v1785
      %1787 = vdwg.mxu0
      %1788 = vmatpush.bf16.msra.mxu0 0
      %1789 = vmatpush.bf16.msra.mxu0 0
      %1790 = vmatpush.bf16.msra.mxu0 0
      %1791 = vmatpush.bf16.msra.mxu0 %v1332
      %1792 = vmatpush.bf16.msra.mxu0 %v1300
      %1793 = vmatpush.bf16.msra.mxu0 %v1268
      %1794 = vmatpush.bf16.msra.mxu0 %v1236
      %1795 = vmatpush.bf16.msra.mxu0 %v1204
      %1796 = vmatmul.bf16.gmra.mxu0 %v1506
      %v1797 = vpop.f32.mrf.mxu0
      %v1798 = vadd.f32 0.0, %v1797
      %v1799 = vpop.f32.mrf.mxu0
      %v1800 = vadd.f32 0.0, %v1799
      %1801 = vdwg.mxu0
      %1802 = vmatpush.bf16.msra.mxu0 0
      %1803 = vmatpush.bf16.msra.mxu0 0
      %1804 = vmatpush.bf16.msra.mxu0 0
      %1805 = vmatpush.bf16.msra.mxu0 %v1333
      %1806 = vmatpush.bf16.msra.mxu0 %v1301
      %1807 = vmatpush.bf16.msra.mxu0 %v1269
      %1808 = vmatpush.bf16.msra.mxu0 %v1237
      %1809 = vmatpush.bf16.msra.mxu0 %v1205
      %1810 = vmatmul.bf16.gmra.mxu0 %v1506
      %v1811 = vpop.f32.mrf.mxu0
      %v1812 = vadd.f32 0.0, %v1811
      %v1813 = vpop.f32.mrf.mxu0
      %v1814 = vadd.f32 0.0, %v1813
      %1815 = vdwg.mxu0
      %1816 = vmatpush.bf16.msra.mxu0 0
      %1817 = vmatpush.bf16.msra.mxu0 0
      %1818 = vmatpush.bf16.msra.mxu0 0
      %1819 = vmatpush.bf16.msra.mxu0 %v1334
      %1820 = vmatpush.bf16.msra.mxu0 %v1302
      %1821 = vmatpush.bf16.msra.mxu0 %v1270
      %1822 = vmatpush.bf16.msra.mxu0 %v1238
      %1823 = vmatpush.bf16.msra.mxu0 %v1206
      %1824 = vmatmul.bf16.gmra.mxu0 %v1506
      %v1825 = vpop.f32.mrf.mxu0
      %v1826 = vadd.f32 0.0, %v1825
      %v1827 = vpop.f32.mrf.mxu0
      %v1828 = vadd.f32 0.0, %v1827
      %1829 = vdwg.mxu0
      %1830 = vmatpush.bf16.msra.mxu0 0
      %1831 = vmatpush.bf16.msra.mxu0 0
      %1832 = vmatpush.bf16.msra.mxu0 0
      %1833 = vmatpush.bf16.msra.mxu0 %v1335
      %1834 = vmatpush.bf16.msra.mxu0 %v1303
      %1835 = vmatpush.bf16.msra.mxu0 %v1271
      %1836 = vmatpush.bf16.msra.mxu0 %v1239
      %1837 = vmatpush.bf16.msra.mxu0 %v1207
      %1838 = vmatmul.bf16.gmra.mxu0 %v1506
      %v1839 = vpop.f32.mrf.mxu0
      %v1840 = vadd.f32 0.0, %v1839
      %v1841 = vpop.f32.mrf.mxu0
      %v1842 = vadd.f32 0.0, %v1841
      %1843 = vdwg.mxu0
      %1844 = vmatpush.bf16.msra.mxu0 0
      %1845 = vmatpush.bf16.msra.mxu0 0
      %1846 = vmatpush.bf16.msra.mxu0 0
      %1847 = vmatpush.bf16.msra.mxu0 %v1336
      %1848 = vmatpush.bf16.msra.mxu0 %v1304
      %1849 = vmatpush.bf16.msra.mxu0 %v1272
      %1850 = vmatpush.bf16.msra.mxu0 %v1240
      %1851 = vmatpush.bf16.msra.mxu0 %v1208
      %1852 = vmatmul.bf16.gmra.mxu0 %v1506
      %v1853 = vpop.f32.mrf.mxu0
      %v1854 = vadd.f32 0.0, %v1853
      %v1855 = vpop.f32.mrf.mxu0
      %v1856 = vadd.f32 0.0, %v1855
      %1857 = vdwg.mxu0
      %1858 = vmatpush.bf16.msra.mxu0 0
      %1859 = vmatpush.bf16.msra.mxu0 0
      %1860 = vmatpush.bf16.msra.mxu0 0
      %1861 = vmatpush.bf16.msra.mxu0 %v1337
      %1862 = vmatpush.bf16.msra.mxu0 %v1305
      %1863 = vmatpush.bf16.msra.mxu0 %v1273
      %1864 = vmatpush.bf16.msra.mxu0 %v1241
      %1865 = vmatpush.bf16.msra.mxu0 %v1209
      %1866 = vmatmul.bf16.gmra.mxu0 %v1506
      %v1867 = vpop.f32.mrf.mxu0
      %v1868 = vadd.f32 0.0, %v1867
      %v1869 = vpop.f32.mrf.mxu0
      %v1870 = vadd.f32 0.0, %v1869
      %1871 = vdwg.mxu0
      %1872 = vmatpush.bf16.msra.mxu0 0
      %1873 = vmatpush.bf16.msra.mxu0 0
      %1874 = vmatpush.bf16.msra.mxu0 0
      %1875 = vmatpush.bf16.msra.mxu0 %v1338
      %1876 = vmatpush.bf16.msra.mxu0 %v1306
      %1877 = vmatpush.bf16.msra.mxu0 %v1274
      %1878 = vmatpush.bf16.msra.mxu0 %v1242
      %1879 = vmatpush.bf16.msra.mxu0 %v1210
      %1880 = vmatmul.bf16.gmra.mxu0 %v1506
      %v1881 = vpop.f32.mrf.mxu0
      %v1882 = vadd.f32 0.0, %v1881
      %v1883 = vpop.f32.mrf.mxu0
      %v1884 = vadd.f32 0.0, %v1883
      %1885 = vdwg.mxu0
      %1886 = vmatpush.bf16.msra.mxu0 0
      %1887 = vmatpush.bf16.msra.mxu0 0
      %1888 = vmatpush.bf16.msra.mxu0 0
      %1889 = vmatpush.bf16.msra.mxu0 %v1339
      %1890 = vmatpush.bf16.msra.mxu0 %v1307
      %1891 = vmatpush.bf16.msra.mxu0 %v1275
      %1892 = vmatpush.bf16.msra.mxu0 %v1243
      %1893 = vmatpush.bf16.msra.mxu0 %v1211
      %1894 = vmatmul.bf16.gmra.mxu0 %v1506
      %v1895 = vpop.f32.mrf.mxu0
      %v1896 = vadd.f32 0.0, %v1895
      %v1897 = vpop.f32.mrf.mxu0
      %v1898 = vadd.f32 0.0, %v1897
      %1899 = vdwg.mxu0
      %1900 = vmatpush.bf16.msra.mxu0 0
      %1901 = vmatpush.bf16.msra.mxu0 0
      %1902 = vmatpush.bf16.msra.mxu0 0
      %1903 = vmatpush.bf16.msra.mxu0 %v1340
      %1904 = vmatpush.bf16.msra.mxu0 %v1308
      %1905 = vmatpush.bf16.msra.mxu0 %v1276
      %1906 = vmatpush.bf16.msra.mxu0 %v1244
      %1907 = vmatpush.bf16.msra.mxu0 %v1212
      %1908 = vmatmul.bf16.gmra.mxu0 %v1506
      %v1909 = vpop.f32.mrf.mxu0
      %v1910 = vadd.f32 0.0, %v1909
      %v1911 = vpop.f32.mrf.mxu0
      %v1912 = vadd.f32 0.0, %v1911
      %1913 = vdwg.mxu0
      %1914 = vmatpush.bf16.msra.mxu0 0
      %1915 = vmatpush.bf16.msra.mxu0 0
      %1916 = vmatpush.bf16.msra.mxu0 0
      %1917 = vmatpush.bf16.msra.mxu0 %v1341
      %1918 = vmatpush.bf16.msra.mxu0 %v1309
      %1919 = vmatpush.bf16.msra.mxu0 %v1277
      %1920 = vmatpush.bf16.msra.mxu0 %v1245
      %1921 = vmatpush.bf16.msra.mxu0 %v1213
      %1922 = vmatmul.bf16.gmra.mxu0 %v1506
      %v1923 = vpop.f32.mrf.mxu0
      %v1924 = vadd.f32 0.0, %v1923
      %v1925 = vpop.f32.mrf.mxu0
      %v1926 = vadd.f32 0.0, %v1925
      %1927 = vdwg.mxu0
      %1928 = vmatpush.bf16.msra.mxu0 0
      %1929 = vmatpush.bf16.msra.mxu0 0
      %1930 = vmatpush.bf16.msra.mxu0 0
      %1931 = vmatpush.bf16.msra.mxu0 %v1342
      %1932 = vmatpush.bf16.msra.mxu0 %v1310
      %1933 = vmatpush.bf16.msra.mxu0 %v1278
      %1934 = vmatpush.bf16.msra.mxu0 %v1246
      %1935 = vmatpush.bf16.msra.mxu0 %v1214
      %1936 = vmatmul.bf16.gmra.mxu0 %v1506
      %v1937 = vpop.f32.mrf.mxu0
      %v1938 = vadd.f32 0.0, %v1937
      %v1939 = vpop.f32.mrf.mxu0
      %v1940 = vadd.f32 0.0, %v1939
      %1941 = vdwg.mxu0
      %1942 = vmatpush.bf16.msra.mxu0 0
      %1943 = vmatpush.bf16.msra.mxu0 0
      %1944 = vmatpush.bf16.msra.mxu0 0
      %1945 = vmatpush.bf16.msra.mxu0 %v1343
      %1946 = vmatpush.bf16.msra.mxu0 %v1311
      %1947 = vmatpush.bf16.msra.mxu0 %v1279
      %1948 = vmatpush.bf16.msra.mxu0 %v1247
      %1949 = vmatpush.bf16.msra.mxu0 %v1215
      %1950 = vmatmul.bf16.gmra.mxu0 %v1506
      %v1951 = vpop.f32.mrf.mxu0
      %v1952 = vadd.f32 0.0, %v1951
      %v1953 = vpop.f32.mrf.mxu0
      %v1954 = vadd.f32 0.0, %v1953
      %1955 = vdwg.mxu0
      %v1958 = vunpack.c.l.b16 %v843
      %v1959 = vunpack.c.l.b16 %v844
      %v1960 = vpack.c.b16 %v1959, %v1958
      %1961 = vrot.lane.b32.xlu0 %v414, 42
      %v1962 = vpop.permute.xlu0 %1961
      %1963 = vrot.lane.b32.xlu0 %v415, 42
      %v1964 = vpop.permute.xlu0 %1963
      %1965 = vrot.lane.b32.xlu0 %v416, 42
      %v1966 = vpop.permute.xlu0 %1965
      %1967 = vrot.lane.b32.xlu0 %v417, 42
      %v1968 = vpop.permute.xlu0 %1967
      %1969 = vrot.lane.b32.xlu0 %v418, 42
      %v1970 = vpop.permute.xlu0 %1969
      %1971 = vrot.lane.b32.xlu0 %v419, 42
      %v1972 = vpop.permute.xlu0 %1971
      %1973 = vrot.lane.b32.xlu0 %v420, 42
      %v1974 = vpop.permute.xlu0 %1973
      %1975 = vrot.lane.b32.xlu0 %v421, 42
      %v1976 = vpop.permute.xlu0 %1975
      %1977 = vrot.lane.b32.xlu0 %v422, 42
      %v1978 = vpop.permute.xlu0 %1977
      %1979 = vrot.lane.b32.xlu0 %v423, 42
      %v1980 = vpop.permute.xlu0 %1979
      %1981 = vrot.lane.b32.xlu0 %v424, 42
      %v1982 = vpop.permute.xlu0 %1981
      %1983 = vrot.lane.b32.xlu0 %v425, 42
      %v1984 = vpop.permute.xlu0 %1983
      %1985 = vrot.lane.b32.xlu0 %v426, 42
      %v1986 = vpop.permute.xlu0 %1985
      %1987 = vrot.lane.b32.xlu0 %v427, 42
      %v1988 = vpop.permute.xlu0 %1987
      %1989 = vrot.lane.b32.xlu0 %v428, 42
      %v1990 = vpop.permute.xlu0 %1989
      %1991 = vrot.lane.b32.xlu0 %v429, 42
      %v1992 = vpop.permute.xlu0 %1991
      %1993 = vrot.lane.b32.xlu0 %v430, 42
      %v1994 = vpop.permute.xlu0 %1993
      %1995 = vrot.lane.b32.xlu0 %v431, 42
      %v1996 = vpop.permute.xlu0 %1995
      %1997 = vrot.lane.b32.xlu0 %v432, 42
      %v1998 = vpop.permute.xlu0 %1997
      %1999 = vrot.lane.b32.xlu0 %v433, 42
      %v2000 = vpop.permute.xlu0 %1999
      %2001 = vrot.lane.b32.xlu0 %v434, 42
      %v2002 = vpop.permute.xlu0 %2001
      %2003 = vrot.lane.b32.xlu0 %v435, 42
      %v2004 = vpop.permute.xlu0 %2003
      %2005 = vrot.lane.b32.xlu0 %v436, 42
      %v2006 = vpop.permute.xlu0 %2005
      %2007 = vrot.lane.b32.xlu0 %v437, 42
      %v2008 = vpop.permute.xlu0 %2007
      %2009 = vrot.lane.b32.xlu0 %v438, 42
      %v2010 = vpop.permute.xlu0 %2009
      %2011 = vrot.lane.b32.xlu0 %v439, 42
      %v2012 = vpop.permute.xlu0 %2011
      %2013 = vrot.lane.b32.xlu0 %v440, 42
      %v2014 = vpop.permute.xlu0 %2013
      %2015 = vrot.lane.b32.xlu0 %v441, 42
      %v2016 = vpop.permute.xlu0 %2015
      %2017 = vrot.lane.b32.xlu0 %v442, 42
      %v2018 = vpop.permute.xlu0 %2017
      %2019 = vrot.lane.b32.xlu0 %v443, 42
      %v2020 = vpop.permute.xlu0 %2019
      %2021 = vrot.lane.b32.xlu0 %v444, 42
      %v2022 = vpop.permute.xlu0 %2021
      %2023 = vrot.lane.b32.xlu0 %v445, 42
      %v2024 = vpop.permute.xlu0 %2023
      %2025 = vrot.lane.b32.xlu0 %v446, 42
      %v2026 = vpop.permute.xlu0 %2025
      %2027 = vrot.lane.b32.xlu0 %v514, 42
      %v2028 = vpop.permute.xlu0 %2027
      %2029 = vrot.lane.b32.xlu0 %v515, 42
      %v2030 = vpop.permute.xlu0 %2029
      %2031 = vrot.lane.b32.xlu0 %v516, 42
      %v2032 = vpop.permute.xlu0 %2031
      %2033 = vrot.lane.b32.xlu0 %v517, 42
      %v2034 = vpop.permute.xlu0 %2033
      %2035 = vrot.lane.b32.xlu0 %v518, 42
      %v2036 = vpop.permute.xlu0 %2035
      %2037 = vrot.lane.b32.xlu0 %v519, 42
      %v2038 = vpop.permute.xlu0 %2037
      %2039 = vrot.lane.b32.xlu0 %v520, 42
      %v2040 = vpop.permute.xlu0 %2039
      %2041 = vrot.lane.b32.xlu0 %v521, 42
      %v2042 = vpop.permute.xlu0 %2041
      %2043 = vrot.lane.b32.xlu0 %v522, 42
      %v2044 = vpop.permute.xlu0 %2043
      %2045 = vrot.lane.b32.xlu0 %v523, 42
      %v2046 = vpop.permute.xlu0 %2045
      %2047 = vrot.lane.b32.xlu0 %v524, 42
      %v2048 = vpop.permute.xlu0 %2047
      %2049 = vrot.lane.b32.xlu0 %v525, 42
      %v2050 = vpop.permute.xlu0 %2049
      %2051 = vrot.lane.b32.xlu0 %v526, 42
      %v2052 = vpop.permute.xlu0 %2051
      %2053 = vrot.lane.b32.xlu0 %v527, 42
      %v2054 = vpop.permute.xlu0 %2053
      %2055 = vrot.lane.b32.xlu0 %v528, 42
      %v2056 = vpop.permute.xlu0 %2055
      %2057 = vrot.lane.b32.xlu0 %v529, 42
      %v2058 = vpop.permute.xlu0 %2057
      %2059 = vrot.lane.b32.xlu0 %v530, 42
      %v2060 = vpop.permute.xlu0 %2059
      %2061 = vrot.lane.b32.xlu0 %v531, 42
      %v2062 = vpop.permute.xlu0 %2061
      %2063 = vrot.lane.b32.xlu0 %v532, 42
      %v2064 = vpop.permute.xlu0 %2063
      %2065 = vrot.lane.b32.xlu0 %v533, 42
      %v2066 = vpop.permute.xlu0 %2065
      %2067 = vrot.lane.b32.xlu0 %v534, 42
      %v2068 = vpop.permute.xlu0 %2067
      %2069 = vrot.lane.b32.xlu0 %v535, 42
      %v2070 = vpop.permute.xlu0 %2069
      %2071 = vrot.lane.b32.xlu0 %v536, 42
      %v2072 = vpop.permute.xlu0 %2071
      %2073 = vrot.lane.b32.xlu0 %v537, 42
      %v2074 = vpop.permute.xlu0 %2073
      %2075 = vrot.lane.b32.xlu0 %v538, 42
      %v2076 = vpop.permute.xlu0 %2075
      %2077 = vrot.lane.b32.xlu0 %v539, 42
      %v2078 = vpop.permute.xlu0 %2077
      %2079 = vrot.lane.b32.xlu0 %v540, 42
      %v2080 = vpop.permute.xlu0 %2079
      %2081 = vrot.lane.b32.xlu0 %v541, 42
      %v2082 = vpop.permute.xlu0 %2081
      %2083 = vrot.lane.b32.xlu0 %v542, 42
      %v2084 = vpop.permute.xlu0 %2083
      %2085 = vrot.lane.b32.xlu0 %v543, 42
      %v2086 = vpop.permute.xlu0 %2085
      %2087 = vrot.lane.b32.xlu0 %v544, 42
      %v2088 = vpop.permute.xlu0 %2087
      %2089 = vrot.lane.b32.xlu0 %v545, 42
      %v2090 = vpop.permute.xlu0 %2089
      %2091 = vrot.lane.b32.xlu0 %v512, 42
      %v2092 = vpop.permute.xlu0 %2091
      %2093 = vrot.lane.b32.xlu0 %v613, 42
      %v2094 = vpop.permute.xlu0 %2093
      %2095 = vrot.lane.b32.xlu0 %v614, 42
      %v2096 = vpop.permute.xlu0 %2095
      %2097 = vrot.lane.b32.xlu0 %v615, 42
      %v2098 = vpop.permute.xlu0 %2097
      %2099 = vrot.lane.b32.xlu0 %v616, 42
      %v2100 = vpop.permute.xlu0 %2099
      %2101 = vrot.lane.b32.xlu0 %v617, 42
      %v2102 = vpop.permute.xlu0 %2101
      %2103 = vrot.lane.b32.xlu0 %v618, 42
      %v2104 = vpop.permute.xlu0 %2103
      %2105 = vrot.lane.b32.xlu0 %v619, 42
      %v2106 = vpop.permute.xlu0 %2105
      %2107 = vrot.lane.b32.xlu0 %v620, 42
      %v2108 = vpop.permute.xlu0 %2107
      %2109 = vrot.lane.b32.xlu0 %v621, 42
      %v2110 = vpop.permute.xlu0 %2109
      %2111 = vrot.lane.b32.xlu0 %v622, 42
      %v2112 = vpop.permute.xlu0 %2111
      %2113 = vrot.lane.b32.xlu0 %v623, 42
      %v2114 = vpop.permute.xlu0 %2113
      %2115 = vrot.lane.b32.xlu0 %v624, 42
      %v2116 = vpop.permute.xlu0 %2115
      %2117 = vrot.lane.b32.xlu0 %v625, 42
      %v2118 = vpop.permute.xlu0 %2117
      %2119 = vrot.lane.b32.xlu0 %v626, 42
      %v2120 = vpop.permute.xlu0 %2119
      %2121 = vrot.lane.b32.xlu0 %v627, 42
      %v2122 = vpop.permute.xlu0 %2121
      %2123 = vrot.lane.b32.xlu0 %v628, 42
      %v2124 = vpop.permute.xlu0 %2123
      %2125 = vrot.lane.b32.xlu0 %v629, 42
      %v2126 = vpop.permute.xlu0 %2125
      %2127 = vrot.lane.b32.xlu0 %v630, 42
      %v2128 = vpop.permute.xlu0 %2127
      %2129 = vrot.lane.b32.xlu0 %v631, 42
      %v2130 = vpop.permute.xlu0 %2129
      %2131 = vrot.lane.b32.xlu0 %v632, 42
      %v2132 = vpop.permute.xlu0 %2131
      %2133 = vrot.lane.b32.xlu0 %v633, 42
      %v2134 = vpop.permute.xlu0 %2133
      %2135 = vrot.lane.b32.xlu0 %v634, 42
      %v2136 = vpop.permute.xlu0 %2135
      %2137 = vrot.lane.b32.xlu0 %v635, 42
      %v2138 = vpop.permute.xlu0 %2137
      %2139 = vrot.lane.b32.xlu0 %v636, 42
      %v2140 = vpop.permute.xlu0 %2139
      %2141 = vrot.lane.b32.xlu0 %v637, 42
      %v2142 = vpop.permute.xlu0 %2141
      %2143 = vrot.lane.b32.xlu0 %v638, 42
      %v2144 = vpop.permute.xlu0 %2143
      %2145 = vrot.lane.b32.xlu0 %v639, 42
      %v2146 = vpop.permute.xlu0 %2145
      %2147 = vrot.lane.b32.xlu0 %v640, 42
      %v2148 = vpop.permute.xlu0 %2147
      %2149 = vrot.lane.b32.xlu0 %v641, 42
      %v2150 = vpop.permute.xlu0 %2149
      %2151 = vrot.lane.b32.xlu0 %v642, 42
      %v2152 = vpop.permute.xlu0 %2151
      %2153 = vrot.lane.b32.xlu0 %v643, 42
      %v2154 = vpop.permute.xlu0 %2153
      %2155 = vrot.lane.b32.xlu0 %v644, 42
      %v2156 = vpop.permute.xlu0 %2155
      %2157 = vrot.lane.b32.xlu0 %v611, 42
      %v2158 = vpop.permute.xlu0 %2157
      %2159 = vrot.lane.b32.xlu0 %v712, 42
      %v2160 = vpop.permute.xlu0 %2159
      %2161 = vrot.lane.b32.xlu0 %v713, 42
      %v2162 = vpop.permute.xlu0 %2161
      %2163 = vrot.lane.b32.xlu0 %v714, 42
      %v2164 = vpop.permute.xlu0 %2163
      %2165 = vrot.lane.b32.xlu0 %v715, 42
      %v2166 = vpop.permute.xlu0 %2165
      %2167 = vrot.lane.b32.xlu0 %v716, 42
      %v2168 = vpop.permute.xlu0 %2167
      %2169 = vrot.lane.b32.xlu0 %v717, 42
      %v2170 = vpop.permute.xlu0 %2169
      %2171 = vrot.lane.b32.xlu0 %v718, 42
      %v2172 = vpop.permute.xlu0 %2171
      %2173 = vrot.lane.b32.xlu0 %v719, 42
      %v2174 = vpop.permute.xlu0 %2173
      %2175 = vrot.lane.b32.xlu0 %v720, 42
      %v2176 = vpop.permute.xlu0 %2175
      %2177 = vrot.lane.b32.xlu0 %v721, 42
      %v2178 = vpop.permute.xlu0 %2177
      %2179 = vrot.lane.b32.xlu0 %v722, 42
      %v2180 = vpop.permute.xlu0 %2179
      %2181 = vrot.lane.b32.xlu0 %v723, 42
      %v2182 = vpop.permute.xlu0 %2181
      %2183 = vrot.lane.b32.xlu0 %v724, 42
      %v2184 = vpop.permute.xlu0 %2183
      %2185 = vrot.lane.b32.xlu0 %v725, 42
      %v2186 = vpop.permute.xlu0 %2185
      %2187 = vrot.lane.b32.xlu0 %v726, 42
      %v2188 = vpop.permute.xlu0 %2187
      %2189 = vrot.lane.b32.xlu0 %v727, 42
      %v2190 = vpop.permute.xlu0 %2189
      %2191 = vrot.lane.b32.xlu0 %v728, 42
      %v2192 = vpop.permute.xlu0 %2191
      %2193 = vrot.lane.b32.xlu0 %v729, 42
      %v2194 = vpop.permute.xlu0 %2193
      %2195 = vrot.lane.b32.xlu0 %v730, 42
      %v2196 = vpop.permute.xlu0 %2195
      %2197 = vrot.lane.b32.xlu0 %v731, 42
      %v2198 = vpop.permute.xlu0 %2197
      %2199 = vrot.lane.b32.xlu0 %v732, 42
      %v2200 = vpop.permute.xlu0 %2199
      %2201 = vrot.lane.b32.xlu0 %v733, 42
      %v2202 = vpop.permute.xlu0 %2201
      %2203 = vrot.lane.b32.xlu0 %v734, 42
      %v2204 = vpop.permute.xlu0 %2203
      %2205 = vrot.lane.b32.xlu0 %v735, 42
      %v2206 = vpop.permute.xlu0 %2205
      %2207 = vrot.lane.b32.xlu0 %v736, 42
      %v2208 = vpop.permute.xlu0 %2207
      %2209 = vrot.lane.b32.xlu0 %v737, 42
      %v2210 = vpop.permute.xlu0 %2209
      %2211 = vrot.lane.b32.xlu0 %v738, 42
      %v2212 = vpop.permute.xlu0 %2211
      %2213 = vrot.lane.b32.xlu0 %v739, 42
      %v2214 = vpop.permute.xlu0 %2213
      %2215 = vrot.lane.b32.xlu0 %v740, 42
      %v2216 = vpop.permute.xlu0 %2215
      %2217 = vrot.lane.b32.xlu0 %v741, 42
      %v2218 = vpop.permute.xlu0 %2217
      %2219 = vrot.lane.b32.xlu0 %v742, 42
      %v2220 = vpop.permute.xlu0 %2219
      %2221 = vrot.lane.b32.xlu0 %v743, 42
      %v2222 = vpop.permute.xlu0 %2221
      %2223 = vrot.lane.b32.xlu0 %v710, 42
      %v2224 = vpop.permute.xlu0 %2223
      %2225 = vrot.lane.b32.xlu0 %v811, 42
      %v2226 = vpop.permute.xlu0 %2225
      %2227 = vrot.lane.b32.xlu0 %v812, 42
      %v2228 = vpop.permute.xlu0 %2227
      %2229 = vrot.lane.b32.xlu0 %v813, 42
      %v2230 = vpop.permute.xlu0 %2229
      %2231 = vrot.lane.b32.xlu0 %v814, 42
      %v2232 = vpop.permute.xlu0 %2231
      %2233 = vrot.lane.b32.xlu0 %v815, 42
      %v2234 = vpop.permute.xlu0 %2233
      %2235 = vrot.lane.b32.xlu0 %v816, 42
      %v2236 = vpop.permute.xlu0 %2235
      %2237 = vrot.lane.b32.xlu0 %v817, 42
      %v2238 = vpop.permute.xlu0 %2237
      %2239 = vrot.lane.b32.xlu0 %v818, 42
      %v2240 = vpop.permute.xlu0 %2239
      %2241 = vrot.lane.b32.xlu0 %v819, 42
      %v2242 = vpop.permute.xlu0 %2241
      %2243 = vrot.lane.b32.xlu0 %v820, 42
      %v2244 = vpop.permute.xlu0 %2243
      %2245 = vrot.lane.b32.xlu0 %v821, 42
      %v2246 = vpop.permute.xlu0 %2245
      %2247 = vrot.lane.b32.xlu0 %v822, 42
      %v2248 = vpop.permute.xlu0 %2247
      %2249 = vrot.lane.b32.xlu0 %v823, 42
      %v2250 = vpop.permute.xlu0 %2249
      %2251 = vrot.lane.b32.xlu0 %v824, 42
      %v2252 = vpop.permute.xlu0 %2251
      %2253 = vrot.lane.b32.xlu0 %v825, 42
      %v2254 = vpop.permute.xlu0 %2253
      %2255 = vrot.lane.b32.xlu0 %v826, 42
      %v2256 = vpop.permute.xlu0 %2255
      %2257 = vrot.lane.b32.xlu0 %v827, 42
      %v2258 = vpop.permute.xlu0 %2257
      %2259 = vrot.lane.b32.xlu0 %v828, 42
      %v2260 = vpop.permute.xlu0 %2259
      %2261 = vrot.lane.b32.xlu0 %v829, 42
      %v2262 = vpop.permute.xlu0 %2261
      %2263 = vrot.lane.b32.xlu0 %v830, 42
      %v2264 = vpop.permute.xlu0 %2263
      %2265 = vrot.lane.b32.xlu0 %v831, 42
      %v2266 = vpop.permute.xlu0 %2265
      %2267 = vrot.lane.b32.xlu0 %v832, 42
      %v2268 = vpop.permute.xlu0 %2267
      %2269 = vrot.lane.b32.xlu0 %v833, 42
      %v2270 = vpop.permute.xlu0 %2269
      %2271 = vrot.lane.b32.xlu0 %v834, 42
      %v2272 = vpop.permute.xlu0 %2271
      %2273 = vrot.lane.b32.xlu0 %v835, 42
      %v2274 = vpop.permute.xlu0 %2273
      %2275 = vrot.lane.b32.xlu0 %v836, 42
      %v2276 = vpop.permute.xlu0 %2275
      %2277 = vrot.lane.b32.xlu0 %v837, 42
      %v2278 = vpop.permute.xlu0 %2277
      %2279 = vrot.lane.b32.xlu0 %v838, 42
      %v2280 = vpop.permute.xlu0 %2279
      %2281 = vrot.lane.b32.xlu0 %v839, 42
      %v2282 = vpop.permute.xlu0 %2281
      %2283 = vrot.lane.b32.xlu0 %v840, 42
      %v2284 = vpop.permute.xlu0 %2283
      %2285 = vrot.lane.b32.xlu0 %v841, 42
      %v2286 = vpop.permute.xlu0 %2285
      %2287 = vrot.lane.b32.xlu0 %v842, 42
      %v2288 = vpop.permute.xlu0 %2287
      %2289 = vrot.lane.b32.xlu0 %v809, 42
      %v2290 = vpop.permute.xlu0 %2289
      %vm2291 = vcmask 343040
      %v2292 = vsel %vm2291, %v1962, %v1964
      %v2293 = vsel %vm2291, %v1964, %v1966
      %v2294 = vsel %vm2291, %v1966, %v1968
      %v2295 = vsel %vm2291, %v1968, %v1970
      %v2296 = vsel %vm2291, %v1970, %v1972
      %v2297 = vsel %vm2291, %v1972, %v1974
      %v2298 = vsel %vm2291, %v1974, %v1976
      %v2299 = vsel %vm2291, %v1976, %v1978
      %v2300 = vsel %vm2291, %v1978, %v1980
      %v2301 = vsel %vm2291, %v1980, %v1982
      %v2302 = vsel %vm2291, %v1982, %v1984
      %v2303 = vsel %vm2291, %v1984, %v1986
      %v2304 = vsel %vm2291, %v1986, %v1988
      %v2305 = vsel %vm2291, %v1988, %v1990
      %v2306 = vsel %vm2291, %v1990, %v1992
      %v2307 = vsel %vm2291, %v1992, %v1994
      %v2308 = vsel %vm2291, %v1994, %v1996
      %v2309 = vsel %vm2291, %v1996, %v1998
      %v2310 = vsel %vm2291, %v1998, %v2000
      %v2311 = vsel %vm2291, %v2000, %v2002
      %v2312 = vsel %vm2291, %v2002, %v2004
      %v2313 = vsel %vm2291, %v2004, %v2006
      %v2314 = vsel %vm2291, %v2006, %v2008
      %v2315 = vsel %vm2291, %v2008, %v2010
      %v2316 = vsel %vm2291, %v2010, %v2012
      %v2317 = vsel %vm2291, %v2012, %v2014
      %v2318 = vsel %vm2291, %v2014, %v2016
      %v2319 = vsel %vm2291, %v2016, %v2018
      %v2320 = vsel %vm2291, %v2018, %v2020
      %v2321 = vsel %vm2291, %v2020, %v2022
      %v2322 = vsel %vm2291, %v2022, %v2024
      %v2323 = vsel %vm2291, %v2024, %v2026
      %v2324 = vsel %vm2291, %v2028, %v2030
      %v2325 = vsel %vm2291, %v2030, %v2032
      %v2326 = vsel %vm2291, %v2032, %v2034
      %v2327 = vsel %vm2291, %v2034, %v2036
      %v2328 = vsel %vm2291, %v2036, %v2038
      %v2329 = vsel %vm2291, %v2038, %v2040
      %v2330 = vsel %vm2291, %v2040, %v2042
      %v2331 = vsel %vm2291, %v2042, %v2044
      %v2332 = vsel %vm2291, %v2044, %v2046
      %v2333 = vsel %vm2291, %v2046, %v2048
      %v2334 = vsel %vm2291, %v2048, %v2050
      %v2335 = vsel %vm2291, %v2050, %v2052
      %v2336 = vsel %vm2291, %v2052, %v2054
      %v2337 = vsel %vm2291, %v2054, %v2056
      %v2338 = vsel %vm2291, %v2056, %v2058
      %v2339 = vsel %vm2291, %v2058, %v2060
      %v2340 = vsel %vm2291, %v2060, %v2062
      %v2341 = vsel %vm2291, %v2062, %v2064
      %v2342 = vsel %vm2291, %v2064, %v2066
      %v2343 = vsel %vm2291, %v2066, %v2068
      %v2344 = vsel %vm2291, %v2068, %v2070
      %v2345 = vsel %vm2291, %v2070, %v2072
      %v2346 = vsel %vm2291, %v2072, %v2074
      %v2347 = vsel %vm2291, %v2074, %v2076
      %v2348 = vsel %vm2291, %v2076, %v2078
      %v2349 = vsel %vm2291, %v2078, %v2080
      %v2350 = vsel %vm2291, %v2080, %v2082
      %v2351 = vsel %vm2291, %v2082, %v2084
      %v2352 = vsel %vm2291, %v2084, %v2086
      %v2353 = vsel %vm2291, %v2086, %v2088
      %v2354 = vsel %vm2291, %v2088, %v2090
      %v2355 = vsel %vm2291, %v2090, %v2092
      %v2356 = vsel %vm2291, %v2094, %v2096
      %v2357 = vsel %vm2291, %v2096, %v2098
      %v2358 = vsel %vm2291, %v2098, %v2100
      %v2359 = vsel %vm2291, %v2100, %v2102
      %v2360 = vsel %vm2291, %v2102, %v2104
      %v2361 = vsel %vm2291, %v2104, %v2106
      %v2362 = vsel %vm2291, %v2106, %v2108
      %v2363 = vsel %vm2291, %v2108, %v2110
      %v2364 = vsel %vm2291, %v2110, %v2112
      %v2365 = vsel %vm2291, %v2112, %v2114
      %v2366 = vsel %vm2291, %v2114, %v2116
      %v2367 = vsel %vm2291, %v2116, %v2118
      %v2368 = vsel %vm2291, %v2118, %v2120
      %v2369 = vsel %vm2291, %v2120, %v2122
      %v2370 = vsel %vm2291, %v2122, %v2124
      %v2371 = vsel %vm2291, %v2124, %v2126
      %v2372 = vsel %vm2291, %v2126, %v2128
      %v2373 = vsel %vm2291, %v2128, %v2130
      %v2374 = vsel %vm2291, %v2130, %v2132
      %v2375 = vsel %vm2291, %v2132, %v2134
      %v2376 = vsel %vm2291, %v2134, %v2136
      %v2377 = vsel %vm2291, %v2136, %v2138
      %v2378 = vsel %vm2291, %v2138, %v2140
      %v2379 = vsel %vm2291, %v2140, %v2142
      %v2380 = vsel %vm2291, %v2142, %v2144
      %v2381 = vsel %vm2291, %v2144, %v2146
      %v2382 = vsel %vm2291, %v2146, %v2148
      %v2383 = vsel %vm2291, %v2148, %v2150
      %v2384 = vsel %vm2291, %v2150, %v2152
      %v2385 = vsel %vm2291, %v2152, %v2154
      %v2386 = vsel %vm2291, %v2154, %v2156
      %v2387 = vsel %vm2291, %v2156, %v2158
      %v2388 = vsel %vm2291, %v2160, %v2162
      %v2389 = vsel %vm2291, %v2162, %v2164
      %v2390 = vsel %vm2291, %v2164, %v2166
      %v2391 = vsel %vm2291, %v2166, %v2168
      %v2392 = vsel %vm2291, %v2168, %v2170
      %v2393 = vsel %vm2291, %v2170, %v2172
      %v2394 = vsel %vm2291, %v2172, %v2174
      %v2395 = vsel %vm2291, %v2174, %v2176
      %v2396 = vsel %vm2291, %v2176, %v2178
      %v2397 = vsel %vm2291, %v2178, %v2180
      %v2398 = vsel %vm2291, %v2180, %v2182
      %v2399 = vsel %vm2291, %v2182, %v2184
      %v2400 = vsel %vm2291, %v2184, %v2186
      %v2401 = vsel %vm2291, %v2186, %v2188
      %v2402 = vsel %vm2291, %v2188, %v2190
      %v2403 = vsel %vm2291, %v2190, %v2192
      %v2404 = vsel %vm2291, %v2192, %v2194
      %v2405 = vsel %vm2291, %v2194, %v2196
      %v2406 = vsel %vm2291, %v2196, %v2198
      %v2407 = vsel %vm2291, %v2198, %v2200
      %v2408 = vsel %vm2291, %v2200, %v2202
      %v2409 = vsel %vm2291, %v2202, %v2204
      %v2410 = vsel %vm2291, %v2204, %v2206
      %v2411 = vsel %vm2291, %v2206, %v2208
      %v2412 = vsel %vm2291, %v2208, %v2210
      %v2413 = vsel %vm2291, %v2210, %v2212
      %v2414 = vsel %vm2291, %v2212, %v2214
      %v2415 = vsel %vm2291, %v2214, %v2216
      %v2416 = vsel %vm2291, %v2216, %v2218
      %v2417 = vsel %vm2291, %v2218, %v2220
      %v2418 = vsel %vm2291, %v2220, %v2222
      %v2419 = vsel %vm2291, %v2222, %v2224
      %v2420 = vsel %vm2291, %v2226, %v2228
      %v2421 = vsel %vm2291, %v2228, %v2230
      %v2422 = vsel %vm2291, %v2230, %v2232
      %v2423 = vsel %vm2291, %v2232, %v2234
      %v2424 = vsel %vm2291, %v2234, %v2236
      %v2425 = vsel %vm2291, %v2236, %v2238
      %v2426 = vsel %vm2291, %v2238, %v2240
      %v2427 = vsel %vm2291, %v2240, %v2242
      %v2428 = vsel %vm2291, %v2242, %v2244
      %v2429 = vsel %vm2291, %v2244, %v2246
      %v2430 = vsel %vm2291, %v2246, %v2248
      %v2431 = vsel %vm2291, %v2248, %v2250
      %v2432 = vsel %vm2291, %v2250, %v2252
      %v2433 = vsel %vm2291, %v2252, %v2254
      %v2434 = vsel %vm2291, %v2254, %v2256
      %v2435 = vsel %vm2291, %v2256, %v2258
      %v2436 = vsel %vm2291, %v2258, %v2260
      %v2437 = vsel %vm2291, %v2260, %v2262
      %v2438 = vsel %vm2291, %v2262, %v2264
      %v2439 = vsel %vm2291, %v2264, %v2266
      %v2440 = vsel %vm2291, %v2266, %v2268
      %v2441 = vsel %vm2291, %v2268, %v2270
      %v2442 = vsel %vm2291, %v2270, %v2272
      %v2443 = vsel %vm2291, %v2272, %v2274
      %v2444 = vsel %vm2291, %v2274, %v2276
      %v2445 = vsel %vm2291, %v2276, %v2278
      %v2446 = vsel %vm2291, %v2278, %v2280
      %v2447 = vsel %vm2291, %v2280, %v2282
      %v2448 = vsel %vm2291, %v2282, %v2284
      %v2449 = vsel %vm2291, %v2284, %v2286
      %v2450 = vsel %vm2291, %v2286, %v2288
      %v2451 = vsel %vm2291, %v2288, %v2290
      %v2613 = vsel %vm1504, %v1960, 0
      %2615 = vmatpush.bf16.msra.mxu0 0
      %2616 = vmatpush.bf16.msra.mxu0 0
      %2617 = vmatpush.bf16.msra.mxu0 0
      %2618 = vmatpush.bf16.msra.mxu0 %v2420
      %2619 = vmatpush.bf16.msra.mxu0 %v2388
      %2620 = vmatpush.bf16.msra.mxu0 %v2356
      %2621 = vmatpush.bf16.msra.mxu0 %v2324
      %2622 = vmatpush.bf16.msra.mxu0 %v2292
      %2623 = vmatmul.bf16.gmra.mxu0 %v2613
      %v2624 = vpop.f32.mrf.mxu0
      %v2625 = vadd.f32 %v1518, %v2624
      %v2626 = vpop.f32.mrf.mxu0
      %v2627 = vadd.f32 %v1520, %v2626
      %2628 = vdwg.mxu0
      %2629 = vmatpush.bf16.msra.mxu0 0
      %2630 = vmatpush.bf16.msra.mxu0 0
      %2631 = vmatpush.bf16.msra.mxu0 0
      %2632 = vmatpush.bf16.msra.mxu0 %v2421
      %2633 = vmatpush.bf16.msra.mxu0 %v2389
      %2634 = vmatpush.bf16.msra.mxu0 %v2357
      %2635 = vmatpush.bf16.msra.mxu0 %v2325
      %2636 = vmatpush.bf16.msra.mxu0 %v2293
      %2637 = vmatmul.bf16.gmra.mxu0 %v2613
      %v2638 = vpop.f32.mrf.mxu0
      %v2639 = vadd.f32 %v1532, %v2638
      %v2640 = vpop.f32.mrf.mxu0
      %v2641 = vadd.f32 %v1534, %v2640
      %2642 = vdwg.mxu0
      %2643 = vmatpush.bf16.msra.mxu0 0
      %2644 = vmatpush.bf16.msra.mxu0 0
      %2645 = vmatpush.bf16.msra.mxu0 0
      %2646 = vmatpush.bf16.msra.mxu0 %v2422
      %2647 = vmatpush.bf16.msra.mxu0 %v2390
      %2648 = vmatpush.bf16.msra.mxu0 %v2358
      %2649 = vmatpush.bf16.msra.mxu0 %v2326
      %2650 = vmatpush.bf16.msra.mxu0 %v2294
      %2651 = vmatmul.bf16.gmra.mxu0 %v2613
      %v2652 = vpop.f32.mrf.mxu0
      %v2653 = vadd.f32 %v1546, %v2652
      %v2654 = vpop.f32.mrf.mxu0
      %v2655 = vadd.f32 %v1548, %v2654
      %2656 = vdwg.mxu0
      %2657 = vmatpush.bf16.msra.mxu0 0
      %2658 = vmatpush.bf16.msra.mxu0 0
      %2659 = vmatpush.bf16.msra.mxu0 0
      %2660 = vmatpush.bf16.msra.mxu0 %v2423
      %2661 = vmatpush.bf16.msra.mxu0 %v2391
      %2662 = vmatpush.bf16.msra.mxu0 %v2359
      %2663 = vmatpush.bf16.msra.mxu0 %v2327
      %2664 = vmatpush.bf16.msra.mxu0 %v2295
      %2665 = vmatmul.bf16.gmra.mxu0 %v2613
      %v2666 = vpop.f32.mrf.mxu0
      %v2667 = vadd.f32 %v1560, %v2666
      %v2668 = vpop.f32.mrf.mxu0
      %v2669 = vadd.f32 %v1562, %v2668
      %2670 = vdwg.mxu0
      %2671 = vmatpush.bf16.msra.mxu0 0
      %2672 = vmatpush.bf16.msra.mxu0 0
      %2673 = vmatpush.bf16.msra.mxu0 0
      %2674 = vmatpush.bf16.msra.mxu0 %v2424
      %2675 = vmatpush.bf16.msra.mxu0 %v2392
      %2676 = vmatpush.bf16.msra.mxu0 %v2360
      %2677 = vmatpush.bf16.msra.mxu0 %v2328
      %2678 = vmatpush.bf16.msra.mxu0 %v2296
      %2679 = vmatmul.bf16.gmra.mxu0 %v2613
      %v2680 = vpop.f32.mrf.mxu0
      %v2681 = vadd.f32 %v1574, %v2680
      %v2682 = vpop.f32.mrf.mxu0
      %v2683 = vadd.f32 %v1576, %v2682
      %2684 = vdwg.mxu0
      %2685 = vmatpush.bf16.msra.mxu0 0
      %2686 = vmatpush.bf16.msra.mxu0 0
      %2687 = vmatpush.bf16.msra.mxu0 0
      %2688 = vmatpush.bf16.msra.mxu0 %v2425
      %2689 = vmatpush.bf16.msra.mxu0 %v2393
      %2690 = vmatpush.bf16.msra.mxu0 %v2361
      %2691 = vmatpush.bf16.msra.mxu0 %v2329
      %2692 = vmatpush.bf16.msra.mxu0 %v2297
      %2693 = vmatmul.bf16.gmra.mxu0 %v2613
      %v2694 = vpop.f32.mrf.mxu0
      %v2695 = vadd.f32 %v1588, %v2694
      %v2696 = vpop.f32.mrf.mxu0
      %v2697 = vadd.f32 %v1590, %v2696
      %2698 = vdwg.mxu0
      %2699 = vmatpush.bf16.msra.mxu0 0
      %2700 = vmatpush.bf16.msra.mxu0 0
      %2701 = vmatpush.bf16.msra.mxu0 0
      %2702 = vmatpush.bf16.msra.mxu0 %v2426
      %2703 = vmatpush.bf16.msra.mxu0 %v2394
      %2704 = vmatpush.bf16.msra.mxu0 %v2362
      %2705 = vmatpush.bf16.msra.mxu0 %v2330
      %2706 = vmatpush.bf16.msra.mxu0 %v2298
      %2707 = vmatmul.bf16.gmra.mxu0 %v2613
      %v2708 = vpop.f32.mrf.mxu0
      %v2709 = vadd.f32 %v1602, %v2708
      %v2710 = vpop.f32.mrf.mxu0
      %v2711 = vadd.f32 %v1604, %v2710
      %2712 = vdwg.mxu0
      %2713 = vmatpush.bf16.msra.mxu0 0
      %2714 = vmatpush.bf16.msra.mxu0 0
      %2715 = vmatpush.bf16.msra.mxu0 0
      %2716 = vmatpush.bf16.msra.mxu0 %v2427
      %2717 = vmatpush.bf16.msra.mxu0 %v2395
      %2718 = vmatpush.bf16.msra.mxu0 %v2363
      %2719 = vmatpush.bf16.msra.mxu0 %v2331
      %2720 = vmatpush.bf16.msra.mxu0 %v2299
      %2721 = vmatmul.bf16.gmra.mxu0 %v2613
      %v2722 = vpop.f32.mrf.mxu0
      %v2723 = vadd.f32 %v1616, %v2722
      %v2724 = vpop.f32.mrf.mxu0
      %v2725 = vadd.f32 %v1618, %v2724
      %2726 = vdwg.mxu0
      %2727 = vmatpush.bf16.msra.mxu0 0
      %2728 = vmatpush.bf16.msra.mxu0 0
      %2729 = vmatpush.bf16.msra.mxu0 0
      %2730 = vmatpush.bf16.msra.mxu0 %v2428
      %2731 = vmatpush.bf16.msra.mxu0 %v2396
      %2732 = vmatpush.bf16.msra.mxu0 %v2364
      %2733 = vmatpush.bf16.msra.mxu0 %v2332
      %2734 = vmatpush.bf16.msra.mxu0 %v2300
      %2735 = vmatmul.bf16.gmra.mxu0 %v2613
      %v2736 = vpop.f32.mrf.mxu0
      %v2737 = vadd.f32 %v1630, %v2736
      %v2738 = vpop.f32.mrf.mxu0
      %v2739 = vadd.f32 %v1632, %v2738
      %2740 = vdwg.mxu0
      %2741 = vmatpush.bf16.msra.mxu0 0
      %2742 = vmatpush.bf16.msra.mxu0 0
      %2743 = vmatpush.bf16.msra.mxu0 0
      %2744 = vmatpush.bf16.msra.mxu0 %v2429
      %2745 = vmatpush.bf16.msra.mxu0 %v2397
      %2746 = vmatpush.bf16.msra.mxu0 %v2365
      %2747 = vmatpush.bf16.msra.mxu0 %v2333
      %2748 = vmatpush.bf16.msra.mxu0 %v2301
      %2749 = vmatmul.bf16.gmra.mxu0 %v2613
      %v2750 = vpop.f32.mrf.mxu0
      %v2751 = vadd.f32 %v1644, %v2750
      %v2752 = vpop.f32.mrf.mxu0
      %v2753 = vadd.f32 %v1646, %v2752
      %2754 = vdwg.mxu0
      %2755 = vmatpush.bf16.msra.mxu0 0
      %2756 = vmatpush.bf16.msra.mxu0 0
      %2757 = vmatpush.bf16.msra.mxu0 0
      %2758 = vmatpush.bf16.msra.mxu0 %v2430
      %2759 = vmatpush.bf16.msra.mxu0 %v2398
      %2760 = vmatpush.bf16.msra.mxu0 %v2366
      %2761 = vmatpush.bf16.msra.mxu0 %v2334
      %2762 = vmatpush.bf16.msra.mxu0 %v2302
      %2763 = vmatmul.bf16.gmra.mxu0 %v2613
      %v2764 = vpop.f32.mrf.mxu0
      %v2765 = vadd.f32 %v1658, %v2764
      %v2766 = vpop.f32.mrf.mxu0
      %v2767 = vadd.f32 %v1660, %v2766
      %2768 = vdwg.mxu0
      %2769 = vmatpush.bf16.msra.mxu0 0
      %2770 = vmatpush.bf16.msra.mxu0 0
      %2771 = vmatpush.bf16.msra.mxu0 0
      %2772 = vmatpush.bf16.msra.mxu0 %v2431
      %2773 = vmatpush.bf16.msra.mxu0 %v2399
      %2774 = vmatpush.bf16.msra.mxu0 %v2367
      %2775 = vmatpush.bf16.msra.mxu0 %v2335
      %2776 = vmatpush.bf16.msra.mxu0 %v2303
      %2777 = vmatmul.bf16.gmra.mxu0 %v2613
      %v2778 = vpop.f32.mrf.mxu0
      %v2779 = vadd.f32 %v1672, %v2778
      %v2780 = vpop.f32.mrf.mxu0
      %v2781 = vadd.f32 %v1674, %v2780
      %2782 = vdwg.mxu0
      %2783 = vmatpush.bf16.msra.mxu0 0
      %2784 = vmatpush.bf16.msra.mxu0 0
      %2785 = vmatpush.bf16.msra.mxu0 0
      %2786 = vmatpush.bf16.msra.mxu0 %v2432
      %2787 = vmatpush.bf16.msra.mxu0 %v2400
      %2788 = vmatpush.bf16.msra.mxu0 %v2368
      %2789 = vmatpush.bf16.msra.mxu0 %v2336
      %2790 = vmatpush.bf16.msra.mxu0 %v2304
      %2791 = vmatmul.bf16.gmra.mxu0 %v2613
      %v2792 = vpop.f32.mrf.mxu0
      %v2793 = vadd.f32 %v1686, %v2792
      %v2794 = vpop.f32.mrf.mxu0
      %v2795 = vadd.f32 %v1688, %v2794
      %2796 = vdwg.mxu0
      %2797 = vmatpush.bf16.msra.mxu0 0
      %2798 = vmatpush.bf16.msra.mxu0 0
      %2799 = vmatpush.bf16.msra.mxu0 0
      %2800 = vmatpush.bf16.msra.mxu0 %v2433
      %2801 = vmatpush.bf16.msra.mxu0 %v2401
      %2802 = vmatpush.bf16.msra.mxu0 %v2369
      %2803 = vmatpush.bf16.msra.mxu0 %v2337
      %2804 = vmatpush.bf16.msra.mxu0 %v2305
      %2805 = vmatmul.bf16.gmra.mxu0 %v2613
      %v2806 = vpop.f32.mrf.mxu0
      %v2807 = vadd.f32 %v1700, %v2806
      %v2808 = vpop.f32.mrf.mxu0
      %v2809 = vadd.f32 %v1702, %v2808
      %2810 = vdwg.mxu0
      %2811 = vmatpush.bf16.msra.mxu0 0
      %2812 = vmatpush.bf16.msra.mxu0 0
      %2813 = vmatpush.bf16.msra.mxu0 0
      %2814 = vmatpush.bf16.msra.mxu0 %v2434
      %2815 = vmatpush.bf16.msra.mxu0 %v2402
      %2816 = vmatpush.bf16.msra.mxu0 %v2370
      %2817 = vmatpush.bf16.msra.mxu0 %v2338
      %2818 = vmatpush.bf16.msra.mxu0 %v2306
      %2819 = vmatmul.bf16.gmra.mxu0 %v2613
      %v2820 = vpop.f32.mrf.mxu0
      %v2821 = vadd.f32 %v1714, %v2820
      %v2822 = vpop.f32.mrf.mxu0
      %v2823 = vadd.f32 %v1716, %v2822
      %2824 = vdwg.mxu0
      %2825 = vmatpush.bf16.msra.mxu0 0
      %2826 = vmatpush.bf16.msra.mxu0 0
      %2827 = vmatpush.bf16.msra.mxu0 0
      %2828 = vmatpush.bf16.msra.mxu0 %v2435
      %2829 = vmatpush.bf16.msra.mxu0 %v2403
      %2830 = vmatpush.bf16.msra.mxu0 %v2371
      %2831 = vmatpush.bf16.msra.mxu0 %v2339
      %2832 = vmatpush.bf16.msra.mxu0 %v2307
      %2833 = vmatmul.bf16.gmra.mxu0 %v2613
      %v2834 = vpop.f32.mrf.mxu0
      %v2835 = vadd.f32 %v1728, %v2834
      %v2836 = vpop.f32.mrf.mxu0
      %v2837 = vadd.f32 %v1730, %v2836
      %2838 = vdwg.mxu0
      %2839 = vmatpush.bf16.msra.mxu0 0
      %2840 = vmatpush.bf16.msra.mxu0 0
      %2841 = vmatpush.bf16.msra.mxu0 0
      %2842 = vmatpush.bf16.msra.mxu0 %v2436
      %2843 = vmatpush.bf16.msra.mxu0 %v2404
      %2844 = vmatpush.bf16.msra.mxu0 %v2372
      %2845 = vmatpush.bf16.msra.mxu0 %v2340
      %2846 = vmatpush.bf16.msra.mxu0 %v2308
      %2847 = vmatmul.bf16.gmra.mxu0 %v2613
      %v2848 = vpop.f32.mrf.mxu0
      %v2849 = vadd.f32 %v1742, %v2848
      %v2850 = vpop.f32.mrf.mxu0
      %v2851 = vadd.f32 %v1744, %v2850
      %2852 = vdwg.mxu0
      %2853 = vmatpush.bf16.msra.mxu0 0
      %2854 = vmatpush.bf16.msra.mxu0 0
      %2855 = vmatpush.bf16.msra.mxu0 0
      %2856 = vmatpush.bf16.msra.mxu0 %v2437
      %2857 = vmatpush.bf16.msra.mxu0 %v2405
      %2858 = vmatpush.bf16.msra.mxu0 %v2373
      %2859 = vmatpush.bf16.msra.mxu0 %v2341
      %2860 = vmatpush.bf16.msra.mxu0 %v2309
      %2861 = vmatmul.bf16.gmra.mxu0 %v2613
      %v2862 = vpop.f32.mrf.mxu0
      %v2863 = vadd.f32 %v1756, %v2862
      %v2864 = vpop.f32.mrf.mxu0
      %v2865 = vadd.f32 %v1758, %v2864
      %2866 = vdwg.mxu0
      %2867 = vmatpush.bf16.msra.mxu0 0
      %2868 = vmatpush.bf16.msra.mxu0 0
      %2869 = vmatpush.bf16.msra.mxu0 0
      %2870 = vmatpush.bf16.msra.mxu0 %v2438
      %2871 = vmatpush.bf16.msra.mxu0 %v2406
      %2872 = vmatpush.bf16.msra.mxu0 %v2374
      %2873 = vmatpush.bf16.msra.mxu0 %v2342
      %2874 = vmatpush.bf16.msra.mxu0 %v2310
      %2875 = vmatmul.bf16.gmra.mxu0 %v2613
      %v2876 = vpop.f32.mrf.mxu0
      %v2877 = vadd.f32 %v1770, %v2876
      %v2878 = vpop.f32.mrf.mxu0
      %v2879 = vadd.f32 %v1772, %v2878
      %2880 = vdwg.mxu0
      %2881 = vmatpush.bf16.msra.mxu0 0
      %2882 = vmatpush.bf16.msra.mxu0 0
      %2883 = vmatpush.bf16.msra.mxu0 0
      %2884 = vmatpush.bf16.msra.mxu0 %v2439
      %2885 = vmatpush.bf16.msra.mxu0 %v2407
      %2886 = vmatpush.bf16.msra.mxu0 %v2375
      %2887 = vmatpush.bf16.msra.mxu0 %v2343
      %2888 = vmatpush.bf16.msra.mxu0 %v2311
      %2889 = vmatmul.bf16.gmra.mxu0 %v2613
      %v2890 = vpop.f32.mrf.mxu0
      %v2891 = vadd.f32 %v1784, %v2890
      %v2892 = vpop.f32.mrf.mxu0
      %v2893 = vadd.f32 %v1786, %v2892
      %2894 = vdwg.mxu0
      %2895 = vmatpush.bf16.msra.mxu0 0
      %2896 = vmatpush.bf16.msra.mxu0 0
      %2897 = vmatpush.bf16.msra.mxu0 0
      %2898 = vmatpush.bf16.msra.mxu0 %v2440
      %2899 = vmatpush.bf16.msra.mxu0 %v2408
      %2900 = vmatpush.bf16.msra.mxu0 %v2376
      %2901 = vmatpush.bf16.msra.mxu0 %v2344
      %2902 = vmatpush.bf16.msra.mxu0 %v2312
      %2903 = vmatmul.bf16.gmra.mxu0 %v2613
      %v2904 = vpop.f32.mrf.mxu0
      %v2905 = vadd.f32 %v1798, %v2904
      %v2906 = vpop.f32.mrf.mxu0
      %v2907 = vadd.f32 %v1800, %v2906
      %2908 = vdwg.mxu0
      %2909 = vmatpush.bf16.msra.mxu0 0
      %2910 = vmatpush.bf16.msra.mxu0 0
      %2911 = vmatpush.bf16.msra.mxu0 0
      %2912 = vmatpush.bf16.msra.mxu0 %v2441
      %2913 = vmatpush.bf16.msra.mxu0 %v2409
      %2914 = vmatpush.bf16.msra.mxu0 %v2377
      %2915 = vmatpush.bf16.msra.mxu0 %v2345
      %2916 = vmatpush.bf16.msra.mxu0 %v2313
      %2917 = vmatmul.bf16.gmra.mxu0 %v2613
      %v2918 = vpop.f32.mrf.mxu0
      %v2919 = vadd.f32 %v1812, %v2918
      %v2920 = vpop.f32.mrf.mxu0
      %v2921 = vadd.f32 %v1814, %v2920
      %2922 = vdwg.mxu0
      %2923 = vmatpush.bf16.msra.mxu0 0
      %2924 = vmatpush.bf16.msra.mxu0 0
      %2925 = vmatpush.bf16.msra.mxu0 0
      %2926 = vmatpush.bf16.msra.mxu0 %v2442
      %2927 = vmatpush.bf16.msra.mxu0 %v2410
      %2928 = vmatpush.bf16.msra.mxu0 %v2378
      %2929 = vmatpush.bf16.msra.mxu0 %v2346
      %2930 = vmatpush.bf16.msra.mxu0 %v2314
      %2931 = vmatmul.bf16.gmra.mxu0 %v2613
      %v2932 = vpop.f32.mrf.mxu0
      %v2933 = vadd.f32 %v1826, %v2932
      %v2934 = vpop.f32.mrf.mxu0
      %v2935 = vadd.f32 %v1828, %v2934
      %2936 = vdwg.mxu0
      %2937 = vmatpush.bf16.msra.mxu0 0
      %2938 = vmatpush.bf16.msra.mxu0 0
      %2939 = vmatpush.bf16.msra.mxu0 0
      %2940 = vmatpush.bf16.msra.mxu0 %v2443
      %2941 = vmatpush.bf16.msra.mxu0 %v2411
      %2942 = vmatpush.bf16.msra.mxu0 %v2379
      %2943 = vmatpush.bf16.msra.mxu0 %v2347
      %2944 = vmatpush.bf16.msra.mxu0 %v2315
      %2945 = vmatmul.bf16.gmra.mxu0 %v2613
      %v2946 = vpop.f32.mrf.mxu0
      %v2947 = vadd.f32 %v1840, %v2946
      %v2948 = vpop.f32.mrf.mxu0
      %v2949 = vadd.f32 %v1842, %v2948
      %2950 = vdwg.mxu0
      %2951 = vmatpush.bf16.msra.mxu0 0
      %2952 = vmatpush.bf16.msra.mxu0 0
      %2953 = vmatpush.bf16.msra.mxu0 0
      %2954 = vmatpush.bf16.msra.mxu0 %v2444
      %2955 = vmatpush.bf16.msra.mxu0 %v2412
      %2956 = vmatpush.bf16.msra.mxu0 %v2380
      %2957 = vmatpush.bf16.msra.mxu0 %v2348
      %2958 = vmatpush.bf16.msra.mxu0 %v2316
      %2959 = vmatmul.bf16.gmra.mxu0 %v2613
      %v2960 = vpop.f32.mrf.mxu0
      %v2961 = vadd.f32 %v1854, %v2960
      %v2962 = vpop.f32.mrf.mxu0
      %v2963 = vadd.f32 %v1856, %v2962
      %2964 = vdwg.mxu0
      %2965 = vmatpush.bf16.msra.mxu0 0
      %2966 = vmatpush.bf16.msra.mxu0 0
      %2967 = vmatpush.bf16.msra.mxu0 0
      %2968 = vmatpush.bf16.msra.mxu0 %v2445
      %2969 = vmatpush.bf16.msra.mxu0 %v2413
      %2970 = vmatpush.bf16.msra.mxu0 %v2381
      %2971 = vmatpush.bf16.msra.mxu0 %v2349
      %2972 = vmatpush.bf16.msra.mxu0 %v2317
      %2973 = vmatmul.bf16.gmra.mxu0 %v2613
      %v2974 = vpop.f32.mrf.mxu0
      %v2975 = vadd.f32 %v1868, %v2974
      %v2976 = vpop.f32.mrf.mxu0
      %v2977 = vadd.f32 %v1870, %v2976
      %2978 = vdwg.mxu0
      %2979 = vmatpush.bf16.msra.mxu0 0
      %2980 = vmatpush.bf16.msra.mxu0 0
      %2981 = vmatpush.bf16.msra.mxu0 0
      %2982 = vmatpush.bf16.msra.mxu0 %v2446
      %2983 = vmatpush.bf16.msra.mxu0 %v2414
      %2984 = vmatpush.bf16.msra.mxu0 %v2382
      %2985 = vmatpush.bf16.msra.mxu0 %v2350
      %2986 = vmatpush.bf16.msra.mxu0 %v2318
      %2987 = vmatmul.bf16.gmra.mxu0 %v2613
      %v2988 = vpop.f32.mrf.mxu0
      %v2989 = vadd.f32 %v1882, %v2988
      %v2990 = vpop.f32.mrf.mxu0
      %v2991 = vadd.f32 %v1884, %v2990
      %2992 = vdwg.mxu0
      %2993 = vmatpush.bf16.msra.mxu0 0
      %2994 = vmatpush.bf16.msra.mxu0 0
      %2995 = vmatpush.bf16.msra.mxu0 0
      %2996 = vmatpush.bf16.msra.mxu0 %v2447
      %2997 = vmatpush.bf16.msra.mxu0 %v2415
      %2998 = vmatpush.bf16.msra.mxu0 %v2383
      %2999 = vmatpush.bf16.msra.mxu0 %v2351
      %3000 = vmatpush.bf16.msra.mxu0 %v2319
      %3001 = vmatmul.bf16.gmra.mxu0 %v2613
      %v3002 = vpop.f32.mrf.mxu0
      %v3003 = vadd.f32 %v1896, %v3002
      %v3004 = vpop.f32.mrf.mxu0
      %v3005 = vadd.f32 %v1898, %v3004
      %3006 = vdwg.mxu0
      %3007 = vmatpush.bf16.msra.mxu0 0
      %3008 = vmatpush.bf16.msra.mxu0 0
      %3009 = vmatpush.bf16.msra.mxu0 0
      %3010 = vmatpush.bf16.msra.mxu0 %v2448
      %3011 = vmatpush.bf16.msra.mxu0 %v2416
      %3012 = vmatpush.bf16.msra.mxu0 %v2384
      %3013 = vmatpush.bf16.msra.mxu0 %v2352
      %3014 = vmatpush.bf16.msra.mxu0 %v2320
      %3015 = vmatmul.bf16.gmra.mxu0 %v2613
      %v3016 = vpop.f32.mrf.mxu0
      %v3017 = vadd.f32 %v1910, %v3016
      %v3018 = vpop.f32.mrf.mxu0
      %v3019 = vadd.f32 %v1912, %v3018
      %3020 = vdwg.mxu0
      %3021 = vmatpush.bf16.msra.mxu0 0
      %3022 = vmatpush.bf16.msra.mxu0 0
      %3023 = vmatpush.bf16.msra.mxu0 0
      %3024 = vmatpush.bf16.msra.mxu0 %v2449
      %3025 = vmatpush.bf16.msra.mxu0 %v2417
      %3026 = vmatpush.bf16.msra.mxu0 %v2385
      %3027 = vmatpush.bf16.msra.mxu0 %v2353
      %3028 = vmatpush.bf16.msra.mxu0 %v2321
      %3029 = vmatmul.bf16.gmra.mxu0 %v2613
      %v3030 = vpop.f32.mrf.mxu0
      %v3031 = vadd.f32 %v1924, %v3030
      %v3032 = vpop.f32.mrf.mxu0
      %v3033 = vadd.f32 %v1926, %v3032
      %3034 = vdwg.mxu0
      %3035 = vmatpush.bf16.msra.mxu0 0
      %3036 = vmatpush.bf16.msra.mxu0 0
      %3037 = vmatpush.bf16.msra.mxu0 0
      %3038 = vmatpush.bf16.msra.mxu0 %v2450
      %3039 = vmatpush.bf16.msra.mxu0 %v2418
      %3040 = vmatpush.bf16.msra.mxu0 %v2386
      %3041 = vmatpush.bf16.msra.mxu0 %v2354
      %3042 = vmatpush.bf16.msra.mxu0 %v2322
      %3043 = vmatmul.bf16.gmra.mxu0 %v2613
      %v3044 = vpop.f32.mrf.mxu0
      %v3045 = vadd.f32 %v1938, %v3044
      %v3046 = vpop.f32.mrf.mxu0
      %v3047 = vadd.f32 %v1940, %v3046
      %3048 = vdwg.mxu0
      %3049 = vmatpush.bf16.msra.mxu0 0
      %3050 = vmatpush.bf16.msra.mxu0 0
      %3051 = vmatpush.bf16.msra.mxu0 0
      %3052 = vmatpush.bf16.msra.mxu0 %v2451
      %3053 = vmatpush.bf16.msra.mxu0 %v2419
      %3054 = vmatpush.bf16.msra.mxu0 %v2387
      %3055 = vmatpush.bf16.msra.mxu0 %v2355
      %3056 = vmatpush.bf16.msra.mxu0 %v2323
      %3057 = vmatmul.bf16.gmra.mxu0 %v2613
      %v3058 = vpop.f32.mrf.mxu0
      %v3059 = vadd.f32 %v1952, %v3058
      %v3060 = vpop.f32.mrf.mxu0
      %v3061 = vadd.f32 %v1954, %v3060
      %3062 = vdwg.mxu0
      %v3063 = vunpack.c.h.b16 %v296
      %v3064 = vunpack.c.h.b16 %v313
      %v3065 = vpack.c.b16 %v3064, %v3063
      %3066 = vrot.lane.b32.xlu0 %v3065, 125
      %v3067 = vpop.permute.xlu0 %3066
      %v3068 = vsel %vm711, %v710, %v3067
      %3069 = vrot.lane.b32.xlu0 %v3065, 124
      %v3070 = vpop.permute.xlu0 %3069
      %v3071 = vsel %vm810, %v809, %v3070
      %s3072 = scalar_lea.vmem %s1, 16
      %v3073 = vld [vmem:[%s3072] sm:$0xf]
      %v3074 = vld [vmem:[%s3072 + $0x4] sm:$0xf]
      %v3077 = vunpack.c.l.b16 %v3073
      %v3078 = vunpack.c.l.b16 %v3074
      %v3079 = vpack.c.b16 %v3078, %v3077
      %3080 = vrot.lane.b32.xlu0 %v414, 2
      %v3081 = vpop.permute.xlu0 %3080
      %3082 = vrot.lane.b32.xlu0 %v415, 2
      %v3083 = vpop.permute.xlu0 %3082
      %3084 = vrot.lane.b32.xlu0 %v416, 2
      %v3085 = vpop.permute.xlu0 %3084
      %3086 = vrot.lane.b32.xlu0 %v417, 2
      %v3087 = vpop.permute.xlu0 %3086
      %3088 = vrot.lane.b32.xlu0 %v418, 2
      %v3089 = vpop.permute.xlu0 %3088
      %3090 = vrot.lane.b32.xlu0 %v419, 2
      %v3091 = vpop.permute.xlu0 %3090
      %3092 = vrot.lane.b32.xlu0 %v420, 2
      %v3093 = vpop.permute.xlu0 %3092
      %3094 = vrot.lane.b32.xlu0 %v421, 2
      %v3095 = vpop.permute.xlu0 %3094
      %3096 = vrot.lane.b32.xlu0 %v422, 2
      %v3097 = vpop.permute.xlu0 %3096
      %3098 = vrot.lane.b32.xlu0 %v423, 2
      %v3099 = vpop.permute.xlu0 %3098
      %3100 = vrot.lane.b32.xlu0 %v424, 2
      %v3101 = vpop.permute.xlu0 %3100
      %3102 = vrot.lane.b32.xlu0 %v425, 2
      %v3103 = vpop.permute.xlu0 %3102
      %3104 = vrot.lane.b32.xlu0 %v426, 2
      %v3105 = vpop.permute.xlu0 %3104
      %3106 = vrot.lane.b32.xlu0 %v427, 2
      %v3107 = vpop.permute.xlu0 %3106
      %3108 = vrot.lane.b32.xlu0 %v428, 2
      %v3109 = vpop.permute.xlu0 %3108
      %3110 = vrot.lane.b32.xlu0 %v429, 2
      %v3111 = vpop.permute.xlu0 %3110
      %3112 = vrot.lane.b32.xlu0 %v430, 2
      %v3113 = vpop.permute.xlu0 %3112
      %3114 = vrot.lane.b32.xlu0 %v431, 2
      %v3115 = vpop.permute.xlu0 %3114
      %3116 = vrot.lane.b32.xlu0 %v432, 2
      %v3117 = vpop.permute.xlu0 %3116
      %3118 = vrot.lane.b32.xlu0 %v433, 2
      %v3119 = vpop.permute.xlu0 %3118
      %3120 = vrot.lane.b32.xlu0 %v434, 2
      %v3121 = vpop.permute.xlu0 %3120
      %3122 = vrot.lane.b32.xlu0 %v435, 2
      %v3123 = vpop.permute.xlu0 %3122
      %3124 = vrot.lane.b32.xlu0 %v436, 2
      %v3125 = vpop.permute.xlu0 %3124
      %3126 = vrot.lane.b32.xlu0 %v437, 2
      %v3127 = vpop.permute.xlu0 %3126
      %3128 = vrot.lane.b32.xlu0 %v438, 2
      %v3129 = vpop.permute.xlu0 %3128
      %3130 = vrot.lane.b32.xlu0 %v439, 2
      %v3131 = vpop.permute.xlu0 %3130
      %3132 = vrot.lane.b32.xlu0 %v440, 2
      %v3133 = vpop.permute.xlu0 %3132
      %3134 = vrot.lane.b32.xlu0 %v441, 2
      %v3135 = vpop.permute.xlu0 %3134
      %3136 = vrot.lane.b32.xlu0 %v442, 2
      %v3137 = vpop.permute.xlu0 %3136
      %3138 = vrot.lane.b32.xlu0 %v443, 2
      %v3139 = vpop.permute.xlu0 %3138
      %3140 = vrot.lane.b32.xlu0 %v444, 2
      %v3141 = vpop.permute.xlu0 %3140
      %3142 = vrot.lane.b32.xlu0 %v445, 2
      %v3143 = vpop.permute.xlu0 %3142
      %3144 = vrot.lane.b32.xlu0 %v446, 2
      %v3145 = vpop.permute.xlu0 %3144
      %3146 = vrot.lane.b32.xlu0 %v514, 2
      %v3147 = vpop.permute.xlu0 %3146
      %3148 = vrot.lane.b32.xlu0 %v515, 2
      %v3149 = vpop.permute.xlu0 %3148
      %3150 = vrot.lane.b32.xlu0 %v516, 2
      %v3151 = vpop.permute.xlu0 %3150
      %3152 = vrot.lane.b32.xlu0 %v517, 2
      %v3153 = vpop.permute.xlu0 %3152
      %3154 = vrot.lane.b32.xlu0 %v518, 2
      %v3155 = vpop.permute.xlu0 %3154
      %3156 = vrot.lane.b32.xlu0 %v519, 2
      %v3157 = vpop.permute.xlu0 %3156
      %3158 = vrot.lane.b32.xlu0 %v520, 2
      %v3159 = vpop.permute.xlu0 %3158
      %3160 = vrot.lane.b32.xlu0 %v521, 2
      %v3161 = vpop.permute.xlu0 %3160
      %3162 = vrot.lane.b32.xlu0 %v522, 2
      %v3163 = vpop.permute.xlu0 %3162
      %3164 = vrot.lane.b32.xlu0 %v523, 2
      %v3165 = vpop.permute.xlu0 %3164
      %3166 = vrot.lane.b32.xlu0 %v524, 2
      %v3167 = vpop.permute.xlu0 %3166
      %3168 = vrot.lane.b32.xlu0 %v525, 2
      %v3169 = vpop.permute.xlu0 %3168
      %3170 = vrot.lane.b32.xlu0 %v526, 2
      %v3171 = vpop.permute.xlu0 %3170
      %3172 = vrot.lane.b32.xlu0 %v527, 2
      %v3173 = vpop.permute.xlu0 %3172
      %3174 = vrot.lane.b32.xlu0 %v528, 2
      %v3175 = vpop.permute.xlu0 %3174
      %3176 = vrot.lane.b32.xlu0 %v529, 2
      %v3177 = vpop.permute.xlu0 %3176
      %3178 = vrot.lane.b32.xlu0 %v530, 2
      %v3179 = vpop.permute.xlu0 %3178
      %3180 = vrot.lane.b32.xlu0 %v531, 2
      %v3181 = vpop.permute.xlu0 %3180
      %3182 = vrot.lane.b32.xlu0 %v532, 2
      %v3183 = vpop.permute.xlu0 %3182
      %3184 = vrot.lane.b32.xlu0 %v533, 2
      %v3185 = vpop.permute.xlu0 %3184
      %3186 = vrot.lane.b32.xlu0 %v534, 2
      %v3187 = vpop.permute.xlu0 %3186
      %3188 = vrot.lane.b32.xlu0 %v535, 2
      %v3189 = vpop.permute.xlu0 %3188
      %3190 = vrot.lane.b32.xlu0 %v536, 2
      %v3191 = vpop.permute.xlu0 %3190
      %3192 = vrot.lane.b32.xlu0 %v537, 2
      %v3193 = vpop.permute.xlu0 %3192
      %3194 = vrot.lane.b32.xlu0 %v538, 2
      %v3195 = vpop.permute.xlu0 %3194
      %3196 = vrot.lane.b32.xlu0 %v539, 2
      %v3197 = vpop.permute.xlu0 %3196
      %3198 = vrot.lane.b32.xlu0 %v540, 2
      %v3199 = vpop.permute.xlu0 %3198
      %3200 = vrot.lane.b32.xlu0 %v541, 2
      %v3201 = vpop.permute.xlu0 %3200
      %3202 = vrot.lane.b32.xlu0 %v542, 2
      %v3203 = vpop.permute.xlu0 %3202
      %3204 = vrot.lane.b32.xlu0 %v543, 2
      %v3205 = vpop.permute.xlu0 %3204
      %3206 = vrot.lane.b32.xlu0 %v544, 2
      %v3207 = vpop.permute.xlu0 %3206
      %3208 = vrot.lane.b32.xlu0 %v545, 2
      %v3209 = vpop.permute.xlu0 %3208
      %3210 = vrot.lane.b32.xlu0 %v512, 2
      %v3211 = vpop.permute.xlu0 %3210
      %3212 = vrot.lane.b32.xlu0 %v549, 2
      %v3213 = vpop.permute.xlu0 %3212
      %3214 = vrot.lane.b32.xlu0 %v614, 2
      %v3215 = vpop.permute.xlu0 %3214
      %3216 = vrot.lane.b32.xlu0 %v615, 2
      %v3217 = vpop.permute.xlu0 %3216
      %3218 = vrot.lane.b32.xlu0 %v616, 2
      %v3219 = vpop.permute.xlu0 %3218
      %3220 = vrot.lane.b32.xlu0 %v617, 2
      %v3221 = vpop.permute.xlu0 %3220
      %3222 = vrot.lane.b32.xlu0 %v618, 2
      %v3223 = vpop.permute.xlu0 %3222
      %3224 = vrot.lane.b32.xlu0 %v619, 2
      %v3225 = vpop.permute.xlu0 %3224
      %3226 = vrot.lane.b32.xlu0 %v620, 2
      %v3227 = vpop.permute.xlu0 %3226
      %3228 = vrot.lane.b32.xlu0 %v621, 2
      %v3229 = vpop.permute.xlu0 %3228
      %3230 = vrot.lane.b32.xlu0 %v622, 2
      %v3231 = vpop.permute.xlu0 %3230
      %3232 = vrot.lane.b32.xlu0 %v623, 2
      %v3233 = vpop.permute.xlu0 %3232
      %3234 = vrot.lane.b32.xlu0 %v624, 2
      %v3235 = vpop.permute.xlu0 %3234
      %3236 = vrot.lane.b32.xlu0 %v625, 2
      %v3237 = vpop.permute.xlu0 %3236
      %3238 = vrot.lane.b32.xlu0 %v626, 2
      %v3239 = vpop.permute.xlu0 %3238
      %3240 = vrot.lane.b32.xlu0 %v627, 2
      %v3241 = vpop.permute.xlu0 %3240
      %3242 = vrot.lane.b32.xlu0 %v628, 2
      %v3243 = vpop.permute.xlu0 %3242
      %3244 = vrot.lane.b32.xlu0 %v629, 2
      %v3245 = vpop.permute.xlu0 %3244
      %3246 = vrot.lane.b32.xlu0 %v630, 2
      %v3247 = vpop.permute.xlu0 %3246
      %3248 = vrot.lane.b32.xlu0 %v631, 2
      %v3249 = vpop.permute.xlu0 %3248
      %3250 = vrot.lane.b32.xlu0 %v632, 2
      %v3251 = vpop.permute.xlu0 %3250
      %3252 = vrot.lane.b32.xlu0 %v633, 2
      %v3253 = vpop.permute.xlu0 %3252
      %3254 = vrot.lane.b32.xlu0 %v634, 2
      %v3255 = vpop.permute.xlu0 %3254
      %3256 = vrot.lane.b32.xlu0 %v635, 2
      %v3257 = vpop.permute.xlu0 %3256
      %3258 = vrot.lane.b32.xlu0 %v636, 2
      %v3259 = vpop.permute.xlu0 %3258
      %3260 = vrot.lane.b32.xlu0 %v637, 2
      %v3261 = vpop.permute.xlu0 %3260
      %3262 = vrot.lane.b32.xlu0 %v638, 2
      %v3263 = vpop.permute.xlu0 %3262
      %3264 = vrot.lane.b32.xlu0 %v639, 2
      %v3265 = vpop.permute.xlu0 %3264
      %3266 = vrot.lane.b32.xlu0 %v640, 2
      %v3267 = vpop.permute.xlu0 %3266
      %3268 = vrot.lane.b32.xlu0 %v641, 2
      %v3269 = vpop.permute.xlu0 %3268
      %3270 = vrot.lane.b32.xlu0 %v642, 2
      %v3271 = vpop.permute.xlu0 %3270
      %3272 = vrot.lane.b32.xlu0 %v643, 2
      %v3273 = vpop.permute.xlu0 %3272
      %3274 = vrot.lane.b32.xlu0 %v644, 2
      %v3275 = vpop.permute.xlu0 %3274
      %3276 = vrot.lane.b32.xlu0 %v611, 2
      %v3277 = vpop.permute.xlu0 %3276
      %3278 = vrot.lane.b32.xlu0 %v648, 2
      %v3279 = vpop.permute.xlu0 %3278
      %3280 = vrot.lane.b32.xlu0 %v713, 2
      %v3281 = vpop.permute.xlu0 %3280
      %3282 = vrot.lane.b32.xlu0 %v714, 2
      %v3283 = vpop.permute.xlu0 %3282
      %3284 = vrot.lane.b32.xlu0 %v715, 2
      %v3285 = vpop.permute.xlu0 %3284
      %3286 = vrot.lane.b32.xlu0 %v716, 2
      %v3287 = vpop.permute.xlu0 %3286
      %3288 = vrot.lane.b32.xlu0 %v717, 2
      %v3289 = vpop.permute.xlu0 %3288
      %3290 = vrot.lane.b32.xlu0 %v718, 2
      %v3291 = vpop.permute.xlu0 %3290
      %3292 = vrot.lane.b32.xlu0 %v719, 2
      %v3293 = vpop.permute.xlu0 %3292
      %3294 = vrot.lane.b32.xlu0 %v720, 2
      %v3295 = vpop.permute.xlu0 %3294
      %3296 = vrot.lane.b32.xlu0 %v721, 2
      %v3297 = vpop.permute.xlu0 %3296
      %3298 = vrot.lane.b32.xlu0 %v722, 2
      %v3299 = vpop.permute.xlu0 %3298
      %3300 = vrot.lane.b32.xlu0 %v723, 2
      %v3301 = vpop.permute.xlu0 %3300
      %3302 = vrot.lane.b32.xlu0 %v724, 2
      %v3303 = vpop.permute.xlu0 %3302
      %3304 = vrot.lane.b32.xlu0 %v725, 2
      %v3305 = vpop.permute.xlu0 %3304
      %3306 = vrot.lane.b32.xlu0 %v726, 2
      %v3307 = vpop.permute.xlu0 %3306
      %3308 = vrot.lane.b32.xlu0 %v727, 2
      %v3309 = vpop.permute.xlu0 %3308
      %3310 = vrot.lane.b32.xlu0 %v728, 2
      %v3311 = vpop.permute.xlu0 %3310
      %3312 = vrot.lane.b32.xlu0 %v729, 2
      %v3313 = vpop.permute.xlu0 %3312
      %3314 = vrot.lane.b32.xlu0 %v730, 2
      %v3315 = vpop.permute.xlu0 %3314
      %3316 = vrot.lane.b32.xlu0 %v731, 2
      %v3317 = vpop.permute.xlu0 %3316
      %3318 = vrot.lane.b32.xlu0 %v732, 2
      %v3319 = vpop.permute.xlu0 %3318
      %3320 = vrot.lane.b32.xlu0 %v733, 2
      %v3321 = vpop.permute.xlu0 %3320
      %3322 = vrot.lane.b32.xlu0 %v734, 2
      %v3323 = vpop.permute.xlu0 %3322
      %3324 = vrot.lane.b32.xlu0 %v735, 2
      %v3325 = vpop.permute.xlu0 %3324
      %3326 = vrot.lane.b32.xlu0 %v736, 2
      %v3327 = vpop.permute.xlu0 %3326
      %3328 = vrot.lane.b32.xlu0 %v737, 2
      %v3329 = vpop.permute.xlu0 %3328
      %3330 = vrot.lane.b32.xlu0 %v738, 2
      %v3331 = vpop.permute.xlu0 %3330
      %3332 = vrot.lane.b32.xlu0 %v739, 2
      %v3333 = vpop.permute.xlu0 %3332
      %3334 = vrot.lane.b32.xlu0 %v740, 2
      %v3335 = vpop.permute.xlu0 %3334
      %3336 = vrot.lane.b32.xlu0 %v741, 2
      %v3337 = vpop.permute.xlu0 %3336
      %3338 = vrot.lane.b32.xlu0 %v742, 2
      %v3339 = vpop.permute.xlu0 %3338
      %3340 = vrot.lane.b32.xlu0 %v743, 2
      %v3341 = vpop.permute.xlu0 %3340
      %3342 = vrot.lane.b32.xlu0 %v3068, 2
      %v3343 = vpop.permute.xlu0 %3342
      %3344 = vrot.lane.b32.xlu0 %v747, 2
      %v3345 = vpop.permute.xlu0 %3344
      %3346 = vrot.lane.b32.xlu0 %v812, 2
      %v3347 = vpop.permute.xlu0 %3346
      %3348 = vrot.lane.b32.xlu0 %v813, 2
      %v3349 = vpop.permute.xlu0 %3348
      %3350 = vrot.lane.b32.xlu0 %v814, 2
      %v3351 = vpop.permute.xlu0 %3350
      %3352 = vrot.lane.b32.xlu0 %v815, 2
      %v3353 = vpop.permute.xlu0 %3352
      %3354 = vrot.lane.b32.xlu0 %v816, 2
      %v3355 = vpop.permute.xlu0 %3354
      %3356 = vrot.lane.b32.xlu0 %v817, 2
      %v3357 = vpop.permute.xlu0 %3356
      %3358 = vrot.lane.b32.xlu0 %v818, 2
      %v3359 = vpop.permute.xlu0 %3358
      %3360 = vrot.lane.b32.xlu0 %v819, 2
      %v3361 = vpop.permute.xlu0 %3360
      %3362 = vrot.lane.b32.xlu0 %v820, 2
      %v3363 = vpop.permute.xlu0 %3362
      %3364 = vrot.lane.b32.xlu0 %v821, 2
      %v3365 = vpop.permute.xlu0 %3364
      %3366 = vrot.lane.b32.xlu0 %v822, 2
      %v3367 = vpop.permute.xlu0 %3366
      %3368 = vrot.lane.b32.xlu0 %v823, 2
      %v3369 = vpop.permute.xlu0 %3368
      %3370 = vrot.lane.b32.xlu0 %v824, 2
      %v3371 = vpop.permute.xlu0 %3370
      %3372 = vrot.lane.b32.xlu0 %v825, 2
      %v3373 = vpop.permute.xlu0 %3372
      %3374 = vrot.lane.b32.xlu0 %v826, 2
      %v3375 = vpop.permute.xlu0 %3374
      %3376 = vrot.lane.b32.xlu0 %v827, 2
      %v3377 = vpop.permute.xlu0 %3376
      %3378 = vrot.lane.b32.xlu0 %v828, 2
      %v3379 = vpop.permute.xlu0 %3378
      %3380 = vrot.lane.b32.xlu0 %v829, 2
      %v3381 = vpop.permute.xlu0 %3380
      %3382 = vrot.lane.b32.xlu0 %v830, 2
      %v3383 = vpop.permute.xlu0 %3382
      %3384 = vrot.lane.b32.xlu0 %v831, 2
      %v3385 = vpop.permute.xlu0 %3384
      %3386 = vrot.lane.b32.xlu0 %v832, 2
      %v3387 = vpop.permute.xlu0 %3386
      %3388 = vrot.lane.b32.xlu0 %v833, 2
      %v3389 = vpop.permute.xlu0 %3388
      %3390 = vrot.lane.b32.xlu0 %v834, 2
      %v3391 = vpop.permute.xlu0 %3390
      %3392 = vrot.lane.b32.xlu0 %v835, 2
      %v3393 = vpop.permute.xlu0 %3392
      %3394 = vrot.lane.b32.xlu0 %v836, 2
      %v3395 = vpop.permute.xlu0 %3394
      %3396 = vrot.lane.b32.xlu0 %v837, 2
      %v3397 = vpop.permute.xlu0 %3396
      %3398 = vrot.lane.b32.xlu0 %v838, 2
      %v3399 = vpop.permute.xlu0 %3398
      %3400 = vrot.lane.b32.xlu0 %v839, 2
      %v3401 = vpop.permute.xlu0 %3400
      %3402 = vrot.lane.b32.xlu0 %v840, 2
      %v3403 = vpop.permute.xlu0 %3402
      %3404 = vrot.lane.b32.xlu0 %v841, 2
      %v3405 = vpop.permute.xlu0 %3404
      %3406 = vrot.lane.b32.xlu0 %v842, 2
      %v3407 = vpop.permute.xlu0 %3406
      %3408 = vrot.lane.b32.xlu0 %v3071, 2
      %v3409 = vpop.permute.xlu0 %3408
      %vm3410 = vcmask 15360
      %v3411 = vsel %vm3410, %v3081, %v3083
      %v3412 = vsel %vm3410, %v3083, %v3085
      %v3413 = vsel %vm3410, %v3085, %v3087
      %v3414 = vsel %vm3410, %v3087, %v3089
      %v3415 = vsel %vm3410, %v3089, %v3091
      %v3416 = vsel %vm3410, %v3091, %v3093
      %v3417 = vsel %vm3410, %v3093, %v3095
      %v3418 = vsel %vm3410, %v3095, %v3097
      %v3419 = vsel %vm3410, %v3097, %v3099
      %v3420 = vsel %vm3410, %v3099, %v3101
      %v3421 = vsel %vm3410, %v3101, %v3103
      %v3422 = vsel %vm3410, %v3103, %v3105
      %v3423 = vsel %vm3410, %v3105, %v3107
      %v3424 = vsel %vm3410, %v3107, %v3109
      %v3425 = vsel %vm3410, %v3109, %v3111
      %v3426 = vsel %vm3410, %v3111, %v3113
      %v3427 = vsel %vm3410, %v3113, %v3115
      %v3428 = vsel %vm3410, %v3115, %v3117
      %v3429 = vsel %vm3410, %v3117, %v3119
      %v3430 = vsel %vm3410, %v3119, %v3121
      %v3431 = vsel %vm3410, %v3121, %v3123
      %v3432 = vsel %vm3410, %v3123, %v3125
      %v3433 = vsel %vm3410, %v3125, %v3127
      %v3434 = vsel %vm3410, %v3127, %v3129
      %v3435 = vsel %vm3410, %v3129, %v3131
      %v3436 = vsel %vm3410, %v3131, %v3133
      %v3437 = vsel %vm3410, %v3133, %v3135
      %v3438 = vsel %vm3410, %v3135, %v3137
      %v3439 = vsel %vm3410, %v3137, %v3139
      %v3440 = vsel %vm3410, %v3139, %v3141
      %v3441 = vsel %vm3410, %v3141, %v3143
      %v3442 = vsel %vm3410, %v3143, %v3145
      %v3443 = vsel %vm3410, %v3147, %v3149
      %v3444 = vsel %vm3410, %v3149, %v3151
      %v3445 = vsel %vm3410, %v3151, %v3153
      %v3446 = vsel %vm3410, %v3153, %v3155
      %v3447 = vsel %vm3410, %v3155, %v3157
      %v3448 = vsel %vm3410, %v3157, %v3159
      %v3449 = vsel %vm3410, %v3159, %v3161
      %v3450 = vsel %vm3410, %v3161, %v3163
      %v3451 = vsel %vm3410, %v3163, %v3165
      %v3452 = vsel %vm3410, %v3165, %v3167
      %v3453 = vsel %vm3410, %v3167, %v3169
      %v3454 = vsel %vm3410, %v3169, %v3171
      %v3455 = vsel %vm3410, %v3171, %v3173
      %v3456 = vsel %vm3410, %v3173, %v3175
      %v3457 = vsel %vm3410, %v3175, %v3177
      %v3458 = vsel %vm3410, %v3177, %v3179
      %v3459 = vsel %vm3410, %v3179, %v3181
      %v3460 = vsel %vm3410, %v3181, %v3183
      %v3461 = vsel %vm3410, %v3183, %v3185
      %v3462 = vsel %vm3410, %v3185, %v3187
      %v3463 = vsel %vm3410, %v3187, %v3189
      %v3464 = vsel %vm3410, %v3189, %v3191
      %v3465 = vsel %vm3410, %v3191, %v3193
      %v3466 = vsel %vm3410, %v3193, %v3195
      %v3467 = vsel %vm3410, %v3195, %v3197
      %v3468 = vsel %vm3410, %v3197, %v3199
      %v3469 = vsel %vm3410, %v3199, %v3201
      %v3470 = vsel %vm3410, %v3201, %v3203
      %v3471 = vsel %vm3410, %v3203, %v3205
      %v3472 = vsel %vm3410, %v3205, %v3207
      %v3473 = vsel %vm3410, %v3207, %v3209
      %v3474 = vsel %vm3410, %v3209, %v3211
      %v3475 = vsel %vm3410, %v3213, %v3215
      %v3476 = vsel %vm3410, %v3215, %v3217
      %v3477 = vsel %vm3410, %v3217, %v3219
      %v3478 = vsel %vm3410, %v3219, %v3221
      %v3479 = vsel %vm3410, %v3221, %v3223
      %v3480 = vsel %vm3410, %v3223, %v3225
      %v3481 = vsel %vm3410, %v3225, %v3227
      %v3482 = vsel %vm3410, %v3227, %v3229
      %v3483 = vsel %vm3410, %v3229, %v3231
      %v3484 = vsel %vm3410, %v3231, %v3233
      %v3485 = vsel %vm3410, %v3233, %v3235
      %v3486 = vsel %vm3410, %v3235, %v3237
      %v3487 = vsel %vm3410, %v3237, %v3239
      %v3488 = vsel %vm3410, %v3239, %v3241
      %v3489 = vsel %vm3410, %v3241, %v3243
      %v3490 = vsel %vm3410, %v3243, %v3245
      %v3491 = vsel %vm3410, %v3245, %v3247
      %v3492 = vsel %vm3410, %v3247, %v3249
      %v3493 = vsel %vm3410, %v3249, %v3251
      %v3494 = vsel %vm3410, %v3251, %v3253
      %v3495 = vsel %vm3410, %v3253, %v3255
      %v3496 = vsel %vm3410, %v3255, %v3257
      %v3497 = vsel %vm3410, %v3257, %v3259
      %v3498 = vsel %vm3410, %v3259, %v3261
      %v3499 = vsel %vm3410, %v3261, %v3263
      %v3500 = vsel %vm3410, %v3263, %v3265
      %v3501 = vsel %vm3410, %v3265, %v3267
      %v3502 = vsel %vm3410, %v3267, %v3269
      %v3503 = vsel %vm3410, %v3269, %v3271
      %v3504 = vsel %vm3410, %v3271, %v3273
      %v3505 = vsel %vm3410, %v3273, %v3275
      %v3506 = vsel %vm3410, %v3275, %v3277
      %v3507 = vsel %vm3410, %v3279, %v3281
      %v3508 = vsel %vm3410, %v3281, %v3283
      %v3509 = vsel %vm3410, %v3283, %v3285
      %v3510 = vsel %vm3410, %v3285, %v3287
      %v3511 = vsel %vm3410, %v3287, %v3289
      %v3512 = vsel %vm3410, %v3289, %v3291
      %v3513 = vsel %vm3410, %v3291, %v3293
      %v3514 = vsel %vm3410, %v3293, %v3295
      %v3515 = vsel %vm3410, %v3295, %v3297
      %v3516 = vsel %vm3410, %v3297, %v3299
      %v3517 = vsel %vm3410, %v3299, %v3301
      %v3518 = vsel %vm3410, %v3301, %v3303
      %v3519 = vsel %vm3410, %v3303, %v3305
      %v3520 = vsel %vm3410, %v3305, %v3307
      %v3521 = vsel %vm3410, %v3307, %v3309
      %v3522 = vsel %vm3410, %v3309, %v3311
      %v3523 = vsel %vm3410, %v3311, %v3313
      %v3524 = vsel %vm3410, %v3313, %v3315
      %v3525 = vsel %vm3410, %v3315, %v3317
      %v3526 = vsel %vm3410, %v3317, %v3319
      %v3527 = vsel %vm3410, %v3319, %v3321
      %v3528 = vsel %vm3410, %v3321, %v3323
      %v3529 = vsel %vm3410, %v3323, %v3325
      %v3530 = vsel %vm3410, %v3325, %v3327
      %v3531 = vsel %vm3410, %v3327, %v3329
      %v3532 = vsel %vm3410, %v3329, %v3331
      %v3533 = vsel %vm3410, %v3331, %v3333
      %v3534 = vsel %vm3410, %v3333, %v3335
      %v3535 = vsel %vm3410, %v3335, %v3337
      %v3536 = vsel %vm3410, %v3337, %v3339
      %v3537 = vsel %vm3410, %v3339, %v3341
      %v3538 = vsel %vm3410, %v3341, %v3343
      %v3539 = vsel %vm3410, %v3345, %v3347
      %v3540 = vsel %vm3410, %v3347, %v3349
      %v3541 = vsel %vm3410, %v3349, %v3351
      %v3542 = vsel %vm3410, %v3351, %v3353
      %v3543 = vsel %vm3410, %v3353, %v3355
      %v3544 = vsel %vm3410, %v3355, %v3357
      %v3545 = vsel %vm3410, %v3357, %v3359
      %v3546 = vsel %vm3410, %v3359, %v3361
      %v3547 = vsel %vm3410, %v3361, %v3363
      %v3548 = vsel %vm3410, %v3363, %v3365
      %v3549 = vsel %vm3410, %v3365, %v3367
      %v3550 = vsel %vm3410, %v3367, %v3369
      %v3551 = vsel %vm3410, %v3369, %v3371
      %v3552 = vsel %vm3410, %v3371, %v3373
      %v3553 = vsel %vm3410, %v3373, %v3375
      %v3554 = vsel %vm3410, %v3375, %v3377
      %v3555 = vsel %vm3410, %v3377, %v3379
      %v3556 = vsel %vm3410, %v3379, %v3381
      %v3557 = vsel %vm3410, %v3381, %v3383
      %v3558 = vsel %vm3410, %v3383, %v3385
      %v3559 = vsel %vm3410, %v3385, %v3387
      %v3560 = vsel %vm3410, %v3387, %v3389
      %v3561 = vsel %vm3410, %v3389, %v3391
      %v3562 = vsel %vm3410, %v3391, %v3393
      %v3563 = vsel %vm3410, %v3393, %v3395
      %v3564 = vsel %vm3410, %v3395, %v3397
      %v3565 = vsel %vm3410, %v3397, %v3399
      %v3566 = vsel %vm3410, %v3399, %v3401
      %v3567 = vsel %vm3410, %v3401, %v3403
      %v3568 = vsel %vm3410, %v3403, %v3405
      %v3569 = vsel %vm3410, %v3405, %v3407
      %v3570 = vsel %vm3410, %v3407, %v3409
      %v3732 = vsel %vm1504, %v3079, 0
      %3734 = vmatpush.bf16.msra.mxu0 0
      %3735 = vmatpush.bf16.msra.mxu0 0
      %3736 = vmatpush.bf16.msra.mxu0 0
      %3737 = vmatpush.bf16.msra.mxu0 %v3539
      %3738 = vmatpush.bf16.msra.mxu0 %v3507
      %3739 = vmatpush.bf16.msra.mxu0 %v3475
      %3740 = vmatpush.bf16.msra.mxu0 %v3443
      %3741 = vmatpush.bf16.msra.mxu0 %v3411
      %3742 = vmatmul.bf16.gmra.mxu0 %v3732
      %v3743 = vpop.f32.mrf.mxu0
      %v3744 = vadd.f32 0.0, %v3743
      %v3745 = vpop.f32.mrf.mxu0
      %v3746 = vadd.f32 0.0, %v3745
      %3747 = vdwg.mxu0
      %3748 = vmatpush.bf16.msra.mxu0 0
      %3749 = vmatpush.bf16.msra.mxu0 0
      %3750 = vmatpush.bf16.msra.mxu0 0
      %3751 = vmatpush.bf16.msra.mxu0 %v3540
      %3752 = vmatpush.bf16.msra.mxu0 %v3508
      %3753 = vmatpush.bf16.msra.mxu0 %v3476
      %3754 = vmatpush.bf16.msra.mxu0 %v3444
      %3755 = vmatpush.bf16.msra.mxu0 %v3412
      %3756 = vmatmul.bf16.gmra.mxu0 %v3732
      %v3757 = vpop.f32.mrf.mxu0
      %v3758 = vadd.f32 0.0, %v3757
      %v3759 = vpop.f32.mrf.mxu0
      %v3760 = vadd.f32 0.0, %v3759
      %3761 = vdwg.mxu0
      %3762 = vmatpush.bf16.msra.mxu0 0
      %3763 = vmatpush.bf16.msra.mxu0 0
      %3764 = vmatpush.bf16.msra.mxu0 0
      %3765 = vmatpush.bf16.msra.mxu0 %v3541
      %3766 = vmatpush.bf16.msra.mxu0 %v3509
      %3767 = vmatpush.bf16.msra.mxu0 %v3477
      %3768 = vmatpush.bf16.msra.mxu0 %v3445
      %3769 = vmatpush.bf16.msra.mxu0 %v3413
      %3770 = vmatmul.bf16.gmra.mxu0 %v3732
      %v3771 = vpop.f32.mrf.mxu0
      %v3772 = vadd.f32 0.0, %v3771
      %v3773 = vpop.f32.mrf.mxu0
      %v3774 = vadd.f32 0.0, %v3773
      %3775 = vdwg.mxu0
      %3776 = vmatpush.bf16.msra.mxu0 0
      %3777 = vmatpush.bf16.msra.mxu0 0
      %3778 = vmatpush.bf16.msra.mxu0 0
      %3779 = vmatpush.bf16.msra.mxu0 %v3542
      %3780 = vmatpush.bf16.msra.mxu0 %v3510
      %3781 = vmatpush.bf16.msra.mxu0 %v3478
      %3782 = vmatpush.bf16.msra.mxu0 %v3446
      %3783 = vmatpush.bf16.msra.mxu0 %v3414
      %3784 = vmatmul.bf16.gmra.mxu0 %v3732
      %v3785 = vpop.f32.mrf.mxu0
      %v3786 = vadd.f32 0.0, %v3785
      %v3787 = vpop.f32.mrf.mxu0
      %v3788 = vadd.f32 0.0, %v3787
      %3789 = vdwg.mxu0
      %3790 = vmatpush.bf16.msra.mxu0 0
      %3791 = vmatpush.bf16.msra.mxu0 0
      %3792 = vmatpush.bf16.msra.mxu0 0
      %3793 = vmatpush.bf16.msra.mxu0 %v3543
      %3794 = vmatpush.bf16.msra.mxu0 %v3511
      %3795 = vmatpush.bf16.msra.mxu0 %v3479
      %3796 = vmatpush.bf16.msra.mxu0 %v3447
      %3797 = vmatpush.bf16.msra.mxu0 %v3415
      %3798 = vmatmul.bf16.gmra.mxu0 %v3732
      %v3799 = vpop.f32.mrf.mxu0
      %v3800 = vadd.f32 0.0, %v3799
      %v3801 = vpop.f32.mrf.mxu0
      %v3802 = vadd.f32 0.0, %v3801
      %3803 = vdwg.mxu0
      %3804 = vmatpush.bf16.msra.mxu0 0
      %3805 = vmatpush.bf16.msra.mxu0 0
      %3806 = vmatpush.bf16.msra.mxu0 0
      %3807 = vmatpush.bf16.msra.mxu0 %v3544
      %3808 = vmatpush.bf16.msra.mxu0 %v3512
      %3809 = vmatpush.bf16.msra.mxu0 %v3480
      %3810 = vmatpush.bf16.msra.mxu0 %v3448
      %3811 = vmatpush.bf16.msra.mxu0 %v3416
      %3812 = vmatmul.bf16.gmra.mxu0 %v3732
      %v3813 = vpop.f32.mrf.mxu0
      %v3814 = vadd.f32 0.0, %v3813
      %v3815 = vpop.f32.mrf.mxu0
      %v3816 = vadd.f32 0.0, %v3815
      %3817 = vdwg.mxu0
      %3818 = vmatpush.bf16.msra.mxu0 0
      %3819 = vmatpush.bf16.msra.mxu0 0
      %3820 = vmatpush.bf16.msra.mxu0 0
      %3821 = vmatpush.bf16.msra.mxu0 %v3545
      %3822 = vmatpush.bf16.msra.mxu0 %v3513
      %3823 = vmatpush.bf16.msra.mxu0 %v3481
      %3824 = vmatpush.bf16.msra.mxu0 %v3449
      %3825 = vmatpush.bf16.msra.mxu0 %v3417
      %3826 = vmatmul.bf16.gmra.mxu0 %v3732
      %v3827 = vpop.f32.mrf.mxu0
      %v3828 = vadd.f32 0.0, %v3827
      %v3829 = vpop.f32.mrf.mxu0
      %v3830 = vadd.f32 0.0, %v3829
      %3831 = vdwg.mxu0
      %3832 = vmatpush.bf16.msra.mxu0 0
      %3833 = vmatpush.bf16.msra.mxu0 0
      %3834 = vmatpush.bf16.msra.mxu0 0
      %3835 = vmatpush.bf16.msra.mxu0 %v3546
      %3836 = vmatpush.bf16.msra.mxu0 %v3514
      %3837 = vmatpush.bf16.msra.mxu0 %v3482
      %3838 = vmatpush.bf16.msra.mxu0 %v3450
      %3839 = vmatpush.bf16.msra.mxu0 %v3418
      %3840 = vmatmul.bf16.gmra.mxu0 %v3732
      %v3841 = vpop.f32.mrf.mxu0
      %v3842 = vadd.f32 0.0, %v3841
      %v3843 = vpop.f32.mrf.mxu0
      %v3844 = vadd.f32 0.0, %v3843
      %3845 = vdwg.mxu0
      %3846 = vmatpush.bf16.msra.mxu0 0
      %3847 = vmatpush.bf16.msra.mxu0 0
      %3848 = vmatpush.bf16.msra.mxu0 0
      %3849 = vmatpush.bf16.msra.mxu0 %v3547
      %3850 = vmatpush.bf16.msra.mxu0 %v3515
      %3851 = vmatpush.bf16.msra.mxu0 %v3483
      %3852 = vmatpush.bf16.msra.mxu0 %v3451
      %3853 = vmatpush.bf16.msra.mxu0 %v3419
      %3854 = vmatmul.bf16.gmra.mxu0 %v3732
      %v3855 = vpop.f32.mrf.mxu0
      %v3856 = vadd.f32 0.0, %v3855
      %v3857 = vpop.f32.mrf.mxu0
      %v3858 = vadd.f32 0.0, %v3857
      %3859 = vdwg.mxu0
      %3860 = vmatpush.bf16.msra.mxu0 0
      %3861 = vmatpush.bf16.msra.mxu0 0
      %3862 = vmatpush.bf16.msra.mxu0 0
      %3863 = vmatpush.bf16.msra.mxu0 %v3548
      %3864 = vmatpush.bf16.msra.mxu0 %v3516
      %3865 = vmatpush.bf16.msra.mxu0 %v3484
      %3866 = vmatpush.bf16.msra.mxu0 %v3452
      %3867 = vmatpush.bf16.msra.mxu0 %v3420
      %3868 = vmatmul.bf16.gmra.mxu0 %v3732
      %v3869 = vpop.f32.mrf.mxu0
      %v3870 = vadd.f32 0.0, %v3869
      %v3871 = vpop.f32.mrf.mxu0
      %v3872 = vadd.f32 0.0, %v3871
      %3873 = vdwg.mxu0
      %3874 = vmatpush.bf16.msra.mxu0 0
      %3875 = vmatpush.bf16.msra.mxu0 0
      %3876 = vmatpush.bf16.msra.mxu0 0
      %3877 = vmatpush.bf16.msra.mxu0 %v3549
      %3878 = vmatpush.bf16.msra.mxu0 %v3517
      %3879 = vmatpush.bf16.msra.mxu0 %v3485
      %3880 = vmatpush.bf16.msra.mxu0 %v3453
      %3881 = vmatpush.bf16.msra.mxu0 %v3421
      %3882 = vmatmul.bf16.gmra.mxu0 %v3732
      %v3883 = vpop.f32.mrf.mxu0
      %v3884 = vadd.f32 0.0, %v3883
      %v3885 = vpop.f32.mrf.mxu0
      %v3886 = vadd.f32 0.0, %v3885
      %3887 = vdwg.mxu0
      %3888 = vmatpush.bf16.msra.mxu0 0
      %3889 = vmatpush.bf16.msra.mxu0 0
      %3890 = vmatpush.bf16.msra.mxu0 0
      %3891 = vmatpush.bf16.msra.mxu0 %v3550
      %3892 = vmatpush.bf16.msra.mxu0 %v3518
      %3893 = vmatpush.bf16.msra.mxu0 %v3486
      %3894 = vmatpush.bf16.msra.mxu0 %v3454
      %3895 = vmatpush.bf16.msra.mxu0 %v3422
      %3896 = vmatmul.bf16.gmra.mxu0 %v3732
      %v3897 = vpop.f32.mrf.mxu0
      %v3898 = vadd.f32 0.0, %v3897
      %v3899 = vpop.f32.mrf.mxu0
      %v3900 = vadd.f32 0.0, %v3899
      %3901 = vdwg.mxu0
      %3902 = vmatpush.bf16.msra.mxu0 0
      %3903 = vmatpush.bf16.msra.mxu0 0
      %3904 = vmatpush.bf16.msra.mxu0 0
      %3905 = vmatpush.bf16.msra.mxu0 %v3551
      %3906 = vmatpush.bf16.msra.mxu0 %v3519
      %3907 = vmatpush.bf16.msra.mxu0 %v3487
      %3908 = vmatpush.bf16.msra.mxu0 %v3455
      %3909 = vmatpush.bf16.msra.mxu0 %v3423
      %3910 = vmatmul.bf16.gmra.mxu0 %v3732
      %v3911 = vpop.f32.mrf.mxu0
      %v3912 = vadd.f32 0.0, %v3911
      %v3913 = vpop.f32.mrf.mxu0
      %v3914 = vadd.f32 0.0, %v3913
      %3915 = vdwg.mxu0
      %3916 = vmatpush.bf16.msra.mxu0 0
      %3917 = vmatpush.bf16.msra.mxu0 0
      %3918 = vmatpush.bf16.msra.mxu0 0
      %3919 = vmatpush.bf16.msra.mxu0 %v3552
      %3920 = vmatpush.bf16.msra.mxu0 %v3520
      %3921 = vmatpush.bf16.msra.mxu0 %v3488
      %3922 = vmatpush.bf16.msra.mxu0 %v3456
      %3923 = vmatpush.bf16.msra.mxu0 %v3424
      %3924 = vmatmul.bf16.gmra.mxu0 %v3732
      %v3925 = vpop.f32.mrf.mxu0
      %v3926 = vadd.f32 0.0, %v3925
      %v3927 = vpop.f32.mrf.mxu0
      %v3928 = vadd.f32 0.0, %v3927
      %3929 = vdwg.mxu0
      %3930 = vmatpush.bf16.msra.mxu0 0
      %3931 = vmatpush.bf16.msra.mxu0 0
      %3932 = vmatpush.bf16.msra.mxu0 0
      %3933 = vmatpush.bf16.msra.mxu0 %v3553
      %3934 = vmatpush.bf16.msra.mxu0 %v3521
      %3935 = vmatpush.bf16.msra.mxu0 %v3489
      %3936 = vmatpush.bf16.msra.mxu0 %v3457
      %3937 = vmatpush.bf16.msra.mxu0 %v3425
      %3938 = vmatmul.bf16.gmra.mxu0 %v3732
      %v3939 = vpop.f32.mrf.mxu0
      %v3940 = vadd.f32 0.0, %v3939
      %v3941 = vpop.f32.mrf.mxu0
      %v3942 = vadd.f32 0.0, %v3941
      %3943 = vdwg.mxu0
      %3944 = vmatpush.bf16.msra.mxu0 0
      %3945 = vmatpush.bf16.msra.mxu0 0
      %3946 = vmatpush.bf16.msra.mxu0 0
      %3947 = vmatpush.bf16.msra.mxu0 %v3554
      %3948 = vmatpush.bf16.msra.mxu0 %v3522
      %3949 = vmatpush.bf16.msra.mxu0 %v3490
      %3950 = vmatpush.bf16.msra.mxu0 %v3458
      %3951 = vmatpush.bf16.msra.mxu0 %v3426
      %3952 = vmatmul.bf16.gmra.mxu0 %v3732
      %v3953 = vpop.f32.mrf.mxu0
      %v3954 = vadd.f32 0.0, %v3953
      %v3955 = vpop.f32.mrf.mxu0
      %v3956 = vadd.f32 0.0, %v3955
      %3957 = vdwg.mxu0
      %3958 = vmatpush.bf16.msra.mxu0 0
      %3959 = vmatpush.bf16.msra.mxu0 0
      %3960 = vmatpush.bf16.msra.mxu0 0
      %3961 = vmatpush.bf16.msra.mxu0 %v3555
      %3962 = vmatpush.bf16.msra.mxu0 %v3523
      %3963 = vmatpush.bf16.msra.mxu0 %v3491
      %3964 = vmatpush.bf16.msra.mxu0 %v3459
      %3965 = vmatpush.bf16.msra.mxu0 %v3427
      %3966 = vmatmul.bf16.gmra.mxu0 %v3732
      %v3967 = vpop.f32.mrf.mxu0
      %v3968 = vadd.f32 0.0, %v3967
      %v3969 = vpop.f32.mrf.mxu0
      %v3970 = vadd.f32 0.0, %v3969
      %3971 = vdwg.mxu0
      %3972 = vmatpush.bf16.msra.mxu0 0
      %3973 = vmatpush.bf16.msra.mxu0 0
      %3974 = vmatpush.bf16.msra.mxu0 0
      %3975 = vmatpush.bf16.msra.mxu0 %v3556
      %3976 = vmatpush.bf16.msra.mxu0 %v3524
      %3977 = vmatpush.bf16.msra.mxu0 %v3492
      %3978 = vmatpush.bf16.msra.mxu0 %v3460
      %3979 = vmatpush.bf16.msra.mxu0 %v3428
      %3980 = vmatmul.bf16.gmra.mxu0 %v3732
      %v3981 = vpop.f32.mrf.mxu0
      %v3982 = vadd.f32 0.0, %v3981
      %v3983 = vpop.f32.mrf.mxu0
      %v3984 = vadd.f32 0.0, %v3983
      %3985 = vdwg.mxu0
      %3986 = vmatpush.bf16.msra.mxu0 0
      %3987 = vmatpush.bf16.msra.mxu0 0
      %3988 = vmatpush.bf16.msra.mxu0 0
      %3989 = vmatpush.bf16.msra.mxu0 %v3557
      %3990 = vmatpush.bf16.msra.mxu0 %v3525
      %3991 = vmatpush.bf16.msra.mxu0 %v3493
      %3992 = vmatpush.bf16.msra.mxu0 %v3461
      %3993 = vmatpush.bf16.msra.mxu0 %v3429
      %3994 = vmatmul.bf16.gmra.mxu0 %v3732
      %v3995 = vpop.f32.mrf.mxu0
      %v3996 = vadd.f32 0.0, %v3995
      %v3997 = vpop.f32.mrf.mxu0
      %v3998 = vadd.f32 0.0, %v3997
      %3999 = vdwg.mxu0
      %4000 = vmatpush.bf16.msra.mxu0 0
      %4001 = vmatpush.bf16.msra.mxu0 0
      %4002 = vmatpush.bf16.msra.mxu0 0
      %4003 = vmatpush.bf16.msra.mxu0 %v3558
      %4004 = vmatpush.bf16.msra.mxu0 %v3526
      %4005 = vmatpush.bf16.msra.mxu0 %v3494
      %4006 = vmatpush.bf16.msra.mxu0 %v3462
      %4007 = vmatpush.bf16.msra.mxu0 %v3430
      %4008 = vmatmul.bf16.gmra.mxu0 %v3732
      %v4009 = vpop.f32.mrf.mxu0
      %v4010 = vadd.f32 0.0, %v4009
      %v4011 = vpop.f32.mrf.mxu0
      %v4012 = vadd.f32 0.0, %v4011
      %4013 = vdwg.mxu0
      %4014 = vmatpush.bf16.msra.mxu0 0
      %4015 = vmatpush.bf16.msra.mxu0 0
      %4016 = vmatpush.bf16.msra.mxu0 0
      %4017 = vmatpush.bf16.msra.mxu0 %v3559
      %4018 = vmatpush.bf16.msra.mxu0 %v3527
      %4019 = vmatpush.bf16.msra.mxu0 %v3495
      %4020 = vmatpush.bf16.msra.mxu0 %v3463
      %4021 = vmatpush.bf16.msra.mxu0 %v3431
      %4022 = vmatmul.bf16.gmra.mxu0 %v3732
      %v4023 = vpop.f32.mrf.mxu0
      %v4024 = vadd.f32 0.0, %v4023
      %v4025 = vpop.f32.mrf.mxu0
      %v4026 = vadd.f32 0.0, %v4025
      %4027 = vdwg.mxu0
      %4028 = vmatpush.bf16.msra.mxu0 0
      %4029 = vmatpush.bf16.msra.mxu0 0
      %4030 = vmatpush.bf16.msra.mxu0 0
      %4031 = vmatpush.bf16.msra.mxu0 %v3560
      %4032 = vmatpush.bf16.msra.mxu0 %v3528
      %4033 = vmatpush.bf16.msra.mxu0 %v3496
      %4034 = vmatpush.bf16.msra.mxu0 %v3464
      %4035 = vmatpush.bf16.msra.mxu0 %v3432
      %4036 = vmatmul.bf16.gmra.mxu0 %v3732
      %v4037 = vpop.f32.mrf.mxu0
      %v4038 = vadd.f32 0.0, %v4037
      %v4039 = vpop.f32.mrf.mxu0
      %v4040 = vadd.f32 0.0, %v4039
      %4041 = vdwg.mxu0
      %4042 = vmatpush.bf16.msra.mxu0 0
      %4043 = vmatpush.bf16.msra.mxu0 0
      %4044 = vmatpush.bf16.msra.mxu0 0
      %4045 = vmatpush.bf16.msra.mxu0 %v3561
      %4046 = vmatpush.bf16.msra.mxu0 %v3529
      %4047 = vmatpush.bf16.msra.mxu0 %v3497
      %4048 = vmatpush.bf16.msra.mxu0 %v3465
      %4049 = vmatpush.bf16.msra.mxu0 %v3433
      %4050 = vmatmul.bf16.gmra.mxu0 %v3732
      %v4051 = vpop.f32.mrf.mxu0
      %v4052 = vadd.f32 0.0, %v4051
      %v4053 = vpop.f32.mrf.mxu0
      %v4054 = vadd.f32 0.0, %v4053
      %4055 = vdwg.mxu0
      %4056 = vmatpush.bf16.msra.mxu0 0
      %4057 = vmatpush.bf16.msra.mxu0 0
      %4058 = vmatpush.bf16.msra.mxu0 0
      %4059 = vmatpush.bf16.msra.mxu0 %v3562
      %4060 = vmatpush.bf16.msra.mxu0 %v3530
      %4061 = vmatpush.bf16.msra.mxu0 %v3498
      %4062 = vmatpush.bf16.msra.mxu0 %v3466
      %4063 = vmatpush.bf16.msra.mxu0 %v3434
      %4064 = vmatmul.bf16.gmra.mxu0 %v3732
      %v4065 = vpop.f32.mrf.mxu0
      %v4066 = vadd.f32 0.0, %v4065
      %v4067 = vpop.f32.mrf.mxu0
      %v4068 = vadd.f32 0.0, %v4067
      %4069 = vdwg.mxu0
      %4070 = vmatpush.bf16.msra.mxu0 0
      %4071 = vmatpush.bf16.msra.mxu0 0
      %4072 = vmatpush.bf16.msra.mxu0 0
      %4073 = vmatpush.bf16.msra.mxu0 %v3563
      %4074 = vmatpush.bf16.msra.mxu0 %v3531
      %4075 = vmatpush.bf16.msra.mxu0 %v3499
      %4076 = vmatpush.bf16.msra.mxu0 %v3467
      %4077 = vmatpush.bf16.msra.mxu0 %v3435
      %4078 = vmatmul.bf16.gmra.mxu0 %v3732
      %v4079 = vpop.f32.mrf.mxu0
      %v4080 = vadd.f32 0.0, %v4079
      %v4081 = vpop.f32.mrf.mxu0
      %v4082 = vadd.f32 0.0, %v4081
      %4083 = vdwg.mxu0
      %4084 = vmatpush.bf16.msra.mxu0 0
      %4085 = vmatpush.bf16.msra.mxu0 0
      %4086 = vmatpush.bf16.msra.mxu0 0
      %4087 = vmatpush.bf16.msra.mxu0 %v3564
      %4088 = vmatpush.bf16.msra.mxu0 %v3532
      %4089 = vmatpush.bf16.msra.mxu0 %v3500
      %4090 = vmatpush.bf16.msra.mxu0 %v3468
      %4091 = vmatpush.bf16.msra.mxu0 %v3436
      %4092 = vmatmul.bf16.gmra.mxu0 %v3732
      %v4093 = vpop.f32.mrf.mxu0
      %v4094 = vadd.f32 0.0, %v4093
      %v4095 = vpop.f32.mrf.mxu0
      %v4096 = vadd.f32 0.0, %v4095
      %4097 = vdwg.mxu0
      %4098 = vmatpush.bf16.msra.mxu0 0
      %4099 = vmatpush.bf16.msra.mxu0 0
      %4100 = vmatpush.bf16.msra.mxu0 0
      %4101 = vmatpush.bf16.msra.mxu0 %v3565
      %4102 = vmatpush.bf16.msra.mxu0 %v3533
      %4103 = vmatpush.bf16.msra.mxu0 %v3501
      %4104 = vmatpush.bf16.msra.mxu0 %v3469
      %4105 = vmatpush.bf16.msra.mxu0 %v3437
      %4106 = vmatmul.bf16.gmra.mxu0 %v3732
      %v4107 = vpop.f32.mrf.mxu0
      %v4108 = vadd.f32 0.0, %v4107
      %v4109 = vpop.f32.mrf.mxu0
      %v4110 = vadd.f32 0.0, %v4109
      %4111 = vdwg.mxu0
      %4112 = vmatpush.bf16.msra.mxu0 0
      %4113 = vmatpush.bf16.msra.mxu0 0
      %4114 = vmatpush.bf16.msra.mxu0 0
      %4115 = vmatpush.bf16.msra.mxu0 %v3566
      %4116 = vmatpush.bf16.msra.mxu0 %v3534
      %4117 = vmatpush.bf16.msra.mxu0 %v3502
      %4118 = vmatpush.bf16.msra.mxu0 %v3470
      %4119 = vmatpush.bf16.msra.mxu0 %v3438
      %4120 = vmatmul.bf16.gmra.mxu0 %v3732
      %v4121 = vpop.f32.mrf.mxu0
      %v4122 = vadd.f32 0.0, %v4121
      %v4123 = vpop.f32.mrf.mxu0
      %v4124 = vadd.f32 0.0, %v4123
      %4125 = vdwg.mxu0
      %4126 = vmatpush.bf16.msra.mxu0 0
      %4127 = vmatpush.bf16.msra.mxu0 0
      %4128 = vmatpush.bf16.msra.mxu0 0
      %4129 = vmatpush.bf16.msra.mxu0 %v3567
      %4130 = vmatpush.bf16.msra.mxu0 %v3535
      %4131 = vmatpush.bf16.msra.mxu0 %v3503
      %4132 = vmatpush.bf16.msra.mxu0 %v3471
      %4133 = vmatpush.bf16.msra.mxu0 %v3439
      %4134 = vmatmul.bf16.gmra.mxu0 %v3732
      %v4135 = vpop.f32.mrf.mxu0
      %v4136 = vadd.f32 0.0, %v4135
      %v4137 = vpop.f32.mrf.mxu0
      %v4138 = vadd.f32 0.0, %v4137
      %4139 = vdwg.mxu0
      %4140 = vmatpush.bf16.msra.mxu0 0
      %4141 = vmatpush.bf16.msra.mxu0 0
      %4142 = vmatpush.bf16.msra.mxu0 0
      %4143 = vmatpush.bf16.msra.mxu0 %v3568
      %4144 = vmatpush.bf16.msra.mxu0 %v3536
      %4145 = vmatpush.bf16.msra.mxu0 %v3504
      %4146 = vmatpush.bf16.msra.mxu0 %v3472
      %4147 = vmatpush.bf16.msra.mxu0 %v3440
      %4148 = vmatmul.bf16.gmra.mxu0 %v3732
      %v4149 = vpop.f32.mrf.mxu0
      %v4150 = vadd.f32 0.0, %v4149
      %v4151 = vpop.f32.mrf.mxu0
      %v4152 = vadd.f32 0.0, %v4151
      %4153 = vdwg.mxu0
      %4154 = vmatpush.bf16.msra.mxu0 0
      %4155 = vmatpush.bf16.msra.mxu0 0
      %4156 = vmatpush.bf16.msra.mxu0 0
      %4157 = vmatpush.bf16.msra.mxu0 %v3569
      %4158 = vmatpush.bf16.msra.mxu0 %v3537
      %4159 = vmatpush.bf16.msra.mxu0 %v3505
      %4160 = vmatpush.bf16.msra.mxu0 %v3473
      %4161 = vmatpush.bf16.msra.mxu0 %v3441
      %4162 = vmatmul.bf16.gmra.mxu0 %v3732
      %v4163 = vpop.f32.mrf.mxu0
      %v4164 = vadd.f32 0.0, %v4163
      %v4165 = vpop.f32.mrf.mxu0
      %v4166 = vadd.f32 0.0, %v4165
      %4167 = vdwg.mxu0
      %4168 = vmatpush.bf16.msra.mxu0 0
      %4169 = vmatpush.bf16.msra.mxu0 0
      %4170 = vmatpush.bf16.msra.mxu0 0
      %4171 = vmatpush.bf16.msra.mxu0 %v3570
      %4172 = vmatpush.bf16.msra.mxu0 %v3538
      %4173 = vmatpush.bf16.msra.mxu0 %v3506
      %4174 = vmatpush.bf16.msra.mxu0 %v3474
      %4175 = vmatpush.bf16.msra.mxu0 %v3442
      %4176 = vmatmul.bf16.gmra.mxu0 %v3732
      %v4177 = vpop.f32.mrf.mxu0
      %v4178 = vadd.f32 0.0, %v4177
      %v4179 = vpop.f32.mrf.mxu0
      %v4180 = vadd.f32 0.0, %v4179
      %4181 = vdwg.mxu0
      %v4182 = vadd.f32 %v2625, %v3744
      %v4183 = vadd.f32 %v2639, %v3758
      %v4184 = vadd.f32 %v2653, %v3772
      %v4185 = vadd.f32 %v2667, %v3786
      %v4186 = vadd.f32 %v2681, %v3800
      %v4187 = vadd.f32 %v2695, %v3814
      %v4188 = vadd.f32 %v2709, %v3828
      %v4189 = vadd.f32 %v2723, %v3842
      %v4190 = vadd.f32 %v2737, %v3856
      %v4191 = vadd.f32 %v2751, %v3870
      %v4192 = vadd.f32 %v2765, %v3884
      %v4193 = vadd.f32 %v2779, %v3898
      %v4194 = vadd.f32 %v2793, %v3912
      %v4195 = vadd.f32 %v2807, %v3926
      %v4196 = vadd.f32 %v2821, %v3940
      %v4197 = vadd.f32 %v2835, %v3954
      %v4198 = vadd.f32 %v2849, %v3968
      %v4199 = vadd.f32 %v2863, %v3982
      %v4200 = vadd.f32 %v2877, %v3996
      %v4201 = vadd.f32 %v2891, %v4010
      %v4202 = vadd.f32 %v2905, %v4024
      %v4203 = vadd.f32 %v2919, %v4038
      %v4204 = vadd.f32 %v2933, %v4052
      %v4205 = vadd.f32 %v2947, %v4066
      %v4206 = vadd.f32 %v2961, %v4080
      %v4207 = vadd.f32 %v2975, %v4094
      %v4208 = vadd.f32 %v2989, %v4108
      %v4209 = vadd.f32 %v3003, %v4122
      %v4210 = vadd.f32 %v3017, %v4136
      %v4211 = vadd.f32 %v3031, %v4150
      %v4212 = vadd.f32 %v3045, %v4164
      %v4213 = vadd.f32 %v3059, %v4178
      %v4214 = vadd.f32 %v2627, %v3746
      %v4215 = vadd.f32 %v2641, %v3760
      %v4216 = vadd.f32 %v2655, %v3774
      %v4217 = vadd.f32 %v2669, %v3788
      %v4218 = vadd.f32 %v2683, %v3802
      %v4219 = vadd.f32 %v2697, %v3816
      %v4220 = vadd.f32 %v2711, %v3830
      %v4221 = vadd.f32 %v2725, %v3844
      %v4222 = vadd.f32 %v2739, %v3858
      %v4223 = vadd.f32 %v2753, %v3872
      %v4224 = vadd.f32 %v2767, %v3886
      %v4225 = vadd.f32 %v2781, %v3900
      %v4226 = vadd.f32 %v2795, %v3914
      %v4227 = vadd.f32 %v2809, %v3928
      %v4228 = vadd.f32 %v2823, %v3942
      %v4229 = vadd.f32 %v2837, %v3956
      %v4230 = vadd.f32 %v2851, %v3970
      %v4231 = vadd.f32 %v2865, %v3984
      %v4232 = vadd.f32 %v2879, %v3998
      %v4233 = vadd.f32 %v2893, %v4012
      %v4234 = vadd.f32 %v2907, %v4026
      %v4235 = vadd.f32 %v2921, %v4040
      %v4236 = vadd.f32 %v2935, %v4054
      %v4237 = vadd.f32 %v2949, %v4068
      %v4238 = vadd.f32 %v2963, %v4082
      %v4239 = vadd.f32 %v2977, %v4096
      %v4240 = vadd.f32 %v2991, %v4110
      %v4241 = vadd.f32 %v3005, %v4124
      %v4242 = vadd.f32 %v3019, %v4138
      %v4243 = vadd.f32 %v3033, %v4152
      %v4244 = vadd.f32 %v3047, %v4166
      %v4245 = vadd.f32 %v3061, %v4180
      %4246 = vrot.lane.b32.xlu0 %v415, 110
      %v4247 = vpop.permute.xlu0 %4246
      %4248 = vrot.lane.b32.xlu0 %v416, 110
      %v4249 = vpop.permute.xlu0 %4248
      %4250 = vrot.lane.b32.xlu0 %v417, 110
      %v4251 = vpop.permute.xlu0 %4250
      %4252 = vrot.lane.b32.xlu0 %v418, 110
      %v4253 = vpop.permute.xlu0 %4252
      %4254 = vrot.lane.b32.xlu0 %v419, 110
      %v4255 = vpop.permute.xlu0 %4254
      %4256 = vrot.lane.b32.xlu0 %v420, 110
      %v4257 = vpop.permute.xlu0 %4256
      %4258 = vrot.lane.b32.xlu0 %v421, 110
      %v4259 = vpop.permute.xlu0 %4258
      %4260 = vrot.lane.b32.xlu0 %v422, 110
      %v4261 = vpop.permute.xlu0 %4260
      %4262 = vrot.lane.b32.xlu0 %v423, 110
      %v4263 = vpop.permute.xlu0 %4262
      %4264 = vrot.lane.b32.xlu0 %v424, 110
      %v4265 = vpop.permute.xlu0 %4264
      %4266 = vrot.lane.b32.xlu0 %v425, 110
      %v4267 = vpop.permute.xlu0 %4266
      %4268 = vrot.lane.b32.xlu0 %v426, 110
      %v4269 = vpop.permute.xlu0 %4268
      %4270 = vrot.lane.b32.xlu0 %v427, 110
      %v4271 = vpop.permute.xlu0 %4270
      %4272 = vrot.lane.b32.xlu0 %v428, 110
      %v4273 = vpop.permute.xlu0 %4272
      %4274 = vrot.lane.b32.xlu0 %v429, 110
      %v4275 = vpop.permute.xlu0 %4274
      %4276 = vrot.lane.b32.xlu0 %v430, 110
      %v4277 = vpop.permute.xlu0 %4276
      %4278 = vrot.lane.b32.xlu0 %v431, 110
      %v4279 = vpop.permute.xlu0 %4278
      %4280 = vrot.lane.b32.xlu0 %v432, 110
      %v4281 = vpop.permute.xlu0 %4280
      %4282 = vrot.lane.b32.xlu0 %v433, 110
      %v4283 = vpop.permute.xlu0 %4282
      %4284 = vrot.lane.b32.xlu0 %v434, 110
      %v4285 = vpop.permute.xlu0 %4284
      %4286 = vrot.lane.b32.xlu0 %v435, 110
      %v4287 = vpop.permute.xlu0 %4286
      %4288 = vrot.lane.b32.xlu0 %v436, 110
      %v4289 = vpop.permute.xlu0 %4288
      %4290 = vrot.lane.b32.xlu0 %v437, 110
      %v4291 = vpop.permute.xlu0 %4290
      %4292 = vrot.lane.b32.xlu0 %v438, 110
      %v4293 = vpop.permute.xlu0 %4292
      %4294 = vrot.lane.b32.xlu0 %v439, 110
      %v4295 = vpop.permute.xlu0 %4294
      %4296 = vrot.lane.b32.xlu0 %v440, 110
      %v4297 = vpop.permute.xlu0 %4296
      %4298 = vrot.lane.b32.xlu0 %v441, 110
      %v4299 = vpop.permute.xlu0 %4298
      %4300 = vrot.lane.b32.xlu0 %v442, 110
      %v4301 = vpop.permute.xlu0 %4300
      %4302 = vrot.lane.b32.xlu0 %v443, 110
      %v4303 = vpop.permute.xlu0 %4302
      %4304 = vrot.lane.b32.xlu0 %v444, 110
      %v4305 = vpop.permute.xlu0 %4304
      %4306 = vrot.lane.b32.xlu0 %v445, 110
      %v4307 = vpop.permute.xlu0 %4306
      %4308 = vrot.lane.b32.xlu0 %v446, 110
      %v4309 = vpop.permute.xlu0 %4308
      %4310 = vrot.lane.b32.xlu0 %v3065, 110
      %v4311 = vpop.permute.xlu0 %4310
      %vm4312 = vcmask 900096
      %v4313 = vsel %vm4312, %v4247, %v4249
      %v4314 = vsel %vm4312, %v4249, %v4251
      %v4315 = vsel %vm4312, %v4251, %v4253
      %v4316 = vsel %vm4312, %v4253, %v4255
      %v4317 = vsel %vm4312, %v4255, %v4257
      %v4318 = vsel %vm4312, %v4257, %v4259
      %v4319 = vsel %vm4312, %v4259, %v4261
      %v4320 = vsel %vm4312, %v4261, %v4263
      %v4321 = vsel %vm4312, %v4263, %v4265
      %v4322 = vsel %vm4312, %v4265, %v4267
      %v4323 = vsel %vm4312, %v4267, %v4269
      %v4324 = vsel %vm4312, %v4269, %v4271
      %v4325 = vsel %vm4312, %v4271, %v4273
      %v4326 = vsel %vm4312, %v4273, %v4275
      %v4327 = vsel %vm4312, %v4275, %v4277
      %v4328 = vsel %vm4312, %v4277, %v4279
      %v4329 = vsel %vm4312, %v4279, %v4281
      %v4330 = vsel %vm4312, %v4281, %v4283
      %v4331 = vsel %vm4312, %v4283, %v4285
      %v4332 = vsel %vm4312, %v4285, %v4287
      %v4333 = vsel %vm4312, %v4287, %v4289
      %v4334 = vsel %vm4312, %v4289, %v4291
      %v4335 = vsel %vm4312, %v4291, %v4293
      %v4336 = vsel %vm4312, %v4293, %v4295
      %v4337 = vsel %vm4312, %v4295, %v4297
      %v4338 = vsel %vm4312, %v4297, %v4299
      %v4339 = vsel %vm4312, %v4299, %v4301
      %v4340 = vsel %vm4312, %v4301, %v4303
      %v4341 = vsel %vm4312, %v4303, %v4305
      %v4342 = vsel %vm4312, %v4305, %v4307
      %v4343 = vsel %vm4312, %v4307, %v4309
      %v4344 = vsel %vm4312, %v4309, %v4311
      %4377 = vrot.lane.b32.xlu0 %v415, 109
      %v4378 = vpop.permute.xlu0 %4377
      %4379 = vrot.lane.b32.xlu0 %v416, 109
      %v4380 = vpop.permute.xlu0 %4379
      %4381 = vrot.lane.b32.xlu0 %v417, 109
      %v4382 = vpop.permute.xlu0 %4381
      %4383 = vrot.lane.b32.xlu0 %v418, 109
      %v4384 = vpop.permute.xlu0 %4383
      %4385 = vrot.lane.b32.xlu0 %v419, 109
      %v4386 = vpop.permute.xlu0 %4385
      %4387 = vrot.lane.b32.xlu0 %v420, 109
      %v4388 = vpop.permute.xlu0 %4387
      %4389 = vrot.lane.b32.xlu0 %v421, 109
      %v4390 = vpop.permute.xlu0 %4389
      %4391 = vrot.lane.b32.xlu0 %v422, 109
      %v4392 = vpop.permute.xlu0 %4391
      %4393 = vrot.lane.b32.xlu0 %v423, 109
      %v4394 = vpop.permute.xlu0 %4393
      %4395 = vrot.lane.b32.xlu0 %v424, 109
      %v4396 = vpop.permute.xlu0 %4395
      %4397 = vrot.lane.b32.xlu0 %v425, 109
      %v4398 = vpop.permute.xlu0 %4397
      %4399 = vrot.lane.b32.xlu0 %v426, 109
      %v4400 = vpop.permute.xlu0 %4399
      %4401 = vrot.lane.b32.xlu0 %v427, 109
      %v4402 = vpop.permute.xlu0 %4401
      %4403 = vrot.lane.b32.xlu0 %v428, 109
      %v4404 = vpop.permute.xlu0 %4403
      %4405 = vrot.lane.b32.xlu0 %v429, 109
      %v4406 = vpop.permute.xlu0 %4405
      %4407 = vrot.lane.b32.xlu0 %v430, 109
      %v4408 = vpop.permute.xlu0 %4407
      %4409 = vrot.lane.b32.xlu0 %v431, 109
      %v4410 = vpop.permute.xlu0 %4409
      %4411 = vrot.lane.b32.xlu0 %v432, 109
      %v4412 = vpop.permute.xlu0 %4411
      %4413 = vrot.lane.b32.xlu0 %v433, 109
      %v4414 = vpop.permute.xlu0 %4413
      %4415 = vrot.lane.b32.xlu0 %v434, 109
      %v4416 = vpop.permute.xlu0 %4415
      %4417 = vrot.lane.b32.xlu0 %v435, 109
      %v4418 = vpop.permute.xlu0 %4417
      %4419 = vrot.lane.b32.xlu0 %v436, 109
      %v4420 = vpop.permute.xlu0 %4419
      %4421 = vrot.lane.b32.xlu0 %v437, 109
      %v4422 = vpop.permute.xlu0 %4421
      %4423 = vrot.lane.b32.xlu0 %v438, 109
      %v4424 = vpop.permute.xlu0 %4423
      %4425 = vrot.lane.b32.xlu0 %v439, 109
      %v4426 = vpop.permute.xlu0 %4425
      %4427 = vrot.lane.b32.xlu0 %v440, 109
      %v4428 = vpop.permute.xlu0 %4427
      %4429 = vrot.lane.b32.xlu0 %v441, 109
      %v4430 = vpop.permute.xlu0 %4429
      %4431 = vrot.lane.b32.xlu0 %v442, 109
      %v4432 = vpop.permute.xlu0 %4431
      %4433 = vrot.lane.b32.xlu0 %v443, 109
      %v4434 = vpop.permute.xlu0 %4433
      %4435 = vrot.lane.b32.xlu0 %v444, 109
      %v4436 = vpop.permute.xlu0 %4435
      %4437 = vrot.lane.b32.xlu0 %v445, 109
      %v4438 = vpop.permute.xlu0 %4437
      %4439 = vrot.lane.b32.xlu0 %v446, 109
      %v4440 = vpop.permute.xlu0 %4439
      %4441 = vrot.lane.b32.xlu0 %v3065, 109
      %v4442 = vpop.permute.xlu0 %4441
      %vm4443 = vcmask 891904
      %v4444 = vsel %vm4443, %v4378, %v4380
      %v4445 = vsel %vm4443, %v4380, %v4382
      %v4446 = vsel %vm4443, %v4382, %v4384
      %v4447 = vsel %vm4443, %v4384, %v4386
      %v4448 = vsel %vm4443, %v4386, %v4388
      %v4449 = vsel %vm4443, %v4388, %v4390
      %v4450 = vsel %vm4443, %v4390, %v4392
      %v4451 = vsel %vm4443, %v4392, %v4394
      %v4452 = vsel %vm4443, %v4394, %v4396
      %v4453 = vsel %vm4443, %v4396, %v4398
      %v4454 = vsel %vm4443, %v4398, %v4400
      %v4455 = vsel %vm4443, %v4400, %v4402
      %v4456 = vsel %vm4443, %v4402, %v4404
      %v4457 = vsel %vm4443, %v4404, %v4406
      %v4458 = vsel %vm4443, %v4406, %v4408
      %v4459 = vsel %vm4443, %v4408, %v4410
      %v4460 = vsel %vm4443, %v4410, %v4412
      %v4461 = vsel %vm4443, %v4412, %v4414
      %v4462 = vsel %vm4443, %v4414, %v4416
      %v4463 = vsel %vm4443, %v4416, %v4418
      %v4464 = vsel %vm4443, %v4418, %v4420
      %v4465 = vsel %vm4443, %v4420, %v4422
      %v4466 = vsel %vm4443, %v4422, %v4424
      %v4467 = vsel %vm4443, %v4424, %v4426
      %v4468 = vsel %vm4443, %v4426, %v4428
      %v4469 = vsel %vm4443, %v4428, %v4430
      %v4470 = vsel %vm4443, %v4430, %v4432
      %v4471 = vsel %vm4443, %v4432, %v4434
      %v4472 = vsel %vm4443, %v4434, %v4436
      %v4473 = vsel %vm4443, %v4436, %v4438
      %v4474 = vsel %vm4443, %v4438, %v4440
      %v4475 = vsel %vm4443, %v4440, %v4442
      %4508 = vrot.lane.b32.xlu0 %v415, 108
      %v4509 = vpop.permute.xlu0 %4508
      %4510 = vrot.lane.b32.xlu0 %v416, 108
      %v4511 = vpop.permute.xlu0 %4510
      %4512 = vrot.lane.b32.xlu0 %v417, 108
      %v4513 = vpop.permute.xlu0 %4512
      %4514 = vrot.lane.b32.xlu0 %v418, 108
      %v4515 = vpop.permute.xlu0 %4514
      %4516 = vrot.lane.b32.xlu0 %v419, 108
      %v4517 = vpop.permute.xlu0 %4516
      %4518 = vrot.lane.b32.xlu0 %v420, 108
      %v4519 = vpop.permute.xlu0 %4518
      %4520 = vrot.lane.b32.xlu0 %v421, 108
      %v4521 = vpop.permute.xlu0 %4520
      %4522 = vrot.lane.b32.xlu0 %v422, 108
      %v4523 = vpop.permute.xlu0 %4522
      %4524 = vrot.lane.b32.xlu0 %v423, 108
      %v4525 = vpop.permute.xlu0 %4524
      %4526 = vrot.lane.b32.xlu0 %v424, 108
      %v4527 = vpop.permute.xlu0 %4526
      %4528 = vrot.lane.b32.xlu0 %v425, 108
      %v4529 = vpop.permute.xlu0 %4528
      %4530 = vrot.lane.b32.xlu0 %v426, 108
      %v4531 = vpop.permute.xlu0 %4530
      %4532 = vrot.lane.b32.xlu0 %v427, 108
      %v4533 = vpop.permute.xlu0 %4532
      %4534 = vrot.lane.b32.xlu0 %v428, 108
      %v4535 = vpop.permute.xlu0 %4534
      %4536 = vrot.lane.b32.xlu0 %v429, 108
      %v4537 = vpop.permute.xlu0 %4536
      %4538 = vrot.lane.b32.xlu0 %v430, 108
      %v4539 = vpop.permute.xlu0 %4538
      %4540 = vrot.lane.b32.xlu0 %v431, 108
      %v4541 = vpop.permute.xlu0 %4540
      %4542 = vrot.lane.b32.xlu0 %v432, 108
      %v4543 = vpop.permute.xlu0 %4542
      %4544 = vrot.lane.b32.xlu0 %v433, 108
      %v4545 = vpop.permute.xlu0 %4544
      %4546 = vrot.lane.b32.xlu0 %v434, 108
      %v4547 = vpop.permute.xlu0 %4546
      %4548 = vrot.lane.b32.xlu0 %v435, 108
      %v4549 = vpop.permute.xlu0 %4548
      %4550 = vrot.lane.b32.xlu0 %v436, 108
      %v4551 = vpop.permute.xlu0 %4550
      %4552 = vrot.lane.b32.xlu0 %v437, 108
      %v4553 = vpop.permute.xlu0 %4552
      %4554 = vrot.lane.b32.xlu0 %v438, 108
      %v4555 = vpop.permute.xlu0 %4554
      %4556 = vrot.lane.b32.xlu0 %v439, 108
      %v4557 = vpop.permute.xlu0 %4556
      %4558 = vrot.lane.b32.xlu0 %v440, 108
      %v4559 = vpop.permute.xlu0 %4558
      %4560 = vrot.lane.b32.xlu0 %v441, 108
      %v4561 = vpop.permute.xlu0 %4560
      %4562 = vrot.lane.b32.xlu0 %v442, 108
      %v4563 = vpop.permute.xlu0 %4562
      %4564 = vrot.lane.b32.xlu0 %v443, 108
      %v4565 = vpop.permute.xlu0 %4564
      %4566 = vrot.lane.b32.xlu0 %v444, 108
      %v4567 = vpop.permute.xlu0 %4566
      %4568 = vrot.lane.b32.xlu0 %v445, 108
      %v4569 = vpop.permute.xlu0 %4568
      %4570 = vrot.lane.b32.xlu0 %v446, 108
      %v4571 = vpop.permute.xlu0 %4570
      %4572 = vrot.lane.b32.xlu0 %v3065, 108
      %v4573 = vpop.permute.xlu0 %4572
      %vm4574 = vcmask 883712
      %v4575 = vsel %vm4574, %v4509, %v4511
      %v4576 = vsel %vm4574, %v4511, %v4513
      %v4577 = vsel %vm4574, %v4513, %v4515
      %v4578 = vsel %vm4574, %v4515, %v4517
      %v4579 = vsel %vm4574, %v4517, %v4519
      %v4580 = vsel %vm4574, %v4519, %v4521
      %v4581 = vsel %vm4574, %v4521, %v4523
      %v4582 = vsel %vm4574, %v4523, %v4525
      %v4583 = vsel %vm4574, %v4525, %v4527
      %v4584 = vsel %vm4574, %v4527, %v4529
      %v4585 = vsel %vm4574, %v4529, %v4531
      %v4586 = vsel %vm4574, %v4531, %v4533
      %v4587 = vsel %vm4574, %v4533, %v4535
      %v4588 = vsel %vm4574, %v4535, %v4537
      %v4589 = vsel %vm4574, %v4537, %v4539
      %v4590 = vsel %vm4574, %v4539, %v4541
      %v4591 = vsel %vm4574, %v4541, %v4543
      %v4592 = vsel %vm4574, %v4543, %v4545
      %v4593 = vsel %vm4574, %v4545, %v4547
      %v4594 = vsel %vm4574, %v4547, %v4549
      %v4595 = vsel %vm4574, %v4549, %v4551
      %v4596 = vsel %vm4574, %v4551, %v4553
      %v4597 = vsel %vm4574, %v4553, %v4555
      %v4598 = vsel %vm4574, %v4555, %v4557
      %v4599 = vsel %vm4574, %v4557, %v4559
      %v4600 = vsel %vm4574, %v4559, %v4561
      %v4601 = vsel %vm4574, %v4561, %v4563
      %v4602 = vsel %vm4574, %v4563, %v4565
      %v4603 = vsel %vm4574, %v4565, %v4567
      %v4604 = vsel %vm4574, %v4567, %v4569
      %v4605 = vsel %vm4574, %v4569, %v4571
      %v4606 = vsel %vm4574, %v4571, %v4573
      %4639 = vrot.lane.b32.xlu0 %v415, 107
      %v4640 = vpop.permute.xlu0 %4639
      %4641 = vrot.lane.b32.xlu0 %v416, 107
      %v4642 = vpop.permute.xlu0 %4641
      %4643 = vrot.lane.b32.xlu0 %v417, 107
      %v4644 = vpop.permute.xlu0 %4643
      %4645 = vrot.lane.b32.xlu0 %v418, 107
      %v4646 = vpop.permute.xlu0 %4645
      %4647 = vrot.lane.b32.xlu0 %v419, 107
      %v4648 = vpop.permute.xlu0 %4647
      %4649 = vrot.lane.b32.xlu0 %v420, 107
      %v4650 = vpop.permute.xlu0 %4649
      %4651 = vrot.lane.b32.xlu0 %v421, 107
      %v4652 = vpop.permute.xlu0 %4651
      %4653 = vrot.lane.b32.xlu0 %v422, 107
      %v4654 = vpop.permute.xlu0 %4653
      %4655 = vrot.lane.b32.xlu0 %v423, 107
      %v4656 = vpop.permute.xlu0 %4655
      %4657 = vrot.lane.b32.xlu0 %v424, 107
      %v4658 = vpop.permute.xlu0 %4657
      %4659 = vrot.lane.b32.xlu0 %v425, 107
      %v4660 = vpop.permute.xlu0 %4659
      %4661 = vrot.lane.b32.xlu0 %v426, 107
      %v4662 = vpop.permute.xlu0 %4661
      %4663 = vrot.lane.b32.xlu0 %v427, 107
      %v4664 = vpop.permute.xlu0 %4663
      %4665 = vrot.lane.b32.xlu0 %v428, 107
      %v4666 = vpop.permute.xlu0 %4665
      %4667 = vrot.lane.b32.xlu0 %v429, 107
      %v4668 = vpop.permute.xlu0 %4667
      %4669 = vrot.lane.b32.xlu0 %v430, 107
      %v4670 = vpop.permute.xlu0 %4669
      %4671 = vrot.lane.b32.xlu0 %v431, 107
      %v4672 = vpop.permute.xlu0 %4671
      %4673 = vrot.lane.b32.xlu0 %v432, 107
      %v4674 = vpop.permute.xlu0 %4673
      %4675 = vrot.lane.b32.xlu0 %v433, 107
      %v4676 = vpop.permute.xlu0 %4675
      %4677 = vrot.lane.b32.xlu0 %v434, 107
      %v4678 = vpop.permute.xlu0 %4677
      %4679 = vrot.lane.b32.xlu0 %v435, 107
      %v4680 = vpop.permute.xlu0 %4679
      %4681 = vrot.lane.b32.xlu0 %v436, 107
      %v4682 = vpop.permute.xlu0 %4681
      %4683 = vrot.lane.b32.xlu0 %v437, 107
      %v4684 = vpop.permute.xlu0 %4683
      %4685 = vrot.lane.b32.xlu0 %v438, 107
      %v4686 = vpop.permute.xlu0 %4685
      %4687 = vrot.lane.b32.xlu0 %v439, 107
      %v4688 = vpop.permute.xlu0 %4687
      %4689 = vrot.lane.b32.xlu0 %v440, 107
      %v4690 = vpop.permute.xlu0 %4689
      %4691 = vrot.lane.b32.xlu0 %v441, 107
      %v4692 = vpop.permute.xlu0 %4691
      %4693 = vrot.lane.b32.xlu0 %v442, 107
      %v4694 = vpop.permute.xlu0 %4693
      %4695 = vrot.lane.b32.xlu0 %v443, 107
      %v4696 = vpop.permute.xlu0 %4695
      %4697 = vrot.lane.b32.xlu0 %v444, 107
      %v4698 = vpop.permute.xlu0 %4697
      %4699 = vrot.lane.b32.xlu0 %v445, 107
      %v4700 = vpop.permute.xlu0 %4699
      %4701 = vrot.lane.b32.xlu0 %v446, 107
      %v4702 = vpop.permute.xlu0 %4701
      %4703 = vrot.lane.b32.xlu0 %v3065, 107
      %v4704 = vpop.permute.xlu0 %4703
      %vm4705 = vcmask 875520
      %v4706 = vsel %vm4705, %v4640, %v4642
      %v4707 = vsel %vm4705, %v4642, %v4644
      %v4708 = vsel %vm4705, %v4644, %v4646
      %v4709 = vsel %vm4705, %v4646, %v4648
      %v4710 = vsel %vm4705, %v4648, %v4650
      %v4711 = vsel %vm4705, %v4650, %v4652
      %v4712 = vsel %vm4705, %v4652, %v4654
      %v4713 = vsel %vm4705, %v4654, %v4656
      %v4714 = vsel %vm4705, %v4656, %v4658
      %v4715 = vsel %vm4705, %v4658, %v4660
      %v4716 = vsel %vm4705, %v4660, %v4662
      %v4717 = vsel %vm4705, %v4662, %v4664
      %v4718 = vsel %vm4705, %v4664, %v4666
      %v4719 = vsel %vm4705, %v4666, %v4668
      %v4720 = vsel %vm4705, %v4668, %v4670
      %v4721 = vsel %vm4705, %v4670, %v4672
      %v4722 = vsel %vm4705, %v4672, %v4674
      %v4723 = vsel %vm4705, %v4674, %v4676
      %v4724 = vsel %vm4705, %v4676, %v4678
      %v4725 = vsel %vm4705, %v4678, %v4680
      %v4726 = vsel %vm4705, %v4680, %v4682
      %v4727 = vsel %vm4705, %v4682, %v4684
      %v4728 = vsel %vm4705, %v4684, %v4686
      %v4729 = vsel %vm4705, %v4686, %v4688
      %v4730 = vsel %vm4705, %v4688, %v4690
      %v4731 = vsel %vm4705, %v4690, %v4692
      %v4732 = vsel %vm4705, %v4692, %v4694
      %v4733 = vsel %vm4705, %v4694, %v4696
      %v4734 = vsel %vm4705, %v4696, %v4698
      %v4735 = vsel %vm4705, %v4698, %v4700
      %v4736 = vsel %vm4705, %v4700, %v4702
      %v4737 = vsel %vm4705, %v4702, %v4704
      %4770 = vrot.lane.b32.xlu0 %v415, 106
      %v4771 = vpop.permute.xlu0 %4770
      %4772 = vrot.lane.b32.xlu0 %v416, 106
      %v4773 = vpop.permute.xlu0 %4772
      %4774 = vrot.lane.b32.xlu0 %v417, 106
      %v4775 = vpop.permute.xlu0 %4774
      %4776 = vrot.lane.b32.xlu0 %v418, 106
      %v4777 = vpop.permute.xlu0 %4776
      %4778 = vrot.lane.b32.xlu0 %v419, 106
      %v4779 = vpop.permute.xlu0 %4778
      %4780 = vrot.lane.b32.xlu0 %v420, 106
      %v4781 = vpop.permute.xlu0 %4780
      %4782 = vrot.lane.b32.xlu0 %v421, 106
      %v4783 = vpop.permute.xlu0 %4782
      %4784 = vrot.lane.b32.xlu0 %v422, 106
      %v4785 = vpop.permute.xlu0 %4784
      %4786 = vrot.lane.b32.xlu0 %v423, 106
      %v4787 = vpop.permute.xlu0 %4786
      %4788 = vrot.lane.b32.xlu0 %v424, 106
      %v4789 = vpop.permute.xlu0 %4788
      %4790 = vrot.lane.b32.xlu0 %v425, 106
      %v4791 = vpop.permute.xlu0 %4790
      %4792 = vrot.lane.b32.xlu0 %v426, 106
      %v4793 = vpop.permute.xlu0 %4792
      %4794 = vrot.lane.b32.xlu0 %v427, 106
      %v4795 = vpop.permute.xlu0 %4794
      %4796 = vrot.lane.b32.xlu0 %v428, 106
      %v4797 = vpop.permute.xlu0 %4796
      %4798 = vrot.lane.b32.xlu0 %v429, 106
      %v4799 = vpop.permute.xlu0 %4798
      %4800 = vrot.lane.b32.xlu0 %v430, 106
      %v4801 = vpop.permute.xlu0 %4800
      %4802 = vrot.lane.b32.xlu0 %v431, 106
      %v4803 = vpop.permute.xlu0 %4802
      %4804 = vrot.lane.b32.xlu0 %v432, 106
      %v4805 = vpop.permute.xlu0 %4804
      %4806 = vrot.lane.b32.xlu0 %v433, 106
      %v4807 = vpop.permute.xlu0 %4806
      %4808 = vrot.lane.b32.xlu0 %v434, 106
      %v4809 = vpop.permute.xlu0 %4808
      %4810 = vrot.lane.b32.xlu0 %v435, 106
      %v4811 = vpop.permute.xlu0 %4810
      %4812 = vrot.lane.b32.xlu0 %v436, 106
      %v4813 = vpop.permute.xlu0 %4812
      %4814 = vrot.lane.b32.xlu0 %v437, 106
      %v4815 = vpop.permute.xlu0 %4814
      %4816 = vrot.lane.b32.xlu0 %v438, 106
      %v4817 = vpop.permute.xlu0 %4816
      %4818 = vrot.lane.b32.xlu0 %v439, 106
      %v4819 = vpop.permute.xlu0 %4818
      %4820 = vrot.lane.b32.xlu0 %v440, 106
      %v4821 = vpop.permute.xlu0 %4820
      %4822 = vrot.lane.b32.xlu0 %v441, 106
      %v4823 = vpop.permute.xlu0 %4822
      %4824 = vrot.lane.b32.xlu0 %v442, 106
      %v4825 = vpop.permute.xlu0 %4824
      %4826 = vrot.lane.b32.xlu0 %v443, 106
      %v4827 = vpop.permute.xlu0 %4826
      %4828 = vrot.lane.b32.xlu0 %v444, 106
      %v4829 = vpop.permute.xlu0 %4828
      %4830 = vrot.lane.b32.xlu0 %v445, 106
      %v4831 = vpop.permute.xlu0 %4830
      %4832 = vrot.lane.b32.xlu0 %v446, 106
      %v4833 = vpop.permute.xlu0 %4832
      %4834 = vrot.lane.b32.xlu0 %v3065, 106
      %v4835 = vpop.permute.xlu0 %4834
      %vm4836 = vcmask 867328
      %v4837 = vsel %vm4836, %v4771, %v4773
      %v4838 = vsel %vm4836, %v4773, %v4775
      %v4839 = vsel %vm4836, %v4775, %v4777
      %v4840 = vsel %vm4836, %v4777, %v4779
      %v4841 = vsel %vm4836, %v4779, %v4781
      %v4842 = vsel %vm4836, %v4781, %v4783
      %v4843 = vsel %vm4836, %v4783, %v4785
      %v4844 = vsel %vm4836, %v4785, %v4787
      %v4845 = vsel %vm4836, %v4787, %v4789
      %v4846 = vsel %vm4836, %v4789, %v4791
      %v4847 = vsel %vm4836, %v4791, %v4793
      %v4848 = vsel %vm4836, %v4793, %v4795
      %v4849 = vsel %vm4836, %v4795, %v4797
      %v4850 = vsel %vm4836, %v4797, %v4799
      %v4851 = vsel %vm4836, %v4799, %v4801
      %v4852 = vsel %vm4836, %v4801, %v4803
      %v4853 = vsel %vm4836, %v4803, %v4805
      %v4854 = vsel %vm4836, %v4805, %v4807
      %v4855 = vsel %vm4836, %v4807, %v4809
      %v4856 = vsel %vm4836, %v4809, %v4811
      %v4857 = vsel %vm4836, %v4811, %v4813
      %v4858 = vsel %vm4836, %v4813, %v4815
      %v4859 = vsel %vm4836, %v4815, %v4817
      %v4860 = vsel %vm4836, %v4817, %v4819
      %v4861 = vsel %vm4836, %v4819, %v4821
      %v4862 = vsel %vm4836, %v4821, %v4823
      %v4863 = vsel %vm4836, %v4823, %v4825
      %v4864 = vsel %vm4836, %v4825, %v4827
      %v4865 = vsel %vm4836, %v4827, %v4829
      %v4866 = vsel %vm4836, %v4829, %v4831
      %v4867 = vsel %vm4836, %v4831, %v4833
      %v4868 = vsel %vm4836, %v4833, %v4835
      %s4901 = scalar_lea.vmem %s1, 24
      %v4902 = vld [vmem:[%s4901] sm:$0xf]
      %v4903 = vld [vmem:[%s4901 + $0x4] sm:$0xf]
      %v4906 = vunpack.c.l.b16 %v4902
      %v4907 = vunpack.c.l.b16 %v4903
      %v4908 = vpack.c.b16 %v4907, %v4906
      %v4910 = vsel %vm1504, %v4908, 0
      %4912 = vmatpush.bf16.msra.mxu0 0
      %4913 = vmatpush.bf16.msra.mxu0 0
      %4914 = vmatpush.bf16.msra.mxu0 0
      %4915 = vmatpush.bf16.msra.mxu0 %v4837
      %4916 = vmatpush.bf16.msra.mxu0 %v4706
      %4917 = vmatpush.bf16.msra.mxu0 %v4575
      %4918 = vmatpush.bf16.msra.mxu0 %v4444
      %4919 = vmatpush.bf16.msra.mxu0 %v4313
      %4920 = vmatmul.bf16.gmra.mxu0 %v4910
      %v4921 = vpop.f32.mrf.mxu0
      %v4922 = vadd.f32 0.0, %v4921
      %v4923 = vpop.f32.mrf.mxu0
      %v4924 = vadd.f32 0.0, %v4923
      %4925 = vdwg.mxu0
      %4926 = vmatpush.bf16.msra.mxu0 0
      %4927 = vmatpush.bf16.msra.mxu0 0
      %4928 = vmatpush.bf16.msra.mxu0 0
      %4929 = vmatpush.bf16.msra.mxu0 %v4838
      %4930 = vmatpush.bf16.msra.mxu0 %v4707
      %4931 = vmatpush.bf16.msra.mxu0 %v4576
      %4932 = vmatpush.bf16.msra.mxu0 %v4445
      %4933 = vmatpush.bf16.msra.mxu0 %v4314
      %4934 = vmatmul.bf16.gmra.mxu0 %v4910
      %v4935 = vpop.f32.mrf.mxu0
      %v4936 = vadd.f32 0.0, %v4935
      %v4937 = vpop.f32.mrf.mxu0
      %v4938 = vadd.f32 0.0, %v4937
      %4939 = vdwg.mxu0
      %4940 = vmatpush.bf16.msra.mxu0 0
      %4941 = vmatpush.bf16.msra.mxu0 0
      %4942 = vmatpush.bf16.msra.mxu0 0
      %4943 = vmatpush.bf16.msra.mxu0 %v4839
      %4944 = vmatpush.bf16.msra.mxu0 %v4708
      %4945 = vmatpush.bf16.msra.mxu0 %v4577
      %4946 = vmatpush.bf16.msra.mxu0 %v4446
      %4947 = vmatpush.bf16.msra.mxu0 %v4315
      %4948 = vmatmul.bf16.gmra.mxu0 %v4910
      %v4949 = vpop.f32.mrf.mxu0
      %v4950 = vadd.f32 0.0, %v4949
      %v4951 = vpop.f32.mrf.mxu0
      %v4952 = vadd.f32 0.0, %v4951
      %4953 = vdwg.mxu0
      %4954 = vmatpush.bf16.msra.mxu0 0
      %4955 = vmatpush.bf16.msra.mxu0 0
      %4956 = vmatpush.bf16.msra.mxu0 0
      %4957 = vmatpush.bf16.msra.mxu0 %v4840
      %4958 = vmatpush.bf16.msra.mxu0 %v4709
      %4959 = vmatpush.bf16.msra.mxu0 %v4578
      %4960 = vmatpush.bf16.msra.mxu0 %v4447
      %4961 = vmatpush.bf16.msra.mxu0 %v4316
      %4962 = vmatmul.bf16.gmra.mxu0 %v4910
      %v4963 = vpop.f32.mrf.mxu0
      %v4964 = vadd.f32 0.0, %v4963
      %v4965 = vpop.f32.mrf.mxu0
      %v4966 = vadd.f32 0.0, %v4965
      %4967 = vdwg.mxu0
      %4968 = vmatpush.bf16.msra.mxu0 0
      %4969 = vmatpush.bf16.msra.mxu0 0
      %4970 = vmatpush.bf16.msra.mxu0 0
      %4971 = vmatpush.bf16.msra.mxu0 %v4841
      %4972 = vmatpush.bf16.msra.mxu0 %v4710
      %4973 = vmatpush.bf16.msra.mxu0 %v4579
      %4974 = vmatpush.bf16.msra.mxu0 %v4448
      %4975 = vmatpush.bf16.msra.mxu0 %v4317
      %4976 = vmatmul.bf16.gmra.mxu0 %v4910
      %v4977 = vpop.f32.mrf.mxu0
      %v4978 = vadd.f32 0.0, %v4977
      %v4979 = vpop.f32.mrf.mxu0
      %v4980 = vadd.f32 0.0, %v4979
      %4981 = vdwg.mxu0
      %4982 = vmatpush.bf16.msra.mxu0 0
      %4983 = vmatpush.bf16.msra.mxu0 0
      %4984 = vmatpush.bf16.msra.mxu0 0
      %4985 = vmatpush.bf16.msra.mxu0 %v4842
      %4986 = vmatpush.bf16.msra.mxu0 %v4711
      %4987 = vmatpush.bf16.msra.mxu0 %v4580
      %4988 = vmatpush.bf16.msra.mxu0 %v4449
      %4989 = vmatpush.bf16.msra.mxu0 %v4318
      %4990 = vmatmul.bf16.gmra.mxu0 %v4910
      %v4991 = vpop.f32.mrf.mxu0
      %v4992 = vadd.f32 0.0, %v4991
      %v4993 = vpop.f32.mrf.mxu0
      %v4994 = vadd.f32 0.0, %v4993
      %4995 = vdwg.mxu0
      %4996 = vmatpush.bf16.msra.mxu0 0
      %4997 = vmatpush.bf16.msra.mxu0 0
      %4998 = vmatpush.bf16.msra.mxu0 0
      %4999 = vmatpush.bf16.msra.mxu0 %v4843
      %5000 = vmatpush.bf16.msra.mxu0 %v4712
      %5001 = vmatpush.bf16.msra.mxu0 %v4581
      %5002 = vmatpush.bf16.msra.mxu0 %v4450
      %5003 = vmatpush.bf16.msra.mxu0 %v4319
      %5004 = vmatmul.bf16.gmra.mxu0 %v4910
      %v5005 = vpop.f32.mrf.mxu0
      %v5006 = vadd.f32 0.0, %v5005
      %v5007 = vpop.f32.mrf.mxu0
      %v5008 = vadd.f32 0.0, %v5007
      %5009 = vdwg.mxu0
      %5010 = vmatpush.bf16.msra.mxu0 0
      %5011 = vmatpush.bf16.msra.mxu0 0
      %5012 = vmatpush.bf16.msra.mxu0 0
      %5013 = vmatpush.bf16.msra.mxu0 %v4844
      %5014 = vmatpush.bf16.msra.mxu0 %v4713
      %5015 = vmatpush.bf16.msra.mxu0 %v4582
      %5016 = vmatpush.bf16.msra.mxu0 %v4451
      %5017 = vmatpush.bf16.msra.mxu0 %v4320
      %5018 = vmatmul.bf16.gmra.mxu0 %v4910
      %v5019 = vpop.f32.mrf.mxu0
      %v5020 = vadd.f32 0.0, %v5019
      %v5021 = vpop.f32.mrf.mxu0
      %v5022 = vadd.f32 0.0, %v5021
      %5023 = vdwg.mxu0
      %5024 = vmatpush.bf16.msra.mxu0 0
      %5025 = vmatpush.bf16.msra.mxu0 0
      %5026 = vmatpush.bf16.msra.mxu0 0
      %5027 = vmatpush.bf16.msra.mxu0 %v4845
      %5028 = vmatpush.bf16.msra.mxu0 %v4714
      %5029 = vmatpush.bf16.msra.mxu0 %v4583
      %5030 = vmatpush.bf16.msra.mxu0 %v4452
      %5031 = vmatpush.bf16.msra.mxu0 %v4321
      %5032 = vmatmul.bf16.gmra.mxu0 %v4910
      %v5033 = vpop.f32.mrf.mxu0
      %v5034 = vadd.f32 0.0, %v5033
      %v5035 = vpop.f32.mrf.mxu0
      %v5036 = vadd.f32 0.0, %v5035
      %5037 = vdwg.mxu0
      %5038 = vmatpush.bf16.msra.mxu0 0
      %5039 = vmatpush.bf16.msra.mxu0 0
      %5040 = vmatpush.bf16.msra.mxu0 0
      %5041 = vmatpush.bf16.msra.mxu0 %v4846
      %5042 = vmatpush.bf16.msra.mxu0 %v4715
      %5043 = vmatpush.bf16.msra.mxu0 %v4584
      %5044 = vmatpush.bf16.msra.mxu0 %v4453
      %5045 = vmatpush.bf16.msra.mxu0 %v4322
      %5046 = vmatmul.bf16.gmra.mxu0 %v4910
      %v5047 = vpop.f32.mrf.mxu0
      %v5048 = vadd.f32 0.0, %v5047
      %v5049 = vpop.f32.mrf.mxu0
      %v5050 = vadd.f32 0.0, %v5049
      %5051 = vdwg.mxu0
      %5052 = vmatpush.bf16.msra.mxu0 0
      %5053 = vmatpush.bf16.msra.mxu0 0
      %5054 = vmatpush.bf16.msra.mxu0 0
      %5055 = vmatpush.bf16.msra.mxu0 %v4847
      %5056 = vmatpush.bf16.msra.mxu0 %v4716
      %5057 = vmatpush.bf16.msra.mxu0 %v4585
      %5058 = vmatpush.bf16.msra.mxu0 %v4454
      %5059 = vmatpush.bf16.msra.mxu0 %v4323
      %5060 = vmatmul.bf16.gmra.mxu0 %v4910
      %v5061 = vpop.f32.mrf.mxu0
      %v5062 = vadd.f32 0.0, %v5061
      %v5063 = vpop.f32.mrf.mxu0
      %v5064 = vadd.f32 0.0, %v5063
      %5065 = vdwg.mxu0
      %5066 = vmatpush.bf16.msra.mxu0 0
      %5067 = vmatpush.bf16.msra.mxu0 0
      %5068 = vmatpush.bf16.msra.mxu0 0
      %5069 = vmatpush.bf16.msra.mxu0 %v4848
      %5070 = vmatpush.bf16.msra.mxu0 %v4717
      %5071 = vmatpush.bf16.msra.mxu0 %v4586
      %5072 = vmatpush.bf16.msra.mxu0 %v4455
      %5073 = vmatpush.bf16.msra.mxu0 %v4324
      %5074 = vmatmul.bf16.gmra.mxu0 %v4910
      %v5075 = vpop.f32.mrf.mxu0
      %v5076 = vadd.f32 0.0, %v5075
      %v5077 = vpop.f32.mrf.mxu0
      %v5078 = vadd.f32 0.0, %v5077
      %5079 = vdwg.mxu0
      %5080 = vmatpush.bf16.msra.mxu0 0
      %5081 = vmatpush.bf16.msra.mxu0 0
      %5082 = vmatpush.bf16.msra.mxu0 0
      %5083 = vmatpush.bf16.msra.mxu0 %v4849
      %5084 = vmatpush.bf16.msra.mxu0 %v4718
      %5085 = vmatpush.bf16.msra.mxu0 %v4587
      %5086 = vmatpush.bf16.msra.mxu0 %v4456
      %5087 = vmatpush.bf16.msra.mxu0 %v4325
      %5088 = vmatmul.bf16.gmra.mxu0 %v4910
      %v5089 = vpop.f32.mrf.mxu0
      %v5090 = vadd.f32 0.0, %v5089
      %v5091 = vpop.f32.mrf.mxu0
      %v5092 = vadd.f32 0.0, %v5091
      %5093 = vdwg.mxu0
      %5094 = vmatpush.bf16.msra.mxu0 0
      %5095 = vmatpush.bf16.msra.mxu0 0
      %5096 = vmatpush.bf16.msra.mxu0 0
      %5097 = vmatpush.bf16.msra.mxu0 %v4850
      %5098 = vmatpush.bf16.msra.mxu0 %v4719
      %5099 = vmatpush.bf16.msra.mxu0 %v4588
      %5100 = vmatpush.bf16.msra.mxu0 %v4457
      %5101 = vmatpush.bf16.msra.mxu0 %v4326
      %5102 = vmatmul.bf16.gmra.mxu0 %v4910
      %v5103 = vpop.f32.mrf.mxu0
      %v5104 = vadd.f32 0.0, %v5103
      %v5105 = vpop.f32.mrf.mxu0
      %v5106 = vadd.f32 0.0, %v5105
      %5107 = vdwg.mxu0
      %5108 = vmatpush.bf16.msra.mxu0 0
      %5109 = vmatpush.bf16.msra.mxu0 0
      %5110 = vmatpush.bf16.msra.mxu0 0
      %5111 = vmatpush.bf16.msra.mxu0 %v4851
      %5112 = vmatpush.bf16.msra.mxu0 %v4720
      %5113 = vmatpush.bf16.msra.mxu0 %v4589
      %5114 = vmatpush.bf16.msra.mxu0 %v4458
      %5115 = vmatpush.bf16.msra.mxu0 %v4327
      %5116 = vmatmul.bf16.gmra.mxu0 %v4910
      %v5117 = vpop.f32.mrf.mxu0
      %v5118 = vadd.f32 0.0, %v5117
      %v5119 = vpop.f32.mrf.mxu0
      %v5120 = vadd.f32 0.0, %v5119
      %5121 = vdwg.mxu0
      %5122 = vmatpush.bf16.msra.mxu0 0
      %5123 = vmatpush.bf16.msra.mxu0 0
      %5124 = vmatpush.bf16.msra.mxu0 0
      %5125 = vmatpush.bf16.msra.mxu0 %v4852
      %5126 = vmatpush.bf16.msra.mxu0 %v4721
      %5127 = vmatpush.bf16.msra.mxu0 %v4590
      %5128 = vmatpush.bf16.msra.mxu0 %v4459
      %5129 = vmatpush.bf16.msra.mxu0 %v4328
      %5130 = vmatmul.bf16.gmra.mxu0 %v4910
      %v5131 = vpop.f32.mrf.mxu0
      %v5132 = vadd.f32 0.0, %v5131
      %v5133 = vpop.f32.mrf.mxu0
      %v5134 = vadd.f32 0.0, %v5133
      %5135 = vdwg.mxu0
      %5136 = vmatpush.bf16.msra.mxu0 0
      %5137 = vmatpush.bf16.msra.mxu0 0
      %5138 = vmatpush.bf16.msra.mxu0 0
      %5139 = vmatpush.bf16.msra.mxu0 %v4853
      %5140 = vmatpush.bf16.msra.mxu0 %v4722
      %5141 = vmatpush.bf16.msra.mxu0 %v4591
      %5142 = vmatpush.bf16.msra.mxu0 %v4460
      %5143 = vmatpush.bf16.msra.mxu0 %v4329
      %5144 = vmatmul.bf16.gmra.mxu0 %v4910
      %v5145 = vpop.f32.mrf.mxu0
      %v5146 = vadd.f32 0.0, %v5145
      %v5147 = vpop.f32.mrf.mxu0
      %v5148 = vadd.f32 0.0, %v5147
      %5149 = vdwg.mxu0
      %5150 = vmatpush.bf16.msra.mxu0 0
      %5151 = vmatpush.bf16.msra.mxu0 0
      %5152 = vmatpush.bf16.msra.mxu0 0
      %5153 = vmatpush.bf16.msra.mxu0 %v4854
      %5154 = vmatpush.bf16.msra.mxu0 %v4723
      %5155 = vmatpush.bf16.msra.mxu0 %v4592
      %5156 = vmatpush.bf16.msra.mxu0 %v4461
      %5157 = vmatpush.bf16.msra.mxu0 %v4330
      %5158 = vmatmul.bf16.gmra.mxu0 %v4910
      %v5159 = vpop.f32.mrf.mxu0
      %v5160 = vadd.f32 0.0, %v5159
      %v5161 = vpop.f32.mrf.mxu0
      %v5162 = vadd.f32 0.0, %v5161
      %5163 = vdwg.mxu0
      %5164 = vmatpush.bf16.msra.mxu0 0
      %5165 = vmatpush.bf16.msra.mxu0 0
      %5166 = vmatpush.bf16.msra.mxu0 0
      %5167 = vmatpush.bf16.msra.mxu0 %v4855
      %5168 = vmatpush.bf16.msra.mxu0 %v4724
      %5169 = vmatpush.bf16.msra.mxu0 %v4593
      %5170 = vmatpush.bf16.msra.mxu0 %v4462
      %5171 = vmatpush.bf16.msra.mxu0 %v4331
      %5172 = vmatmul.bf16.gmra.mxu0 %v4910
      %v5173 = vpop.f32.mrf.mxu0
      %v5174 = vadd.f32 0.0, %v5173
      %v5175 = vpop.f32.mrf.mxu0
      %v5176 = vadd.f32 0.0, %v5175
      %5177 = vdwg.mxu0
      %5178 = vmatpush.bf16.msra.mxu0 0
      %5179 = vmatpush.bf16.msra.mxu0 0
      %5180 = vmatpush.bf16.msra.mxu0 0
      %5181 = vmatpush.bf16.msra.mxu0 %v4856
      %5182 = vmatpush.bf16.msra.mxu0 %v4725
      %5183 = vmatpush.bf16.msra.mxu0 %v4594
      %5184 = vmatpush.bf16.msra.mxu0 %v4463
      %5185 = vmatpush.bf16.msra.mxu0 %v4332
      %5186 = vmatmul.bf16.gmra.mxu0 %v4910
      %v5187 = vpop.f32.mrf.mxu0
      %v5188 = vadd.f32 0.0, %v5187
      %v5189 = vpop.f32.mrf.mxu0
      %v5190 = vadd.f32 0.0, %v5189
      %5191 = vdwg.mxu0
      %5192 = vmatpush.bf16.msra.mxu0 0
      %5193 = vmatpush.bf16.msra.mxu0 0
      %5194 = vmatpush.bf16.msra.mxu0 0
      %5195 = vmatpush.bf16.msra.mxu0 %v4857
      %5196 = vmatpush.bf16.msra.mxu0 %v4726
      %5197 = vmatpush.bf16.msra.mxu0 %v4595
      %5198 = vmatpush.bf16.msra.mxu0 %v4464
      %5199 = vmatpush.bf16.msra.mxu0 %v4333
      %5200 = vmatmul.bf16.gmra.mxu0 %v4910
      %v5201 = vpop.f32.mrf.mxu0
      %v5202 = vadd.f32 0.0, %v5201
      %v5203 = vpop.f32.mrf.mxu0
      %v5204 = vadd.f32 0.0, %v5203
      %5205 = vdwg.mxu0
      %5206 = vmatpush.bf16.msra.mxu0 0
      %5207 = vmatpush.bf16.msra.mxu0 0
      %5208 = vmatpush.bf16.msra.mxu0 0
      %5209 = vmatpush.bf16.msra.mxu0 %v4858
      %5210 = vmatpush.bf16.msra.mxu0 %v4727
      %5211 = vmatpush.bf16.msra.mxu0 %v4596
      %5212 = vmatpush.bf16.msra.mxu0 %v4465
      %5213 = vmatpush.bf16.msra.mxu0 %v4334
      %5214 = vmatmul.bf16.gmra.mxu0 %v4910
      %v5215 = vpop.f32.mrf.mxu0
      %v5216 = vadd.f32 0.0, %v5215
      %v5217 = vpop.f32.mrf.mxu0
      %v5218 = vadd.f32 0.0, %v5217
      %5219 = vdwg.mxu0
      %5220 = vmatpush.bf16.msra.mxu0 0
      %5221 = vmatpush.bf16.msra.mxu0 0
      %5222 = vmatpush.bf16.msra.mxu0 0
      %5223 = vmatpush.bf16.msra.mxu0 %v4859
      %5224 = vmatpush.bf16.msra.mxu0 %v4728
      %5225 = vmatpush.bf16.msra.mxu0 %v4597
      %5226 = vmatpush.bf16.msra.mxu0 %v4466
      %5227 = vmatpush.bf16.msra.mxu0 %v4335
      %5228 = vmatmul.bf16.gmra.mxu0 %v4910
      %v5229 = vpop.f32.mrf.mxu0
      %v5230 = vadd.f32 0.0, %v5229
      %v5231 = vpop.f32.mrf.mxu0
      %v5232 = vadd.f32 0.0, %v5231
      %5233 = vdwg.mxu0
      %5234 = vmatpush.bf16.msra.mxu0 0
      %5235 = vmatpush.bf16.msra.mxu0 0
      %5236 = vmatpush.bf16.msra.mxu0 0
      %5237 = vmatpush.bf16.msra.mxu0 %v4860
      %5238 = vmatpush.bf16.msra.mxu0 %v4729
      %5239 = vmatpush.bf16.msra.mxu0 %v4598
      %5240 = vmatpush.bf16.msra.mxu0 %v4467
      %5241 = vmatpush.bf16.msra.mxu0 %v4336
      %5242 = vmatmul.bf16.gmra.mxu0 %v4910
      %v5243 = vpop.f32.mrf.mxu0
      %v5244 = vadd.f32 0.0, %v5243
      %v5245 = vpop.f32.mrf.mxu0
      %v5246 = vadd.f32 0.0, %v5245
      %5247 = vdwg.mxu0
      %5248 = vmatpush.bf16.msra.mxu0 0
      %5249 = vmatpush.bf16.msra.mxu0 0
      %5250 = vmatpush.bf16.msra.mxu0 0
      %5251 = vmatpush.bf16.msra.mxu0 %v4861
      %5252 = vmatpush.bf16.msra.mxu0 %v4730
      %5253 = vmatpush.bf16.msra.mxu0 %v4599
      %5254 = vmatpush.bf16.msra.mxu0 %v4468
      %5255 = vmatpush.bf16.msra.mxu0 %v4337
      %5256 = vmatmul.bf16.gmra.mxu0 %v4910
      %v5257 = vpop.f32.mrf.mxu0
      %v5258 = vadd.f32 0.0, %v5257
      %v5259 = vpop.f32.mrf.mxu0
      %v5260 = vadd.f32 0.0, %v5259
      %5261 = vdwg.mxu0
      %5262 = vmatpush.bf16.msra.mxu0 0
      %5263 = vmatpush.bf16.msra.mxu0 0
      %5264 = vmatpush.bf16.msra.mxu0 0
      %5265 = vmatpush.bf16.msra.mxu0 %v4862
      %5266 = vmatpush.bf16.msra.mxu0 %v4731
      %5267 = vmatpush.bf16.msra.mxu0 %v4600
      %5268 = vmatpush.bf16.msra.mxu0 %v4469
      %5269 = vmatpush.bf16.msra.mxu0 %v4338
      %5270 = vmatmul.bf16.gmra.mxu0 %v4910
      %v5271 = vpop.f32.mrf.mxu0
      %v5272 = vadd.f32 0.0, %v5271
      %v5273 = vpop.f32.mrf.mxu0
      %v5274 = vadd.f32 0.0, %v5273
      %5275 = vdwg.mxu0
      %5276 = vmatpush.bf16.msra.mxu0 0
      %5277 = vmatpush.bf16.msra.mxu0 0
      %5278 = vmatpush.bf16.msra.mxu0 0
      %5279 = vmatpush.bf16.msra.mxu0 %v4863
      %5280 = vmatpush.bf16.msra.mxu0 %v4732
      %5281 = vmatpush.bf16.msra.mxu0 %v4601
      %5282 = vmatpush.bf16.msra.mxu0 %v4470
      %5283 = vmatpush.bf16.msra.mxu0 %v4339
      %5284 = vmatmul.bf16.gmra.mxu0 %v4910
      %v5285 = vpop.f32.mrf.mxu0
      %v5286 = vadd.f32 0.0, %v5285
      %v5287 = vpop.f32.mrf.mxu0
      %v5288 = vadd.f32 0.0, %v5287
      %5289 = vdwg.mxu0
      %5290 = vmatpush.bf16.msra.mxu0 0
      %5291 = vmatpush.bf16.msra.mxu0 0
      %5292 = vmatpush.bf16.msra.mxu0 0
      %5293 = vmatpush.bf16.msra.mxu0 %v4864
      %5294 = vmatpush.bf16.msra.mxu0 %v4733
      %5295 = vmatpush.bf16.msra.mxu0 %v4602
      %5296 = vmatpush.bf16.msra.mxu0 %v4471
      %5297 = vmatpush.bf16.msra.mxu0 %v4340
      %5298 = vmatmul.bf16.gmra.mxu0 %v4910
      %v5299 = vpop.f32.mrf.mxu0
      %v5300 = vadd.f32 0.0, %v5299
      %v5301 = vpop.f32.mrf.mxu0
      %v5302 = vadd.f32 0.0, %v5301
      %5303 = vdwg.mxu0
      %5304 = vmatpush.bf16.msra.mxu0 0
      %5305 = vmatpush.bf16.msra.mxu0 0
      %5306 = vmatpush.bf16.msra.mxu0 0
      %5307 = vmatpush.bf16.msra.mxu0 %v4865
      %5308 = vmatpush.bf16.msra.mxu0 %v4734
      %5309 = vmatpush.bf16.msra.mxu0 %v4603
      %5310 = vmatpush.bf16.msra.mxu0 %v4472
      %5311 = vmatpush.bf16.msra.mxu0 %v4341
      %5312 = vmatmul.bf16.gmra.mxu0 %v4910
      %v5313 = vpop.f32.mrf.mxu0
      %v5314 = vadd.f32 0.0, %v5313
      %v5315 = vpop.f32.mrf.mxu0
      %v5316 = vadd.f32 0.0, %v5315
      %5317 = vdwg.mxu0
      %5318 = vmatpush.bf16.msra.mxu0 0
      %5319 = vmatpush.bf16.msra.mxu0 0
      %5320 = vmatpush.bf16.msra.mxu0 0
      %5321 = vmatpush.bf16.msra.mxu0 %v4866
      %5322 = vmatpush.bf16.msra.mxu0 %v4735
      %5323 = vmatpush.bf16.msra.mxu0 %v4604
      %5324 = vmatpush.bf16.msra.mxu0 %v4473
      %5325 = vmatpush.bf16.msra.mxu0 %v4342
      %5326 = vmatmul.bf16.gmra.mxu0 %v4910
      %v5327 = vpop.f32.mrf.mxu0
      %v5328 = vadd.f32 0.0, %v5327
      %v5329 = vpop.f32.mrf.mxu0
      %v5330 = vadd.f32 0.0, %v5329
      %5331 = vdwg.mxu0
      %5332 = vmatpush.bf16.msra.mxu0 0
      %5333 = vmatpush.bf16.msra.mxu0 0
      %5334 = vmatpush.bf16.msra.mxu0 0
      %5335 = vmatpush.bf16.msra.mxu0 %v4867
      %5336 = vmatpush.bf16.msra.mxu0 %v4736
      %5337 = vmatpush.bf16.msra.mxu0 %v4605
      %5338 = vmatpush.bf16.msra.mxu0 %v4474
      %5339 = vmatpush.bf16.msra.mxu0 %v4343
      %5340 = vmatmul.bf16.gmra.mxu0 %v4910
      %v5341 = vpop.f32.mrf.mxu0
      %v5342 = vadd.f32 0.0, %v5341
      %v5343 = vpop.f32.mrf.mxu0
      %v5344 = vadd.f32 0.0, %v5343
      %5345 = vdwg.mxu0
      %5346 = vmatpush.bf16.msra.mxu0 0
      %5347 = vmatpush.bf16.msra.mxu0 0
      %5348 = vmatpush.bf16.msra.mxu0 0
      %5349 = vmatpush.bf16.msra.mxu0 %v4868
      %5350 = vmatpush.bf16.msra.mxu0 %v4737
      %5351 = vmatpush.bf16.msra.mxu0 %v4606
      %5352 = vmatpush.bf16.msra.mxu0 %v4475
      %5353 = vmatpush.bf16.msra.mxu0 %v4344
      %5354 = vmatmul.bf16.gmra.mxu0 %v4910
      %v5355 = vpop.f32.mrf.mxu0
      %v5356 = vadd.f32 0.0, %v5355
      %v5357 = vpop.f32.mrf.mxu0
      %v5358 = vadd.f32 0.0, %v5357
      %5359 = vdwg.mxu0
      %v5360 = vadd.f32 %v4182, %v4922
      %v5361 = vadd.f32 %v4183, %v4936
      %v5362 = vadd.f32 %v4184, %v4950
      %v5363 = vadd.f32 %v4185, %v4964
      %v5364 = vadd.f32 %v4186, %v4978
      %v5365 = vadd.f32 %v4187, %v4992
      %v5366 = vadd.f32 %v4188, %v5006
      %v5367 = vadd.f32 %v4189, %v5020
      %v5368 = vadd.f32 %v4190, %v5034
      %v5369 = vadd.f32 %v4191, %v5048
      %v5370 = vadd.f32 %v4192, %v5062
      %v5371 = vadd.f32 %v4193, %v5076
      %v5372 = vadd.f32 %v4194, %v5090
      %v5373 = vadd.f32 %v4195, %v5104
      %v5374 = vadd.f32 %v4196, %v5118
      %v5375 = vadd.f32 %v4197, %v5132
      %v5376 = vadd.f32 %v4198, %v5146
      %v5377 = vadd.f32 %v4199, %v5160
      %v5378 = vadd.f32 %v4200, %v5174
      %v5379 = vadd.f32 %v4201, %v5188
      %v5380 = vadd.f32 %v4202, %v5202
      %v5381 = vadd.f32 %v4203, %v5216
      %v5382 = vadd.f32 %v4204, %v5230
      %v5383 = vadd.f32 %v4205, %v5244
      %v5384 = vadd.f32 %v4206, %v5258
      %v5385 = vadd.f32 %v4207, %v5272
      %v5386 = vadd.f32 %v4208, %v5286
      %v5387 = vadd.f32 %v4209, %v5300
      %v5388 = vadd.f32 %v4210, %v5314
      %v5389 = vadd.f32 %v4211, %v5328
      %v5390 = vadd.f32 %v4212, %v5342
      %v5391 = vadd.f32 %v4213, %v5356
      %v5392 = vadd.f32 %v4214, %v4924
      %v5393 = vadd.f32 %v4215, %v4938
      %v5394 = vadd.f32 %v4216, %v4952
      %v5395 = vadd.f32 %v4217, %v4966
      %v5396 = vadd.f32 %v4218, %v4980
      %v5397 = vadd.f32 %v4219, %v4994
      %v5398 = vadd.f32 %v4220, %v5008
      %v5399 = vadd.f32 %v4221, %v5022
      %v5400 = vadd.f32 %v4222, %v5036
      %v5401 = vadd.f32 %v4223, %v5050
      %v5402 = vadd.f32 %v4224, %v5064
      %v5403 = vadd.f32 %v4225, %v5078
      %v5404 = vadd.f32 %v4226, %v5092
      %v5405 = vadd.f32 %v4227, %v5106
      %v5406 = vadd.f32 %v4228, %v5120
      %v5407 = vadd.f32 %v4229, %v5134
      %v5408 = vadd.f32 %v4230, %v5148
      %v5409 = vadd.f32 %v4231, %v5162
      %v5410 = vadd.f32 %v4232, %v5176
      %v5411 = vadd.f32 %v4233, %v5190
      %v5412 = vadd.f32 %v4234, %v5204
      %v5413 = vadd.f32 %v4235, %v5218
      %v5414 = vadd.f32 %v4236, %v5232
      %v5415 = vadd.f32 %v4237, %v5246
      %v5416 = vadd.f32 %v4238, %v5260
      %v5417 = vadd.f32 %v4239, %v5274
      %v5418 = vadd.f32 %v4240, %v5288
      %v5419 = vadd.f32 %v4241, %v5302
      %v5420 = vadd.f32 %v4242, %v5316
      %v5421 = vadd.f32 %v4243, %v5330
      %v5422 = vadd.f32 %v4244, %v5344
      %v5423 = vadd.f32 %v4245, %v5358
      %5424 = vrot.lane.b32.xlu0 %v415, 90
      %v5425 = vpop.permute.xlu0 %5424
      %5426 = vrot.lane.b32.xlu0 %v416, 90
      %v5427 = vpop.permute.xlu0 %5426
      %5428 = vrot.lane.b32.xlu0 %v417, 90
      %v5429 = vpop.permute.xlu0 %5428
      %5430 = vrot.lane.b32.xlu0 %v418, 90
      %v5431 = vpop.permute.xlu0 %5430
      %5432 = vrot.lane.b32.xlu0 %v419, 90
      %v5433 = vpop.permute.xlu0 %5432
      %5434 = vrot.lane.b32.xlu0 %v420, 90
      %v5435 = vpop.permute.xlu0 %5434
      %5436 = vrot.lane.b32.xlu0 %v421, 90
      %v5437 = vpop.permute.xlu0 %5436
      %5438 = vrot.lane.b32.xlu0 %v422, 90
      %v5439 = vpop.permute.xlu0 %5438
      %5440 = vrot.lane.b32.xlu0 %v423, 90
      %v5441 = vpop.permute.xlu0 %5440
      %5442 = vrot.lane.b32.xlu0 %v424, 90
      %v5443 = vpop.permute.xlu0 %5442
      %5444 = vrot.lane.b32.xlu0 %v425, 90
      %v5445 = vpop.permute.xlu0 %5444
      %5446 = vrot.lane.b32.xlu0 %v426, 90
      %v5447 = vpop.permute.xlu0 %5446
      %5448 = vrot.lane.b32.xlu0 %v427, 90
      %v5449 = vpop.permute.xlu0 %5448
      %5450 = vrot.lane.b32.xlu0 %v428, 90
      %v5451 = vpop.permute.xlu0 %5450
      %5452 = vrot.lane.b32.xlu0 %v429, 90
      %v5453 = vpop.permute.xlu0 %5452
      %5454 = vrot.lane.b32.xlu0 %v430, 90
      %v5455 = vpop.permute.xlu0 %5454
      %5456 = vrot.lane.b32.xlu0 %v431, 90
      %v5457 = vpop.permute.xlu0 %5456
      %5458 = vrot.lane.b32.xlu0 %v432, 90
      %v5459 = vpop.permute.xlu0 %5458
      %5460 = vrot.lane.b32.xlu0 %v433, 90
      %v5461 = vpop.permute.xlu0 %5460
      %5462 = vrot.lane.b32.xlu0 %v434, 90
      %v5463 = vpop.permute.xlu0 %5462
      %5464 = vrot.lane.b32.xlu0 %v435, 90
      %v5465 = vpop.permute.xlu0 %5464
      %5466 = vrot.lane.b32.xlu0 %v436, 90
      %v5467 = vpop.permute.xlu0 %5466
      %5468 = vrot.lane.b32.xlu0 %v437, 90
      %v5469 = vpop.permute.xlu0 %5468
      %5470 = vrot.lane.b32.xlu0 %v438, 90
      %v5471 = vpop.permute.xlu0 %5470
      %5472 = vrot.lane.b32.xlu0 %v439, 90
      %v5473 = vpop.permute.xlu0 %5472
      %5474 = vrot.lane.b32.xlu0 %v440, 90
      %v5475 = vpop.permute.xlu0 %5474
      %5476 = vrot.lane.b32.xlu0 %v441, 90
      %v5477 = vpop.permute.xlu0 %5476
      %5478 = vrot.lane.b32.xlu0 %v442, 90
      %v5479 = vpop.permute.xlu0 %5478
      %5480 = vrot.lane.b32.xlu0 %v443, 90
      %v5481 = vpop.permute.xlu0 %5480
      %5482 = vrot.lane.b32.xlu0 %v444, 90
      %v5483 = vpop.permute.xlu0 %5482
      %5484 = vrot.lane.b32.xlu0 %v445, 90
      %v5485 = vpop.permute.xlu0 %5484
      %5486 = vrot.lane.b32.xlu0 %v446, 90
      %v5487 = vpop.permute.xlu0 %5486
      %5488 = vrot.lane.b32.xlu0 %v3065, 90
      %v5489 = vpop.permute.xlu0 %5488
      %vm5490 = vcmask 736256
      %v5491 = vsel %vm5490, %v5425, %v5427
      %v5492 = vsel %vm5490, %v5427, %v5429
      %v5493 = vsel %vm5490, %v5429, %v5431
      %v5494 = vsel %vm5490, %v5431, %v5433
      %v5495 = vsel %vm5490, %v5433, %v5435
      %v5496 = vsel %vm5490, %v5435, %v5437
      %v5497 = vsel %vm5490, %v5437, %v5439
      %v5498 = vsel %vm5490, %v5439, %v5441
      %v5499 = vsel %vm5490, %v5441, %v5443
      %v5500 = vsel %vm5490, %v5443, %v5445
      %v5501 = vsel %vm5490, %v5445, %v5447
      %v5502 = vsel %vm5490, %v5447, %v5449
      %v5503 = vsel %vm5490, %v5449, %v5451
      %v5504 = vsel %vm5490, %v5451, %v5453
      %v5505 = vsel %vm5490, %v5453, %v5455
      %v5506 = vsel %vm5490, %v5455, %v5457
      %v5507 = vsel %vm5490, %v5457, %v5459
      %v5508 = vsel %vm5490, %v5459, %v5461
      %v5509 = vsel %vm5490, %v5461, %v5463
      %v5510 = vsel %vm5490, %v5463, %v5465
      %v5511 = vsel %vm5490, %v5465, %v5467
      %v5512 = vsel %vm5490, %v5467, %v5469
      %v5513 = vsel %vm5490, %v5469, %v5471
      %v5514 = vsel %vm5490, %v5471, %v5473
      %v5515 = vsel %vm5490, %v5473, %v5475
      %v5516 = vsel %vm5490, %v5475, %v5477
      %v5517 = vsel %vm5490, %v5477, %v5479
      %v5518 = vsel %vm5490, %v5479, %v5481
      %v5519 = vsel %vm5490, %v5481, %v5483
      %v5520 = vsel %vm5490, %v5483, %v5485
      %v5521 = vsel %vm5490, %v5485, %v5487
      %v5522 = vsel %vm5490, %v5487, %v5489
      %5555 = vrot.lane.b32.xlu0 %v415, 89
      %v5556 = vpop.permute.xlu0 %5555
      %5557 = vrot.lane.b32.xlu0 %v416, 89
      %v5558 = vpop.permute.xlu0 %5557
      %5559 = vrot.lane.b32.xlu0 %v417, 89
      %v5560 = vpop.permute.xlu0 %5559
      %5561 = vrot.lane.b32.xlu0 %v418, 89
      %v5562 = vpop.permute.xlu0 %5561
      %5563 = vrot.lane.b32.xlu0 %v419, 89
      %v5564 = vpop.permute.xlu0 %5563
      %5565 = vrot.lane.b32.xlu0 %v420, 89
      %v5566 = vpop.permute.xlu0 %5565
      %5567 = vrot.lane.b32.xlu0 %v421, 89
      %v5568 = vpop.permute.xlu0 %5567
      %5569 = vrot.lane.b32.xlu0 %v422, 89
      %v5570 = vpop.permute.xlu0 %5569
      %5571 = vrot.lane.b32.xlu0 %v423, 89
      %v5572 = vpop.permute.xlu0 %5571
      %5573 = vrot.lane.b32.xlu0 %v424, 89
      %v5574 = vpop.permute.xlu0 %5573
      %5575 = vrot.lane.b32.xlu0 %v425, 89
      %v5576 = vpop.permute.xlu0 %5575
      %5577 = vrot.lane.b32.xlu0 %v426, 89
      %v5578 = vpop.permute.xlu0 %5577
      %5579 = vrot.lane.b32.xlu0 %v427, 89
      %v5580 = vpop.permute.xlu0 %5579
      %5581 = vrot.lane.b32.xlu0 %v428, 89
      %v5582 = vpop.permute.xlu0 %5581
      %5583 = vrot.lane.b32.xlu0 %v429, 89
      %v5584 = vpop.permute.xlu0 %5583
      %5585 = vrot.lane.b32.xlu0 %v430, 89
      %v5586 = vpop.permute.xlu0 %5585
      %5587 = vrot.lane.b32.xlu0 %v431, 89
      %v5588 = vpop.permute.xlu0 %5587
      %5589 = vrot.lane.b32.xlu0 %v432, 89
      %v5590 = vpop.permute.xlu0 %5589
      %5591 = vrot.lane.b32.xlu0 %v433, 89
      %v5592 = vpop.permute.xlu0 %5591
      %5593 = vrot.lane.b32.xlu0 %v434, 89
      %v5594 = vpop.permute.xlu0 %5593
      %5595 = vrot.lane.b32.xlu0 %v435, 89
      %v5596 = vpop.permute.xlu0 %5595
      %5597 = vrot.lane.b32.xlu0 %v436, 89
      %v5598 = vpop.permute.xlu0 %5597
      %5599 = vrot.lane.b32.xlu0 %v437, 89
      %v5600 = vpop.permute.xlu0 %5599
      %5601 = vrot.lane.b32.xlu0 %v438, 89
      %v5602 = vpop.permute.xlu0 %5601
      %5603 = vrot.lane.b32.xlu0 %v439, 89
      %v5604 = vpop.permute.xlu0 %5603
      %5605 = vrot.lane.b32.xlu0 %v440, 89
      %v5606 = vpop.permute.xlu0 %5605
      %5607 = vrot.lane.b32.xlu0 %v441, 89
      %v5608 = vpop.permute.xlu0 %5607
      %5609 = vrot.lane.b32.xlu0 %v442, 89
      %v5610 = vpop.permute.xlu0 %5609
      %5611 = vrot.lane.b32.xlu0 %v443, 89
      %v5612 = vpop.permute.xlu0 %5611
      %5613 = vrot.lane.b32.xlu0 %v444, 89
      %v5614 = vpop.permute.xlu0 %5613
      %5615 = vrot.lane.b32.xlu0 %v445, 89
      %v5616 = vpop.permute.xlu0 %5615
      %5617 = vrot.lane.b32.xlu0 %v446, 89
      %v5618 = vpop.permute.xlu0 %5617
      %5619 = vrot.lane.b32.xlu0 %v3065, 89
      %v5620 = vpop.permute.xlu0 %5619
      %vm5621 = vcmask 728064
      %v5622 = vsel %vm5621, %v5556, %v5558
      %v5623 = vsel %vm5621, %v5558, %v5560
      %v5624 = vsel %vm5621, %v5560, %v5562
      %v5625 = vsel %vm5621, %v5562, %v5564
      %v5626 = vsel %vm5621, %v5564, %v5566
      %v5627 = vsel %vm5621, %v5566, %v5568
      %v5628 = vsel %vm5621, %v5568, %v5570
      %v5629 = vsel %vm5621, %v5570, %v5572
      %v5630 = vsel %vm5621, %v5572, %v5574
      %v5631 = vsel %vm5621, %v5574, %v5576
      %v5632 = vsel %vm5621, %v5576, %v5578
      %v5633 = vsel %vm5621, %v5578, %v5580
      %v5634 = vsel %vm5621, %v5580, %v5582
      %v5635 = vsel %vm5621, %v5582, %v5584
      %v5636 = vsel %vm5621, %v5584, %v5586
      %v5637 = vsel %vm5621, %v5586, %v5588
      %v5638 = vsel %vm5621, %v5588, %v5590
      %v5639 = vsel %vm5621, %v5590, %v5592
      %v5640 = vsel %vm5621, %v5592, %v5594
      %v5641 = vsel %vm5621, %v5594, %v5596
      %v5642 = vsel %vm5621, %v5596, %v5598
      %v5643 = vsel %vm5621, %v5598, %v5600
      %v5644 = vsel %vm5621, %v5600, %v5602
      %v5645 = vsel %vm5621, %v5602, %v5604
      %v5646 = vsel %vm5621, %v5604, %v5606
      %v5647 = vsel %vm5621, %v5606, %v5608
      %v5648 = vsel %vm5621, %v5608, %v5610
      %v5649 = vsel %vm5621, %v5610, %v5612
      %v5650 = vsel %vm5621, %v5612, %v5614
      %v5651 = vsel %vm5621, %v5614, %v5616
      %v5652 = vsel %vm5621, %v5616, %v5618
      %v5653 = vsel %vm5621, %v5618, %v5620
      %5686 = vrot.lane.b32.xlu0 %v415, 88
      %v5687 = vpop.permute.xlu0 %5686
      %5688 = vrot.lane.b32.xlu0 %v416, 88
      %v5689 = vpop.permute.xlu0 %5688
      %5690 = vrot.lane.b32.xlu0 %v417, 88
      %v5691 = vpop.permute.xlu0 %5690
      %5692 = vrot.lane.b32.xlu0 %v418, 88
      %v5693 = vpop.permute.xlu0 %5692
      %5694 = vrot.lane.b32.xlu0 %v419, 88
      %v5695 = vpop.permute.xlu0 %5694
      %5696 = vrot.lane.b32.xlu0 %v420, 88
      %v5697 = vpop.permute.xlu0 %5696
      %5698 = vrot.lane.b32.xlu0 %v421, 88
      %v5699 = vpop.permute.xlu0 %5698
      %5700 = vrot.lane.b32.xlu0 %v422, 88
      %v5701 = vpop.permute.xlu0 %5700
      %5702 = vrot.lane.b32.xlu0 %v423, 88
      %v5703 = vpop.permute.xlu0 %5702
      %5704 = vrot.lane.b32.xlu0 %v424, 88
      %v5705 = vpop.permute.xlu0 %5704
      %5706 = vrot.lane.b32.xlu0 %v425, 88
      %v5707 = vpop.permute.xlu0 %5706
      %5708 = vrot.lane.b32.xlu0 %v426, 88
      %v5709 = vpop.permute.xlu0 %5708
      %5710 = vrot.lane.b32.xlu0 %v427, 88
      %v5711 = vpop.permute.xlu0 %5710
      %5712 = vrot.lane.b32.xlu0 %v428, 88
      %v5713 = vpop.permute.xlu0 %5712
      %5714 = vrot.lane.b32.xlu0 %v429, 88
      %v5715 = vpop.permute.xlu0 %5714
      %5716 = vrot.lane.b32.xlu0 %v430, 88
      %v5717 = vpop.permute.xlu0 %5716
      %5718 = vrot.lane.b32.xlu0 %v431, 88
      %v5719 = vpop.permute.xlu0 %5718
      %5720 = vrot.lane.b32.xlu0 %v432, 88
      %v5721 = vpop.permute.xlu0 %5720
      %5722 = vrot.lane.b32.xlu0 %v433, 88
      %v5723 = vpop.permute.xlu0 %5722
      %5724 = vrot.lane.b32.xlu0 %v434, 88
      %v5725 = vpop.permute.xlu0 %5724
      %5726 = vrot.lane.b32.xlu0 %v435, 88
      %v5727 = vpop.permute.xlu0 %5726
      %5728 = vrot.lane.b32.xlu0 %v436, 88
      %v5729 = vpop.permute.xlu0 %5728
      %5730 = vrot.lane.b32.xlu0 %v437, 88
      %v5731 = vpop.permute.xlu0 %5730
      %5732 = vrot.lane.b32.xlu0 %v438, 88
      %v5733 = vpop.permute.xlu0 %5732
      %5734 = vrot.lane.b32.xlu0 %v439, 88
      %v5735 = vpop.permute.xlu0 %5734
      %5736 = vrot.lane.b32.xlu0 %v440, 88
      %v5737 = vpop.permute.xlu0 %5736
      %5738 = vrot.lane.b32.xlu0 %v441, 88
      %v5739 = vpop.permute.xlu0 %5738
      %5740 = vrot.lane.b32.xlu0 %v442, 88
      %v5741 = vpop.permute.xlu0 %5740
      %5742 = vrot.lane.b32.xlu0 %v443, 88
      %v5743 = vpop.permute.xlu0 %5742
      %5744 = vrot.lane.b32.xlu0 %v444, 88
      %v5745 = vpop.permute.xlu0 %5744
      %5746 = vrot.lane.b32.xlu0 %v445, 88
      %v5747 = vpop.permute.xlu0 %5746
      %5748 = vrot.lane.b32.xlu0 %v446, 88
      %v5749 = vpop.permute.xlu0 %5748
      %5750 = vrot.lane.b32.xlu0 %v3065, 88
      %v5751 = vpop.permute.xlu0 %5750
      %vm5752 = vcmask 719872
      %v5753 = vsel %vm5752, %v5687, %v5689
      %v5754 = vsel %vm5752, %v5689, %v5691
      %v5755 = vsel %vm5752, %v5691, %v5693
      %v5756 = vsel %vm5752, %v5693, %v5695
      %v5757 = vsel %vm5752, %v5695, %v5697
      %v5758 = vsel %vm5752, %v5697, %v5699
      %v5759 = vsel %vm5752, %v5699, %v5701
      %v5760 = vsel %vm5752, %v5701, %v5703
      %v5761 = vsel %vm5752, %v5703, %v5705
      %v5762 = vsel %vm5752, %v5705, %v5707
      %v5763 = vsel %vm5752, %v5707, %v5709
      %v5764 = vsel %vm5752, %v5709, %v5711
      %v5765 = vsel %vm5752, %v5711, %v5713
      %v5766 = vsel %vm5752, %v5713, %v5715
      %v5767 = vsel %vm5752, %v5715, %v5717
      %v5768 = vsel %vm5752, %v5717, %v5719
      %v5769 = vsel %vm5752, %v5719, %v5721
      %v5770 = vsel %vm5752, %v5721, %v5723
      %v5771 = vsel %vm5752, %v5723, %v5725
      %v5772 = vsel %vm5752, %v5725, %v5727
      %v5773 = vsel %vm5752, %v5727, %v5729
      %v5774 = vsel %vm5752, %v5729, %v5731
      %v5775 = vsel %vm5752, %v5731, %v5733
      %v5776 = vsel %vm5752, %v5733, %v5735
      %v5777 = vsel %vm5752, %v5735, %v5737
      %v5778 = vsel %vm5752, %v5737, %v5739
      %v5779 = vsel %vm5752, %v5739, %v5741
      %v5780 = vsel %vm5752, %v5741, %v5743
      %v5781 = vsel %vm5752, %v5743, %v5745
      %v5782 = vsel %vm5752, %v5745, %v5747
      %v5783 = vsel %vm5752, %v5747, %v5749
      %v5784 = vsel %vm5752, %v5749, %v5751
      %5817 = vrot.lane.b32.xlu0 %v415, 87
      %v5818 = vpop.permute.xlu0 %5817
      %5819 = vrot.lane.b32.xlu0 %v416, 87
      %v5820 = vpop.permute.xlu0 %5819
      %5821 = vrot.lane.b32.xlu0 %v417, 87
      %v5822 = vpop.permute.xlu0 %5821
      %5823 = vrot.lane.b32.xlu0 %v418, 87
      %v5824 = vpop.permute.xlu0 %5823
      %5825 = vrot.lane.b32.xlu0 %v419, 87
      %v5826 = vpop.permute.xlu0 %5825
      %5827 = vrot.lane.b32.xlu0 %v420, 87
      %v5828 = vpop.permute.xlu0 %5827
      %5829 = vrot.lane.b32.xlu0 %v421, 87
      %v5830 = vpop.permute.xlu0 %5829
      %5831 = vrot.lane.b32.xlu0 %v422, 87
      %v5832 = vpop.permute.xlu0 %5831
      %5833 = vrot.lane.b32.xlu0 %v423, 87
      %v5834 = vpop.permute.xlu0 %5833
      %5835 = vrot.lane.b32.xlu0 %v424, 87
      %v5836 = vpop.permute.xlu0 %5835
      %5837 = vrot.lane.b32.xlu0 %v425, 87
      %v5838 = vpop.permute.xlu0 %5837
      %5839 = vrot.lane.b32.xlu0 %v426, 87
      %v5840 = vpop.permute.xlu0 %5839
      %5841 = vrot.lane.b32.xlu0 %v427, 87
      %v5842 = vpop.permute.xlu0 %5841
      %5843 = vrot.lane.b32.xlu0 %v428, 87
      %v5844 = vpop.permute.xlu0 %5843
      %5845 = vrot.lane.b32.xlu0 %v429, 87
      %v5846 = vpop.permute.xlu0 %5845
      %5847 = vrot.lane.b32.xlu0 %v430, 87
      %v5848 = vpop.permute.xlu0 %5847
      %5849 = vrot.lane.b32.xlu0 %v431, 87
      %v5850 = vpop.permute.xlu0 %5849
      %5851 = vrot.lane.b32.xlu0 %v432, 87
      %v5852 = vpop.permute.xlu0 %5851
      %5853 = vrot.lane.b32.xlu0 %v433, 87
      %v5854 = vpop.permute.xlu0 %5853
      %5855 = vrot.lane.b32.xlu0 %v434, 87
      %v5856 = vpop.permute.xlu0 %5855
      %5857 = vrot.lane.b32.xlu0 %v435, 87
      %v5858 = vpop.permute.xlu0 %5857
      %5859 = vrot.lane.b32.xlu0 %v436, 87
      %v5860 = vpop.permute.xlu0 %5859
      %5861 = vrot.lane.b32.xlu0 %v437, 87
      %v5862 = vpop.permute.xlu0 %5861
      %5863 = vrot.lane.b32.xlu0 %v438, 87
      %v5864 = vpop.permute.xlu0 %5863
      %5865 = vrot.lane.b32.xlu0 %v439, 87
      %v5866 = vpop.permute.xlu0 %5865
      %5867 = vrot.lane.b32.xlu0 %v440, 87
      %v5868 = vpop.permute.xlu0 %5867
      %5869 = vrot.lane.b32.xlu0 %v441, 87
      %v5870 = vpop.permute.xlu0 %5869
      %5871 = vrot.lane.b32.xlu0 %v442, 87
      %v5872 = vpop.permute.xlu0 %5871
      %5873 = vrot.lane.b32.xlu0 %v443, 87
      %v5874 = vpop.permute.xlu0 %5873
      %5875 = vrot.lane.b32.xlu0 %v444, 87
      %v5876 = vpop.permute.xlu0 %5875
      %5877 = vrot.lane.b32.xlu0 %v445, 87
      %v5878 = vpop.permute.xlu0 %5877
      %5879 = vrot.lane.b32.xlu0 %v446, 87
      %v5880 = vpop.permute.xlu0 %5879
      %5881 = vrot.lane.b32.xlu0 %v3065, 87
      %v5882 = vpop.permute.xlu0 %5881
      %vm5883 = vcmask 711680
      %v5884 = vsel %vm5883, %v5818, %v5820
      %v5885 = vsel %vm5883, %v5820, %v5822
      %v5886 = vsel %vm5883, %v5822, %v5824
      %v5887 = vsel %vm5883, %v5824, %v5826
      %v5888 = vsel %vm5883, %v5826, %v5828
      %v5889 = vsel %vm5883, %v5828, %v5830
      %v5890 = vsel %vm5883, %v5830, %v5832
      %v5891 = vsel %vm5883, %v5832, %v5834
      %v5892 = vsel %vm5883, %v5834, %v5836
      %v5893 = vsel %vm5883, %v5836, %v5838
      %v5894 = vsel %vm5883, %v5838, %v5840
      %v5895 = vsel %vm5883, %v5840, %v5842
      %v5896 = vsel %vm5883, %v5842, %v5844
      %v5897 = vsel %vm5883, %v5844, %v5846
      %v5898 = vsel %vm5883, %v5846, %v5848
      %v5899 = vsel %vm5883, %v5848, %v5850
      %v5900 = vsel %vm5883, %v5850, %v5852
      %v5901 = vsel %vm5883, %v5852, %v5854
      %v5902 = vsel %vm5883, %v5854, %v5856
      %v5903 = vsel %vm5883, %v5856, %v5858
      %v5904 = vsel %vm5883, %v5858, %v5860
      %v5905 = vsel %vm5883, %v5860, %v5862
      %v5906 = vsel %vm5883, %v5862, %v5864
      %v5907 = vsel %vm5883, %v5864, %v5866
      %v5908 = vsel %vm5883, %v5866, %v5868
      %v5909 = vsel %vm5883, %v5868, %v5870
      %v5910 = vsel %vm5883, %v5870, %v5872
      %v5911 = vsel %vm5883, %v5872, %v5874
      %v5912 = vsel %vm5883, %v5874, %v5876
      %v5913 = vsel %vm5883, %v5876, %v5878
      %v5914 = vsel %vm5883, %v5878, %v5880
      %v5915 = vsel %vm5883, %v5880, %v5882
      %5948 = vrot.lane.b32.xlu0 %v415, 86
      %v5949 = vpop.permute.xlu0 %5948
      %5950 = vrot.lane.b32.xlu0 %v416, 86
      %v5951 = vpop.permute.xlu0 %5950
      %5952 = vrot.lane.b32.xlu0 %v417, 86
      %v5953 = vpop.permute.xlu0 %5952
      %5954 = vrot.lane.b32.xlu0 %v418, 86
      %v5955 = vpop.permute.xlu0 %5954
      %5956 = vrot.lane.b32.xlu0 %v419, 86
      %v5957 = vpop.permute.xlu0 %5956
      %5958 = vrot.lane.b32.xlu0 %v420, 86
      %v5959 = vpop.permute.xlu0 %5958
      %5960 = vrot.lane.b32.xlu0 %v421, 86
      %v5961 = vpop.permute.xlu0 %5960
      %5962 = vrot.lane.b32.xlu0 %v422, 86
      %v5963 = vpop.permute.xlu0 %5962
      %5964 = vrot.lane.b32.xlu0 %v423, 86
      %v5965 = vpop.permute.xlu0 %5964
      %5966 = vrot.lane.b32.xlu0 %v424, 86
      %v5967 = vpop.permute.xlu0 %5966
      %5968 = vrot.lane.b32.xlu0 %v425, 86
      %v5969 = vpop.permute.xlu0 %5968
      %5970 = vrot.lane.b32.xlu0 %v426, 86
      %v5971 = vpop.permute.xlu0 %5970
      %5972 = vrot.lane.b32.xlu0 %v427, 86
      %v5973 = vpop.permute.xlu0 %5972
      %5974 = vrot.lane.b32.xlu0 %v428, 86
      %v5975 = vpop.permute.xlu0 %5974
      %5976 = vrot.lane.b32.xlu0 %v429, 86
      %v5977 = vpop.permute.xlu0 %5976
      %5978 = vrot.lane.b32.xlu0 %v430, 86
      %v5979 = vpop.permute.xlu0 %5978
      %5980 = vrot.lane.b32.xlu0 %v431, 86
      %v5981 = vpop.permute.xlu0 %5980
      %5982 = vrot.lane.b32.xlu0 %v432, 86
      %v5983 = vpop.permute.xlu0 %5982
      %5984 = vrot.lane.b32.xlu0 %v433, 86
      %v5985 = vpop.permute.xlu0 %5984
      %5986 = vrot.lane.b32.xlu0 %v434, 86
      %v5987 = vpop.permute.xlu0 %5986
      %5988 = vrot.lane.b32.xlu0 %v435, 86
      %v5989 = vpop.permute.xlu0 %5988
      %5990 = vrot.lane.b32.xlu0 %v436, 86
      %v5991 = vpop.permute.xlu0 %5990
      %5992 = vrot.lane.b32.xlu0 %v437, 86
      %v5993 = vpop.permute.xlu0 %5992
      %5994 = vrot.lane.b32.xlu0 %v438, 86
      %v5995 = vpop.permute.xlu0 %5994
      %5996 = vrot.lane.b32.xlu0 %v439, 86
      %v5997 = vpop.permute.xlu0 %5996
      %5998 = vrot.lane.b32.xlu0 %v440, 86
      %v5999 = vpop.permute.xlu0 %5998
      %6000 = vrot.lane.b32.xlu0 %v441, 86
      %v6001 = vpop.permute.xlu0 %6000
      %6002 = vrot.lane.b32.xlu0 %v442, 86
      %v6003 = vpop.permute.xlu0 %6002
      %6004 = vrot.lane.b32.xlu0 %v443, 86
      %v6005 = vpop.permute.xlu0 %6004
      %6006 = vrot.lane.b32.xlu0 %v444, 86
      %v6007 = vpop.permute.xlu0 %6006
      %6008 = vrot.lane.b32.xlu0 %v445, 86
      %v6009 = vpop.permute.xlu0 %6008
      %6010 = vrot.lane.b32.xlu0 %v446, 86
      %v6011 = vpop.permute.xlu0 %6010
      %6012 = vrot.lane.b32.xlu0 %v3065, 86
      %v6013 = vpop.permute.xlu0 %6012
      %vm6014 = vcmask 703488
      %v6015 = vsel %vm6014, %v5949, %v5951
      %v6016 = vsel %vm6014, %v5951, %v5953
      %v6017 = vsel %vm6014, %v5953, %v5955
      %v6018 = vsel %vm6014, %v5955, %v5957
      %v6019 = vsel %vm6014, %v5957, %v5959
      %v6020 = vsel %vm6014, %v5959, %v5961
      %v6021 = vsel %vm6014, %v5961, %v5963
      %v6022 = vsel %vm6014, %v5963, %v5965
      %v6023 = vsel %vm6014, %v5965, %v5967
      %v6024 = vsel %vm6014, %v5967, %v5969
      %v6025 = vsel %vm6014, %v5969, %v5971
      %v6026 = vsel %vm6014, %v5971, %v5973
      %v6027 = vsel %vm6014, %v5973, %v5975
      %v6028 = vsel %vm6014, %v5975, %v5977
      %v6029 = vsel %vm6014, %v5977, %v5979
      %v6030 = vsel %vm6014, %v5979, %v5981
      %v6031 = vsel %vm6014, %v5981, %v5983
      %v6032 = vsel %vm6014, %v5983, %v5985
      %v6033 = vsel %vm6014, %v5985, %v5987
      %v6034 = vsel %vm6014, %v5987, %v5989
      %v6035 = vsel %vm6014, %v5989, %v5991
      %v6036 = vsel %vm6014, %v5991, %v5993
      %v6037 = vsel %vm6014, %v5993, %v5995
      %v6038 = vsel %vm6014, %v5995, %v5997
      %v6039 = vsel %vm6014, %v5997, %v5999
      %v6040 = vsel %vm6014, %v5999, %v6001
      %v6041 = vsel %vm6014, %v6001, %v6003
      %v6042 = vsel %vm6014, %v6003, %v6005
      %v6043 = vsel %vm6014, %v6005, %v6007
      %v6044 = vsel %vm6014, %v6007, %v6009
      %v6045 = vsel %vm6014, %v6009, %v6011
      %v6046 = vsel %vm6014, %v6011, %v6013
      %s6079 = scalar_lea.vmem %s1, 32
      %v6080 = vld [vmem:[%s6079] sm:$0xf]
      %v6081 = vld [vmem:[%s6079 + $0x4] sm:$0xf]
      %v6084 = vunpack.c.l.b16 %v6080
      %v6085 = vunpack.c.l.b16 %v6081
      %v6086 = vpack.c.b16 %v6085, %v6084
      %v6088 = vsel %vm1504, %v6086, 0
      %6090 = vmatpush.bf16.msra.mxu0 0
      %6091 = vmatpush.bf16.msra.mxu0 0
      %6092 = vmatpush.bf16.msra.mxu0 0
      %6093 = vmatpush.bf16.msra.mxu0 %v6015
      %6094 = vmatpush.bf16.msra.mxu0 %v5884
      %6095 = vmatpush.bf16.msra.mxu0 %v5753
      %6096 = vmatpush.bf16.msra.mxu0 %v5622
      %6097 = vmatpush.bf16.msra.mxu0 %v5491
      %6098 = vmatmul.bf16.gmra.mxu0 %v6088
      %v6099 = vpop.f32.mrf.mxu0
      %v6100 = vadd.f32 0.0, %v6099
      %v6101 = vpop.f32.mrf.mxu0
      %v6102 = vadd.f32 0.0, %v6101
      %6103 = vdwg.mxu0
      %6104 = vmatpush.bf16.msra.mxu0 0
      %6105 = vmatpush.bf16.msra.mxu0 0
      %6106 = vmatpush.bf16.msra.mxu0 0
      %6107 = vmatpush.bf16.msra.mxu0 %v6016
      %6108 = vmatpush.bf16.msra.mxu0 %v5885
      %6109 = vmatpush.bf16.msra.mxu0 %v5754
      %6110 = vmatpush.bf16.msra.mxu0 %v5623
      %6111 = vmatpush.bf16.msra.mxu0 %v5492
      %6112 = vmatmul.bf16.gmra.mxu0 %v6088
      %v6113 = vpop.f32.mrf.mxu0
      %v6114 = vadd.f32 0.0, %v6113
      %v6115 = vpop.f32.mrf.mxu0
      %v6116 = vadd.f32 0.0, %v6115
      %6117 = vdwg.mxu0
      %6118 = vmatpush.bf16.msra.mxu0 0
      %6119 = vmatpush.bf16.msra.mxu0 0
      %6120 = vmatpush.bf16.msra.mxu0 0
      %6121 = vmatpush.bf16.msra.mxu0 %v6017
      %6122 = vmatpush.bf16.msra.mxu0 %v5886
      %6123 = vmatpush.bf16.msra.mxu0 %v5755
      %6124 = vmatpush.bf16.msra.mxu0 %v5624
      %6125 = vmatpush.bf16.msra.mxu0 %v5493
      %6126 = vmatmul.bf16.gmra.mxu0 %v6088
      %v6127 = vpop.f32.mrf.mxu0
      %v6128 = vadd.f32 0.0, %v6127
      %v6129 = vpop.f32.mrf.mxu0
      %v6130 = vadd.f32 0.0, %v6129
      %6131 = vdwg.mxu0
      %6132 = vmatpush.bf16.msra.mxu0 0
      %6133 = vmatpush.bf16.msra.mxu0 0
      %6134 = vmatpush.bf16.msra.mxu0 0
      %6135 = vmatpush.bf16.msra.mxu0 %v6018
      %6136 = vmatpush.bf16.msra.mxu0 %v5887
      %6137 = vmatpush.bf16.msra.mxu0 %v5756
      %6138 = vmatpush.bf16.msra.mxu0 %v5625
      %6139 = vmatpush.bf16.msra.mxu0 %v5494
      %6140 = vmatmul.bf16.gmra.mxu0 %v6088
      %v6141 = vpop.f32.mrf.mxu0
      %v6142 = vadd.f32 0.0, %v6141
      %v6143 = vpop.f32.mrf.mxu0
      %v6144 = vadd.f32 0.0, %v6143
      %6145 = vdwg.mxu0
      %6146 = vmatpush.bf16.msra.mxu0 0
      %6147 = vmatpush.bf16.msra.mxu0 0
      %6148 = vmatpush.bf16.msra.mxu0 0
      %6149 = vmatpush.bf16.msra.mxu0 %v6019
      %6150 = vmatpush.bf16.msra.mxu0 %v5888
      %6151 = vmatpush.bf16.msra.mxu0 %v5757
      %6152 = vmatpush.bf16.msra.mxu0 %v5626
      %6153 = vmatpush.bf16.msra.mxu0 %v5495
      %6154 = vmatmul.bf16.gmra.mxu0 %v6088
      %v6155 = vpop.f32.mrf.mxu0
      %v6156 = vadd.f32 0.0, %v6155
      %v6157 = vpop.f32.mrf.mxu0
      %v6158 = vadd.f32 0.0, %v6157
      %6159 = vdwg.mxu0
      %6160 = vmatpush.bf16.msra.mxu0 0
      %6161 = vmatpush.bf16.msra.mxu0 0
      %6162 = vmatpush.bf16.msra.mxu0 0
      %6163 = vmatpush.bf16.msra.mxu0 %v6020
      %6164 = vmatpush.bf16.msra.mxu0 %v5889
      %6165 = vmatpush.bf16.msra.mxu0 %v5758
      %6166 = vmatpush.bf16.msra.mxu0 %v5627
      %6167 = vmatpush.bf16.msra.mxu0 %v5496
      %6168 = vmatmul.bf16.gmra.mxu0 %v6088
      %v6169 = vpop.f32.mrf.mxu0
      %v6170 = vadd.f32 0.0, %v6169
      %v6171 = vpop.f32.mrf.mxu0
      %v6172 = vadd.f32 0.0, %v6171
      %6173 = vdwg.mxu0
      %6174 = vmatpush.bf16.msra.mxu0 0
      %6175 = vmatpush.bf16.msra.mxu0 0
      %6176 = vmatpush.bf16.msra.mxu0 0
      %6177 = vmatpush.bf16.msra.mxu0 %v6021
      %6178 = vmatpush.bf16.msra.mxu0 %v5890
      %6179 = vmatpush.bf16.msra.mxu0 %v5759
      %6180 = vmatpush.bf16.msra.mxu0 %v5628
      %6181 = vmatpush.bf16.msra.mxu0 %v5497
      %6182 = vmatmul.bf16.gmra.mxu0 %v6088
      %v6183 = vpop.f32.mrf.mxu0
      %v6184 = vadd.f32 0.0, %v6183
      %v6185 = vpop.f32.mrf.mxu0
      %v6186 = vadd.f32 0.0, %v6185
      %6187 = vdwg.mxu0
      %6188 = vmatpush.bf16.msra.mxu0 0
      %6189 = vmatpush.bf16.msra.mxu0 0
      %6190 = vmatpush.bf16.msra.mxu0 0
      %6191 = vmatpush.bf16.msra.mxu0 %v6022
      %6192 = vmatpush.bf16.msra.mxu0 %v5891
      %6193 = vmatpush.bf16.msra.mxu0 %v5760
      %6194 = vmatpush.bf16.msra.mxu0 %v5629
      %6195 = vmatpush.bf16.msra.mxu0 %v5498
      %6196 = vmatmul.bf16.gmra.mxu0 %v6088
      %v6197 = vpop.f32.mrf.mxu0
      %v6198 = vadd.f32 0.0, %v6197
      %v6199 = vpop.f32.mrf.mxu0
      %v6200 = vadd.f32 0.0, %v6199
      %6201 = vdwg.mxu0
      %6202 = vmatpush.bf16.msra.mxu0 0
      %6203 = vmatpush.bf16.msra.mxu0 0
      %6204 = vmatpush.bf16.msra.mxu0 0
      %6205 = vmatpush.bf16.msra.mxu0 %v6023
      %6206 = vmatpush.bf16.msra.mxu0 %v5892
      %6207 = vmatpush.bf16.msra.mxu0 %v5761
      %6208 = vmatpush.bf16.msra.mxu0 %v5630
      %6209 = vmatpush.bf16.msra.mxu0 %v5499
      %6210 = vmatmul.bf16.gmra.mxu0 %v6088
      %v6211 = vpop.f32.mrf.mxu0
      %v6212 = vadd.f32 0.0, %v6211
      %v6213 = vpop.f32.mrf.mxu0
      %v6214 = vadd.f32 0.0, %v6213
      %6215 = vdwg.mxu0
      %6216 = vmatpush.bf16.msra.mxu0 0
      %6217 = vmatpush.bf16.msra.mxu0 0
      %6218 = vmatpush.bf16.msra.mxu0 0
      %6219 = vmatpush.bf16.msra.mxu0 %v6024
      %6220 = vmatpush.bf16.msra.mxu0 %v5893
      %6221 = vmatpush.bf16.msra.mxu0 %v5762
      %6222 = vmatpush.bf16.msra.mxu0 %v5631
      %6223 = vmatpush.bf16.msra.mxu0 %v5500
      %6224 = vmatmul.bf16.gmra.mxu0 %v6088
      %v6225 = vpop.f32.mrf.mxu0
      %v6226 = vadd.f32 0.0, %v6225
      %v6227 = vpop.f32.mrf.mxu0
      %v6228 = vadd.f32 0.0, %v6227
      %6229 = vdwg.mxu0
      %6230 = vmatpush.bf16.msra.mxu0 0
      %6231 = vmatpush.bf16.msra.mxu0 0
      %6232 = vmatpush.bf16.msra.mxu0 0
      %6233 = vmatpush.bf16.msra.mxu0 %v6025
      %6234 = vmatpush.bf16.msra.mxu0 %v5894
      %6235 = vmatpush.bf16.msra.mxu0 %v5763
      %6236 = vmatpush.bf16.msra.mxu0 %v5632
      %6237 = vmatpush.bf16.msra.mxu0 %v5501
      %6238 = vmatmul.bf16.gmra.mxu0 %v6088
      %v6239 = vpop.f32.mrf.mxu0
      %v6240 = vadd.f32 0.0, %v6239
      %v6241 = vpop.f32.mrf.mxu0
      %v6242 = vadd.f32 0.0, %v6241
      %6243 = vdwg.mxu0
      %6244 = vmatpush.bf16.msra.mxu0 0
      %6245 = vmatpush.bf16.msra.mxu0 0
      %6246 = vmatpush.bf16.msra.mxu0 0
      %6247 = vmatpush.bf16.msra.mxu0 %v6026
      %6248 = vmatpush.bf16.msra.mxu0 %v5895
      %6249 = vmatpush.bf16.msra.mxu0 %v5764
      %6250 = vmatpush.bf16.msra.mxu0 %v5633
      %6251 = vmatpush.bf16.msra.mxu0 %v5502
      %6252 = vmatmul.bf16.gmra.mxu0 %v6088
      %v6253 = vpop.f32.mrf.mxu0
      %v6254 = vadd.f32 0.0, %v6253
      %v6255 = vpop.f32.mrf.mxu0
      %v6256 = vadd.f32 0.0, %v6255
      %6257 = vdwg.mxu0
      %6258 = vmatpush.bf16.msra.mxu0 0
      %6259 = vmatpush.bf16.msra.mxu0 0
      %6260 = vmatpush.bf16.msra.mxu0 0
      %6261 = vmatpush.bf16.msra.mxu0 %v6027
      %6262 = vmatpush.bf16.msra.mxu0 %v5896
      %6263 = vmatpush.bf16.msra.mxu0 %v5765
      %6264 = vmatpush.bf16.msra.mxu0 %v5634
      %6265 = vmatpush.bf16.msra.mxu0 %v5503
      %6266 = vmatmul.bf16.gmra.mxu0 %v6088
      %v6267 = vpop.f32.mrf.mxu0
      %v6268 = vadd.f32 0.0, %v6267
      %v6269 = vpop.f32.mrf.mxu0
      %v6270 = vadd.f32 0.0, %v6269
      %6271 = vdwg.mxu0
      %6272 = vmatpush.bf16.msra.mxu0 0
      %6273 = vmatpush.bf16.msra.mxu0 0
      %6274 = vmatpush.bf16.msra.mxu0 0
      %6275 = vmatpush.bf16.msra.mxu0 %v6028
      %6276 = vmatpush.bf16.msra.mxu0 %v5897
      %6277 = vmatpush.bf16.msra.mxu0 %v5766
      %6278 = vmatpush.bf16.msra.mxu0 %v5635
      %6279 = vmatpush.bf16.msra.mxu0 %v5504
      %6280 = vmatmul.bf16.gmra.mxu0 %v6088
      %v6281 = vpop.f32.mrf.mxu0
      %v6282 = vadd.f32 0.0, %v6281
      %v6283 = vpop.f32.mrf.mxu0
      %v6284 = vadd.f32 0.0, %v6283
      %6285 = vdwg.mxu0
      %6286 = vmatpush.bf16.msra.mxu0 0
      %6287 = vmatpush.bf16.msra.mxu0 0
      %6288 = vmatpush.bf16.msra.mxu0 0
      %6289 = vmatpush.bf16.msra.mxu0 %v6029
      %6290 = vmatpush.bf16.msra.mxu0 %v5898
      %6291 = vmatpush.bf16.msra.mxu0 %v5767
      %6292 = vmatpush.bf16.msra.mxu0 %v5636
      %6293 = vmatpush.bf16.msra.mxu0 %v5505
      %6294 = vmatmul.bf16.gmra.mxu0 %v6088
      %v6295 = vpop.f32.mrf.mxu0
      %v6296 = vadd.f32 0.0, %v6295
      %v6297 = vpop.f32.mrf.mxu0
      %v6298 = vadd.f32 0.0, %v6297
      %6299 = vdwg.mxu0
      %6300 = vmatpush.bf16.msra.mxu0 0
      %6301 = vmatpush.bf16.msra.mxu0 0
      %6302 = vmatpush.bf16.msra.mxu0 0
      %6303 = vmatpush.bf16.msra.mxu0 %v6030
      %6304 = vmatpush.bf16.msra.mxu0 %v5899
      %6305 = vmatpush.bf16.msra.mxu0 %v5768
      %6306 = vmatpush.bf16.msra.mxu0 %v5637
      %6307 = vmatpush.bf16.msra.mxu0 %v5506
      %6308 = vmatmul.bf16.gmra.mxu0 %v6088
      %v6309 = vpop.f32.mrf.mxu0
      %v6310 = vadd.f32 0.0, %v6309
      %v6311 = vpop.f32.mrf.mxu0
      %v6312 = vadd.f32 0.0, %v6311
      %6313 = vdwg.mxu0
      %6314 = vmatpush.bf16.msra.mxu0 0
      %6315 = vmatpush.bf16.msra.mxu0 0
      %6316 = vmatpush.bf16.msra.mxu0 0
      %6317 = vmatpush.bf16.msra.mxu0 %v6031
      %6318 = vmatpush.bf16.msra.mxu0 %v5900
      %6319 = vmatpush.bf16.msra.mxu0 %v5769
      %6320 = vmatpush.bf16.msra.mxu0 %v5638
      %6321 = vmatpush.bf16.msra.mxu0 %v5507
      %6322 = vmatmul.bf16.gmra.mxu0 %v6088
      %v6323 = vpop.f32.mrf.mxu0
      %v6324 = vadd.f32 0.0, %v6323
      %v6325 = vpop.f32.mrf.mxu0
      %v6326 = vadd.f32 0.0, %v6325
      %6327 = vdwg.mxu0
      %6328 = vmatpush.bf16.msra.mxu0 0
      %6329 = vmatpush.bf16.msra.mxu0 0
      %6330 = vmatpush.bf16.msra.mxu0 0
      %6331 = vmatpush.bf16.msra.mxu0 %v6032
      %6332 = vmatpush.bf16.msra.mxu0 %v5901
      %6333 = vmatpush.bf16.msra.mxu0 %v5770
      %6334 = vmatpush.bf16.msra.mxu0 %v5639
      %6335 = vmatpush.bf16.msra.mxu0 %v5508
      %6336 = vmatmul.bf16.gmra.mxu0 %v6088
      %v6337 = vpop.f32.mrf.mxu0
      %v6338 = vadd.f32 0.0, %v6337
      %v6339 = vpop.f32.mrf.mxu0
      %v6340 = vadd.f32 0.0, %v6339
      %6341 = vdwg.mxu0
      %6342 = vmatpush.bf16.msra.mxu0 0
      %6343 = vmatpush.bf16.msra.mxu0 0
      %6344 = vmatpush.bf16.msra.mxu0 0
      %6345 = vmatpush.bf16.msra.mxu0 %v6033
      %6346 = vmatpush.bf16.msra.mxu0 %v5902
      %6347 = vmatpush.bf16.msra.mxu0 %v5771
      %6348 = vmatpush.bf16.msra.mxu0 %v5640
      %6349 = vmatpush.bf16.msra.mxu0 %v5509
      %6350 = vmatmul.bf16.gmra.mxu0 %v6088
      %v6351 = vpop.f32.mrf.mxu0
      %v6352 = vadd.f32 0.0, %v6351
      %v6353 = vpop.f32.mrf.mxu0
      %v6354 = vadd.f32 0.0, %v6353
      %6355 = vdwg.mxu0
      %6356 = vmatpush.bf16.msra.mxu0 0
      %6357 = vmatpush.bf16.msra.mxu0 0
      %6358 = vmatpush.bf16.msra.mxu0 0
      %6359 = vmatpush.bf16.msra.mxu0 %v6034
      %6360 = vmatpush.bf16.msra.mxu0 %v5903
      %6361 = vmatpush.bf16.msra.mxu0 %v5772
      %6362 = vmatpush.bf16.msra.mxu0 %v5641
      %6363 = vmatpush.bf16.msra.mxu0 %v5510
      %6364 = vmatmul.bf16.gmra.mxu0 %v6088
      %v6365 = vpop.f32.mrf.mxu0
      %v6366 = vadd.f32 0.0, %v6365
      %v6367 = vpop.f32.mrf.mxu0
      %v6368 = vadd.f32 0.0, %v6367
      %6369 = vdwg.mxu0
      %6370 = vmatpush.bf16.msra.mxu0 0
      %6371 = vmatpush.bf16.msra.mxu0 0
      %6372 = vmatpush.bf16.msra.mxu0 0
      %6373 = vmatpush.bf16.msra.mxu0 %v6035
      %6374 = vmatpush.bf16.msra.mxu0 %v5904
      %6375 = vmatpush.bf16.msra.mxu0 %v5773
      %6376 = vmatpush.bf16.msra.mxu0 %v5642
      %6377 = vmatpush.bf16.msra.mxu0 %v5511
      %6378 = vmatmul.bf16.gmra.mxu0 %v6088
      %v6379 = vpop.f32.mrf.mxu0
      %v6380 = vadd.f32 0.0, %v6379
      %v6381 = vpop.f32.mrf.mxu0
      %v6382 = vadd.f32 0.0, %v6381
      %6383 = vdwg.mxu0
      %6384 = vmatpush.bf16.msra.mxu0 0
      %6385 = vmatpush.bf16.msra.mxu0 0
      %6386 = vmatpush.bf16.msra.mxu0 0
      %6387 = vmatpush.bf16.msra.mxu0 %v6036
      %6388 = vmatpush.bf16.msra.mxu0 %v5905
      %6389 = vmatpush.bf16.msra.mxu0 %v5774
      %6390 = vmatpush.bf16.msra.mxu0 %v5643
      %6391 = vmatpush.bf16.msra.mxu0 %v5512
      %6392 = vmatmul.bf16.gmra.mxu0 %v6088
      %v6393 = vpop.f32.mrf.mxu0
      %v6394 = vadd.f32 0.0, %v6393
      %v6395 = vpop.f32.mrf.mxu0
      %v6396 = vadd.f32 0.0, %v6395
      %6397 = vdwg.mxu0
      %6398 = vmatpush.bf16.msra.mxu0 0
      %6399 = vmatpush.bf16.msra.mxu0 0
      %6400 = vmatpush.bf16.msra.mxu0 0
      %6401 = vmatpush.bf16.msra.mxu0 %v6037
      %6402 = vmatpush.bf16.msra.mxu0 %v5906
      %6403 = vmatpush.bf16.msra.mxu0 %v5775
      %6404 = vmatpush.bf16.msra.mxu0 %v5644
      %6405 = vmatpush.bf16.msra.mxu0 %v5513
      %6406 = vmatmul.bf16.gmra.mxu0 %v6088
      %v6407 = vpop.f32.mrf.mxu0
      %v6408 = vadd.f32 0.0, %v6407
      %v6409 = vpop.f32.mrf.mxu0
      %v6410 = vadd.f32 0.0, %v6409
      %6411 = vdwg.mxu0
      %6412 = vmatpush.bf16.msra.mxu0 0
      %6413 = vmatpush.bf16.msra.mxu0 0
      %6414 = vmatpush.bf16.msra.mxu0 0
      %6415 = vmatpush.bf16.msra.mxu0 %v6038
      %6416 = vmatpush.bf16.msra.mxu0 %v5907
      %6417 = vmatpush.bf16.msra.mxu0 %v5776
      %6418 = vmatpush.bf16.msra.mxu0 %v5645
      %6419 = vmatpush.bf16.msra.mxu0 %v5514
      %6420 = vmatmul.bf16.gmra.mxu0 %v6088
      %v6421 = vpop.f32.mrf.mxu0
      %v6422 = vadd.f32 0.0, %v6421
      %v6423 = vpop.f32.mrf.mxu0
      %v6424 = vadd.f32 0.0, %v6423
      %6425 = vdwg.mxu0
      %6426 = vmatpush.bf16.msra.mxu0 0
      %6427 = vmatpush.bf16.msra.mxu0 0
      %6428 = vmatpush.bf16.msra.mxu0 0
      %6429 = vmatpush.bf16.msra.mxu0 %v6039
      %6430 = vmatpush.bf16.msra.mxu0 %v5908
      %6431 = vmatpush.bf16.msra.mxu0 %v5777
      %6432 = vmatpush.bf16.msra.mxu0 %v5646
      %6433 = vmatpush.bf16.msra.mxu0 %v5515
      %6434 = vmatmul.bf16.gmra.mxu0 %v6088
      %v6435 = vpop.f32.mrf.mxu0
      %v6436 = vadd.f32 0.0, %v6435
      %v6437 = vpop.f32.mrf.mxu0
      %v6438 = vadd.f32 0.0, %v6437
      %6439 = vdwg.mxu0
      %6440 = vmatpush.bf16.msra.mxu0 0
      %6441 = vmatpush.bf16.msra.mxu0 0
      %6442 = vmatpush.bf16.msra.mxu0 0
      %6443 = vmatpush.bf16.msra.mxu0 %v6040
      %6444 = vmatpush.bf16.msra.mxu0 %v5909
      %6445 = vmatpush.bf16.msra.mxu0 %v5778
      %6446 = vmatpush.bf16.msra.mxu0 %v5647
      %6447 = vmatpush.bf16.msra.mxu0 %v5516
      %6448 = vmatmul.bf16.gmra.mxu0 %v6088
      %v6449 = vpop.f32.mrf.mxu0
      %v6450 = vadd.f32 0.0, %v6449
      %v6451 = vpop.f32.mrf.mxu0
      %v6452 = vadd.f32 0.0, %v6451
      %6453 = vdwg.mxu0
      %6454 = vmatpush.bf16.msra.mxu0 0
      %6455 = vmatpush.bf16.msra.mxu0 0
      %6456 = vmatpush.bf16.msra.mxu0 0
      %6457 = vmatpush.bf16.msra.mxu0 %v6041
      %6458 = vmatpush.bf16.msra.mxu0 %v5910
      %6459 = vmatpush.bf16.msra.mxu0 %v5779
      %6460 = vmatpush.bf16.msra.mxu0 %v5648
      %6461 = vmatpush.bf16.msra.mxu0 %v5517
      %6462 = vmatmul.bf16.gmra.mxu0 %v6088
      %v6463 = vpop.f32.mrf.mxu0
      %v6464 = vadd.f32 0.0, %v6463
      %v6465 = vpop.f32.mrf.mxu0
      %v6466 = vadd.f32 0.0, %v6465
      %6467 = vdwg.mxu0
      %6468 = vmatpush.bf16.msra.mxu0 0
      %6469 = vmatpush.bf16.msra.mxu0 0
      %6470 = vmatpush.bf16.msra.mxu0 0
      %6471 = vmatpush.bf16.msra.mxu0 %v6042
      %6472 = vmatpush.bf16.msra.mxu0 %v5911
      %6473 = vmatpush.bf16.msra.mxu0 %v5780
      %6474 = vmatpush.bf16.msra.mxu0 %v5649
      %6475 = vmatpush.bf16.msra.mxu0 %v5518
      %6476 = vmatmul.bf16.gmra.mxu0 %v6088
      %v6477 = vpop.f32.mrf.mxu0
      %v6478 = vadd.f32 0.0, %v6477
      %v6479 = vpop.f32.mrf.mxu0
      %v6480 = vadd.f32 0.0, %v6479
      %6481 = vdwg.mxu0
      %6482 = vmatpush.bf16.msra.mxu0 0
      %6483 = vmatpush.bf16.msra.mxu0 0
      %6484 = vmatpush.bf16.msra.mxu0 0
      %6485 = vmatpush.bf16.msra.mxu0 %v6043
      %6486 = vmatpush.bf16.msra.mxu0 %v5912
      %6487 = vmatpush.bf16.msra.mxu0 %v5781
      %6488 = vmatpush.bf16.msra.mxu0 %v5650
      %6489 = vmatpush.bf16.msra.mxu0 %v5519
      %6490 = vmatmul.bf16.gmra.mxu0 %v6088
      %v6491 = vpop.f32.mrf.mxu0
      %v6492 = vadd.f32 0.0, %v6491
      %v6493 = vpop.f32.mrf.mxu0
      %v6494 = vadd.f32 0.0, %v6493
      %6495 = vdwg.mxu0
      %6496 = vmatpush.bf16.msra.mxu0 0
      %6497 = vmatpush.bf16.msra.mxu0 0
      %6498 = vmatpush.bf16.msra.mxu0 0
      %6499 = vmatpush.bf16.msra.mxu0 %v6044
      %6500 = vmatpush.bf16.msra.mxu0 %v5913
      %6501 = vmatpush.bf16.msra.mxu0 %v5782
      %6502 = vmatpush.bf16.msra.mxu0 %v5651
      %6503 = vmatpush.bf16.msra.mxu0 %v5520
      %6504 = vmatmul.bf16.gmra.mxu0 %v6088
      %v6505 = vpop.f32.mrf.mxu0
      %v6506 = vadd.f32 0.0, %v6505
      %v6507 = vpop.f32.mrf.mxu0
      %v6508 = vadd.f32 0.0, %v6507
      %6509 = vdwg.mxu0
      %6510 = vmatpush.bf16.msra.mxu0 0
      %6511 = vmatpush.bf16.msra.mxu0 0
      %6512 = vmatpush.bf16.msra.mxu0 0
      %6513 = vmatpush.bf16.msra.mxu0 %v6045
      %6514 = vmatpush.bf16.msra.mxu0 %v5914
      %6515 = vmatpush.bf16.msra.mxu0 %v5783
      %6516 = vmatpush.bf16.msra.mxu0 %v5652
      %6517 = vmatpush.bf16.msra.mxu0 %v5521
      %6518 = vmatmul.bf16.gmra.mxu0 %v6088
      %v6519 = vpop.f32.mrf.mxu0
      %v6520 = vadd.f32 0.0, %v6519
      %v6521 = vpop.f32.mrf.mxu0
      %v6522 = vadd.f32 0.0, %v6521
      %6523 = vdwg.mxu0
      %6524 = vmatpush.bf16.msra.mxu0 0
      %6525 = vmatpush.bf16.msra.mxu0 0
      %6526 = vmatpush.bf16.msra.mxu0 0
      %6527 = vmatpush.bf16.msra.mxu0 %v6046
      %6528 = vmatpush.bf16.msra.mxu0 %v5915
      %6529 = vmatpush.bf16.msra.mxu0 %v5784
      %6530 = vmatpush.bf16.msra.mxu0 %v5653
      %6531 = vmatpush.bf16.msra.mxu0 %v5522
      %6532 = vmatmul.bf16.gmra.mxu0 %v6088
      %v6533 = vpop.f32.mrf.mxu0
      %v6534 = vadd.f32 0.0, %v6533
      %v6535 = vpop.f32.mrf.mxu0
      %v6536 = vadd.f32 0.0, %v6535
      %6537 = vdwg.mxu0
      %v6538 = vadd.f32 %v5360, %v6100
      %v6539 = vadd.f32 %v5361, %v6114
      %v6540 = vadd.f32 %v5362, %v6128
      %v6541 = vadd.f32 %v5363, %v6142
      %v6542 = vadd.f32 %v5364, %v6156
      %v6543 = vadd.f32 %v5365, %v6170
      %v6544 = vadd.f32 %v5366, %v6184
      %v6545 = vadd.f32 %v5367, %v6198
      %v6546 = vadd.f32 %v5368, %v6212
      %v6547 = vadd.f32 %v5369, %v6226
      %v6548 = vadd.f32 %v5370, %v6240
      %v6549 = vadd.f32 %v5371, %v6254
      %v6550 = vadd.f32 %v5372, %v6268
      %v6551 = vadd.f32 %v5373, %v6282
      %v6552 = vadd.f32 %v5374, %v6296
      %v6553 = vadd.f32 %v5375, %v6310
      %v6554 = vadd.f32 %v5376, %v6324
      %v6555 = vadd.f32 %v5377, %v6338
      %v6556 = vadd.f32 %v5378, %v6352
      %v6557 = vadd.f32 %v5379, %v6366
      %v6558 = vadd.f32 %v5380, %v6380
      %v6559 = vadd.f32 %v5381, %v6394
      %v6560 = vadd.f32 %v5382, %v6408
      %v6561 = vadd.f32 %v5383, %v6422
      %v6562 = vadd.f32 %v5384, %v6436
      %v6563 = vadd.f32 %v5385, %v6450
      %v6564 = vadd.f32 %v5386, %v6464
      %v6565 = vadd.f32 %v5387, %v6478
      %v6566 = vadd.f32 %v5388, %v6492
      %v6567 = vadd.f32 %v5389, %v6506
      %v6568 = vadd.f32 %v5390, %v6520
      %v6569 = vadd.f32 %v5391, %v6534
      %v6570 = vadd.f32 %v5392, %v6102
      %v6571 = vadd.f32 %v5393, %v6116
      %v6572 = vadd.f32 %v5394, %v6130
      %v6573 = vadd.f32 %v5395, %v6144
      %v6574 = vadd.f32 %v5396, %v6158
      %v6575 = vadd.f32 %v5397, %v6172
      %v6576 = vadd.f32 %v5398, %v6186
      %v6577 = vadd.f32 %v5399, %v6200
      %v6578 = vadd.f32 %v5400, %v6214
      %v6579 = vadd.f32 %v5401, %v6228
      %v6580 = vadd.f32 %v5402, %v6242
      %v6581 = vadd.f32 %v5403, %v6256
      %v6582 = vadd.f32 %v5404, %v6270
      %v6583 = vadd.f32 %v5405, %v6284
      %v6584 = vadd.f32 %v5406, %v6298
      %v6585 = vadd.f32 %v5407, %v6312
      %v6586 = vadd.f32 %v5408, %v6326
      %v6587 = vadd.f32 %v5409, %v6340
      %v6588 = vadd.f32 %v5410, %v6354
      %v6589 = vadd.f32 %v5411, %v6368
      %v6590 = vadd.f32 %v5412, %v6382
      %v6591 = vadd.f32 %v5413, %v6396
      %v6592 = vadd.f32 %v5414, %v6410
      %v6593 = vadd.f32 %v5415, %v6424
      %v6594 = vadd.f32 %v5416, %v6438
      %v6595 = vadd.f32 %v5417, %v6452
      %v6596 = vadd.f32 %v5418, %v6466
      %v6597 = vadd.f32 %v5419, %v6480
      %v6598 = vadd.f32 %v5420, %v6494
      %v6599 = vadd.f32 %v5421, %v6508
      %v6600 = vadd.f32 %v5422, %v6522
      %v6601 = vadd.f32 %v5423, %v6536
      %v6602 = vld [vmem:[%s2] sm:$0xff]
      %v6603 = vld [vmem:[%s2 + $0x8] sm:$0xff]
      %6605 = vset.pattern.permute.xlu0 0
      %6606 = vperm.xlu0 %6605, %v6602
      %v6607 = vpop.permute.xlu0 %6606
      %6610 = vset.pattern.permute.xlu0 0
      %6611 = vperm.xlu0 %6610, %v6603
      %v6612 = vpop.permute.xlu0 %6611
      %v6614 = vadd.f32 %v6538, %v6607
      %v6615 = vadd.f32 %v6539, %v6607
      %v6616 = vadd.f32 %v6540, %v6607
      %v6617 = vadd.f32 %v6541, %v6607
      %v6618 = vadd.f32 %v6542, %v6607
      %v6619 = vadd.f32 %v6543, %v6607
      %v6620 = vadd.f32 %v6544, %v6607
      %v6621 = vadd.f32 %v6545, %v6607
      %v6622 = vadd.f32 %v6546, %v6607
      %v6623 = vadd.f32 %v6547, %v6607
      %v6624 = vadd.f32 %v6548, %v6607
      %v6625 = vadd.f32 %v6549, %v6607
      %v6626 = vadd.f32 %v6550, %v6607
      %v6627 = vadd.f32 %v6551, %v6607
      %v6628 = vadd.f32 %v6552, %v6607
      %v6629 = vadd.f32 %v6553, %v6607
      %v6630 = vadd.f32 %v6554, %v6607
      %v6631 = vadd.f32 %v6555, %v6607
      %v6632 = vadd.f32 %v6556, %v6607
      %v6633 = vadd.f32 %v6557, %v6607
      %v6634 = vadd.f32 %v6558, %v6607
      %v6635 = vadd.f32 %v6559, %v6607
      %v6636 = vadd.f32 %v6560, %v6607
      %v6637 = vadd.f32 %v6561, %v6607
      %v6638 = vadd.f32 %v6562, %v6607
      %v6639 = vadd.f32 %v6563, %v6607
      %v6640 = vadd.f32 %v6564, %v6607
      %v6641 = vadd.f32 %v6565, %v6607
      %v6642 = vadd.f32 %v6566, %v6607
      %v6643 = vadd.f32 %v6567, %v6607
      %v6644 = vadd.f32 %v6568, %v6607
      %v6645 = vadd.f32 %v6569, %v6607
      %v6646 = vadd.f32 %v6570, %v6612
      %v6647 = vadd.f32 %v6571, %v6612
      %v6648 = vadd.f32 %v6572, %v6612
      %v6649 = vadd.f32 %v6573, %v6612
      %v6650 = vadd.f32 %v6574, %v6612
      %v6651 = vadd.f32 %v6575, %v6612
      %v6652 = vadd.f32 %v6576, %v6612
      %v6653 = vadd.f32 %v6577, %v6612
      %v6654 = vadd.f32 %v6578, %v6612
      %v6655 = vadd.f32 %v6579, %v6612
      %v6656 = vadd.f32 %v6580, %v6612
      %v6657 = vadd.f32 %v6581, %v6612
      %v6658 = vadd.f32 %v6582, %v6612
      %v6659 = vadd.f32 %v6583, %v6612
      %v6660 = vadd.f32 %v6584, %v6612
      %v6661 = vadd.f32 %v6585, %v6612
      %v6662 = vadd.f32 %v6586, %v6612
      %v6663 = vadd.f32 %v6587, %v6612
      %v6664 = vadd.f32 %v6588, %v6612
      %v6665 = vadd.f32 %v6589, %v6612
      %v6666 = vadd.f32 %v6590, %v6612
      %v6667 = vadd.f32 %v6591, %v6612
      %v6668 = vadd.f32 %v6592, %v6612
      %v6669 = vadd.f32 %v6593, %v6612
      %v6670 = vadd.f32 %v6594, %v6612
      %v6671 = vadd.f32 %v6595, %v6612
      %v6672 = vadd.f32 %v6596, %v6612
      %v6673 = vadd.f32 %v6597, %v6612
      %v6674 = vadd.f32 %v6598, %v6612
      %v6675 = vadd.f32 %v6599, %v6612
      %v6676 = vadd.f32 %v6600, %v6612
      %v6677 = vadd.f32 %v6601, %v6612
      %v6678 = vmax.f32 %v6614, 0.0
      %v6679 = vmax.f32 %v6615, 0.0
      %v6680 = vmax.f32 %v6616, 0.0
      %v6681 = vmax.f32 %v6617, 0.0
      %v6682 = vmax.f32 %v6618, 0.0
      %v6683 = vmax.f32 %v6619, 0.0
      %v6684 = vmax.f32 %v6620, 0.0
      %v6685 = vmax.f32 %v6621, 0.0
      %v6686 = vmax.f32 %v6622, 0.0
      %v6687 = vmax.f32 %v6623, 0.0
      %v6688 = vmax.f32 %v6624, 0.0
      %v6689 = vmax.f32 %v6625, 0.0
      %v6690 = vmax.f32 %v6626, 0.0
      %v6691 = vmax.f32 %v6627, 0.0
      %v6692 = vmax.f32 %v6628, 0.0
      %v6693 = vmax.f32 %v6629, 0.0
      %v6694 = vmax.f32 %v6630, 0.0
      %v6695 = vmax.f32 %v6631, 0.0
      %v6696 = vmax.f32 %v6632, 0.0
      %v6697 = vmax.f32 %v6633, 0.0
      %v6698 = vmax.f32 %v6634, 0.0
      %v6699 = vmax.f32 %v6635, 0.0
      %v6700 = vmax.f32 %v6636, 0.0
      %v6701 = vmax.f32 %v6637, 0.0
      %v6702 = vmax.f32 %v6638, 0.0
      %v6703 = vmax.f32 %v6639, 0.0
      %v6704 = vmax.f32 %v6640, 0.0
      %v6705 = vmax.f32 %v6641, 0.0
      %v6706 = vmax.f32 %v6642, 0.0
      %v6707 = vmax.f32 %v6643, 0.0
      %v6708 = vmax.f32 %v6644, 0.0
      %v6709 = vmax.f32 %v6645, 0.0
      %v6710 = vmax.f32 %v6646, 0.0
      %v6711 = vmax.f32 %v6647, 0.0
      %v6712 = vmax.f32 %v6648, 0.0
      %v6713 = vmax.f32 %v6649, 0.0
      %v6714 = vmax.f32 %v6650, 0.0
      %v6715 = vmax.f32 %v6651, 0.0
      %v6716 = vmax.f32 %v6652, 0.0
      %v6717 = vmax.f32 %v6653, 0.0
      %v6718 = vmax.f32 %v6654, 0.0
      %v6719 = vmax.f32 %v6655, 0.0
      %v6720 = vmax.f32 %v6656, 0.0
      %v6721 = vmax.f32 %v6657, 0.0
      %v6722 = vmax.f32 %v6658, 0.0
      %v6723 = vmax.f32 %v6659, 0.0
      %v6724 = vmax.f32 %v6660, 0.0
      %v6725 = vmax.f32 %v6661, 0.0
      %v6726 = vmax.f32 %v6662, 0.0
      %v6727 = vmax.f32 %v6663, 0.0
      %v6728 = vmax.f32 %v6664, 0.0
      %v6729 = vmax.f32 %v6665, 0.0
      %v6730 = vmax.f32 %v6666, 0.0
      %v6731 = vmax.f32 %v6667, 0.0
      %v6732 = vmax.f32 %v6668, 0.0
      %v6733 = vmax.f32 %v6669, 0.0
      %v6734 = vmax.f32 %v6670, 0.0
      %v6735 = vmax.f32 %v6671, 0.0
      %v6736 = vmax.f32 %v6672, 0.0
      %v6737 = vmax.f32 %v6673, 0.0
      %v6738 = vmax.f32 %v6674, 0.0
      %v6739 = vmax.f32 %v6675, 0.0
      %v6740 = vmax.f32 %v6676, 0.0
      %v6741 = vmax.f32 %v6677, 0.0
      %v6742 = vpack.c.bf16 %v6679, %v6678
      %v6743 = vpack.c.bf16 %v6681, %v6680
      %v6744 = vpack.c.bf16 %v6683, %v6682
      %v6745 = vpack.c.bf16 %v6685, %v6684
      %v6746 = vpack.c.bf16 %v6687, %v6686
      %v6747 = vpack.c.bf16 %v6689, %v6688
      %v6748 = vpack.c.bf16 %v6691, %v6690
      %v6749 = vpack.c.bf16 %v6693, %v6692
      %v6750 = vpack.c.bf16 %v6695, %v6694
      %v6751 = vpack.c.bf16 %v6697, %v6696
      %v6752 = vpack.c.bf16 %v6699, %v6698
      %v6753 = vpack.c.bf16 %v6701, %v6700
      %v6754 = vpack.c.bf16 %v6703, %v6702
      %v6755 = vpack.c.bf16 %v6705, %v6704
      %v6756 = vpack.c.bf16 %v6707, %v6706
      %v6757 = vpack.c.bf16 %v6709, %v6708
      %v6758 = vpack.c.bf16 %v6711, %v6710
      %v6759 = vpack.c.bf16 %v6713, %v6712
      %v6760 = vpack.c.bf16 %v6715, %v6714
      %v6761 = vpack.c.bf16 %v6717, %v6716
      %v6762 = vpack.c.bf16 %v6719, %v6718
      %v6763 = vpack.c.bf16 %v6721, %v6720
      %v6764 = vpack.c.bf16 %v6723, %v6722
      %v6765 = vpack.c.bf16 %v6725, %v6724
      %v6766 = vpack.c.bf16 %v6727, %v6726
      %v6767 = vpack.c.bf16 %v6729, %v6728
      %v6768 = vpack.c.bf16 %v6731, %v6730
      %v6769 = vpack.c.bf16 %v6733, %v6732
      %v6770 = vpack.c.bf16 %v6735, %v6734
      %v6771 = vpack.c.bf16 %v6737, %v6736
      %v6772 = vpack.c.bf16 %v6739, %v6738
      %v6773 = vpack.c.bf16 %v6741, %v6740
      %v6798 = vunpack.c.l.b16 %v6742
      %v6799 = vunpack.c.h.b16 %v6742
      %v6800 = vunpack.c.l.b16 %v6743
      %v6801 = vunpack.c.h.b16 %v6743
      %v6802 = vunpack.c.l.b16 %v6744
      %v6803 = vunpack.c.h.b16 %v6744
      %v6804 = vunpack.c.l.b16 %v6745
      %v6805 = vunpack.c.h.b16 %v6745
      %v6806 = vunpack.c.l.b16 %v6746
      %v6807 = vunpack.c.h.b16 %v6746
      %v6808 = vunpack.c.l.b16 %v6747
      %v6809 = vunpack.c.h.b16 %v6747
      %v6810 = vunpack.c.l.b16 %v6748
      %v6811 = vunpack.c.h.b16 %v6748
      %v6812 = vunpack.c.l.b16 %v6749
      %v6813 = vunpack.c.h.b16 %v6749
      %v6814 = vunpack.c.l.b16 %v6750
      %v6815 = vunpack.c.h.b16 %v6750
      %v6816 = vunpack.c.l.b16 %v6751
      %v6817 = vunpack.c.h.b16 %v6751
      %v6818 = vunpack.c.l.b16 %v6752
      %v6819 = vunpack.c.h.b16 %v6752
      %v6820 = vunpack.c.l.b16 %v6753
      %v6821 = vunpack.c.h.b16 %v6753
      %v6822 = vunpack.c.l.b16 %v6758
      %v6823 = vunpack.c.h.b16 %v6758
      %v6824 = vunpack.c.l.b16 %v6759
      %v6825 = vunpack.c.h.b16 %v6759
      %v6826 = vunpack.c.l.b16 %v6760
      %v6827 = vunpack.c.h.b16 %v6760
      %v6828 = vunpack.c.l.b16 %v6761
      %v6829 = vunpack.c.h.b16 %v6761
      %v6830 = vunpack.c.l.b16 %v6762
      %v6831 = vunpack.c.h.b16 %v6762
      %v6832 = vunpack.c.l.b16 %v6763
      %v6833 = vunpack.c.h.b16 %v6763
      %v6834 = vunpack.c.l.b16 %v6764
      %v6835 = vunpack.c.h.b16 %v6764
      %v6836 = vunpack.c.l.b16 %v6765
      %v6837 = vunpack.c.h.b16 %v6765
      %v6838 = vunpack.c.l.b16 %v6766
      %v6839 = vunpack.c.h.b16 %v6766
      %v6840 = vunpack.c.l.b16 %v6767
      %v6841 = vunpack.c.h.b16 %v6767
      %v6842 = vunpack.c.l.b16 %v6768
      %v6843 = vunpack.c.h.b16 %v6768
      %v6844 = vunpack.c.l.b16 %v6769
      %v6845 = vunpack.c.h.b16 %v6769
      %v6846 = vpack.c.b16 %v6822, %v6798
      %v6847 = vpack.c.b16 %v6823, %v6799
      %v6848 = vpack.c.b16 %v6824, %v6800
      %v6849 = vpack.c.b16 %v6825, %v6801
      %v6850 = vpack.c.b16 %v6826, %v6802
      %v6851 = vpack.c.b16 %v6827, %v6803
      %v6852 = vpack.c.b16 %v6828, %v6804
      %v6853 = vpack.c.b16 %v6829, %v6805
      %v6854 = vpack.c.b16 %v6830, %v6806
      %v6855 = vpack.c.b16 %v6831, %v6807
      %v6856 = vpack.c.b16 %v6832, %v6808
      %v6857 = vpack.c.b16 %v6833, %v6809
      %v6858 = vpack.c.b16 %v6834, %v6810
      %v6859 = vpack.c.b16 %v6835, %v6811
      %v6860 = vpack.c.b16 %v6836, %v6812
      %v6861 = vpack.c.b16 %v6837, %v6813
      %v6862 = vpack.c.b16 %v6838, %v6814
      %v6863 = vpack.c.b16 %v6839, %v6815
      %v6864 = vpack.c.b16 %v6840, %v6816
      %v6865 = vpack.c.b16 %v6841, %v6817
      %v6866 = vpack.c.b16 %v6842, %v6818
      %v6867 = vpack.c.b16 %v6843, %v6819
      %v6868 = vpack.c.b16 %v6844, %v6820
      %v6869 = vpack.c.b16 %v6845, %v6821
      %v6898 = vunpack.c.l.b16 %v6754
      %v6899 = vunpack.c.h.b16 %v6754
      %v6900 = vunpack.c.l.b16 %v6755
      %v6901 = vunpack.c.h.b16 %v6755
      %v6902 = vunpack.c.l.b16 %v6770
      %v6903 = vunpack.c.h.b16 %v6770
      %v6904 = vunpack.c.l.b16 %v6771
      %v6905 = vunpack.c.h.b16 %v6771
      %v6906 = vpack.c.b16 %v6902, %v6898
      %v6907 = vpack.c.b16 %v6903, %v6899
      %v6908 = vpack.c.b16 %v6904, %v6900
      %v6909 = vpack.c.b16 %v6905, %v6901
      %v6918 = vunpack.c.l.b16 %v6756
      %v6919 = vunpack.c.h.b16 %v6756
      %v6920 = vunpack.c.l.b16 %v6757
      %v6921 = vunpack.c.h.b16 %v6757
      %v6922 = vunpack.c.l.b16 %v6772
      %v6923 = vunpack.c.h.b16 %v6772
      %v6924 = vunpack.c.l.b16 %v6773
      %v6925 = vunpack.c.h.b16 %v6773
      %v6926 = vpack.c.b16 %v6922, %v6918
      %v6927 = vpack.c.b16 %v6923, %v6919
      %v6928 = vpack.c.b16 %v6924, %v6920
      %v6929 = vpack.c.b16 %v6925, %v6921
      %v6934 = vld [vmem:[%s3] sm:$0xf]
      %v6935 = vld [vmem:[%s3 + $0x4] sm:$0xf]
      %v6936 = vld [vmem:[%s4] sm:$0xff]
      %v6937 = vld [vmem:[%s4 + $0x8] sm:$0xff]
      %6939 = vset.pattern.permute.xlu0 0
      %6940 = vperm.xlu0 %6939, %v6936
      %v6941 = vpop.permute.xlu0 %6940
      %6944 = vset.pattern.permute.xlu0 0
      %6945 = vperm.xlu0 %6944, %v6937
      %v6946 = vpop.permute.xlu0 %6945
      %v6950 = vunpack.c.l.b16 %v6934
      %v6951 = vunpack.c.l.b16 %v6935
      %v6952 = vpack.c.b16 %v6951, %v6950
      %v6954 = vsel %vm1504, %v6952, 0
      %6956 = vmatpush.bf16.msra.mxu0 0
      %6957 = vmatpush.bf16.msra.mxu0 0
      %6958 = vmatpush.bf16.msra.mxu0 0
      %6959 = vmatpush.bf16.msra.mxu0 %v6854
      %6960 = vmatpush.bf16.msra.mxu0 %v6850
      %6961 = vmatpush.bf16.msra.mxu0 %v6846
      %6962 = vmatpush.bf16.msra.mxu0 0
      %6963 = vmatpush.bf16.msra.mxu0 0
      %6964 = vmatmul.bf16.gmra.mxu0 %v6954
      %v6965 = vpop.f32.mrf.mxu0
      %v6966 = vadd.f32 %v6941, %v6965
      %v6967 = vpop.f32.mrf.mxu0
      %v6968 = vadd.f32 %v6946, %v6967
      %6969 = vdwg.mxu0
      %6970 = vmatpush.bf16.msra.mxu0 0
      %6971 = vmatpush.bf16.msra.mxu0 0
      %6972 = vmatpush.bf16.msra.mxu0 0
      %6973 = vmatpush.bf16.msra.mxu0 %v6855
      %6974 = vmatpush.bf16.msra.mxu0 %v6851
      %6975 = vmatpush.bf16.msra.mxu0 %v6847
      %6976 = vmatpush.bf16.msra.mxu0 0
      %6977 = vmatpush.bf16.msra.mxu0 0
      %6978 = vmatmul.bf16.gmra.mxu0 %v6954
      %v6979 = vpop.f32.mrf.mxu0
      %v6980 = vadd.f32 %v6941, %v6979
      %v6981 = vpop.f32.mrf.mxu0
      %v6982 = vadd.f32 %v6946, %v6981
      %6983 = vdwg.mxu0
      %6984 = vmatpush.bf16.msra.mxu0 0
      %6985 = vmatpush.bf16.msra.mxu0 0
      %6986 = vmatpush.bf16.msra.mxu0 0
      %6987 = vmatpush.bf16.msra.mxu0 %v6856
      %6988 = vmatpush.bf16.msra.mxu0 %v6852
      %6989 = vmatpush.bf16.msra.mxu0 %v6848
      %6990 = vmatpush.bf16.msra.mxu0 0
      %6991 = vmatpush.bf16.msra.mxu0 0
      %6992 = vmatmul.bf16.gmra.mxu0 %v6954
      %v6993 = vpop.f32.mrf.mxu0
      %v6994 = vadd.f32 %v6941, %v6993
      %v6995 = vpop.f32.mrf.mxu0
      %v6996 = vadd.f32 %v6946, %v6995
      %6997 = vdwg.mxu0
      %6998 = vmatpush.bf16.msra.mxu0 0
      %6999 = vmatpush.bf16.msra.mxu0 0
      %7000 = vmatpush.bf16.msra.mxu0 0
      %7001 = vmatpush.bf16.msra.mxu0 %v6857
      %7002 = vmatpush.bf16.msra.mxu0 %v6853
      %7003 = vmatpush.bf16.msra.mxu0 %v6849
      %7004 = vmatpush.bf16.msra.mxu0 0
      %7005 = vmatpush.bf16.msra.mxu0 0
      %7006 = vmatmul.bf16.gmra.mxu0 %v6954
      %v7007 = vpop.f32.mrf.mxu0
      %v7008 = vadd.f32 %v6941, %v7007
      %v7009 = vpop.f32.mrf.mxu0
      %v7010 = vadd.f32 %v6946, %v7009
      %7011 = vdwg.mxu0
      %7012 = vmatpush.bf16.msra.mxu0 0
      %7013 = vmatpush.bf16.msra.mxu0 0
      %7014 = vmatpush.bf16.msra.mxu0 0
      %7015 = vmatpush.bf16.msra.mxu0 %v6858
      %7016 = vmatpush.bf16.msra.mxu0 %v6854
      %7017 = vmatpush.bf16.msra.mxu0 %v6850
      %7018 = vmatpush.bf16.msra.mxu0 %v6846
      %7019 = vmatpush.bf16.msra.mxu0 0
      %7020 = vmatmul.bf16.gmra.mxu0 %v6954
      %v7021 = vpop.f32.mrf.mxu0
      %v7022 = vadd.f32 %v6941, %v7021
      %v7023 = vpop.f32.mrf.mxu0
      %v7024 = vadd.f32 %v6946, %v7023
      %7025 = vdwg.mxu0
      %7026 = vmatpush.bf16.msra.mxu0 0
      %7027 = vmatpush.bf16.msra.mxu0 0
      %7028 = vmatpush.bf16.msra.mxu0 0
      %7029 = vmatpush.bf16.msra.mxu0 %v6859
      %7030 = vmatpush.bf16.msra.mxu0 %v6855
      %7031 = vmatpush.bf16.msra.mxu0 %v6851
      %7032 = vmatpush.bf16.msra.mxu0 %v6847
      %7033 = vmatpush.bf16.msra.mxu0 0
      %7034 = vmatmul.bf16.gmra.mxu0 %v6954
      %v7035 = vpop.f32.mrf.mxu0
      %v7036 = vadd.f32 %v6941, %v7035
      %v7037 = vpop.f32.mrf.mxu0
      %v7038 = vadd.f32 %v6946, %v7037
      %7039 = vdwg.mxu0
      %7040 = vmatpush.bf16.msra.mxu0 0
      %7041 = vmatpush.bf16.msra.mxu0 0
      %7042 = vmatpush.bf16.msra.mxu0 0
      %7043 = vmatpush.bf16.msra.mxu0 %v6860
      %7044 = vmatpush.bf16.msra.mxu0 %v6856
      %7045 = vmatpush.bf16.msra.mxu0 %v6852
      %7046 = vmatpush.bf16.msra.mxu0 %v6848
      %7047 = vmatpush.bf16.msra.mxu0 0
      %7048 = vmatmul.bf16.gmra.mxu0 %v6954
      %v7049 = vpop.f32.mrf.mxu0
      %v7050 = vadd.f32 %v6941, %v7049
      %v7051 = vpop.f32.mrf.mxu0
      %v7052 = vadd.f32 %v6946, %v7051
      %7053 = vdwg.mxu0
      %7054 = vmatpush.bf16.msra.mxu0 0
      %7055 = vmatpush.bf16.msra.mxu0 0
      %7056 = vmatpush.bf16.msra.mxu0 0
      %7057 = vmatpush.bf16.msra.mxu0 %v6861
      %7058 = vmatpush.bf16.msra.mxu0 %v6857
      %7059 = vmatpush.bf16.msra.mxu0 %v6853
      %7060 = vmatpush.bf16.msra.mxu0 %v6849
      %7061 = vmatpush.bf16.msra.mxu0 0
      %7062 = vmatmul.bf16.gmra.mxu0 %v6954
      %v7063 = vpop.f32.mrf.mxu0
      %v7064 = vadd.f32 %v6941, %v7063
      %v7065 = vpop.f32.mrf.mxu0
      %v7066 = vadd.f32 %v6946, %v7065
      %7067 = vdwg.mxu0
      %7068 = vmatpush.bf16.msra.mxu0 0
      %7069 = vmatpush.bf16.msra.mxu0 0
      %7070 = vmatpush.bf16.msra.mxu0 0
      %7071 = vmatpush.bf16.msra.mxu0 %v6862
      %7072 = vmatpush.bf16.msra.mxu0 %v6858
      %7073 = vmatpush.bf16.msra.mxu0 %v6854
      %7074 = vmatpush.bf16.msra.mxu0 %v6850
      %7075 = vmatpush.bf16.msra.mxu0 %v6846
      %7076 = vmatmul.bf16.gmra.mxu0 %v6954
      %v7077 = vpop.f32.mrf.mxu0
      %v7078 = vadd.f32 %v6941, %v7077
      %v7079 = vpop.f32.mrf.mxu0
      %v7080 = vadd.f32 %v6946, %v7079
      %7081 = vdwg.mxu0
      %7082 = vmatpush.bf16.msra.mxu0 0
      %7083 = vmatpush.bf16.msra.mxu0 0
      %7084 = vmatpush.bf16.msra.mxu0 0
      %7085 = vmatpush.bf16.msra.mxu0 %v6863
      %7086 = vmatpush.bf16.msra.mxu0 %v6859
      %7087 = vmatpush.bf16.msra.mxu0 %v6855
      %7088 = vmatpush.bf16.msra.mxu0 %v6851
      %7089 = vmatpush.bf16.msra.mxu0 %v6847
      %7090 = vmatmul.bf16.gmra.mxu0 %v6954
      %v7091 = vpop.f32.mrf.mxu0
      %v7092 = vadd.f32 %v6941, %v7091
      %v7093 = vpop.f32.mrf.mxu0
      %v7094 = vadd.f32 %v6946, %v7093
      %7095 = vdwg.mxu0
      %7096 = vmatpush.bf16.msra.mxu0 0
      %7097 = vmatpush.bf16.msra.mxu0 0
      %7098 = vmatpush.bf16.msra.mxu0 0
      %7099 = vmatpush.bf16.msra.mxu0 %v6864
      %7100 = vmatpush.bf16.msra.mxu0 %v6860
      %7101 = vmatpush.bf16.msra.mxu0 %v6856
      %7102 = vmatpush.bf16.msra.mxu0 %v6852
      %7103 = vmatpush.bf16.msra.mxu0 %v6848
      %7104 = vmatmul.bf16.gmra.mxu0 %v6954
      %v7105 = vpop.f32.mrf.mxu0
      %v7106 = vadd.f32 %v6941, %v7105
      %v7107 = vpop.f32.mrf.mxu0
      %v7108 = vadd.f32 %v6946, %v7107
      %7109 = vdwg.mxu0
      %7110 = vmatpush.bf16.msra.mxu0 0
      %7111 = vmatpush.bf16.msra.mxu0 0
      %7112 = vmatpush.bf16.msra.mxu0 0
      %7113 = vmatpush.bf16.msra.mxu0 %v6865
      %7114 = vmatpush.bf16.msra.mxu0 %v6861
      %7115 = vmatpush.bf16.msra.mxu0 %v6857
      %7116 = vmatpush.bf16.msra.mxu0 %v6853
      %7117 = vmatpush.bf16.msra.mxu0 %v6849
      %7118 = vmatmul.bf16.gmra.mxu0 %v6954
      %v7119 = vpop.f32.mrf.mxu0
      %v7120 = vadd.f32 %v6941, %v7119
      %v7121 = vpop.f32.mrf.mxu0
      %v7122 = vadd.f32 %v6946, %v7121
      %7123 = vdwg.mxu0
      %7124 = vmatpush.bf16.msra.mxu0 0
      %7125 = vmatpush.bf16.msra.mxu0 0
      %7126 = vmatpush.bf16.msra.mxu0 0
      %7127 = vmatpush.bf16.msra.mxu0 %v6866
      %7128 = vmatpush.bf16.msra.mxu0 %v6862
      %7129 = vmatpush.bf16.msra.mxu0 %v6858
      %7130 = vmatpush.bf16.msra.mxu0 %v6854
      %7131 = vmatpush.bf16.msra.mxu0 %v6850
      %7132 = vmatmul.bf16.gmra.mxu0 %v6954
      %v7133 = vpop.f32.mrf.mxu0
      %v7134 = vadd.f32 %v6941, %v7133
      %v7135 = vpop.f32.mrf.mxu0
      %v7136 = vadd.f32 %v6946, %v7135
      %7137 = vdwg.mxu0
      %7138 = vmatpush.bf16.msra.mxu0 0
      %7139 = vmatpush.bf16.msra.mxu0 0
      %7140 = vmatpush.bf16.msra.mxu0 0
      %7141 = vmatpush.bf16.msra.mxu0 %v6867
      %7142 = vmatpush.bf16.msra.mxu0 %v6863
      %7143 = vmatpush.bf16.msra.mxu0 %v6859
      %7144 = vmatpush.bf16.msra.mxu0 %v6855
      %7145 = vmatpush.bf16.msra.mxu0 %v6851
      %7146 = vmatmul.bf16.gmra.mxu0 %v6954
      %v7147 = vpop.f32.mrf.mxu0
      %v7148 = vadd.f32 %v6941, %v7147
      %v7149 = vpop.f32.mrf.mxu0
      %v7150 = vadd.f32 %v6946, %v7149
      %7151 = vdwg.mxu0
      %7152 = vmatpush.bf16.msra.mxu0 0
      %7153 = vmatpush.bf16.msra.mxu0 0
      %7154 = vmatpush.bf16.msra.mxu0 0
      %7155 = vmatpush.bf16.msra.mxu0 %v6868
      %7156 = vmatpush.bf16.msra.mxu0 %v6864
      %7157 = vmatpush.bf16.msra.mxu0 %v6860
      %7158 = vmatpush.bf16.msra.mxu0 %v6856
      %7159 = vmatpush.bf16.msra.mxu0 %v6852
      %7160 = vmatmul.bf16.gmra.mxu0 %v6954
      %v7161 = vpop.f32.mrf.mxu0
      %v7162 = vadd.f32 %v6941, %v7161
      %v7163 = vpop.f32.mrf.mxu0
      %v7164 = vadd.f32 %v6946, %v7163
      %7165 = vdwg.mxu0
      %7166 = vmatpush.bf16.msra.mxu0 0
      %7167 = vmatpush.bf16.msra.mxu0 0
      %7168 = vmatpush.bf16.msra.mxu0 0
      %7169 = vmatpush.bf16.msra.mxu0 %v6869
      %7170 = vmatpush.bf16.msra.mxu0 %v6865
      %7171 = vmatpush.bf16.msra.mxu0 %v6861
      %7172 = vmatpush.bf16.msra.mxu0 %v6857
      %7173 = vmatpush.bf16.msra.mxu0 %v6853
      %7174 = vmatmul.bf16.gmra.mxu0 %v6954
      %v7175 = vpop.f32.mrf.mxu0
      %v7176 = vadd.f32 %v6941, %v7175
      %v7177 = vpop.f32.mrf.mxu0
      %v7178 = vadd.f32 %v6946, %v7177
      %7179 = vdwg.mxu0
      %7180 = vmatpush.bf16.msra.mxu0 0
      %7181 = vmatpush.bf16.msra.mxu0 0
      %7182 = vmatpush.bf16.msra.mxu0 0
      %7183 = vmatpush.bf16.msra.mxu0 %v6906
      %7184 = vmatpush.bf16.msra.mxu0 %v6866
      %7185 = vmatpush.bf16.msra.mxu0 %v6862
      %7186 = vmatpush.bf16.msra.mxu0 %v6858
      %7187 = vmatpush.bf16.msra.mxu0 %v6854
      %7188 = vmatmul.bf16.gmra.mxu0 %v6954
      %v7189 = vpop.f32.mrf.mxu0
      %v7190 = vadd.f32 %v6941, %v7189
      %v7191 = vpop.f32.mrf.mxu0
      %v7192 = vadd.f32 %v6946, %v7191
      %7193 = vdwg.mxu0
      %7194 = vmatpush.bf16.msra.mxu0 0
      %7195 = vmatpush.bf16.msra.mxu0 0
      %7196 = vmatpush.bf16.msra.mxu0 0
      %7197 = vmatpush.bf16.msra.mxu0 %v6907
      %7198 = vmatpush.bf16.msra.mxu0 %v6867
      %7199 = vmatpush.bf16.msra.mxu0 %v6863
      %7200 = vmatpush.bf16.msra.mxu0 %v6859
      %7201 = vmatpush.bf16.msra.mxu0 %v6855
      %7202 = vmatmul.bf16.gmra.mxu0 %v6954
      %v7203 = vpop.f32.mrf.mxu0
      %v7204 = vadd.f32 %v6941, %v7203
      %v7205 = vpop.f32.mrf.mxu0
      %v7206 = vadd.f32 %v6946, %v7205
      %7207 = vdwg.mxu0
      %7208 = vmatpush.bf16.msra.mxu0 0
      %7209 = vmatpush.bf16.msra.mxu0 0
      %7210 = vmatpush.bf16.msra.mxu0 0
      %7211 = vmatpush.bf16.msra.mxu0 %v6908
      %7212 = vmatpush.bf16.msra.mxu0 %v6868
      %7213 = vmatpush.bf16.msra.mxu0 %v6864
      %7214 = vmatpush.bf16.msra.mxu0 %v6860
      %7215 = vmatpush.bf16.msra.mxu0 %v6856
      %7216 = vmatmul.bf16.gmra.mxu0 %v6954
      %v7217 = vpop.f32.mrf.mxu0
      %v7218 = vadd.f32 %v6941, %v7217
      %v7219 = vpop.f32.mrf.mxu0
      %v7220 = vadd.f32 %v6946, %v7219
      %7221 = vdwg.mxu0
      %7222 = vmatpush.bf16.msra.mxu0 0
      %7223 = vmatpush.bf16.msra.mxu0 0
      %7224 = vmatpush.bf16.msra.mxu0 0
      %7225 = vmatpush.bf16.msra.mxu0 %v6909
      %7226 = vmatpush.bf16.msra.mxu0 %v6869
      %7227 = vmatpush.bf16.msra.mxu0 %v6865
      %7228 = vmatpush.bf16.msra.mxu0 %v6861
      %7229 = vmatpush.bf16.msra.mxu0 %v6857
      %7230 = vmatmul.bf16.gmra.mxu0 %v6954
      %v7231 = vpop.f32.mrf.mxu0
      %v7232 = vadd.f32 %v6941, %v7231
      %v7233 = vpop.f32.mrf.mxu0
      %v7234 = vadd.f32 %v6946, %v7233
      %7235 = vdwg.mxu0
      %7236 = vmatpush.bf16.msra.mxu0 0
      %7237 = vmatpush.bf16.msra.mxu0 0
      %7238 = vmatpush.bf16.msra.mxu0 0
      %7239 = vmatpush.bf16.msra.mxu0 %v6926
      %7240 = vmatpush.bf16.msra.mxu0 %v6906
      %7241 = vmatpush.bf16.msra.mxu0 %v6866
      %7242 = vmatpush.bf16.msra.mxu0 %v6862
      %7243 = vmatpush.bf16.msra.mxu0 %v6858
      %7244 = vmatmul.bf16.gmra.mxu0 %v6954
      %v7245 = vpop.f32.mrf.mxu0
      %v7246 = vadd.f32 %v6941, %v7245
      %v7247 = vpop.f32.mrf.mxu0
      %v7248 = vadd.f32 %v6946, %v7247
      %7249 = vdwg.mxu0
      %7250 = vmatpush.bf16.msra.mxu0 0
      %7251 = vmatpush.bf16.msra.mxu0 0
      %7252 = vmatpush.bf16.msra.mxu0 0
      %7253 = vmatpush.bf16.msra.mxu0 %v6927
      %7254 = vmatpush.bf16.msra.mxu0 %v6907
      %7255 = vmatpush.bf16.msra.mxu0 %v6867
      %7256 = vmatpush.bf16.msra.mxu0 %v6863
      %7257 = vmatpush.bf16.msra.mxu0 %v6859
      %7258 = vmatmul.bf16.gmra.mxu0 %v6954
      %v7259 = vpop.f32.mrf.mxu0
      %v7260 = vadd.f32 %v6941, %v7259
      %v7261 = vpop.f32.mrf.mxu0
      %v7262 = vadd.f32 %v6946, %v7261
      %7263 = vdwg.mxu0
      %7264 = vmatpush.bf16.msra.mxu0 0
      %7265 = vmatpush.bf16.msra.mxu0 0
      %7266 = vmatpush.bf16.msra.mxu0 0
      %7267 = vmatpush.bf16.msra.mxu0 %v6928
      %7268 = vmatpush.bf16.msra.mxu0 %v6908
      %7269 = vmatpush.bf16.msra.mxu0 %v6868
      %7270 = vmatpush.bf16.msra.mxu0 %v6864
      %7271 = vmatpush.bf16.msra.mxu0 %v6860
      %7272 = vmatmul.bf16.gmra.mxu0 %v6954
      %v7273 = vpop.f32.mrf.mxu0
      %v7274 = vadd.f32 %v6941, %v7273
      %v7275 = vpop.f32.mrf.mxu0
      %v7276 = vadd.f32 %v6946, %v7275
      %7277 = vdwg.mxu0
      %7278 = vmatpush.bf16.msra.mxu0 0
      %7279 = vmatpush.bf16.msra.mxu0 0
      %7280 = vmatpush.bf16.msra.mxu0 0
      %7281 = vmatpush.bf16.msra.mxu0 %v6929
      %7282 = vmatpush.bf16.msra.mxu0 %v6909
      %7283 = vmatpush.bf16.msra.mxu0 %v6869
      %7284 = vmatpush.bf16.msra.mxu0 %v6865
      %7285 = vmatpush.bf16.msra.mxu0 %v6861
      %7286 = vmatmul.bf16.gmra.mxu0 %v6954
      %v7287 = vpop.f32.mrf.mxu0
      %v7288 = vadd.f32 %v6941, %v7287
      %v7289 = vpop.f32.mrf.mxu0
      %v7290 = vadd.f32 %v6946, %v7289
      %7291 = vdwg.mxu0
      %7292 = vmatpush.bf16.msra.mxu0 0
      %7293 = vmatpush.bf16.msra.mxu0 0
      %7294 = vmatpush.bf16.msra.mxu0 0
      %7295 = vmatpush.bf16.msra.mxu0 0
      %7296 = vmatpush.bf16.msra.mxu0 %v6926
      %7297 = vmatpush.bf16.msra.mxu0 %v6906
      %7298 = vmatpush.bf16.msra.mxu0 %v6866
      %7299 = vmatpush.bf16.msra.mxu0 %v6862
      %7300 = vmatmul.bf16.gmra.mxu0 %v6954
      %v7301 = vpop.f32.mrf.mxu0
      %v7302 = vadd.f32 %v6941, %v7301
      %v7303 = vpop.f32.mrf.mxu0
      %v7304 = vadd.f32 %v6946, %v7303
      %7305 = vdwg.mxu0
      %7306 = vmatpush.bf16.msra.mxu0 0
      %7307 = vmatpush.bf16.msra.mxu0 0
      %7308 = vmatpush.bf16.msra.mxu0 0
      %7309 = vmatpush.bf16.msra.mxu0 0
      %7310 = vmatpush.bf16.msra.mxu0 %v6927
      %7311 = vmatpush.bf16.msra.mxu0 %v6907
      %7312 = vmatpush.bf16.msra.mxu0 %v6867
      %7313 = vmatpush.bf16.msra.mxu0 %v6863
      %7314 = vmatmul.bf16.gmra.mxu0 %v6954
      %v7315 = vpop.f32.mrf.mxu0
      %v7316 = vadd.f32 %v6941, %v7315
      %v7317 = vpop.f32.mrf.mxu0
      %v7318 = vadd.f32 %v6946, %v7317
      %7319 = vdwg.mxu0
      %7320 = vmatpush.bf16.msra.mxu0 0
      %7321 = vmatpush.bf16.msra.mxu0 0
      %7322 = vmatpush.bf16.msra.mxu0 0
      %7323 = vmatpush.bf16.msra.mxu0 0
      %7324 = vmatpush.bf16.msra.mxu0 %v6928
      %7325 = vmatpush.bf16.msra.mxu0 %v6908
      %7326 = vmatpush.bf16.msra.mxu0 %v6868
      %7327 = vmatpush.bf16.msra.mxu0 %v6864
      %7328 = vmatmul.bf16.gmra.mxu0 %v6954
      %v7329 = vpop.f32.mrf.mxu0
      %v7330 = vadd.f32 %v6941, %v7329
      %v7331 = vpop.f32.mrf.mxu0
      %v7332 = vadd.f32 %v6946, %v7331
      %7333 = vdwg.mxu0
      %7334 = vmatpush.bf16.msra.mxu0 0
      %7335 = vmatpush.bf16.msra.mxu0 0
      %7336 = vmatpush.bf16.msra.mxu0 0
      %7337 = vmatpush.bf16.msra.mxu0 0
      %7338 = vmatpush.bf16.msra.mxu0 %v6929
      %7339 = vmatpush.bf16.msra.mxu0 %v6909
      %7340 = vmatpush.bf16.msra.mxu0 %v6869
      %7341 = vmatpush.bf16.msra.mxu0 %v6865
      %7342 = vmatmul.bf16.gmra.mxu0 %v6954
      %v7343 = vpop.f32.mrf.mxu0
      %v7344 = vadd.f32 %v6941, %v7343
      %v7345 = vpop.f32.mrf.mxu0
      %v7346 = vadd.f32 %v6946, %v7345
      %7347 = vdwg.mxu0
      %7348 = vmatpush.bf16.msra.mxu0 0
      %7349 = vmatpush.bf16.msra.mxu0 0
      %7350 = vmatpush.bf16.msra.mxu0 0
      %7351 = vmatpush.bf16.msra.mxu0 0
      %7352 = vmatpush.bf16.msra.mxu0 0
      %7353 = vmatpush.bf16.msra.mxu0 %v6926
      %7354 = vmatpush.bf16.msra.mxu0 %v6906
      %7355 = vmatpush.bf16.msra.mxu0 %v6866
      %7356 = vmatmul.bf16.gmra.mxu0 %v6954
      %v7357 = vpop.f32.mrf.mxu0
      %v7358 = vadd.f32 %v6941, %v7357
      %v7359 = vpop.f32.mrf.mxu0
      %v7360 = vadd.f32 %v6946, %v7359
      %7361 = vdwg.mxu0
      %7362 = vmatpush.bf16.msra.mxu0 0
      %7363 = vmatpush.bf16.msra.mxu0 0
      %7364 = vmatpush.bf16.msra.mxu0 0
      %7365 = vmatpush.bf16.msra.mxu0 0
      %7366 = vmatpush.bf16.msra.mxu0 0
      %7367 = vmatpush.bf16.msra.mxu0 %v6927
      %7368 = vmatpush.bf16.msra.mxu0 %v6907
      %7369 = vmatpush.bf16.msra.mxu0 %v6867
      %7370 = vmatmul.bf16.gmra.mxu0 %v6954
      %v7371 = vpop.f32.mrf.mxu0
      %v7372 = vadd.f32 %v6941, %v7371
      %v7373 = vpop.f32.mrf.mxu0
      %v7374 = vadd.f32 %v6946, %v7373
      %7375 = vdwg.mxu0
      %7376 = vmatpush.bf16.msra.mxu0 0
      %7377 = vmatpush.bf16.msra.mxu0 0
      %7378 = vmatpush.bf16.msra.mxu0 0
      %7379 = vmatpush.bf16.msra.mxu0 0
      %7380 = vmatpush.bf16.msra.mxu0 0
      %7381 = vmatpush.bf16.msra.mxu0 %v6928
      %7382 = vmatpush.bf16.msra.mxu0 %v6908
      %7383 = vmatpush.bf16.msra.mxu0 %v6868
      %7384 = vmatmul.bf16.gmra.mxu0 %v6954
      %v7385 = vpop.f32.mrf.mxu0
      %v7386 = vadd.f32 %v6941, %v7385
      %v7387 = vpop.f32.mrf.mxu0
      %v7388 = vadd.f32 %v6946, %v7387
      %7389 = vdwg.mxu0
      %7390 = vmatpush.bf16.msra.mxu0 0
      %7391 = vmatpush.bf16.msra.mxu0 0
      %7392 = vmatpush.bf16.msra.mxu0 0
      %7393 = vmatpush.bf16.msra.mxu0 0
      %7394 = vmatpush.bf16.msra.mxu0 0
      %7395 = vmatpush.bf16.msra.mxu0 %v6929
      %7396 = vmatpush.bf16.msra.mxu0 %v6909
      %7397 = vmatpush.bf16.msra.mxu0 %v6869
      %7398 = vmatmul.bf16.gmra.mxu0 %v6954
      %v7399 = vpop.f32.mrf.mxu0
      %v7400 = vadd.f32 %v6941, %v7399
      %v7401 = vpop.f32.mrf.mxu0
      %v7402 = vadd.f32 %v6946, %v7401
      %7403 = vdwg.mxu0
      %v7404 = vmax.f32 %v6966, 0.0
      %v7405 = vmax.f32 %v6980, 0.0
      %v7406 = vmax.f32 %v6994, 0.0
      %v7407 = vmax.f32 %v7008, 0.0
      %v7408 = vmax.f32 %v7022, 0.0
      %v7409 = vmax.f32 %v7036, 0.0
      %v7410 = vmax.f32 %v7050, 0.0
      %v7411 = vmax.f32 %v7064, 0.0
      %v7412 = vmax.f32 %v7078, 0.0
      %v7413 = vmax.f32 %v7092, 0.0
      %v7414 = vmax.f32 %v7106, 0.0
      %v7415 = vmax.f32 %v7120, 0.0
      %v7416 = vmax.f32 %v7134, 0.0
      %v7417 = vmax.f32 %v7148, 0.0
      %v7418 = vmax.f32 %v7162, 0.0
      %v7419 = vmax.f32 %v7176, 0.0
      %v7420 = vmax.f32 %v7190, 0.0
      %v7421 = vmax.f32 %v7204, 0.0
      %v7422 = vmax.f32 %v7218, 0.0
      %v7423 = vmax.f32 %v7232, 0.0
      %v7424 = vmax.f32 %v7246, 0.0
      %v7425 = vmax.f32 %v7260, 0.0
      %v7426 = vmax.f32 %v7274, 0.0
      %v7427 = vmax.f32 %v7288, 0.0
      %v7428 = vmax.f32 %v7302, 0.0
      %v7429 = vmax.f32 %v7316, 0.0
      %v7430 = vmax.f32 %v7330, 0.0
      %v7431 = vmax.f32 %v7344, 0.0
      %v7432 = vmax.f32 %v7358, 0.0
      %v7433 = vmax.f32 %v7372, 0.0
      %v7434 = vmax.f32 %v7386, 0.0
      %v7435 = vmax.f32 %v7400, 0.0
      %v7436 = vmax.f32 %v6968, 0.0
      %v7437 = vmax.f32 %v6982, 0.0
      %v7438 = vmax.f32 %v6996, 0.0
      %v7439 = vmax.f32 %v7010, 0.0
      %v7440 = vmax.f32 %v7024, 0.0
      %v7441 = vmax.f32 %v7038, 0.0
      %v7442 = vmax.f32 %v7052, 0.0
      %v7443 = vmax.f32 %v7066, 0.0
      %v7444 = vmax.f32 %v7080, 0.0
      %v7445 = vmax.f32 %v7094, 0.0
      %v7446 = vmax.f32 %v7108, 0.0
      %v7447 = vmax.f32 %v7122, 0.0
      %v7448 = vmax.f32 %v7136, 0.0
      %v7449 = vmax.f32 %v7150, 0.0
      %v7450 = vmax.f32 %v7164, 0.0
      %v7451 = vmax.f32 %v7178, 0.0
      %v7452 = vmax.f32 %v7192, 0.0
      %v7453 = vmax.f32 %v7206, 0.0
      %v7454 = vmax.f32 %v7220, 0.0
      %v7455 = vmax.f32 %v7234, 0.0
      %v7456 = vmax.f32 %v7248, 0.0
      %v7457 = vmax.f32 %v7262, 0.0
      %v7458 = vmax.f32 %v7276, 0.0
      %v7459 = vmax.f32 %v7290, 0.0
      %v7460 = vmax.f32 %v7304, 0.0
      %v7461 = vmax.f32 %v7318, 0.0
      %v7462 = vmax.f32 %v7332, 0.0
      %v7463 = vmax.f32 %v7346, 0.0
      %v7464 = vmax.f32 %v7360, 0.0
      %v7465 = vmax.f32 %v7374, 0.0
      %v7466 = vmax.f32 %v7388, 0.0
      %v7467 = vmax.f32 %v7402, 0.0
      %v7468 = vld [vmem:[%s5] sm:$0xf]
      %v7469 = vpack.c.bf16 %v7436, %v7404
      %v7470 = vpack.c.bf16 %v7437, %v7405
      %v7471 = vpack.c.bf16 %v7438, %v7406
      %v7472 = vpack.c.bf16 %v7439, %v7407
      %v7473 = vpack.c.bf16 %v7440, %v7408
      %v7474 = vpack.c.bf16 %v7441, %v7409
      %v7475 = vpack.c.bf16 %v7442, %v7410
      %v7476 = vpack.c.bf16 %v7443, %v7411
      %v7477 = vpack.c.bf16 %v7444, %v7412
      %v7478 = vpack.c.bf16 %v7445, %v7413
      %v7479 = vpack.c.bf16 %v7446, %v7414
      %v7480 = vpack.c.bf16 %v7447, %v7415
      %v7481 = vpack.c.bf16 %v7448, %v7416
      %v7482 = vpack.c.bf16 %v7449, %v7417
      %v7483 = vpack.c.bf16 %v7450, %v7418
      %v7484 = vpack.c.bf16 %v7451, %v7419
      %v7485 = vpack.c.bf16 %v7452, %v7420
      %v7486 = vpack.c.bf16 %v7453, %v7421
      %v7487 = vpack.c.bf16 %v7454, %v7422
      %v7488 = vpack.c.bf16 %v7455, %v7423
      %v7489 = vpack.c.bf16 %v7456, %v7424
      %v7490 = vpack.c.bf16 %v7457, %v7425
      %v7491 = vpack.c.bf16 %v7458, %v7426
      %v7492 = vpack.c.bf16 %v7459, %v7427
      %v7493 = vpack.c.bf16 %v7460, %v7428
      %v7494 = vpack.c.bf16 %v7461, %v7429
      %v7495 = vpack.c.bf16 %v7462, %v7430
      %v7496 = vpack.c.bf16 %v7463, %v7431
      %v7497 = vpack.c.bf16 %v7464, %v7432
      %v7498 = vpack.c.bf16 %v7465, %v7433
      %v7499 = vpack.c.bf16 %v7466, %v7434
      %v7500 = vpack.c.bf16 %v7467, %v7435
      %v7501 = vld [vmem:[%s6] sm:$0xff]
      %7503 = vset.pattern.permute.xlu0 0
      %7504 = vperm.xlu0 %7503, %v7501
      %v7505 = vpop.permute.xlu0 %7504
      %vm7507 = vcmask 130048
      %v7509 = vsel %vm7507, %v7468, 0
      %7511 = vmatpush.bf16.msra.mxu0 0
      %7512 = vmatpush.bf16.msra.mxu0 0
      %7513 = vmatpush.bf16.msra.mxu0 0
      %7514 = vmatpush.bf16.msra.mxu0 0
      %7515 = vmatpush.bf16.msra.mxu0 0
      %7516 = vmatpush.bf16.msra.mxu0 0
      %7517 = vmatpush.bf16.msra.mxu0 0
      %7518 = vmatpush.bf16.msra.mxu0 %v7469
      %7519 = vmatmul.bf16.gmra.mxu0 %v7509
      %v7520 = vpop.f32.mrf.mxu0
      %v7521 = vadd.f32 %v7505, %v7520
      %v7522 = vpop.f32.mrf.mxu0
      %7523 = vdwg.mxu0
      %7524 = vmatpush.bf16.msra.mxu0 0
      %7525 = vmatpush.bf16.msra.mxu0 0
      %7526 = vmatpush.bf16.msra.mxu0 0
      %7527 = vmatpush.bf16.msra.mxu0 0
      %7528 = vmatpush.bf16.msra.mxu0 0
      %7529 = vmatpush.bf16.msra.mxu0 0
      %7530 = vmatpush.bf16.msra.mxu0 0
      %7531 = vmatpush.bf16.msra.mxu0 %v7470
      %7532 = vmatmul.bf16.gmra.mxu0 %v7509
      %v7533 = vpop.f32.mrf.mxu0
      %v7534 = vadd.f32 %v7505, %v7533
      %v7535 = vpop.f32.mrf.mxu0
      %7536 = vdwg.mxu0
      %7537 = vmatpush.bf16.msra.mxu0 0
      %7538 = vmatpush.bf16.msra.mxu0 0
      %7539 = vmatpush.bf16.msra.mxu0 0
      %7540 = vmatpush.bf16.msra.mxu0 0
      %7541 = vmatpush.bf16.msra.mxu0 0
      %7542 = vmatpush.bf16.msra.mxu0 0
      %7543 = vmatpush.bf16.msra.mxu0 0
      %7544 = vmatpush.bf16.msra.mxu0 %v7471
      %7545 = vmatmul.bf16.gmra.mxu0 %v7509
      %v7546 = vpop.f32.mrf.mxu0
      %v7547 = vadd.f32 %v7505, %v7546
      %v7548 = vpop.f32.mrf.mxu0
      %7549 = vdwg.mxu0
      %7550 = vmatpush.bf16.msra.mxu0 0
      %7551 = vmatpush.bf16.msra.mxu0 0
      %7552 = vmatpush.bf16.msra.mxu0 0
      %7553 = vmatpush.bf16.msra.mxu0 0
      %7554 = vmatpush.bf16.msra.mxu0 0
      %7555 = vmatpush.bf16.msra.mxu0 0
      %7556 = vmatpush.bf16.msra.mxu0 0
      %7557 = vmatpush.bf16.msra.mxu0 %v7472
      %7558 = vmatmul.bf16.gmra.mxu0 %v7509
      %v7559 = vpop.f32.mrf.mxu0
      %v7560 = vadd.f32 %v7505, %v7559
      %v7561 = vpop.f32.mrf.mxu0
      %7562 = vdwg.mxu0
      %7563 = vmatpush.bf16.msra.mxu0 0
      %7564 = vmatpush.bf16.msra.mxu0 0
      %7565 = vmatpush.bf16.msra.mxu0 0
      %7566 = vmatpush.bf16.msra.mxu0 0
      %7567 = vmatpush.bf16.msra.mxu0 0
      %7568 = vmatpush.bf16.msra.mxu0 0
      %7569 = vmatpush.bf16.msra.mxu0 0
      %7570 = vmatpush.bf16.msra.mxu0 %v7473
      %7571 = vmatmul.bf16.gmra.mxu0 %v7509
      %v7572 = vpop.f32.mrf.mxu0
      %v7573 = vadd.f32 %v7505, %v7572
      %v7574 = vpop.f32.mrf.mxu0
      %7575 = vdwg.mxu0
      %7576 = vmatpush.bf16.msra.mxu0 0
      %7577 = vmatpush.bf16.msra.mxu0 0
      %7578 = vmatpush.bf16.msra.mxu0 0
      %7579 = vmatpush.bf16.msra.mxu0 0
      %7580 = vmatpush.bf16.msra.mxu0 0
      %7581 = vmatpush.bf16.msra.mxu0 0
      %7582 = vmatpush.bf16.msra.mxu0 0
      %7583 = vmatpush.bf16.msra.mxu0 %v7474
      %7584 = vmatmul.bf16.gmra.mxu0 %v7509
      %v7585 = vpop.f32.mrf.mxu0
      %v7586 = vadd.f32 %v7505, %v7585
      %v7587 = vpop.f32.mrf.mxu0
      %7588 = vdwg.mxu0
      %7589 = vmatpush.bf16.msra.mxu0 0
      %7590 = vmatpush.bf16.msra.mxu0 0
      %7591 = vmatpush.bf16.msra.mxu0 0
      %7592 = vmatpush.bf16.msra.mxu0 0
      %7593 = vmatpush.bf16.msra.mxu0 0
      %7594 = vmatpush.bf16.msra.mxu0 0
      %7595 = vmatpush.bf16.msra.mxu0 0
      %7596 = vmatpush.bf16.msra.mxu0 %v7475
      %7597 = vmatmul.bf16.gmra.mxu0 %v7509
      %v7598 = vpop.f32.mrf.mxu0
      %v7599 = vadd.f32 %v7505, %v7598
      %v7600 = vpop.f32.mrf.mxu0
      %7601 = vdwg.mxu0
      %7602 = vmatpush.bf16.msra.mxu0 0
      %7603 = vmatpush.bf16.msra.mxu0 0
      %7604 = vmatpush.bf16.msra.mxu0 0
      %7605 = vmatpush.bf16.msra.mxu0 0
      %7606 = vmatpush.bf16.msra.mxu0 0
      %7607 = vmatpush.bf16.msra.mxu0 0
      %7608 = vmatpush.bf16.msra.mxu0 0
      %7609 = vmatpush.bf16.msra.mxu0 %v7476
      %7610 = vmatmul.bf16.gmra.mxu0 %v7509
      %v7611 = vpop.f32.mrf.mxu0
      %v7612 = vadd.f32 %v7505, %v7611
      %v7613 = vpop.f32.mrf.mxu0
      %7614 = vdwg.mxu0
      %7615 = vmatpush.bf16.msra.mxu0 0
      %7616 = vmatpush.bf16.msra.mxu0 0
      %7617 = vmatpush.bf16.msra.mxu0 0
      %7618 = vmatpush.bf16.msra.mxu0 0
      %7619 = vmatpush.bf16.msra.mxu0 0
      %7620 = vmatpush.bf16.msra.mxu0 0
      %7621 = vmatpush.bf16.msra.mxu0 0
      %7622 = vmatpush.bf16.msra.mxu0 %v7477
      %7623 = vmatmul.bf16.gmra.mxu0 %v7509
      %v7624 = vpop.f32.mrf.mxu0
      %v7625 = vadd.f32 %v7505, %v7624
      %v7626 = vpop.f32.mrf.mxu0
      %7627 = vdwg.mxu0
      %7628 = vmatpush.bf16.msra.mxu0 0
      %7629 = vmatpush.bf16.msra.mxu0 0
      %7630 = vmatpush.bf16.msra.mxu0 0
      %7631 = vmatpush.bf16.msra.mxu0 0
      %7632 = vmatpush.bf16.msra.mxu0 0
      %7633 = vmatpush.bf16.msra.mxu0 0
      %7634 = vmatpush.bf16.msra.mxu0 0
      %7635 = vmatpush.bf16.msra.mxu0 %v7478
      %7636 = vmatmul.bf16.gmra.mxu0 %v7509
      %v7637 = vpop.f32.mrf.mxu0
      %v7638 = vadd.f32 %v7505, %v7637
      %v7639 = vpop.f32.mrf.mxu0
      %7640 = vdwg.mxu0
      %7641 = vmatpush.bf16.msra.mxu0 0
      %7642 = vmatpush.bf16.msra.mxu0 0
      %7643 = vmatpush.bf16.msra.mxu0 0
      %7644 = vmatpush.bf16.msra.mxu0 0
      %7645 = vmatpush.bf16.msra.mxu0 0
      %7646 = vmatpush.bf16.msra.mxu0 0
      %7647 = vmatpush.bf16.msra.mxu0 0
      %7648 = vmatpush.bf16.msra.mxu0 %v7479
      %7649 = vmatmul.bf16.gmra.mxu0 %v7509
      %v7650 = vpop.f32.mrf.mxu0
      %v7651 = vadd.f32 %v7505, %v7650
      %v7652 = vpop.f32.mrf.mxu0
      %7653 = vdwg.mxu0
      %7654 = vmatpush.bf16.msra.mxu0 0
      %7655 = vmatpush.bf16.msra.mxu0 0
      %7656 = vmatpush.bf16.msra.mxu0 0
      %7657 = vmatpush.bf16.msra.mxu0 0
      %7658 = vmatpush.bf16.msra.mxu0 0
      %7659 = vmatpush.bf16.msra.mxu0 0
      %7660 = vmatpush.bf16.msra.mxu0 0
      %7661 = vmatpush.bf16.msra.mxu0 %v7480
      %7662 = vmatmul.bf16.gmra.mxu0 %v7509
      %v7663 = vpop.f32.mrf.mxu0
      %v7664 = vadd.f32 %v7505, %v7663
      %v7665 = vpop.f32.mrf.mxu0
      %7666 = vdwg.mxu0
      %7667 = vmatpush.bf16.msra.mxu0 0
      %7668 = vmatpush.bf16.msra.mxu0 0
      %7669 = vmatpush.bf16.msra.mxu0 0
      %7670 = vmatpush.bf16.msra.mxu0 0
      %7671 = vmatpush.bf16.msra.mxu0 0
      %7672 = vmatpush.bf16.msra.mxu0 0
      %7673 = vmatpush.bf16.msra.mxu0 0
      %7674 = vmatpush.bf16.msra.mxu0 %v7481
      %7675 = vmatmul.bf16.gmra.mxu0 %v7509
      %v7676 = vpop.f32.mrf.mxu0
      %v7677 = vadd.f32 %v7505, %v7676
      %v7678 = vpop.f32.mrf.mxu0
      %7679 = vdwg.mxu0
      %7680 = vmatpush.bf16.msra.mxu0 0
      %7681 = vmatpush.bf16.msra.mxu0 0
      %7682 = vmatpush.bf16.msra.mxu0 0
      %7683 = vmatpush.bf16.msra.mxu0 0
      %7684 = vmatpush.bf16.msra.mxu0 0
      %7685 = vmatpush.bf16.msra.mxu0 0
      %7686 = vmatpush.bf16.msra.mxu0 0
      %7687 = vmatpush.bf16.msra.mxu0 %v7482
      %7688 = vmatmul.bf16.gmra.mxu0 %v7509
      %v7689 = vpop.f32.mrf.mxu0
      %v7690 = vadd.f32 %v7505, %v7689
      %v7691 = vpop.f32.mrf.mxu0
      %7692 = vdwg.mxu0
      %7693 = vmatpush.bf16.msra.mxu0 0
      %7694 = vmatpush.bf16.msra.mxu0 0
      %7695 = vmatpush.bf16.msra.mxu0 0
      %7696 = vmatpush.bf16.msra.mxu0 0
      %7697 = vmatpush.bf16.msra.mxu0 0
      %7698 = vmatpush.bf16.msra.mxu0 0
      %7699 = vmatpush.bf16.msra.mxu0 0
      %7700 = vmatpush.bf16.msra.mxu0 %v7483
      %7701 = vmatmul.bf16.gmra.mxu0 %v7509
      %v7702 = vpop.f32.mrf.mxu0
      %v7703 = vadd.f32 %v7505, %v7702
      %v7704 = vpop.f32.mrf.mxu0
      %7705 = vdwg.mxu0
      %7706 = vmatpush.bf16.msra.mxu0 0
      %7707 = vmatpush.bf16.msra.mxu0 0
      %7708 = vmatpush.bf16.msra.mxu0 0
      %7709 = vmatpush.bf16.msra.mxu0 0
      %7710 = vmatpush.bf16.msra.mxu0 0
      %7711 = vmatpush.bf16.msra.mxu0 0
      %7712 = vmatpush.bf16.msra.mxu0 0
      %7713 = vmatpush.bf16.msra.mxu0 %v7484
      %7714 = vmatmul.bf16.gmra.mxu0 %v7509
      %v7715 = vpop.f32.mrf.mxu0
      %v7716 = vadd.f32 %v7505, %v7715
      %v7717 = vpop.f32.mrf.mxu0
      %7718 = vdwg.mxu0
      %7719 = vmatpush.bf16.msra.mxu0 0
      %7720 = vmatpush.bf16.msra.mxu0 0
      %7721 = vmatpush.bf16.msra.mxu0 0
      %7722 = vmatpush.bf16.msra.mxu0 0
      %7723 = vmatpush.bf16.msra.mxu0 0
      %7724 = vmatpush.bf16.msra.mxu0 0
      %7725 = vmatpush.bf16.msra.mxu0 0
      %7726 = vmatpush.bf16.msra.mxu0 %v7485
      %7727 = vmatmul.bf16.gmra.mxu0 %v7509
      %v7728 = vpop.f32.mrf.mxu0
      %v7729 = vadd.f32 %v7505, %v7728
      %v7730 = vpop.f32.mrf.mxu0
      %7731 = vdwg.mxu0
      %7732 = vmatpush.bf16.msra.mxu0 0
      %7733 = vmatpush.bf16.msra.mxu0 0
      %7734 = vmatpush.bf16.msra.mxu0 0
      %7735 = vmatpush.bf16.msra.mxu0 0
      %7736 = vmatpush.bf16.msra.mxu0 0
      %7737 = vmatpush.bf16.msra.mxu0 0
      %7738 = vmatpush.bf16.msra.mxu0 0
      %7739 = vmatpush.bf16.msra.mxu0 %v7486
      %7740 = vmatmul.bf16.gmra.mxu0 %v7509
      %v7741 = vpop.f32.mrf.mxu0
      %v7742 = vadd.f32 %v7505, %v7741
      %v7743 = vpop.f32.mrf.mxu0
      %7744 = vdwg.mxu0
      %7745 = vmatpush.bf16.msra.mxu0 0
      %7746 = vmatpush.bf16.msra.mxu0 0
      %7747 = vmatpush.bf16.msra.mxu0 0
      %7748 = vmatpush.bf16.msra.mxu0 0
      %7749 = vmatpush.bf16.msra.mxu0 0
      %7750 = vmatpush.bf16.msra.mxu0 0
      %7751 = vmatpush.bf16.msra.mxu0 0
      %7752 = vmatpush.bf16.msra.mxu0 %v7487
      %7753 = vmatmul.bf16.gmra.mxu0 %v7509
      %v7754 = vpop.f32.mrf.mxu0
      %v7755 = vadd.f32 %v7505, %v7754
      %v7756 = vpop.f32.mrf.mxu0
      %7757 = vdwg.mxu0
      %7758 = vmatpush.bf16.msra.mxu0 0
      %7759 = vmatpush.bf16.msra.mxu0 0
      %7760 = vmatpush.bf16.msra.mxu0 0
      %7761 = vmatpush.bf16.msra.mxu0 0
      %7762 = vmatpush.bf16.msra.mxu0 0
      %7763 = vmatpush.bf16.msra.mxu0 0
      %7764 = vmatpush.bf16.msra.mxu0 0
      %7765 = vmatpush.bf16.msra.mxu0 %v7488
      %7766 = vmatmul.bf16.gmra.mxu0 %v7509
      %v7767 = vpop.f32.mrf.mxu0
      %v7768 = vadd.f32 %v7505, %v7767
      %v7769 = vpop.f32.mrf.mxu0
      %7770 = vdwg.mxu0
      %7771 = vmatpush.bf16.msra.mxu0 0
      %7772 = vmatpush.bf16.msra.mxu0 0
      %7773 = vmatpush.bf16.msra.mxu0 0
      %7774 = vmatpush.bf16.msra.mxu0 0
      %7775 = vmatpush.bf16.msra.mxu0 0
      %7776 = vmatpush.bf16.msra.mxu0 0
      %7777 = vmatpush.bf16.msra.mxu0 0
      %7778 = vmatpush.bf16.msra.mxu0 %v7489
      %7779 = vmatmul.bf16.gmra.mxu0 %v7509
      %v7780 = vpop.f32.mrf.mxu0
      %v7781 = vadd.f32 %v7505, %v7780
      %v7782 = vpop.f32.mrf.mxu0
      %7783 = vdwg.mxu0
      %7784 = vmatpush.bf16.msra.mxu0 0
      %7785 = vmatpush.bf16.msra.mxu0 0
      %7786 = vmatpush.bf16.msra.mxu0 0
      %7787 = vmatpush.bf16.msra.mxu0 0
      %7788 = vmatpush.bf16.msra.mxu0 0
      %7789 = vmatpush.bf16.msra.mxu0 0
      %7790 = vmatpush.bf16.msra.mxu0 0
      %7791 = vmatpush.bf16.msra.mxu0 %v7490
      %7792 = vmatmul.bf16.gmra.mxu0 %v7509
      %v7793 = vpop.f32.mrf.mxu0
      %v7794 = vadd.f32 %v7505, %v7793
      %v7795 = vpop.f32.mrf.mxu0
      %7796 = vdwg.mxu0
      %7797 = vmatpush.bf16.msra.mxu0 0
      %7798 = vmatpush.bf16.msra.mxu0 0
      %7799 = vmatpush.bf16.msra.mxu0 0
      %7800 = vmatpush.bf16.msra.mxu0 0
      %7801 = vmatpush.bf16.msra.mxu0 0
      %7802 = vmatpush.bf16.msra.mxu0 0
      %7803 = vmatpush.bf16.msra.mxu0 0
      %7804 = vmatpush.bf16.msra.mxu0 %v7491
      %7805 = vmatmul.bf16.gmra.mxu0 %v7509
      %v7806 = vpop.f32.mrf.mxu0
      %v7807 = vadd.f32 %v7505, %v7806
      %v7808 = vpop.f32.mrf.mxu0
      %7809 = vdwg.mxu0
      %7810 = vmatpush.bf16.msra.mxu0 0
      %7811 = vmatpush.bf16.msra.mxu0 0
      %7812 = vmatpush.bf16.msra.mxu0 0
      %7813 = vmatpush.bf16.msra.mxu0 0
      %7814 = vmatpush.bf16.msra.mxu0 0
      %7815 = vmatpush.bf16.msra.mxu0 0
      %7816 = vmatpush.bf16.msra.mxu0 0
      %7817 = vmatpush.bf16.msra.mxu0 %v7492
      %7818 = vmatmul.bf16.gmra.mxu0 %v7509
      %v7819 = vpop.f32.mrf.mxu0
      %v7820 = vadd.f32 %v7505, %v7819
      %v7821 = vpop.f32.mrf.mxu0
      %7822 = vdwg.mxu0
      %7823 = vmatpush.bf16.msra.mxu0 0
      %7824 = vmatpush.bf16.msra.mxu0 0
      %7825 = vmatpush.bf16.msra.mxu0 0
      %7826 = vmatpush.bf16.msra.mxu0 0
      %7827 = vmatpush.bf16.msra.mxu0 0
      %7828 = vmatpush.bf16.msra.mxu0 0
      %7829 = vmatpush.bf16.msra.mxu0 0
      %7830 = vmatpush.bf16.msra.mxu0 %v7493
      %7831 = vmatmul.bf16.gmra.mxu0 %v7509
      %v7832 = vpop.f32.mrf.mxu0
      %v7833 = vadd.f32 %v7505, %v7832
      %v7834 = vpop.f32.mrf.mxu0
      %7835 = vdwg.mxu0
      %7836 = vmatpush.bf16.msra.mxu0 0
      %7837 = vmatpush.bf16.msra.mxu0 0
      %7838 = vmatpush.bf16.msra.mxu0 0
      %7839 = vmatpush.bf16.msra.mxu0 0
      %7840 = vmatpush.bf16.msra.mxu0 0
      %7841 = vmatpush.bf16.msra.mxu0 0
      %7842 = vmatpush.bf16.msra.mxu0 0
      %7843 = vmatpush.bf16.msra.mxu0 %v7494
      %7844 = vmatmul.bf16.gmra.mxu0 %v7509
      %v7845 = vpop.f32.mrf.mxu0
      %v7846 = vadd.f32 %v7505, %v7845
      %v7847 = vpop.f32.mrf.mxu0
      %7848 = vdwg.mxu0
      %7849 = vmatpush.bf16.msra.mxu0 0
      %7850 = vmatpush.bf16.msra.mxu0 0
      %7851 = vmatpush.bf16.msra.mxu0 0
      %7852 = vmatpush.bf16.msra.mxu0 0
      %7853 = vmatpush.bf16.msra.mxu0 0
      %7854 = vmatpush.bf16.msra.mxu0 0
      %7855 = vmatpush.bf16.msra.mxu0 0
      %7856 = vmatpush.bf16.msra.mxu0 %v7495
      %7857 = vmatmul.bf16.gmra.mxu0 %v7509
      %v7858 = vpop.f32.mrf.mxu0
      %v7859 = vadd.f32 %v7505, %v7858
      %v7860 = vpop.f32.mrf.mxu0
      %7861 = vdwg.mxu0
      %7862 = vmatpush.bf16.msra.mxu0 0
      %7863 = vmatpush.bf16.msra.mxu0 0
      %7864 = vmatpush.bf16.msra.mxu0 0
      %7865 = vmatpush.bf16.msra.mxu0 0
      %7866 = vmatpush.bf16.msra.mxu0 0
      %7867 = vmatpush.bf16.msra.mxu0 0
      %7868 = vmatpush.bf16.msra.mxu0 0
      %7869 = vmatpush.bf16.msra.mxu0 %v7496
      %7870 = vmatmul.bf16.gmra.mxu0 %v7509
      %v7871 = vpop.f32.mrf.mxu0
      %v7872 = vadd.f32 %v7505, %v7871
      %v7873 = vpop.f32.mrf.mxu0
      %7874 = vdwg.mxu0
      %7875 = vmatpush.bf16.msra.mxu0 0
      %7876 = vmatpush.bf16.msra.mxu0 0
      %7877 = vmatpush.bf16.msra.mxu0 0
      %7878 = vmatpush.bf16.msra.mxu0 0
      %7879 = vmatpush.bf16.msra.mxu0 0
      %7880 = vmatpush.bf16.msra.mxu0 0
      %7881 = vmatpush.bf16.msra.mxu0 0
      %7882 = vmatpush.bf16.msra.mxu0 %v7497
      %7883 = vmatmul.bf16.gmra.mxu0 %v7509
      %v7884 = vpop.f32.mrf.mxu0
      %v7885 = vadd.f32 %v7505, %v7884
      %v7886 = vpop.f32.mrf.mxu0
      %7887 = vdwg.mxu0
      %7888 = vmatpush.bf16.msra.mxu0 0
      %7889 = vmatpush.bf16.msra.mxu0 0
      %7890 = vmatpush.bf16.msra.mxu0 0
      %7891 = vmatpush.bf16.msra.mxu0 0
      %7892 = vmatpush.bf16.msra.mxu0 0
      %7893 = vmatpush.bf16.msra.mxu0 0
      %7894 = vmatpush.bf16.msra.mxu0 0
      %7895 = vmatpush.bf16.msra.mxu0 %v7498
      %7896 = vmatmul.bf16.gmra.mxu0 %v7509
      %v7897 = vpop.f32.mrf.mxu0
      %v7898 = vadd.f32 %v7505, %v7897
      %v7899 = vpop.f32.mrf.mxu0
      %7900 = vdwg.mxu0
      %7901 = vmatpush.bf16.msra.mxu0 0
      %7902 = vmatpush.bf16.msra.mxu0 0
      %7903 = vmatpush.bf16.msra.mxu0 0
      %7904 = vmatpush.bf16.msra.mxu0 0
      %7905 = vmatpush.bf16.msra.mxu0 0
      %7906 = vmatpush.bf16.msra.mxu0 0
      %7907 = vmatpush.bf16.msra.mxu0 0
      %7908 = vmatpush.bf16.msra.mxu0 %v7499
      %7909 = vmatmul.bf16.gmra.mxu0 %v7509
      %v7910 = vpop.f32.mrf.mxu0
      %v7911 = vadd.f32 %v7505, %v7910
      %v7912 = vpop.f32.mrf.mxu0
      %7913 = vdwg.mxu0
      %7914 = vmatpush.bf16.msra.mxu0 0
      %7915 = vmatpush.bf16.msra.mxu0 0
      %7916 = vmatpush.bf16.msra.mxu0 0
      %7917 = vmatpush.bf16.msra.mxu0 0
      %7918 = vmatpush.bf16.msra.mxu0 0
      %7919 = vmatpush.bf16.msra.mxu0 0
      %7920 = vmatpush.bf16.msra.mxu0 0
      %7921 = vmatpush.bf16.msra.mxu0 %v7500
      %7922 = vmatmul.bf16.gmra.mxu0 %v7509
      %v7923 = vpop.f32.mrf.mxu0
      %v7924 = vadd.f32 %v7505, %v7923
      %v7925 = vpop.f32.mrf.mxu0
      %7926 = vdwg.mxu0
      %v7927 = vmax.f32 %v7521, 0.0
      %v7928 = vmax.f32 %v7534, 0.0
      %v7929 = vmax.f32 %v7547, 0.0
      %v7930 = vmax.f32 %v7560, 0.0
      %v7931 = vmax.f32 %v7573, 0.0
      %v7932 = vmax.f32 %v7586, 0.0
      %v7933 = vmax.f32 %v7599, 0.0
      %v7934 = vmax.f32 %v7612, 0.0
      %v7935 = vmax.f32 %v7625, 0.0
      %v7936 = vmax.f32 %v7638, 0.0
      %v7937 = vmax.f32 %v7651, 0.0
      %v7938 = vmax.f32 %v7664, 0.0
      %v7939 = vmax.f32 %v7677, 0.0
      %v7940 = vmax.f32 %v7690, 0.0
      %v7941 = vmax.f32 %v7703, 0.0
      %v7942 = vmax.f32 %v7716, 0.0
      %v7943 = vmax.f32 %v7729, 0.0
      %v7944 = vmax.f32 %v7742, 0.0
      %v7945 = vmax.f32 %v7755, 0.0
      %v7946 = vmax.f32 %v7768, 0.0
      %v7947 = vmax.f32 %v7781, 0.0
      %v7948 = vmax.f32 %v7794, 0.0
      %v7949 = vmax.f32 %v7807, 0.0
      %v7950 = vmax.f32 %v7820, 0.0
      %v7951 = vmax.f32 %v7833, 0.0
      %v7952 = vmax.f32 %v7846, 0.0
      %v7953 = vmax.f32 %v7859, 0.0
      %v7954 = vmax.f32 %v7872, 0.0
      %v7955 = vmax.f32 %v7885, 0.0
      %v7956 = vmax.f32 %v7898, 0.0
      %v7957 = vmax.f32 %v7911, 0.0
      %v7958 = vmax.f32 %v7924, 0.0
      %7959 = vst [vmem:[%s278] sm:$0xff] %v7927
      %7960 = vst [vmem:[%s278 + $0x8] sm:$0xff] %v7928
      %7961 = vst [vmem:[%s278 + $0x10] sm:$0xff] %v7929
      %7962 = vst [vmem:[%s278 + $0x18] sm:$0xff] %v7930
      %7963 = vst [vmem:[%s278 + $0x20] sm:$0xff] %v7931
      %7964 = vst [vmem:[%s278 + $0x28] sm:$0xff] %v7932
      %7965 = vst [vmem:[%s278 + $0x30] sm:$0xff] %v7933
      %7966 = vst [vmem:[%s278 + $0x38] sm:$0xff] %v7934
      %7967 = vst [vmem:[%s278 + $0x40] sm:$0xff] %v7935
      %7968 = vst [vmem:[%s278 + $0x48] sm:$0xff] %v7936
      %7969 = vst [vmem:[%s278 + $0x50] sm:$0xff] %v7937
      %7970 = vst [vmem:[%s278 + $0x58] sm:$0xff] %v7938
      %7971 = vst [vmem:[%s278 + $0x60] sm:$0xff] %v7939
      %7972 = vst [vmem:[%s278 + $0x68] sm:$0xff] %v7940
      %7973 = vst [vmem:[%s278 + $0x70] sm:$0xff] %v7941
      %7974 = vst [vmem:[%s278 + $0x78] sm:$0xff] %v7942
      %7975 = vst [vmem:[%s278 + $0x80] sm:$0xff] %v7943
      %7976 = vst [vmem:[%s278 + $0x88] sm:$0xff] %v7944
      %7977 = vst [vmem:[%s278 + $0x90] sm:$0xff] %v7945
      %7978 = vst [vmem:[%s278 + $0x98] sm:$0xff] %v7946
      %7979 = vst [vmem:[%s278 + $0xa0] sm:$0xff] %v7947
      %7980 = vst [vmem:[%s278 + $0xa8] sm:$0xff] %v7948
      %7981 = vst [vmem:[%s278 + $0xb0] sm:$0xff] %v7949
      %7982 = vst [vmem:[%s278 + $0xb8] sm:$0xff] %v7950
      %7983 = vst [vmem:[%s278 + $0xc0] sm:$0xff] %v7951
      %7984 = vst [vmem:[%s278 + $0xc8] sm:$0xff] %v7952
      %7985 = vst [vmem:[%s278 + $0xd0] sm:$0xff] %v7953
      %7986 = vst [vmem:[%s278 + $0xd8] sm:$0xff] %v7954
      %7987 = vst [vmem:[%s278 + $0xe0] sm:$0xff] %v7955
      %7988 = vst [vmem:[%s278 + $0xe8] sm:$0xff] %v7956
      %7989 = vst [vmem:[%s278 + $0xf0] sm:$0xff] %v7957
      %7990 = vst [vmem:[%s278 + $0xf8] sm:$0xff] %v7958
      %p7991 = scmp.lt.s32.totalorder %s18, 1
      %s7992 = scalar_select %p7991, %s18, 1
      %s7993 = smul.addr %s7992, 32
      %s7994 = smul.addr %s7993, 8
      %s7995 = scalar_lea.vmem %s7, %s7994
      // Predicated region
      $region49: #{visual_block_forward.1} parent=47 // pred_check
        %p7996 = pneg %p188
      $region50: #{visual_block_forward.1} parent=47 // pred_check_branch
        %7998 = sbr.rel (%p7996) target = $region52
      $region51: #{visual_block_forward.1} parent=47 // pred_region
        _
      $region52: #{visual_block_forward.1} parent=47 // pred_fallthru
        _
    $region48: #{visual_block_forward.1} parent=5 // pred_fallthru
      _
    %p7999 = scmp.le.s32.totalorder 2, %s13
    // Predicated region
    $region53: #{visual_block_forward.1} parent=5 // pred_check
      %p8000 = pneg %p7999
    $region54: #{visual_block_forward.1} parent=5 // pred_check_branch
      %8002 = sbr.rel (%p8000) target = $region56
    $region55: #{visual_block_forward.1} parent=5 // pred_region
      %s8003 = ssub.s32 %s13, 2
      // Predicated region
      $region57: #{visual_block_forward.1} parent=55 // pred_check
        %p8004 = pneg %p194
      $region58: #{visual_block_forward.1} parent=55 // pred_check_branch
        %8006 = sbr.rel (%p8004) target = $region60
      $region59: #{visual_block_forward.1} parent=55 // pred_region
        %p8007 = scmp.lt.s32.totalorder %s19, 1
        %s8008 = scalar_select %p8007, %s19, 1
        %s8009 = smul.addr %s8008, 32
        %s8010 = smul.addr %s8009, 8
        %s8011 = scalar_lea.vmem %s7, %s8010
      $region60: #{visual_block_forward.1} parent=55 // pred_fallthru
        _
    $region56: #{visual_block_forward.1} parent=5 // pred_fallthru
      _
  $region6: #{visual_block_forward.1} parent=0 // loop_footer
    %s17 = sadd.s32 1, %s13
  $region7: #{visual_block_forward.1} parent=0 // loop_footer_branch
    %12 = sbr.rel target = $region3
  $region8: #{visual_block_forward.1} parent=0 // loop_exit
    _

</llo_original>
